<compile_context>
chip_gen: v6e
topology: v6e:2x2x1
jax: 0.10.0
libtpu: 0.0.40
codegen_flags: <defaults>
</compile_context>

<pallas_src>
import random

import jax
import jax.numpy as jnp
from jax.experimental import pallas as pl
from jax.experimental.pallas import tpu as pltpu


# ------------------------------ configuration ------------------------------

class Config:
    in_vocab = 16
    out_vocab = 16
    emb_dim = 32
    hid_dim = 32
    n_layers = 2


V_PAD = 128        # lane-dense padded vocab (embedding rows / fc_out columns)


# ------------------------------- fused kernel -------------------------------

def _seq2seq_kernel(src_ref, trg_ref, tf_ref,
                    enc_emb_ref, dec_emb_ref,
                    ewx_ref, ewh_ref, eb_ref, ebh_ref,
                    dwx_ref, dwh_ref, db_ref, dbh_ref,
                    fcw_ref, fcb_ref,
                    out_ref):
    """Whole seq2seq forward in one invocation (no grid).

    src_ref/trg_ref: (T, B, 1) int32 token ids (VMEM); tf_ref: (trg_len-1,)
    int32 teacher-forcing flags (SMEM).  GRU weights are pre-fused per layer:
    wx (L, E, 4H) / wh (L, H, 4H) with column blocks [r | z | n_x | n_h],
    b (L, 1, 4H) = [b_r | b_z | b_in | 0], bh (L, 1, H) = b_hn.
    """
    trg_len, B, vpad = out_ref.shape
    src_len = src_ref.shape[0]
    L = ewx_ref.shape[0]
    H = ebh_ref.shape[2]
    f32 = jnp.float32

    # Hoisted loop invariant (JAX does not CSE broadcast_in_dim).
    col = jax.lax.broadcasted_iota(jnp.int32, (B, vpad), 1)

    def embed(ids, table_ref):
        onehot = (ids == col).astype(f32)                       # (B, V_PAD)
        return jnp.dot(onehot, table_ref[...], preferred_element_type=f32)

    def gru_stack(x, hs, wx_ref, wh_ref, b_ref, bh_ref):
        """L stacked GRU layers, fused-gate form (PyTorch GRU semantics)."""
        new_hs = []
        for l in range(L):
            h = hs[l]
            g = (jnp.dot(x, wx_ref[l], preferred_element_type=f32)
                 + jnp.dot(h, wh_ref[l], preferred_element_type=f32)
                 + b_ref[l])                                    # (B, 4H)
            r = jax.nn.sigmoid(g[:, 0:H])
            z = jax.nn.sigmoid(g[:, H:2 * H])
            n = jnp.tanh(g[:, 2 * H:3 * H] + r * (g[:, 3 * H:4 * H] + bh_ref[l]))
            h = (1.0 - z) * n + z * h
            new_hs.append(h)
            x = h
        return tuple(new_hs), x

    # -------------------------------- encoder -------------------------------
    def enc_step(t, hs):
        x = embed(src_ref[t], enc_emb_ref)
        hs, _ = gru_stack(x, hs, ewx_ref, ewh_ref, eb_ref, ebh_ref)
        return hs

    h_init = tuple(jnp.zeros((B, H), f32) for _ in range(L))
    hs = jax.lax.fori_loop(0, src_len, enc_step, h_init, unroll=True)

    # -------------------------------- decoder -------------------------------
    out_ref[0] = jnp.zeros((B, vpad), f32)          # outputs[0] stays zero

    def dec_step(i, carry):
        hs, x = carry
        hs, top = gru_stack(x, hs, dwx_ref, dwh_ref, db_ref, dbh_ref)
        # Lane-dense fc_out; padded columns carry a -1e30 bias -> never argmax.
        logits = jnp.dot(top, fcw_ref[...], preferred_element_type=f32) + fcb_ref[...]
        out_ref[i + 1] = logits
        # Greedy top-1 as a one-hot (first-max tie-break == argmax) -> embedding.
        mx = jnp.max(logits, axis=-1, keepdims=True)
        idx = jnp.min(jnp.where(logits >= mx, col, vpad), axis=-1, keepdims=True)
        top1_emb = jnp.dot((col == idx).astype(f32), dec_emb_ref[...],
                           preferred_element_type=f32)
        # Teacher-forcing select for the next step's input embedding.
        t_emb = embed(trg_ref[i + 1], dec_emb_ref)
        tf = tf_ref[i].astype(f32)
        return hs, tf * t_emb + (1.0 - tf) * top1_emb

    jax.lax.fori_loop(0, trg_len - 1, dec_step, (hs, embed(trg_ref[0], dec_emb_ref)),
                      unroll=True)


# ------------------------------ model forward -------------------------------

def _nbytes(a):
    return int(a.size) * a.dtype.itemsize


@jax.jit
def seq2seq_forward(params, src, trg, tf_flags):
    """Mirrors AINLPSeq2Seq.forward. Returns (trg_len, B, out_vocab) f32."""
    src_len, _ = src.shape
    trg_len, B = trg.shape
    V = params["fc_w"].shape[1]
    E = params["enc_emb"].shape[1]
    H = params["fc_w_pad"].shape[0]
    L = params["enc_fused"][0].shape[0]
    vpad = params["fc_w_pad"].shape[1]

    ins = [src[..., None].astype(jnp.int32),        # (src_len, B, 1)  VMEM
           trg[..., None].astype(jnp.int32),        # (trg_len, B, 1)  VMEM
           tf_flags.astype(jnp.int32),              # (trg_len-1,)     SMEM
           params["enc_emb_pad"], params["dec_emb_pad"],
           *params["enc_fused"], *params["dec_fused"],
           params["fc_w_pad"], params["fc_b_pad"]]

    in_specs = ([pl.BlockSpec(memory_space=pltpu.MemorySpace.VMEM)] * 2
                + [pl.BlockSpec(memory_space=pltpu.MemorySpace.SMEM)]
                + [pl.BlockSpec(memory_space=pltpu.MemorySpace.VMEM)] * (len(ins) - 3))

    steps = trg_len - 1
    G = 4 * H
    gru_flops = L * (2 * B * E * G + 2 * B * H * G + 12 * B * H)
    flops = int(src_len * (2 * B * vpad * E + gru_flops)
                + steps * (gru_flops + 2 * B * H * vpad + 4 * B * vpad * E + 8 * B * vpad))
    transcendentals = int((src_len + steps) * L * 3 * B * H)
    bytes_accessed = int(sum(_nbytes(x) for x in ins) + trg_len * B * vpad * 4)

    logits_pad = pl.pallas_call(
        _seq2seq_kernel,
        out_shape=jax.ShapeDtypeStruct((trg_len, B, vpad), jnp.float32),
        in_specs=in_specs,
        out_specs=pl.BlockSpec(memory_space=pltpu.MemorySpace.VMEM),
        cost_estimate=pl.CostEstimate(flops=flops, transcendentals=transcendentals,
                                      bytes_accessed=bytes_accessed),
    )(*ins)
    # Keep the un-padding slice adjacent to the call (padded cols hold -1e30 bias).
    return logits_pad[:, :, :V]


# --------------------------------- params -----------------------------------

def init_params(cfg: Config):
    # NOTE: stacked per-layer weights assume emb_dim == hid_dim (true here).
    assert cfg.emb_dim == cfg.hid_dim, "stacked per-layer GRU weights need E == H"
    E, H, L = cfg.emb_dim, cfg.hid_dim, cfg.n_layers
    key = jax.random.PRNGKey(42)

    def nxt(shape, scale=0.1):
        nonlocal key
        key, sub = jax.random.split(key)
        return scale * jax.random.normal(sub, shape, dtype=jnp.float32)

    def gru_gates():
        # per-gate layout: w_r/w_z take [x, h] stacked rows; w_in/w_hn separate.
        return dict(w_r=nxt((L, E + H, H)), w_z=nxt((L, E + H, H)),
                    w_in=nxt((L, E, H)), w_hn=nxt((L, H, H)),
                    b_r=nxt((L, 1, H)), b_z=nxt((L, 1, H)),
                    b_in=nxt((L, 1, H)), b_hn=nxt((L, 1, H)))

    def fuse(g):
        zE = jnp.zeros((L, E, H), jnp.float32)
        zH = jnp.zeros((L, H, H), jnp.float32)
        zb = jnp.zeros((L, 1, H), jnp.float32)
        wx = jnp.concatenate([g["w_r"][:, :E], g["w_z"][:, :E], g["w_in"], zE], axis=-1)
        wh = jnp.concatenate([g["w_r"][:, E:], g["w_z"][:, E:], zH, g["w_hn"]], axis=-1)
        b = jnp.concatenate([g["b_r"], g["b_z"], g["b_in"], zb], axis=-1)
        return (wx, wh, b, g["b_hn"])          # (L,E,4H), (L,H,4H), (L,1,4H), (L,1,H)

    enc_emb = nxt((cfg.in_vocab, E))
    dec_emb = nxt((cfg.out_vocab, E))
    fc_w = nxt((H, cfg.out_vocab))
    fc_b = nxt((1, cfg.out_vocab))
    enc_g, dec_g = gru_gates(), gru_gates()

    return dict(
        enc_emb=enc_emb, dec_emb=dec_emb, enc=enc_g, dec=dec_g,
        fc_w=fc_w, fc_b=fc_b,
        enc_emb_pad=jnp.zeros((V_PAD, E), jnp.float32).at[:cfg.in_vocab].set(enc_emb),
        dec_emb_pad=jnp.zeros((V_PAD, E), jnp.float32).at[:cfg.out_vocab].set(dec_emb),
        enc_fused=fuse(enc_g), dec_fused=fuse(dec_g),
        fc_w_pad=jnp.zeros((H, V_PAD), jnp.float32).at[:, :cfg.out_vocab].set(fc_w),
        fc_b_pad=jnp.full((1, V_PAD), -1e30, jnp.float32).at[:, :cfg.out_vocab].set(fc_b),
    )


# ---------------------------- pure-JAX reference ----------------------------

def _dot_hi(a, b):
    return jnp.dot(a, b, precision=jax.lax.Precision.HIGHEST)


def _gru_ref(x, h, g, l):
    xh = jnp.concatenate([x, h], axis=-1)
    r = jax.nn.sigmoid(_dot_hi(xh, g["w_r"][l]) + g["b_r"][l])
    z = jax.nn.sigmoid(_dot_hi(xh, g["w_z"][l]) + g["b_z"][l])
    n = jnp.tanh(_dot_hi(x, g["w_in"][l]) + g["b_in"][l]
                 + r * (_dot_hi(h, g["w_hn"][l]) + g["b_hn"][l]))
    return (1.0 - z) * n + z * h


def reference_forward(params, src, trg, tf_flags):
    src_len, B = src.shape
    trg_len = trg.shape[0]
    L, _, H = params["enc"]["w_hn"].shape
    V = params["dec_emb"].shape[0]

    hidden = [jnp.zeros((B, H), jnp.float32) for _ in range(L)]
    for t in range(src_len):
        x = params["enc_emb"][src[t]]
        for l in range(L):
            hidden[l] = _gru_ref(x, hidden[l], params["enc"], l)
            x = hidden[l]

    outputs = [jnp.zeros((B, V), jnp.float32)]
    inp = trg[0]
    for t in range(1, trg_len):
        x = params["dec_emb"][inp]
        for l in range(L):
            hidden[l] = _gru_ref(x, hidden[l], params["dec"], l)
            x = hidden[l]
        logits = _dot_hi(x, params["fc_w"]) + params["fc_b"]
        outputs.append(logits)
        top1 = jnp.argmax(logits, axis=1).astype(trg.dtype)
        inp = jnp.where(tf_flags[t - 1] == 1, trg[t], top1)
    return jnp.stack(outputs, axis=0)


# ----------------------------------- driver ---------------------------------

if __name__ == "__main__":
    cfg = Config()
    src_len, trg_len, batch = 8, 8, 8   # batch=8 keeps f32 sublane tiles dense

    key = jax.random.PRNGKey(0)
    k_src, k_trg = jax.random.split(key)
    src = jax.random.randint(k_src, (src_len, batch), 0, cfg.in_vocab, dtype=jnp.int32)
    trg = jax.random.randint(k_trg, (trg_len, batch), 0, cfg.out_vocab, dtype=jnp.int32)

    # TODO(synk): PyTorch re-samples teacher forcing with random.random() on every
    # forward; here the per-step 0/1 decisions are drawn host-side and passed as an
    # int32 array (so they can be re-sampled per call without re-tracing).
    teacher_forcing_ratio = 0.5
    rng = random.Random(0)
    tf_flags = jnp.array([1 if rng.random() < teacher_forcing_ratio else 0
                          for _ in range(trg_len - 1)], dtype=jnp.int32)

    params = init_params(cfg)

    out = seq2seq_forward(params, src, trg, tf_flags)
    out = jax.block_until_ready(out)

    assert out.shape == (trg_len, batch, cfg.out_vocab)
    assert out.dtype == jnp.float32

    ref = reference_forward(params, src, trg, tf_flags)
    err = float(jnp.max(jnp.abs(out - ref)))
    assert err < 5e-3, f"mismatch vs pure-JAX reference: max abs err = {err}"

    print("KERNEL_OK")
</pallas_src>

<mosaic_0001>
module attributes {stable_mosaic.version = 11 : i64} {
  func.func @_seq2seq_kernel(%arg0: memref<8x8x1xi32, #tpu.memory_space<vmem>>, %arg1: memref<8x8x1xi32, #tpu.memory_space<vmem>>, %arg2: memref<7xi32, #tpu.memory_space<smem>>, %arg3: memref<128x32xf32, #tpu.memory_space<vmem>>, %arg4: memref<128x32xf32, #tpu.memory_space<vmem>>, %arg5: memref<2x32x128xf32, #tpu.memory_space<vmem>>, %arg6: memref<2x32x128xf32, #tpu.memory_space<vmem>>, %arg7: memref<2x1x128xf32, #tpu.memory_space<vmem>>, %arg8: memref<2x1x32xf32, #tpu.memory_space<vmem>>, %arg9: memref<2x32x128xf32, #tpu.memory_space<vmem>>, %arg10: memref<2x32x128xf32, #tpu.memory_space<vmem>>, %arg11: memref<2x1x128xf32, #tpu.memory_space<vmem>>, %arg12: memref<2x1x32xf32, #tpu.memory_space<vmem>>, %arg13: memref<32x128xf32, #tpu.memory_space<vmem>>, %arg14: memref<1x128xf32, #tpu.memory_space<vmem>>, %arg15: memref<8x8x128xf32, #tpu.memory_space<vmem>>) attributes {dimension_semantics = [], scalar_prefetch = 0 : i64, scratch_operands = 0 : i64, tpu.core_type = #tpu.core_type<tc>} {
    %0 = tpu.iota {dimensions = array<i32: 1>} : vector<8x128xi32>
    %cst = arith.constant 0.000000e+00 : f32
    %1 = vector.broadcast %cst : f32 to vector<8x32xf32>
    %cst_0 = arith.constant 0.000000e+00 : f32
    %2 = vector.broadcast %cst_0 : f32 to vector<8x32xf32>
    %c0_i32 = arith.constant 0 : i32
    %3 = arith.index_cast %c0_i32 : i32 to index
    %c0 = arith.constant 0 : index
    %c0_1 = arith.constant 0 : index
    %4 = vector.load %arg0[%3, %c0, %c0_1] : memref<8x8x1xi32, #tpu.memory_space<vmem>>, vector<1x8x1xi32>
    %5 = vector.shape_cast %4 : vector<1x8x1xi32> to vector<8x1xi32>
    %6 = vector.broadcast %5 : vector<8x1xi32> to vector<8x128xi32>
    %7 = arith.cmpi eq, %6, %0 : vector<8x128xi32>
    %8 = arith.extui %7 : vector<8x128xi1> to vector<8x128xi32>
    %9 = arith.sitofp %8 : vector<8x128xi32> to vector<8x128xf32>
    %c0_2 = arith.constant 0 : index
    %c0_3 = arith.constant 0 : index
    %10 = vector.load %arg3[%c0_2, %c0_3] : memref<128x32xf32, #tpu.memory_space<vmem>>, vector<128x32xf32>
    %cst_4 = arith.constant dense<0.000000e+00> : vector<8x32xf32>
    %11 = tpu.matmul %9, %10, %cst_4 {dimension_numbers = #tpu.dot_dimension_numbers<[1], [0], [0], [1], [0, 0, 1, 1], [], []>} : vector<8x128xf32>, vector<128x32xf32>, vector<8x32xf32> -> vector<8x32xf32>
    %c0_5 = arith.constant 0 : index
    %c0_6 = arith.constant 0 : index
    %c0_7 = arith.constant 0 : index
    %12 = vector.load %arg5[%c0_5, %c0_6, %c0_7] : memref<2x32x128xf32, #tpu.memory_space<vmem>>, vector<1x32x128xf32>
    %13 = vector.shape_cast %12 : vector<1x32x128xf32> to vector<32x128xf32>
    %cst_8 = arith.constant dense<0.000000e+00> : vector<8x128xf32>
    %14 = tpu.matmul %11, %13, %cst_8 {dimension_numbers = #tpu.dot_dimension_numbers<[1], [0], [0], [1], [0, 0, 1, 1], [], []>} : vector<8x32xf32>, vector<32x128xf32>, vector<8x128xf32> -> vector<8x128xf32>
    %c0_9 = arith.constant 0 : index
    %c0_10 = arith.constant 0 : index
    %c0_11 = arith.constant 0 : index
    %15 = vector.load %arg6[%c0_9, %c0_10, %c0_11] : memref<2x32x128xf32, #tpu.memory_space<vmem>>, vector<1x32x128xf32>
    %16 = vector.shape_cast %15 : vector<1x32x128xf32> to vector<32x128xf32>
    %cst_12 = arith.constant dense<0.000000e+00> : vector<8x128xf32>
    %17 = tpu.matmul %1, %16, %cst_12 {dimension_numbers = #tpu.dot_dimension_numbers<[1], [0], [0], [1], [0, 0, 1, 1], [], []>} : vector<8x32xf32>, vector<32x128xf32>, vector<8x128xf32> -> vector<8x128xf32>
    %18 = arith.addf %14, %17 : vector<8x128xf32>
    %c0_13 = arith.constant 0 : index
    %c0_14 = arith.constant 0 : index
    %c0_15 = arith.constant 0 : index
    %19 = vector.load %arg7[%c0_13, %c0_14, %c0_15] : memref<2x1x128xf32, #tpu.memory_space<vmem>>, vector<1x1x128xf32>
    %20 = vector.shape_cast %19 : vector<1x1x128xf32> to vector<1x128xf32>
    %21 = vector.broadcast %20 : vector<1x128xf32> to vector<8x128xf32>
    %22 = arith.addf %18, %21 : vector<8x128xf32>
    %23 = vector.extract_strided_slice %22 {offsets = [0, 0], sizes = [8, 32], strides = [1, 1]} : vector<8x128xf32> to vector<8x32xf32>
    %24 = arith.negf %23 : vector<8x32xf32>
    %25 = math.exp %24 : vector<8x32xf32>
    %cst_16 = arith.constant 1.000000e+00 : f32
    %26 = vector.broadcast %cst_16 : f32 to vector<8x32xf32>
    %27 = arith.addf %26, %25 : vector<8x32xf32>
    %28 = arith.divf %26, %27 : vector<8x32xf32>
    %29 = vector.extract_strided_slice %22 {offsets = [0, 32], sizes = [8, 32], strides = [1, 1]} : vector<8x128xf32> to vector<8x32xf32>
    %30 = arith.negf %29 : vector<8x32xf32>
    %31 = math.exp %30 : vector<8x32xf32>
    %cst_17 = arith.constant 1.000000e+00 : f32
    %32 = vector.broadcast %cst_17 : f32 to vector<8x32xf32>
    %33 = arith.addf %32, %31 : vector<8x32xf32>
    %34 = arith.divf %32, %33 : vector<8x32xf32>
    %35 = vector.extract_strided_slice %22 {offsets = [0, 64], sizes = [8, 32], strides = [1, 1]} : vector<8x128xf32> to vector<8x32xf32>
    %36 = vector.extract_strided_slice %22 {offsets = [0, 96], sizes = [8, 32], strides = [1, 1]} : vector<8x128xf32> to vector<8x32xf32>
    %c0_18 = arith.constant 0 : index
    %c0_19 = arith.constant 0 : index
    %c0_20 = arith.constant 0 : index
    %37 = vector.load %arg8[%c0_18, %c0_19, %c0_20] : memref<2x1x32xf32, #tpu.memory_space<vmem>>, vector<1x1x32xf32>
    %38 = vector.shape_cast %37 : vector<1x1x32xf32> to vector<1x32xf32>
    %39 = vector.broadcast %38 : vector<1x32xf32> to vector<8x32xf32>
    %40 = arith.addf %36, %39 : vector<8x32xf32>
    %41 = arith.mulf %28, %40 : vector<8x32xf32>
    %42 = arith.addf %35, %41 : vector<8x32xf32>
    %43 = math.tanh %42 : vector<8x32xf32>
    %cst_21 = arith.constant 1.000000e+00 : f32
    %44 = vector.broadcast %cst_21 : f32 to vector<8x32xf32>
    %45 = arith.subf %44, %34 : vector<8x32xf32>
    %46 = arith.mulf %45, %43 : vector<8x32xf32>
    %47 = arith.mulf %34, %1 : vector<8x32xf32>
    %48 = arith.addf %46, %47 : vector<8x32xf32>
    %c1 = arith.constant 1 : index
    %c0_22 = arith.constant 0 : index
    %c0_23 = arith.constant 0 : index
    %49 = vector.load %arg5[%c1, %c0_22, %c0_23] : memref<2x32x128xf32, #tpu.memory_space<vmem>>, vector<1x32x128xf32>
    %50 = vector.shape_cast %49 : vector<1x32x128xf32> to vector<32x128xf32>
    %cst_24 = arith.constant dense<0.000000e+00> : vector<8x128xf32>
    %51 = tpu.matmul %48, %50, %cst_24 {dimension_numbers = #tpu.dot_dimension_numbers<[1], [0], [0], [1], [0, 0, 1, 1], [], []>} : vector<8x32xf32>, vector<32x128xf32>, vector<8x128xf32> -> vector<8x128xf32>
    %c1_25 = arith.constant 1 : index
    %c0_26 = arith.constant 0 : index
    %c0_27 = arith.constant 0 : index
    %52 = vector.load %arg6[%c1_25, %c0_26, %c0_27] : memref<2x32x128xf32, #tpu.memory_space<vmem>>, vector<1x32x128xf32>
    %53 = vector.shape_cast %52 : vector<1x32x128xf32> to vector<32x128xf32>
    %cst_28 = arith.constant dense<0.000000e+00> : vector<8x128xf32>
    %54 = tpu.matmul %2, %53, %cst_28 {dimension_numbers = #tpu.dot_dimension_numbers<[1], [0], [0], [1], [0, 0, 1, 1], [], []>} : vector<8x32xf32>, vector<32x128xf32>, vector<8x128xf32> -> vector<8x128xf32>
    %55 = arith.addf %51, %54 : vector<8x128xf32>
    %c1_29 = arith.constant 1 : index
    %c0_30 = arith.constant 0 : index
    %c0_31 = arith.constant 0 : index
    %56 = vector.load %arg7[%c1_29, %c0_30, %c0_31] : memref<2x1x128xf32, #tpu.memory_space<vmem>>, vector<1x1x128xf32>
    %57 = vector.shape_cast %56 : vector<1x1x128xf32> to vector<1x128xf32>
    %58 = vector.broadcast %57 : vector<1x128xf32> to vector<8x128xf32>
    %59 = arith.addf %55, %58 : vector<8x128xf32>
    %60 = vector.extract_strided_slice %59 {offsets = [0, 0], sizes = [8, 32], strides = [1, 1]} : vector<8x128xf32> to vector<8x32xf32>
    %61 = arith.negf %60 : vector<8x32xf32>
    %62 = math.exp %61 : vector<8x32xf32>
    %cst_32 = arith.constant 1.000000e+00 : f32
    %63 = vector.broadcast %cst_32 : f32 to vector<8x32xf32>
    %64 = arith.addf %63, %62 : vector<8x32xf32>
    %65 = arith.divf %63, %64 : vector<8x32xf32>
    %66 = vector.extract_strided_slice %59 {offsets = [0, 32], sizes = [8, 32], strides = [1, 1]} : vector<8x128xf32> to vector<8x32xf32>
    %67 = arith.negf %66 : vector<8x32xf32>
    %68 = math.exp %67 : vector<8x32xf32>
    %cst_33 = arith.constant 1.000000e+00 : f32
    %69 = vector.broadcast %cst_33 : f32 to vector<8x32xf32>
    %70 = arith.addf %69, %68 : vector<8x32xf32>
    %71 = arith.divf %69, %70 : vector<8x32xf32>
    %72 = vector.extract_strided_slice %59 {offsets = [0, 64], sizes = [8, 32], strides = [1, 1]} : vector<8x128xf32> to vector<8x32xf32>
    %73 = vector.extract_strided_slice %59 {offsets = [0, 96], sizes = [8, 32], strides = [1, 1]} : vector<8x128xf32> to vector<8x32xf32>
    %c1_34 = arith.constant 1 : index
    %c0_35 = arith.constant 0 : index
    %c0_36 = arith.constant 0 : index
    %74 = vector.load %arg8[%c1_34, %c0_35, %c0_36] : memref<2x1x32xf32, #tpu.memory_space<vmem>>, vector<1x1x32xf32>
    %75 = vector.shape_cast %74 : vector<1x1x32xf32> to vector<1x32xf32>
    %76 = vector.broadcast %75 : vector<1x32xf32> to vector<8x32xf32>
    %77 = arith.addf %73, %76 : vector<8x32xf32>
    %78 = arith.mulf %65, %77 : vector<8x32xf32>
    %79 = arith.addf %72, %78 : vector<8x32xf32>
    %80 = math.tanh %79 : vector<8x32xf32>
    %cst_37 = arith.constant 1.000000e+00 : f32
    %81 = vector.broadcast %cst_37 : f32 to vector<8x32xf32>
    %82 = arith.subf %81, %71 : vector<8x32xf32>
    %83 = arith.mulf %82, %80 : vector<8x32xf32>
    %84 = arith.mulf %71, %2 : vector<8x32xf32>
    %85 = arith.addf %83, %84 : vector<8x32xf32>
    %c1_i32 = arith.constant 1 : i32
    %86 = arith.index_cast %c1_i32 : i32 to index
    %c0_38 = arith.constant 0 : index
    %c0_39 = arith.constant 0 : index
    %87 = vector.load %arg0[%86, %c0_38, %c0_39] : memref<8x8x1xi32, #tpu.memory_space<vmem>>, vector<1x8x1xi32>
    %88 = vector.shape_cast %87 : vector<1x8x1xi32> to vector<8x1xi32>
    %89 = vector.broadcast %88 : vector<8x1xi32> to vector<8x128xi32>
    %90 = arith.cmpi eq, %89, %0 : vector<8x128xi32>
    %91 = arith.extui %90 : vector<8x128xi1> to vector<8x128xi32>
    %92 = arith.sitofp %91 : vector<8x128xi32> to vector<8x128xf32>
    %c0_40 = arith.constant 0 : index
    %c0_41 = arith.constant 0 : index
    %93 = vector.load %arg3[%c0_40, %c0_41] : memref<128x32xf32, #tpu.memory_space<vmem>>, vector<128x32xf32>
    %cst_42 = arith.constant dense<0.000000e+00> : vector<8x32xf32>
    %94 = tpu.matmul %92, %93, %cst_42 {dimension_numbers = #tpu.dot_dimension_numbers<[1], [0], [0], [1], [0, 0, 1, 1], [], []>} : vector<8x128xf32>, vector<128x32xf32>, vector<8x32xf32> -> vector<8x32xf32>
    %c0_43 = arith.constant 0 : index
    %c0_44 = arith.constant 0 : index
    %c0_45 = arith.constant 0 : index
    %95 = vector.load %arg5[%c0_43, %c0_44, %c0_45] : memref<2x32x128xf32, #tpu.memory_space<vmem>>, vector<1x32x128xf32>
    %96 = vector.shape_cast %95 : vector<1x32x128xf32> to vector<32x128xf32>
    %cst_46 = arith.constant dense<0.000000e+00> : vector<8x128xf32>
    %97 = tpu.matmul %94, %96, %cst_46 {dimension_numbers = #tpu.dot_dimension_numbers<[1], [0], [0], [1], [0, 0, 1, 1], [], []>} : vector<8x32xf32>, vector<32x128xf32>, vector<8x128xf32> -> vector<8x128xf32>
    %c0_47 = arith.constant 0 : index
    %c0_48 = arith.constant 0 : index
    %c0_49 = arith.constant 0 : index
    %98 = vector.load %arg6[%c0_47, %c0_48, %c0_49] : memref<2x32x128xf32, #tpu.memory_space<vmem>>, vector<1x32x128xf32>
    %99 = vector.shape_cast %98 : vector<1x32x128xf32> to vector<32x128xf32>
    %cst_50 = arith.constant dense<0.000000e+00> : vector<8x128xf32>
    %100 = tpu.matmul %48, %99, %cst_50 {dimension_numbers = #tpu.dot_dimension_numbers<[1], [0], [0], [1], [0, 0, 1, 1], [], []>} : vector<8x32xf32>, vector<32x128xf32>, vector<8x128xf32> -> vector<8x128xf32>
    %101 = arith.addf %97, %100 : vector<8x128xf32>
    %c0_51 = arith.constant 0 : index
    %c0_52 = arith.constant 0 : index
    %c0_53 = arith.constant 0 : index
    %102 = vector.load %arg7[%c0_51, %c0_52, %c0_53] : memref<2x1x128xf32, #tpu.memory_space<vmem>>, vector<1x1x128xf32>
    %103 = vector.shape_cast %102 : vector<1x1x128xf32> to vector<1x128xf32>
    %104 = vector.broadcast %103 : vector<1x128xf32> to vector<8x128xf32>
    %105 = arith.addf %101, %104 : vector<8x128xf32>
    %106 = vector.extract_strided_slice %105 {offsets = [0, 0], sizes = [8, 32], strides = [1, 1]} : vector<8x128xf32> to vector<8x32xf32>
    %107 = arith.negf %106 : vector<8x32xf32>
    %108 = math.exp %107 : vector<8x32xf32>
    %cst_54 = arith.constant 1.000000e+00 : f32
    %109 = vector.broadcast %cst_54 : f32 to vector<8x32xf32>
    %110 = arith.addf %109, %108 : vector<8x32xf32>
    %111 = arith.divf %109, %110 : vector<8x32xf32>
    %112 = vector.extract_strided_slice %105 {offsets = [0, 32], sizes = [8, 32], strides = [1, 1]} : vector<8x128xf32> to vector<8x32xf32>
    %113 = arith.negf %112 : vector<8x32xf32>
    %114 = math.exp %113 : vector<8x32xf32>
    %cst_55 = arith.constant 1.000000e+00 : f32
    %115 = vector.broadcast %cst_55 : f32 to vector<8x32xf32>
    %116 = arith.addf %115, %114 : vector<8x32xf32>
    %117 = arith.divf %115, %116 : vector<8x32xf32>
    %118 = vector.extract_strided_slice %105 {offsets = [0, 64], sizes = [8, 32], strides = [1, 1]} : vector<8x128xf32> to vector<8x32xf32>
    %119 = vector.extract_strided_slice %105 {offsets = [0, 96], sizes = [8, 32], strides = [1, 1]} : vector<8x128xf32> to vector<8x32xf32>
    %c0_56 = arith.constant 0 : index
    %c0_57 = arith.constant 0 : index
    %c0_58 = arith.constant 0 : index
    %120 = vector.load %arg8[%c0_56, %c0_57, %c0_58] : memref<2x1x32xf32, #tpu.memory_space<vmem>>, vector<1x1x32xf32>
    %121 = vector.shape_cast %120 : vector<1x1x32xf32> to vector<1x32xf32>
    %122 = vector.broadcast %121 : vector<1x32xf32> to vector<8x32xf32>
    %123 = arith.addf %119, %122 : vector<8x32xf32>
    %124 = arith.mulf %111, %123 : vector<8x32xf32>
    %125 = arith.addf %118, %124 : vector<8x32xf32>
    %126 = math.tanh %125 : vector<8x32xf32>
    %cst_59 = arith.constant 1.000000e+00 : f32
    %127 = vector.broadcast %cst_59 : f32 to vector<8x32xf32>
    %128 = arith.subf %127, %117 : vector<8x32xf32>
    %129 = arith.mulf %128, %126 : vector<8x32xf32>
    %130 = arith.mulf %117, %48 : vector<8x32xf32>
    %131 = arith.addf %129, %130 : vector<8x32xf32>
    %c1_60 = arith.constant 1 : index
    %c0_61 = arith.constant 0 : index
    %c0_62 = arith.constant 0 : index
    %132 = vector.load %arg5[%c1_60, %c0_61, %c0_62] : memref<2x32x128xf32, #tpu.memory_space<vmem>>, vector<1x32x128xf32>
    %133 = vector.shape_cast %132 : vector<1x32x128xf32> to vector<32x128xf32>
    %cst_63 = arith.constant dense<0.000000e+00> : vector<8x128xf32>
    %134 = tpu.matmul %131, %133, %cst_63 {dimension_numbers = #tpu.dot_dimension_numbers<[1], [0], [0], [1], [0, 0, 1, 1], [], []>} : vector<8x32xf32>, vector<32x128xf32>, vector<8x128xf32> -> vector<8x128xf32>
    %c1_64 = arith.constant 1 : index
    %c0_65 = arith.constant 0 : index
    %c0_66 = arith.constant 0 : index
    %135 = vector.load %arg6[%c1_64, %c0_65, %c0_66] : memref<2x32x128xf32, #tpu.memory_space<vmem>>, vector<1x32x128xf32>
    %136 = vector.shape_cast %135 : vector<1x32x128xf32> to vector<32x128xf32>
    %cst_67 = arith.constant dense<0.000000e+00> : vector<8x128xf32>
    %137 = tpu.matmul %85, %136, %cst_67 {dimension_numbers = #tpu.dot_dimension_numbers<[1], [0], [0], [1], [0, 0, 1, 1], [], []>} : vector<8x32xf32>, vector<32x128xf32>, vector<8x128xf32> -> vector<8x128xf32>
    %138 = arith.addf %134, %137 : vector<8x128xf32>
    %c1_68 = arith.constant 1 : index
    %c0_69 = arith.constant 0 : index
    %c0_70 = arith.constant 0 : index
    %139 = vector.load %arg7[%c1_68, %c0_69, %c0_70] : memref<2x1x128xf32, #tpu.memory_space<vmem>>, vector<1x1x128xf32>
    %140 = vector.shape_cast %139 : vector<1x1x128xf32> to vector<1x128xf32>
    %141 = vector.broadcast %140 : vector<1x128xf32> to vector<8x128xf32>
    %142 = arith.addf %138, %141 : vector<8x128xf32>
    %143 = vector.extract_strided_slice %142 {offsets = [0, 0], sizes = [8, 32], strides = [1, 1]} : vector<8x128xf32> to vector<8x32xf32>
    %144 = arith.negf %143 : vector<8x32xf32>
    %145 = math.exp %144 : vector<8x32xf32>
    %cst_71 = arith.constant 1.000000e+00 : f32
    %146 = vector.broadcast %cst_71 : f32 to vector<8x32xf32>
    %147 = arith.addf %146, %145 : vector<8x32xf32>
    %148 = arith.divf %146, %147 : vector<8x32xf32>
    %149 = vector.extract_strided_slice %142 {offsets = [0, 32], sizes = [8, 32], strides = [1, 1]} : vector<8x128xf32> to vector<8x32xf32>
    %150 = arith.negf %149 : vector<8x32xf32>
    %151 = math.exp %150 : vector<8x32xf32>
    %cst_72 = arith.constant 1.000000e+00 : f32
    %152 = vector.broadcast %cst_72 : f32 to vector<8x32xf32>
    %153 = arith.addf %152, %151 : vector<8x32xf32>
    %154 = arith.divf %152, %153 : vector<8x32xf32>
    %155 = vector.extract_strided_slice %142 {offsets = [0, 64], sizes = [8, 32], strides = [1, 1]} : vector<8x128xf32> to vector<8x32xf32>
    %156 = vector.extract_strided_slice %142 {offsets = [0, 96], sizes = [8, 32], strides = [1, 1]} : vector<8x128xf32> to vector<8x32xf32>
    %c1_73 = arith.constant 1 : index
    %c0_74 = arith.constant 0 : index
    %c0_75 = arith.constant 0 : index
    %157 = vector.load %arg8[%c1_73, %c0_74, %c0_75] : memref<2x1x32xf32, #tpu.memory_space<vmem>>, vector<1x1x32xf32>
    %158 = vector.shape_cast %157 : vector<1x1x32xf32> to vector<1x32xf32>
    %159 = vector.broadcast %158 : vector<1x32xf32> to vector<8x32xf32>
    %160 = arith.addf %156, %159 : vector<8x32xf32>
    %161 = arith.mulf %148, %160 : vector<8x32xf32>
    %162 = arith.addf %155, %161 : vector<8x32xf32>
    %163 = math.tanh %162 : vector<8x32xf32>
    %cst_76 = arith.constant 1.000000e+00 : f32
    %164 = vector.broadcast %cst_76 : f32 to vector<8x32xf32>
    %165 = arith.subf %164, %154 : vector<8x32xf32>
    %166 = arith.mulf %165, %163 : vector<8x32xf32>
    %167 = arith.mulf %154, %85 : vector<8x32xf32>
    %168 = arith.addf %166, %167 : vector<8x32xf32>
    %c2_i32 = arith.constant 2 : i32
    %169 = arith.index_cast %c2_i32 : i32 to index
    %c0_77 = arith.constant 0 : index
    %c0_78 = arith.constant 0 : index
    %170 = vector.load %arg0[%169, %c0_77, %c0_78] : memref<8x8x1xi32, #tpu.memory_space<vmem>>, vector<1x8x1xi32>
    %171 = vector.shape_cast %170 : vector<1x8x1xi32> to vector<8x1xi32>
    %172 = vector.broadcast %171 : vector<8x1xi32> to vector<8x128xi32>
    %173 = arith.cmpi eq, %172, %0 : vector<8x128xi32>
    %174 = arith.extui %173 : vector<8x128xi1> to vector<8x128xi32>
    %175 = arith.sitofp %174 : vector<8x128xi32> to vector<8x128xf32>
    %c0_79 = arith.constant 0 : index
    %c0_80 = arith.constant 0 : index
    %176 = vector.load %arg3[%c0_79, %c0_80] : memref<128x32xf32, #tpu.memory_space<vmem>>, vector<128x32xf32>
    %cst_81 = arith.constant dense<0.000000e+00> : vector<8x32xf32>
    %177 = tpu.matmul %175, %176, %cst_81 {dimension_numbers = #tpu.dot_dimension_numbers<[1], [0], [0], [1], [0, 0, 1, 1], [], []>} : vector<8x128xf32>, vector<128x32xf32>, vector<8x32xf32> -> vector<8x32xf32>
    %c0_82 = arith.constant 0 : index
    %c0_83 = arith.constant 0 : index
    %c0_84 = arith.constant 0 : index
    %178 = vector.load %arg5[%c0_82, %c0_83, %c0_84] : memref<2x32x128xf32, #tpu.memory_space<vmem>>, vector<1x32x128xf32>
    %179 = vector.shape_cast %178 : vector<1x32x128xf32> to vector<32x128xf32>
    %cst_85 = arith.constant dense<0.000000e+00> : vector<8x128xf32>
    %180 = tpu.matmul %177, %179, %cst_85 {dimension_numbers = #tpu.dot_dimension_numbers<[1], [0], [0], [1], [0, 0, 1, 1], [], []>} : vector<8x32xf32>, vector<32x128xf32>, vector<8x128xf32> -> vector<8x128xf32>
    %c0_86 = arith.constant 0 : index
    %c0_87 = arith.constant 0 : index
    %c0_88 = arith.constant 0 : index
    %181 = vector.load %arg6[%c0_86, %c0_87, %c0_88] : memref<2x32x128xf32, #tpu.memory_space<vmem>>, vector<1x32x128xf32>
    %182 = vector.shape_cast %181 : vector<1x32x128xf32> to vector<32x128xf32>
    %cst_89 = arith.constant dense<0.000000e+00> : vector<8x128xf32>
    %183 = tpu.matmul %131, %182, %cst_89 {dimension_numbers = #tpu.dot_dimension_numbers<[1], [0], [0], [1], [0, 0, 1, 1], [], []>} : vector<8x32xf32>, vector<32x128xf32>, vector<8x128xf32> -> vector<8x128xf32>
    %184 = arith.addf %180, %183 : vector<8x128xf32>
    %c0_90 = arith.constant 0 : index
    %c0_91 = arith.constant 0 : index
    %c0_92 = arith.constant 0 : index
    %185 = vector.load %arg7[%c0_90, %c0_91, %c0_92] : memref<2x1x128xf32, #tpu.memory_space<vmem>>, vector<1x1x128xf32>
    %186 = vector.shape_cast %185 : vector<1x1x128xf32> to vector<1x128xf32>
    %187 = vector.broadcast %186 : vector<1x128xf32> to vector<8x128xf32>
    %188 = arith.addf %184, %187 : vector<8x128xf32>
    %189 = vector.extract_strided_slice %188 {offsets = [0, 0], sizes = [8, 32], strides = [1, 1]} : vector<8x128xf32> to vector<8x32xf32>
    %190 = arith.negf %189 : vector<8x32xf32>
    %191 = math.exp %190 : vector<8x32xf32>
    %cst_93 = arith.constant 1.000000e+00 : f32
    %192 = vector.broadcast %cst_93 : f32 to vector<8x32xf32>
    %193 = arith.addf %192, %191 : vector<8x32xf32>
    %194 = arith.divf %192, %193 : vector<8x32xf32>
    %195 = vector.extract_strided_slice %188 {offsets = [0, 32], sizes = [8, 32], strides = [1, 1]} : vector<8x128xf32> to vector<8x32xf32>
    %196 = arith.negf %195 : vector<8x32xf32>
    %197 = math.exp %196 : vector<8x32xf32>
    %cst_94 = arith.constant 1.000000e+00 : f32
    %198 = vector.broadcast %cst_94 : f32 to vector<8x32xf32>
    %199 = arith.addf %198, %197 : vector<8x32xf32>
    %200 = arith.divf %198, %199 : vector<8x32xf32>
    %201 = vector.extract_strided_slice %188 {offsets = [0, 64], sizes = [8, 32], strides = [1, 1]} : vector<8x128xf32> to vector<8x32xf32>
    %202 = vector.extract_strided_slice %188 {offsets = [0, 96], sizes = [8, 32], strides = [1, 1]} : vector<8x128xf32> to vector<8x32xf32>
    %c0_95 = arith.constant 0 : index
    %c0_96 = arith.constant 0 : index
    %c0_97 = arith.constant 0 : index
    %203 = vector.load %arg8[%c0_95, %c0_96, %c0_97] : memref<2x1x32xf32, #tpu.memory_space<vmem>>, vector<1x1x32xf32>
    %204 = vector.shape_cast %203 : vector<1x1x32xf32> to vector<1x32xf32>
    %205 = vector.broadcast %204 : vector<1x32xf32> to vector<8x32xf32>
    %206 = arith.addf %202, %205 : vector<8x32xf32>
    %207 = arith.mulf %194, %206 : vector<8x32xf32>
    %208 = arith.addf %201, %207 : vector<8x32xf32>
    %209 = math.tanh %208 : vector<8x32xf32>
    %cst_98 = arith.constant 1.000000e+00 : f32
    %210 = vector.broadcast %cst_98 : f32 to vector<8x32xf32>
    %211 = arith.subf %210, %200 : vector<8x32xf32>
    %212 = arith.mulf %211, %209 : vector<8x32xf32>
    %213 = arith.mulf %200, %131 : vector<8x32xf32>
    %214 = arith.addf %212, %213 : vector<8x32xf32>
    %c1_99 = arith.constant 1 : index
    %c0_100 = arith.constant 0 : index
    %c0_101 = arith.constant 0 : index
    %215 = vector.load %arg5[%c1_99, %c0_100, %c0_101] : memref<2x32x128xf32, #tpu.memory_space<vmem>>, vector<1x32x128xf32>
    %216 = vector.shape_cast %215 : vector<1x32x128xf32> to vector<32x128xf32>
    %cst_102 = arith.constant dense<0.000000e+00> : vector<8x128xf32>
    %217 = tpu.matmul %214, %216, %cst_102 {dimension_numbers = #tpu.dot_dimension_numbers<[1], [0], [0], [1], [0, 0, 1, 1], [], []>} : vector<8x32xf32>, vector<32x128xf32>, vector<8x128xf32> -> vector<8x128xf32>
    %c1_103 = arith.constant 1 : index
    %c0_104 = arith.constant 0 : index
    %c0_105 = arith.constant 0 : index
    %218 = vector.load %arg6[%c1_103, %c0_104, %c0_105] : memref<2x32x128xf32, #tpu.memory_space<vmem>>, vector<1x32x128xf32>
    %219 = vector.shape_cast %218 : vector<1x32x128xf32> to vector<32x128xf32>
    %cst_106 = arith.constant dense<0.000000e+00> : vector<8x128xf32>
    %220 = tpu.matmul %168, %219, %cst_106 {dimension_numbers = #tpu.dot_dimension_numbers<[1], [0], [0], [1], [0, 0, 1, 1], [], []>} : vector<8x32xf32>, vector<32x128xf32>, vector<8x128xf32> -> vector<8x128xf32>
    %221 = arith.addf %217, %220 : vector<8x128xf32>
    %c1_107 = arith.constant 1 : index
    %c0_108 = arith.constant 0 : index
    %c0_109 = arith.constant 0 : index
    %222 = vector.load %arg7[%c1_107, %c0_108, %c0_109] : memref<2x1x128xf32, #tpu.memory_space<vmem>>, vector<1x1x128xf32>
    %223 = vector.shape_cast %222 : vector<1x1x128xf32> to vector<1x128xf32>
    %224 = vector.broadcast %223 : vector<1x128xf32> to vector<8x128xf32>
    %225 = arith.addf %221, %224 : vector<8x128xf32>
    %226 = vector.extract_strided_slice %225 {offsets = [0, 0], sizes = [8, 32], strides = [1, 1]} : vector<8x128xf32> to vector<8x32xf32>
    %227 = arith.negf %226 : vector<8x32xf32>
    %228 = math.exp %227 : vector<8x32xf32>
    %cst_110 = arith.constant 1.000000e+00 : f32
    %229 = vector.broadcast %cst_110 : f32 to vector<8x32xf32>
    %230 = arith.addf %229, %228 : vector<8x32xf32>
    %231 = arith.divf %229, %230 : vector<8x32xf32>
    %232 = vector.extract_strided_slice %225 {offsets = [0, 32], sizes = [8, 32], strides = [1, 1]} : vector<8x128xf32> to vector<8x32xf32>
    %233 = arith.negf %232 : vector<8x32xf32>
    %234 = math.exp %233 : vector<8x32xf32>
    %cst_111 = arith.constant 1.000000e+00 : f32
    %235 = vector.broadcast %cst_111 : f32 to vector<8x32xf32>
    %236 = arith.addf %235, %234 : vector<8x32xf32>
    %237 = arith.divf %235, %236 : vector<8x32xf32>
    %238 = vector.extract_strided_slice %225 {offsets = [0, 64], sizes = [8, 32], strides = [1, 1]} : vector<8x128xf32> to vector<8x32xf32>
    %239 = vector.extract_strided_slice %225 {offsets = [0, 96], sizes = [8, 32], strides = [1, 1]} : vector<8x128xf32> to vector<8x32xf32>
    %c1_112 = arith.constant 1 : index
    %c0_113 = arith.constant 0 : index
    %c0_114 = arith.constant 0 : index
    %240 = vector.load %arg8[%c1_112, %c0_113, %c0_114] : memref<2x1x32xf32, #tpu.memory_space<vmem>>, vector<1x1x32xf32>
    %241 = vector.shape_cast %240 : vector<1x1x32xf32> to vector<1x32xf32>
    %242 = vector.broadcast %241 : vector<1x32xf32> to vector<8x32xf32>
    %243 = arith.addf %239, %242 : vector<8x32xf32>
    %244 = arith.mulf %231, %243 : vector<8x32xf32>
    %245 = arith.addf %238, %244 : vector<8x32xf32>
    %246 = math.tanh %245 : vector<8x32xf32>
    %cst_115 = arith.constant 1.000000e+00 : f32
    %247 = vector.broadcast %cst_115 : f32 to vector<8x32xf32>
    %248 = arith.subf %247, %237 : vector<8x32xf32>
    %249 = arith.mulf %248, %246 : vector<8x32xf32>
    %250 = arith.mulf %237, %168 : vector<8x32xf32>
    %251 = arith.addf %249, %250 : vector<8x32xf32>
    %c3_i32 = arith.constant 3 : i32
    %252 = arith.index_cast %c3_i32 : i32 to index
    %c0_116 = arith.constant 0 : index
    %c0_117 = arith.constant 0 : index
    %253 = vector.load %arg0[%252, %c0_116, %c0_117] : memref<8x8x1xi32, #tpu.memory_space<vmem>>, vector<1x8x1xi32>
    %254 = vector.shape_cast %253 : vector<1x8x1xi32> to vector<8x1xi32>
    %255 = vector.broadcast %254 : vector<8x1xi32> to vector<8x128xi32>
    %256 = arith.cmpi eq, %255, %0 : vector<8x128xi32>
    %257 = arith.extui %256 : vector<8x128xi1> to vector<8x128xi32>
    %258 = arith.sitofp %257 : vector<8x128xi32> to vector<8x128xf32>
    %c0_118 = arith.constant 0 : index
    %c0_119 = arith.constant 0 : index
    %259 = vector.load %arg3[%c0_118, %c0_119] : memref<128x32xf32, #tpu.memory_space<vmem>>, vector<128x32xf32>
    %cst_120 = arith.constant dense<0.000000e+00> : vector<8x32xf32>
    %260 = tpu.matmul %258, %259, %cst_120 {dimension_numbers = #tpu.dot_dimension_numbers<[1], [0], [0], [1], [0, 0, 1, 1], [], []>} : vector<8x128xf32>, vector<128x32xf32>, vector<8x32xf32> -> vector<8x32xf32>
    %c0_121 = arith.constant 0 : index
    %c0_122 = arith.constant 0 : index
    %c0_123 = arith.constant 0 : index
    %261 = vector.load %arg5[%c0_121, %c0_122, %c0_123] : memref<2x32x128xf32, #tpu.memory_space<vmem>>, vector<1x32x128xf32>
    %262 = vector.shape_cast %261 : vector<1x32x128xf32> to vector<32x128xf32>
    %cst_124 = arith.constant dense<0.000000e+00> : vector<8x128xf32>
    %263 = tpu.matmul %260, %262, %cst_124 {dimension_numbers = #tpu.dot_dimension_numbers<[1], [0], [0], [1], [0, 0, 1, 1], [], []>} : vector<8x32xf32>, vector<32x128xf32>, vector<8x128xf32> -> vector<8x128xf32>
    %c0_125 = arith.constant 0 : index
    %c0_126 = arith.constant 0 : index
    %c0_127 = arith.constant 0 : index
    %264 = vector.load %arg6[%c0_125, %c0_126, %c0_127] : memref<2x32x128xf32, #tpu.memory_space<vmem>>, vector<1x32x128xf32>
    %265 = vector.shape_cast %264 : vector<1x32x128xf32> to vector<32x128xf32>
    %cst_128 = arith.constant dense<0.000000e+00> : vector<8x128xf32>
    %266 = tpu.matmul %214, %265, %cst_128 {dimension_numbers = #tpu.dot_dimension_numbers<[1], [0], [0], [1], [0, 0, 1, 1], [], []>} : vector<8x32xf32>, vector<32x128xf32>, vector<8x128xf32> -> vector<8x128xf32>
    %267 = arith.addf %263, %266 : vector<8x128xf32>
    %c0_129 = arith.constant 0 : index
    %c0_130 = arith.constant 0 : index
    %c0_131 = arith.constant 0 : index
    %268 = vector.load %arg7[%c0_129, %c0_130, %c0_131] : memref<2x1x128xf32, #tpu.memory_space<vmem>>, vector<1x1x128xf32>
    %269 = vector.shape_cast %268 : vector<1x1x128xf32> to vector<1x128xf32>
    %270 = vector.broadcast %269 : vector<1x128xf32> to vector<8x128xf32>
    %271 = arith.addf %267, %270 : vector<8x128xf32>
    %272 = vector.extract_strided_slice %271 {offsets = [0, 0], sizes = [8, 32], strides = [1, 1]} : vector<8x128xf32> to vector<8x32xf32>
    %273 = arith.negf %272 : vector<8x32xf32>
    %274 = math.exp %273 : vector<8x32xf32>
    %cst_132 = arith.constant 1.000000e+00 : f32
    %275 = vector.broadcast %cst_132 : f32 to vector<8x32xf32>
    %276 = arith.addf %275, %274 : vector<8x32xf32>
    %277 = arith.divf %275, %276 : vector<8x32xf32>
    %278 = vector.extract_strided_slice %271 {offsets = [0, 32], sizes = [8, 32], strides = [1, 1]} : vector<8x128xf32> to vector<8x32xf32>
    %279 = arith.negf %278 : vector<8x32xf32>
    %280 = math.exp %279 : vector<8x32xf32>
    %cst_133 = arith.constant 1.000000e+00 : f32
    %281 = vector.broadcast %cst_133 : f32 to vector<8x32xf32>
    %282 = arith.addf %281, %280 : vector<8x32xf32>
    %283 = arith.divf %281, %282 : vector<8x32xf32>
    %284 = vector.extract_strided_slice %271 {offsets = [0, 64], sizes = [8, 32], strides = [1, 1]} : vector<8x128xf32> to vector<8x32xf32>
    %285 = vector.extract_strided_slice %271 {offsets = [0, 96], sizes = [8, 32], strides = [1, 1]} : vector<8x128xf32> to vector<8x32xf32>
    %c0_134 = arith.constant 0 : index
    %c0_135 = arith.constant 0 : index
    %c0_136 = arith.constant 0 : index
    %286 = vector.load %arg8[%c0_134, %c0_135, %c0_136] : memref<2x1x32xf32, #tpu.memory_space<vmem>>, vector<1x1x32xf32>
    %287 = vector.shape_cast %286 : vector<1x1x32xf32> to vector<1x32xf32>
    %288 = vector.broadcast %287 : vector<1x32xf32> to vector<8x32xf32>
    %289 = arith.addf %285, %288 : vector<8x32xf32>
    %290 = arith.mulf %277, %289 : vector<8x32xf32>
    %291 = arith.addf %284, %290 : vector<8x32xf32>
    %292 = math.tanh %291 : vector<8x32xf32>
    %cst_137 = arith.constant 1.000000e+00 : f32
    %293 = vector.broadcast %cst_137 : f32 to vector<8x32xf32>
    %294 = arith.subf %293, %283 : vector<8x32xf32>
    %295 = arith.mulf %294, %292 : vector<8x32xf32>
    %296 = arith.mulf %283, %214 : vector<8x32xf32>
    %297 = arith.addf %295, %296 : vector<8x32xf32>
    %c1_138 = arith.constant 1 : index
    %c0_139 = arith.constant 0 : index
    %c0_140 = arith.constant 0 : index
    %298 = vector.load %arg5[%c1_138, %c0_139, %c0_140] : memref<2x32x128xf32, #tpu.memory_space<vmem>>, vector<1x32x128xf32>
    %299 = vector.shape_cast %298 : vector<1x32x128xf32> to vector<32x128xf32>
    %cst_141 = arith.constant dense<0.000000e+00> : vector<8x128xf32>
    %300 = tpu.matmul %297, %299, %cst_141 {dimension_numbers = #tpu.dot_dimension_numbers<[1], [0], [0], [1], [0, 0, 1, 1], [], []>} : vector<8x32xf32>, vector<32x128xf32>, vector<8x128xf32> -> vector<8x128xf32>
    %c1_142 = arith.constant 1 : index
    %c0_143 = arith.constant 0 : index
    %c0_144 = arith.constant 0 : index
    %301 = vector.load %arg6[%c1_142, %c0_143, %c0_144] : memref<2x32x128xf32, #tpu.memory_space<vmem>>, vector<1x32x128xf32>
    %302 = vector.shape_cast %301 : vector<1x32x128xf32> to vector<32x128xf32>
    %cst_145 = arith.constant dense<0.000000e+00> : vector<8x128xf32>
    %303 = tpu.matmul %251, %302, %cst_145 {dimension_numbers = #tpu.dot_dimension_numbers<[1], [0], [0], [1], [0, 0, 1, 1], [], []>} : vector<8x32xf32>, vector<32x128xf32>, vector<8x128xf32> -> vector<8x128xf32>
    %304 = arith.addf %300, %303 : vector<8x128xf32>
    %c1_146 = arith.constant 1 : index
    %c0_147 = arith.constant 0 : index
    %c0_148 = arith.constant 0 : index
    %305 = vector.load %arg7[%c1_146, %c0_147, %c0_148] : memref<2x1x128xf32, #tpu.memory_space<vmem>>, vector<1x1x128xf32>
    %306 = vector.shape_cast %305 : vector<1x1x128xf32> to vector<1x128xf32>
    %307 = vector.broadcast %306 : vector<1x128xf32> to vector<8x128xf32>
    %308 = arith.addf %304, %307 : vector<8x128xf32>
    %309 = vector.extract_strided_slice %308 {offsets = [0, 0], sizes = [8, 32], strides = [1, 1]} : vector<8x128xf32> to vector<8x32xf32>
    %310 = arith.negf %309 : vector<8x32xf32>
    %311 = math.exp %310 : vector<8x32xf32>
    %cst_149 = arith.constant 1.000000e+00 : f32
    %312 = vector.broadcast %cst_149 : f32 to vector<8x32xf32>
    %313 = arith.addf %312, %311 : vector<8x32xf32>
    %314 = arith.divf %312, %313 : vector<8x32xf32>
    %315 = vector.extract_strided_slice %308 {offsets = [0, 32], sizes = [8, 32], strides = [1, 1]} : vector<8x128xf32> to vector<8x32xf32>
    %316 = arith.negf %315 : vector<8x32xf32>
    %317 = math.exp %316 : vector<8x32xf32>
    %cst_150 = arith.constant 1.000000e+00 : f32
    %318 = vector.broadcast %cst_150 : f32 to vector<8x32xf32>
    %319 = arith.addf %318, %317 : vector<8x32xf32>
    %320 = arith.divf %318, %319 : vector<8x32xf32>
    %321 = vector.extract_strided_slice %308 {offsets = [0, 64], sizes = [8, 32], strides = [1, 1]} : vector<8x128xf32> to vector<8x32xf32>
    %322 = vector.extract_strided_slice %308 {offsets = [0, 96], sizes = [8, 32], strides = [1, 1]} : vector<8x128xf32> to vector<8x32xf32>
    %c1_151 = arith.constant 1 : index
    %c0_152 = arith.constant 0 : index
    %c0_153 = arith.constant 0 : index
    %323 = vector.load %arg8[%c1_151, %c0_152, %c0_153] : memref<2x1x32xf32, #tpu.memory_space<vmem>>, vector<1x1x32xf32>
    %324 = vector.shape_cast %323 : vector<1x1x32xf32> to vector<1x32xf32>
    %325 = vector.broadcast %324 : vector<1x32xf32> to vector<8x32xf32>
    %326 = arith.addf %322, %325 : vector<8x32xf32>
    %327 = arith.mulf %314, %326 : vector<8x32xf32>
    %328 = arith.addf %321, %327 : vector<8x32xf32>
    %329 = math.tanh %328 : vector<8x32xf32>
    %cst_154 = arith.constant 1.000000e+00 : f32
    %330 = vector.broadcast %cst_154 : f32 to vector<8x32xf32>
    %331 = arith.subf %330, %320 : vector<8x32xf32>
    %332 = arith.mulf %331, %329 : vector<8x32xf32>
    %333 = arith.mulf %320, %251 : vector<8x32xf32>
    %334 = arith.addf %332, %333 : vector<8x32xf32>
    %c4_i32 = arith.constant 4 : i32
    %335 = arith.index_cast %c4_i32 : i32 to index
    %c0_155 = arith.constant 0 : index
    %c0_156 = arith.constant 0 : index
    %336 = vector.load %arg0[%335, %c0_155, %c0_156] : memref<8x8x1xi32, #tpu.memory_space<vmem>>, vector<1x8x1xi32>
    %337 = vector.shape_cast %336 : vector<1x8x1xi32> to vector<8x1xi32>
    %338 = vector.broadcast %337 : vector<8x1xi32> to vector<8x128xi32>
    %339 = arith.cmpi eq, %338, %0 : vector<8x128xi32>
    %340 = arith.extui %339 : vector<8x128xi1> to vector<8x128xi32>
    %341 = arith.sitofp %340 : vector<8x128xi32> to vector<8x128xf32>
    %c0_157 = arith.constant 0 : index
    %c0_158 = arith.constant 0 : index
    %342 = vector.load %arg3[%c0_157, %c0_158] : memref<128x32xf32, #tpu.memory_space<vmem>>, vector<128x32xf32>
    %cst_159 = arith.constant dense<0.000000e+00> : vector<8x32xf32>
    %343 = tpu.matmul %341, %342, %cst_159 {dimension_numbers = #tpu.dot_dimension_numbers<[1], [0], [0], [1], [0, 0, 1, 1], [], []>} : vector<8x128xf32>, vector<128x32xf32>, vector<8x32xf32> -> vector<8x32xf32>
    %c0_160 = arith.constant 0 : index
    %c0_161 = arith.constant 0 : index
    %c0_162 = arith.constant 0 : index
    %344 = vector.load %arg5[%c0_160, %c0_161, %c0_162] : memref<2x32x128xf32, #tpu.memory_space<vmem>>, vector<1x32x128xf32>
    %345 = vector.shape_cast %344 : vector<1x32x128xf32> to vector<32x128xf32>
    %cst_163 = arith.constant dense<0.000000e+00> : vector<8x128xf32>
    %346 = tpu.matmul %343, %345, %cst_163 {dimension_numbers = #tpu.dot_dimension_numbers<[1], [0], [0], [1], [0, 0, 1, 1], [], []>} : vector<8x32xf32>, vector<32x128xf32>, vector<8x128xf32> -> vector<8x128xf32>
    %c0_164 = arith.constant 0 : index
    %c0_165 = arith.constant 0 : index
    %c0_166 = arith.constant 0 : index
    %347 = vector.load %arg6[%c0_164, %c0_165, %c0_166] : memref<2x32x128xf32, #tpu.memory_space<vmem>>, vector<1x32x128xf32>
    %348 = vector.shape_cast %347 : vector<1x32x128xf32> to vector<32x128xf32>
    %cst_167 = arith.constant dense<0.000000e+00> : vector<8x128xf32>
    %349 = tpu.matmul %297, %348, %cst_167 {dimension_numbers = #tpu.dot_dimension_numbers<[1], [0], [0], [1], [0, 0, 1, 1], [], []>} : vector<8x32xf32>, vector<32x128xf32>, vector<8x128xf32> -> vector<8x128xf32>
    %350 = arith.addf %346, %349 : vector<8x128xf32>
    %c0_168 = arith.constant 0 : index
    %c0_169 = arith.constant 0 : index
    %c0_170 = arith.constant 0 : index
    %351 = vector.load %arg7[%c0_168, %c0_169, %c0_170] : memref<2x1x128xf32, #tpu.memory_space<vmem>>, vector<1x1x128xf32>
    %352 = vector.shape_cast %351 : vector<1x1x128xf32> to vector<1x128xf32>
    %353 = vector.broadcast %352 : vector<1x128xf32> to vector<8x128xf32>
    %354 = arith.addf %350, %353 : vector<8x128xf32>
    %355 = vector.extract_strided_slice %354 {offsets = [0, 0], sizes = [8, 32], strides = [1, 1]} : vector<8x128xf32> to vector<8x32xf32>
    %356 = arith.negf %355 : vector<8x32xf32>
    %357 = math.exp %356 : vector<8x32xf32>
    %cst_171 = arith.constant 1.000000e+00 : f32
    %358 = vector.broadcast %cst_171 : f32 to vector<8x32xf32>
    %359 = arith.addf %358, %357 : vector<8x32xf32>
    %360 = arith.divf %358, %359 : vector<8x32xf32>
    %361 = vector.extract_strided_slice %354 {offsets = [0, 32], sizes = [8, 32], strides = [1, 1]} : vector<8x128xf32> to vector<8x32xf32>
    %362 = arith.negf %361 : vector<8x32xf32>
    %363 = math.exp %362 : vector<8x32xf32>
    %cst_172 = arith.constant 1.000000e+00 : f32
    %364 = vector.broadcast %cst_172 : f32 to vector<8x32xf32>
    %365 = arith.addf %364, %363 : vector<8x32xf32>
    %366 = arith.divf %364, %365 : vector<8x32xf32>
    %367 = vector.extract_strided_slice %354 {offsets = [0, 64], sizes = [8, 32], strides = [1, 1]} : vector<8x128xf32> to vector<8x32xf32>
    %368 = vector.extract_strided_slice %354 {offsets = [0, 96], sizes = [8, 32], strides = [1, 1]} : vector<8x128xf32> to vector<8x32xf32>
    %c0_173 = arith.constant 0 : index
    %c0_174 = arith.constant 0 : index
    %c0_175 = arith.constant 0 : index
    %369 = vector.load %arg8[%c0_173, %c0_174, %c0_175] : memref<2x1x32xf32, #tpu.memory_space<vmem>>, vector<1x1x32xf32>
    %370 = vector.shape_cast %369 : vector<1x1x32xf32> to vector<1x32xf32>
    %371 = vector.broadcast %370 : vector<1x32xf32> to vector<8x32xf32>
    %372 = arith.addf %368, %371 : vector<8x32xf32>
    %373 = arith.mulf %360, %372 : vector<8x32xf32>
    %374 = arith.addf %367, %373 : vector<8x32xf32>
    %375 = math.tanh %374 : vector<8x32xf32>
    %cst_176 = arith.constant 1.000000e+00 : f32
    %376 = vector.broadcast %cst_176 : f32 to vector<8x32xf32>
    %377 = arith.subf %376, %366 : vector<8x32xf32>
    %378 = arith.mulf %377, %375 : vector<8x32xf32>
    %379 = arith.mulf %366, %297 : vector<8x32xf32>
    %380 = arith.addf %378, %379 : vector<8x32xf32>
    %c1_177 = arith.constant 1 : index
    %c0_178 = arith.constant 0 : index
    %c0_179 = arith.constant 0 : index
    %381 = vector.load %arg5[%c1_177, %c0_178, %c0_179] : memref<2x32x128xf32, #tpu.memory_space<vmem>>, vector<1x32x128xf32>
    %382 = vector.shape_cast %381 : vector<1x32x128xf32> to vector<32x128xf32>
    %cst_180 = arith.constant dense<0.000000e+00> : vector<8x128xf32>
    %383 = tpu.matmul %380, %382, %cst_180 {dimension_numbers = #tpu.dot_dimension_numbers<[1], [0], [0], [1], [0, 0, 1, 1], [], []>} : vector<8x32xf32>, vector<32x128xf32>, vector<8x128xf32> -> vector<8x128xf32>
    %c1_181 = arith.constant 1 : index
    %c0_182 = arith.constant 0 : index
    %c0_183 = arith.constant 0 : index
    %384 = vector.load %arg6[%c1_181, %c0_182, %c0_183] : memref<2x32x128xf32, #tpu.memory_space<vmem>>, vector<1x32x128xf32>
    %385 = vector.shape_cast %384 : vector<1x32x128xf32> to vector<32x128xf32>
    %cst_184 = arith.constant dense<0.000000e+00> : vector<8x128xf32>
    %386 = tpu.matmul %334, %385, %cst_184 {dimension_numbers = #tpu.dot_dimension_numbers<[1], [0], [0], [1], [0, 0, 1, 1], [], []>} : vector<8x32xf32>, vector<32x128xf32>, vector<8x128xf32> -> vector<8x128xf32>
    %387 = arith.addf %383, %386 : vector<8x128xf32>
    %c1_185 = arith.constant 1 : index
    %c0_186 = arith.constant 0 : index
    %c0_187 = arith.constant 0 : index
    %388 = vector.load %arg7[%c1_185, %c0_186, %c0_187] : memref<2x1x128xf32, #tpu.memory_space<vmem>>, vector<1x1x128xf32>
    %389 = vector.shape_cast %388 : vector<1x1x128xf32> to vector<1x128xf32>
    %390 = vector.broadcast %389 : vector<1x128xf32> to vector<8x128xf32>
    %391 = arith.addf %387, %390 : vector<8x128xf32>
    %392 = vector.extract_strided_slice %391 {offsets = [0, 0], sizes = [8, 32], strides = [1, 1]} : vector<8x128xf32> to vector<8x32xf32>
    %393 = arith.negf %392 : vector<8x32xf32>
    %394 = math.exp %393 : vector<8x32xf32>
    %cst_188 = arith.constant 1.000000e+00 : f32
    %395 = vector.broadcast %cst_188 : f32 to vector<8x32xf32>
    %396 = arith.addf %395, %394 : vector<8x32xf32>
    %397 = arith.divf %395, %396 : vector<8x32xf32>
    %398 = vector.extract_strided_slice %391 {offsets = [0, 32], sizes = [8, 32], strides = [1, 1]} : vector<8x128xf32> to vector<8x32xf32>
    %399 = arith.negf %398 : vector<8x32xf32>
    %400 = math.exp %399 : vector<8x32xf32>
    %cst_189 = arith.constant 1.000000e+00 : f32
    %401 = vector.broadcast %cst_189 : f32 to vector<8x32xf32>
    %402 = arith.addf %401, %400 : vector<8x32xf32>
    %403 = arith.divf %401, %402 : vector<8x32xf32>
    %404 = vector.extract_strided_slice %391 {offsets = [0, 64], sizes = [8, 32], strides = [1, 1]} : vector<8x128xf32> to vector<8x32xf32>
    %405 = vector.extract_strided_slice %391 {offsets = [0, 96], sizes = [8, 32], strides = [1, 1]} : vector<8x128xf32> to vector<8x32xf32>
    %c1_190 = arith.constant 1 : index
    %c0_191 = arith.constant 0 : index
    %c0_192 = arith.constant 0 : index
    %406 = vector.load %arg8[%c1_190, %c0_191, %c0_192] : memref<2x1x32xf32, #tpu.memory_space<vmem>>, vector<1x1x32xf32>
    %407 = vector.shape_cast %406 : vector<1x1x32xf32> to vector<1x32xf32>
    %408 = vector.broadcast %407 : vector<1x32xf32> to vector<8x32xf32>
    %409 = arith.addf %405, %408 : vector<8x32xf32>
    %410 = arith.mulf %397, %409 : vector<8x32xf32>
    %411 = arith.addf %404, %410 : vector<8x32xf32>
    %412 = math.tanh %411 : vector<8x32xf32>
    %cst_193 = arith.constant 1.000000e+00 : f32
    %413 = vector.broadcast %cst_193 : f32 to vector<8x32xf32>
    %414 = arith.subf %413, %403 : vector<8x32xf32>
    %415 = arith.mulf %414, %412 : vector<8x32xf32>
    %416 = arith.mulf %403, %334 : vector<8x32xf32>
    %417 = arith.addf %415, %416 : vector<8x32xf32>
    %c5_i32 = arith.constant 5 : i32
    %418 = arith.index_cast %c5_i32 : i32 to index
    %c0_194 = arith.constant 0 : index
    %c0_195 = arith.constant 0 : index
    %419 = vector.load %arg0[%418, %c0_194, %c0_195] : memref<8x8x1xi32, #tpu.memory_space<vmem>>, vector<1x8x1xi32>
    %420 = vector.shape_cast %419 : vector<1x8x1xi32> to vector<8x1xi32>
    %421 = vector.broadcast %420 : vector<8x1xi32> to vector<8x128xi32>
    %422 = arith.cmpi eq, %421, %0 : vector<8x128xi32>
    %423 = arith.extui %422 : vector<8x128xi1> to vector<8x128xi32>
    %424 = arith.sitofp %423 : vector<8x128xi32> to vector<8x128xf32>
    %c0_196 = arith.constant 0 : index
    %c0_197 = arith.constant 0 : index
    %425 = vector.load %arg3[%c0_196, %c0_197] : memref<128x32xf32, #tpu.memory_space<vmem>>, vector<128x32xf32>
    %cst_198 = arith.constant dense<0.000000e+00> : vector<8x32xf32>
    %426 = tpu.matmul %424, %425, %cst_198 {dimension_numbers = #tpu.dot_dimension_numbers<[1], [0], [0], [1], [0, 0, 1, 1], [], []>} : vector<8x128xf32>, vector<128x32xf32>, vector<8x32xf32> -> vector<8x32xf32>
    %c0_199 = arith.constant 0 : index
    %c0_200 = arith.constant 0 : index
    %c0_201 = arith.constant 0 : index
    %427 = vector.load %arg5[%c0_199, %c0_200, %c0_201] : memref<2x32x128xf32, #tpu.memory_space<vmem>>, vector<1x32x128xf32>
    %428 = vector.shape_cast %427 : vector<1x32x128xf32> to vector<32x128xf32>
    %cst_202 = arith.constant dense<0.000000e+00> : vector<8x128xf32>
    %429 = tpu.matmul %426, %428, %cst_202 {dimension_numbers = #tpu.dot_dimension_numbers<[1], [0], [0], [1], [0, 0, 1, 1], [], []>} : vector<8x32xf32>, vector<32x128xf32>, vector<8x128xf32> -> vector<8x128xf32>
    %c0_203 = arith.constant 0 : index
    %c0_204 = arith.constant 0 : index
    %c0_205 = arith.constant 0 : index
    %430 = vector.load %arg6[%c0_203, %c0_204, %c0_205] : memref<2x32x128xf32, #tpu.memory_space<vmem>>, vector<1x32x128xf32>
    %431 = vector.shape_cast %430 : vector<1x32x128xf32> to vector<32x128xf32>
    %cst_206 = arith.constant dense<0.000000e+00> : vector<8x128xf32>
    %432 = tpu.matmul %380, %431, %cst_206 {dimension_numbers = #tpu.dot_dimension_numbers<[1], [0], [0], [1], [0, 0, 1, 1], [], []>} : vector<8x32xf32>, vector<32x128xf32>, vector<8x128xf32> -> vector<8x128xf32>
    %433 = arith.addf %429, %432 : vector<8x128xf32>
    %c0_207 = arith.constant 0 : index
    %c0_208 = arith.constant 0 : index
    %c0_209 = arith.constant 0 : index
    %434 = vector.load %arg7[%c0_207, %c0_208, %c0_209] : memref<2x1x128xf32, #tpu.memory_space<vmem>>, vector<1x1x128xf32>
    %435 = vector.shape_cast %434 : vector<1x1x128xf32> to vector<1x128xf32>
    %436 = vector.broadcast %435 : vector<1x128xf32> to vector<8x128xf32>
    %437 = arith.addf %433, %436 : vector<8x128xf32>
    %438 = vector.extract_strided_slice %437 {offsets = [0, 0], sizes = [8, 32], strides = [1, 1]} : vector<8x128xf32> to vector<8x32xf32>
    %439 = arith.negf %438 : vector<8x32xf32>
    %440 = math.exp %439 : vector<8x32xf32>
    %cst_210 = arith.constant 1.000000e+00 : f32
    %441 = vector.broadcast %cst_210 : f32 to vector<8x32xf32>
    %442 = arith.addf %441, %440 : vector<8x32xf32>
    %443 = arith.divf %441, %442 : vector<8x32xf32>
    %444 = vector.extract_strided_slice %437 {offsets = [0, 32], sizes = [8, 32], strides = [1, 1]} : vector<8x128xf32> to vector<8x32xf32>
    %445 = arith.negf %444 : vector<8x32xf32>
    %446 = math.exp %445 : vector<8x32xf32>
    %cst_211 = arith.constant 1.000000e+00 : f32
    %447 = vector.broadcast %cst_211 : f32 to vector<8x32xf32>
    %448 = arith.addf %447, %446 : vector<8x32xf32>
    %449 = arith.divf %447, %448 : vector<8x32xf32>
    %450 = vector.extract_strided_slice %437 {offsets = [0, 64], sizes = [8, 32], strides = [1, 1]} : vector<8x128xf32> to vector<8x32xf32>
    %451 = vector.extract_strided_slice %437 {offsets = [0, 96], sizes = [8, 32], strides = [1, 1]} : vector<8x128xf32> to vector<8x32xf32>
    %c0_212 = arith.constant 0 : index
    %c0_213 = arith.constant 0 : index
    %c0_214 = arith.constant 0 : index
    %452 = vector.load %arg8[%c0_212, %c0_213, %c0_214] : memref<2x1x32xf32, #tpu.memory_space<vmem>>, vector<1x1x32xf32>
    %453 = vector.shape_cast %452 : vector<1x1x32xf32> to vector<1x32xf32>
    %454 = vector.broadcast %453 : vector<1x32xf32> to vector<8x32xf32>
    %455 = arith.addf %451, %454 : vector<8x32xf32>
    %456 = arith.mulf %443, %455 : vector<8x32xf32>
    %457 = arith.addf %450, %456 : vector<8x32xf32>
    %458 = math.tanh %457 : vector<8x32xf32>
    %cst_215 = arith.constant 1.000000e+00 : f32
    %459 = vector.broadcast %cst_215 : f32 to vector<8x32xf32>
    %460 = arith.subf %459, %449 : vector<8x32xf32>
    %461 = arith.mulf %460, %458 : vector<8x32xf32>
    %462 = arith.mulf %449, %380 : vector<8x32xf32>
    %463 = arith.addf %461, %462 : vector<8x32xf32>
    %c1_216 = arith.constant 1 : index
    %c0_217 = arith.constant 0 : index
    %c0_218 = arith.constant 0 : index
    %464 = vector.load %arg5[%c1_216, %c0_217, %c0_218] : memref<2x32x128xf32, #tpu.memory_space<vmem>>, vector<1x32x128xf32>
    %465 = vector.shape_cast %464 : vector<1x32x128xf32> to vector<32x128xf32>
    %cst_219 = arith.constant dense<0.000000e+00> : vector<8x128xf32>
    %466 = tpu.matmul %463, %465, %cst_219 {dimension_numbers = #tpu.dot_dimension_numbers<[1], [0], [0], [1], [0, 0, 1, 1], [], []>} : vector<8x32xf32>, vector<32x128xf32>, vector<8x128xf32> -> vector<8x128xf32>
    %c1_220 = arith.constant 1 : index
    %c0_221 = arith.constant 0 : index
    %c0_222 = arith.constant 0 : index
    %467 = vector.load %arg6[%c1_220, %c0_221, %c0_222] : memref<2x32x128xf32, #tpu.memory_space<vmem>>, vector<1x32x128xf32>
    %468 = vector.shape_cast %467 : vector<1x32x128xf32> to vector<32x128xf32>
    %cst_223 = arith.constant dense<0.000000e+00> : vector<8x128xf32>
    %469 = tpu.matmul %417, %468, %cst_223 {dimension_numbers = #tpu.dot_dimension_numbers<[1], [0], [0], [1], [0, 0, 1, 1], [], []>} : vector<8x32xf32>, vector<32x128xf32>, vector<8x128xf32> -> vector<8x128xf32>
    %470 = arith.addf %466, %469 : vector<8x128xf32>
    %c1_224 = arith.constant 1 : index
    %c0_225 = arith.constant 0 : index
    %c0_226 = arith.constant 0 : index
    %471 = vector.load %arg7[%c1_224, %c0_225, %c0_226] : memref<2x1x128xf32, #tpu.memory_space<vmem>>, vector<1x1x128xf32>
    %472 = vector.shape_cast %471 : vector<1x1x128xf32> to vector<1x128xf32>
    %473 = vector.broadcast %472 : vector<1x128xf32> to vector<8x128xf32>
    %474 = arith.addf %470, %473 : vector<8x128xf32>
    %475 = vector.extract_strided_slice %474 {offsets = [0, 0], sizes = [8, 32], strides = [1, 1]} : vector<8x128xf32> to vector<8x32xf32>
    %476 = arith.negf %475 : vector<8x32xf32>
    %477 = math.exp %476 : vector<8x32xf32>
    %cst_227 = arith.constant 1.000000e+00 : f32
    %478 = vector.broadcast %cst_227 : f32 to vector<8x32xf32>
    %479 = arith.addf %478, %477 : vector<8x32xf32>
    %480 = arith.divf %478, %479 : vector<8x32xf32>
    %481 = vector.extract_strided_slice %474 {offsets = [0, 32], sizes = [8, 32], strides = [1, 1]} : vector<8x128xf32> to vector<8x32xf32>
    %482 = arith.negf %481 : vector<8x32xf32>
    %483 = math.exp %482 : vector<8x32xf32>
    %cst_228 = arith.constant 1.000000e+00 : f32
    %484 = vector.broadcast %cst_228 : f32 to vector<8x32xf32>
    %485 = arith.addf %484, %483 : vector<8x32xf32>
    %486 = arith.divf %484, %485 : vector<8x32xf32>
    %487 = vector.extract_strided_slice %474 {offsets = [0, 64], sizes = [8, 32], strides = [1, 1]} : vector<8x128xf32> to vector<8x32xf32>
    %488 = vector.extract_strided_slice %474 {offsets = [0, 96], sizes = [8, 32], strides = [1, 1]} : vector<8x128xf32> to vector<8x32xf32>
    %c1_229 = arith.constant 1 : index
    %c0_230 = arith.constant 0 : index
    %c0_231 = arith.constant 0 : index
    %489 = vector.load %arg8[%c1_229, %c0_230, %c0_231] : memref<2x1x32xf32, #tpu.memory_space<vmem>>, vector<1x1x32xf32>
    %490 = vector.shape_cast %489 : vector<1x1x32xf32> to vector<1x32xf32>
    %491 = vector.broadcast %490 : vector<1x32xf32> to vector<8x32xf32>
    %492 = arith.addf %488, %491 : vector<8x32xf32>
    %493 = arith.mulf %480, %492 : vector<8x32xf32>
    %494 = arith.addf %487, %493 : vector<8x32xf32>
    %495 = math.tanh %494 : vector<8x32xf32>
    %cst_232 = arith.constant 1.000000e+00 : f32
    %496 = vector.broadcast %cst_232 : f32 to vector<8x32xf32>
    %497 = arith.subf %496, %486 : vector<8x32xf32>
    %498 = arith.mulf %497, %495 : vector<8x32xf32>
    %499 = arith.mulf %486, %417 : vector<8x32xf32>
    %500 = arith.addf %498, %499 : vector<8x32xf32>
    %c6_i32 = arith.constant 6 : i32
    %501 = arith.index_cast %c6_i32 : i32 to index
    %c0_233 = arith.constant 0 : index
    %c0_234 = arith.constant 0 : index
    %502 = vector.load %arg0[%501, %c0_233, %c0_234] : memref<8x8x1xi32, #tpu.memory_space<vmem>>, vector<1x8x1xi32>
    %503 = vector.shape_cast %502 : vector<1x8x1xi32> to vector<8x1xi32>
    %504 = vector.broadcast %503 : vector<8x1xi32> to vector<8x128xi32>
    %505 = arith.cmpi eq, %504, %0 : vector<8x128xi32>
    %506 = arith.extui %505 : vector<8x128xi1> to vector<8x128xi32>
    %507 = arith.sitofp %506 : vector<8x128xi32> to vector<8x128xf32>
    %c0_235 = arith.constant 0 : index
    %c0_236 = arith.constant 0 : index
    %508 = vector.load %arg3[%c0_235, %c0_236] : memref<128x32xf32, #tpu.memory_space<vmem>>, vector<128x32xf32>
    %cst_237 = arith.constant dense<0.000000e+00> : vector<8x32xf32>
    %509 = tpu.matmul %507, %508, %cst_237 {dimension_numbers = #tpu.dot_dimension_numbers<[1], [0], [0], [1], [0, 0, 1, 1], [], []>} : vector<8x128xf32>, vector<128x32xf32>, vector<8x32xf32> -> vector<8x32xf32>
    %c0_238 = arith.constant 0 : index
    %c0_239 = arith.constant 0 : index
    %c0_240 = arith.constant 0 : index
    %510 = vector.load %arg5[%c0_238, %c0_239, %c0_240] : memref<2x32x128xf32, #tpu.memory_space<vmem>>, vector<1x32x128xf32>
    %511 = vector.shape_cast %510 : vector<1x32x128xf32> to vector<32x128xf32>
    %cst_241 = arith.constant dense<0.000000e+00> : vector<8x128xf32>
    %512 = tpu.matmul %509, %511, %cst_241 {dimension_numbers = #tpu.dot_dimension_numbers<[1], [0], [0], [1], [0, 0, 1, 1], [], []>} : vector<8x32xf32>, vector<32x128xf32>, vector<8x128xf32> -> vector<8x128xf32>
    %c0_242 = arith.constant 0 : index
    %c0_243 = arith.constant 0 : index
    %c0_244 = arith.constant 0 : index
    %513 = vector.load %arg6[%c0_242, %c0_243, %c0_244] : memref<2x32x128xf32, #tpu.memory_space<vmem>>, vector<1x32x128xf32>
    %514 = vector.shape_cast %513 : vector<1x32x128xf32> to vector<32x128xf32>
    %cst_245 = arith.constant dense<0.000000e+00> : vector<8x128xf32>
    %515 = tpu.matmul %463, %514, %cst_245 {dimension_numbers = #tpu.dot_dimension_numbers<[1], [0], [0], [1], [0, 0, 1, 1], [], []>} : vector<8x32xf32>, vector<32x128xf32>, vector<8x128xf32> -> vector<8x128xf32>
    %516 = arith.addf %512, %515 : vector<8x128xf32>
    %c0_246 = arith.constant 0 : index
    %c0_247 = arith.constant 0 : index
    %c0_248 = arith.constant 0 : index
    %517 = vector.load %arg7[%c0_246, %c0_247, %c0_248] : memref<2x1x128xf32, #tpu.memory_space<vmem>>, vector<1x1x128xf32>
    %518 = vector.shape_cast %517 : vector<1x1x128xf32> to vector<1x128xf32>
    %519 = vector.broadcast %518 : vector<1x128xf32> to vector<8x128xf32>
    %520 = arith.addf %516, %519 : vector<8x128xf32>
    %521 = vector.extract_strided_slice %520 {offsets = [0, 0], sizes = [8, 32], strides = [1, 1]} : vector<8x128xf32> to vector<8x32xf32>
    %522 = arith.negf %521 : vector<8x32xf32>
    %523 = math.exp %522 : vector<8x32xf32>
    %cst_249 = arith.constant 1.000000e+00 : f32
    %524 = vector.broadcast %cst_249 : f32 to vector<8x32xf32>
    %525 = arith.addf %524, %523 : vector<8x32xf32>
    %526 = arith.divf %524, %525 : vector<8x32xf32>
    %527 = vector.extract_strided_slice %520 {offsets = [0, 32], sizes = [8, 32], strides = [1, 1]} : vector<8x128xf32> to vector<8x32xf32>
    %528 = arith.negf %527 : vector<8x32xf32>
    %529 = math.exp %528 : vector<8x32xf32>
    %cst_250 = arith.constant 1.000000e+00 : f32
    %530 = vector.broadcast %cst_250 : f32 to vector<8x32xf32>
    %531 = arith.addf %530, %529 : vector<8x32xf32>
    %532 = arith.divf %530, %531 : vector<8x32xf32>
    %533 = vector.extract_strided_slice %520 {offsets = [0, 64], sizes = [8, 32], strides = [1, 1]} : vector<8x128xf32> to vector<8x32xf32>
    %534 = vector.extract_strided_slice %520 {offsets = [0, 96], sizes = [8, 32], strides = [1, 1]} : vector<8x128xf32> to vector<8x32xf32>
    %c0_251 = arith.constant 0 : index
    %c0_252 = arith.constant 0 : index
    %c0_253 = arith.constant 0 : index
    %535 = vector.load %arg8[%c0_251, %c0_252, %c0_253] : memref<2x1x32xf32, #tpu.memory_space<vmem>>, vector<1x1x32xf32>
    %536 = vector.shape_cast %535 : vector<1x1x32xf32> to vector<1x32xf32>
    %537 = vector.broadcast %536 : vector<1x32xf32> to vector<8x32xf32>
    %538 = arith.addf %534, %537 : vector<8x32xf32>
    %539 = arith.mulf %526, %538 : vector<8x32xf32>
    %540 = arith.addf %533, %539 : vector<8x32xf32>
    %541 = math.tanh %540 : vector<8x32xf32>
    %cst_254 = arith.constant 1.000000e+00 : f32
    %542 = vector.broadcast %cst_254 : f32 to vector<8x32xf32>
    %543 = arith.subf %542, %532 : vector<8x32xf32>
    %544 = arith.mulf %543, %541 : vector<8x32xf32>
    %545 = arith.mulf %532, %463 : vector<8x32xf32>
    %546 = arith.addf %544, %545 : vector<8x32xf32>
    %c1_255 = arith.constant 1 : index
    %c0_256 = arith.constant 0 : index
    %c0_257 = arith.constant 0 : index
    %547 = vector.load %arg5[%c1_255, %c0_256, %c0_257] : memref<2x32x128xf32, #tpu.memory_space<vmem>>, vector<1x32x128xf32>
    %548 = vector.shape_cast %547 : vector<1x32x128xf32> to vector<32x128xf32>
    %cst_258 = arith.constant dense<0.000000e+00> : vector<8x128xf32>
    %549 = tpu.matmul %546, %548, %cst_258 {dimension_numbers = #tpu.dot_dimension_numbers<[1], [0], [0], [1], [0, 0, 1, 1], [], []>} : vector<8x32xf32>, vector<32x128xf32>, vector<8x128xf32> -> vector<8x128xf32>
    %c1_259 = arith.constant 1 : index
    %c0_260 = arith.constant 0 : index
    %c0_261 = arith.constant 0 : index
    %550 = vector.load %arg6[%c1_259, %c0_260, %c0_261] : memref<2x32x128xf32, #tpu.memory_space<vmem>>, vector<1x32x128xf32>
    %551 = vector.shape_cast %550 : vector<1x32x128xf32> to vector<32x128xf32>
    %cst_262 = arith.constant dense<0.000000e+00> : vector<8x128xf32>
    %552 = tpu.matmul %500, %551, %cst_262 {dimension_numbers = #tpu.dot_dimension_numbers<[1], [0], [0], [1], [0, 0, 1, 1], [], []>} : vector<8x32xf32>, vector<32x128xf32>, vector<8x128xf32> -> vector<8x128xf32>
    %553 = arith.addf %549, %552 : vector<8x128xf32>
    %c1_263 = arith.constant 1 : index
    %c0_264 = arith.constant 0 : index
    %c0_265 = arith.constant 0 : index
    %554 = vector.load %arg7[%c1_263, %c0_264, %c0_265] : memref<2x1x128xf32, #tpu.memory_space<vmem>>, vector<1x1x128xf32>
    %555 = vector.shape_cast %554 : vector<1x1x128xf32> to vector<1x128xf32>
    %556 = vector.broadcast %555 : vector<1x128xf32> to vector<8x128xf32>
    %557 = arith.addf %553, %556 : vector<8x128xf32>
    %558 = vector.extract_strided_slice %557 {offsets = [0, 0], sizes = [8, 32], strides = [1, 1]} : vector<8x128xf32> to vector<8x32xf32>
    %559 = arith.negf %558 : vector<8x32xf32>
    %560 = math.exp %559 : vector<8x32xf32>
    %cst_266 = arith.constant 1.000000e+00 : f32
    %561 = vector.broadcast %cst_266 : f32 to vector<8x32xf32>
    %562 = arith.addf %561, %560 : vector<8x32xf32>
    %563 = arith.divf %561, %562 : vector<8x32xf32>
    %564 = vector.extract_strided_slice %557 {offsets = [0, 32], sizes = [8, 32], strides = [1, 1]} : vector<8x128xf32> to vector<8x32xf32>
    %565 = arith.negf %564 : vector<8x32xf32>
    %566 = math.exp %565 : vector<8x32xf32>
    %cst_267 = arith.constant 1.000000e+00 : f32
    %567 = vector.broadcast %cst_267 : f32 to vector<8x32xf32>
    %568 = arith.addf %567, %566 : vector<8x32xf32>
    %569 = arith.divf %567, %568 : vector<8x32xf32>
    %570 = vector.extract_strided_slice %557 {offsets = [0, 64], sizes = [8, 32], strides = [1, 1]} : vector<8x128xf32> to vector<8x32xf32>
    %571 = vector.extract_strided_slice %557 {offsets = [0, 96], sizes = [8, 32], strides = [1, 1]} : vector<8x128xf32> to vector<8x32xf32>
    %c1_268 = arith.constant 1 : index
    %c0_269 = arith.constant 0 : index
    %c0_270 = arith.constant 0 : index
    %572 = vector.load %arg8[%c1_268, %c0_269, %c0_270] : memref<2x1x32xf32, #tpu.memory_space<vmem>>, vector<1x1x32xf32>
    %573 = vector.shape_cast %572 : vector<1x1x32xf32> to vector<1x32xf32>
    %574 = vector.broadcast %573 : vector<1x32xf32> to vector<8x32xf32>
    %575 = arith.addf %571, %574 : vector<8x32xf32>
    %576 = arith.mulf %563, %575 : vector<8x32xf32>
    %577 = arith.addf %570, %576 : vector<8x32xf32>
    %578 = math.tanh %577 : vector<8x32xf32>
    %cst_271 = arith.constant 1.000000e+00 : f32
    %579 = vector.broadcast %cst_271 : f32 to vector<8x32xf32>
    %580 = arith.subf %579, %569 : vector<8x32xf32>
    %581 = arith.mulf %580, %578 : vector<8x32xf32>
    %582 = arith.mulf %569, %500 : vector<8x32xf32>
    %583 = arith.addf %581, %582 : vector<8x32xf32>
    %c7_i32 = arith.constant 7 : i32
    %584 = arith.index_cast %c7_i32 : i32 to index
    %c0_272 = arith.constant 0 : index
    %c0_273 = arith.constant 0 : index
    %585 = vector.load %arg0[%584, %c0_272, %c0_273] : memref<8x8x1xi32, #tpu.memory_space<vmem>>, vector<1x8x1xi32>
    %586 = vector.shape_cast %585 : vector<1x8x1xi32> to vector<8x1xi32>
    %587 = vector.broadcast %586 : vector<8x1xi32> to vector<8x128xi32>
    %588 = arith.cmpi eq, %587, %0 : vector<8x128xi32>
    %589 = arith.extui %588 : vector<8x128xi1> to vector<8x128xi32>
    %590 = arith.sitofp %589 : vector<8x128xi32> to vector<8x128xf32>
    %c0_274 = arith.constant 0 : index
    %c0_275 = arith.constant 0 : index
    %591 = vector.load %arg3[%c0_274, %c0_275] : memref<128x32xf32, #tpu.memory_space<vmem>>, vector<128x32xf32>
    %cst_276 = arith.constant dense<0.000000e+00> : vector<8x32xf32>
    %592 = tpu.matmul %590, %591, %cst_276 {dimension_numbers = #tpu.dot_dimension_numbers<[1], [0], [0], [1], [0, 0, 1, 1], [], []>} : vector<8x128xf32>, vector<128x32xf32>, vector<8x32xf32> -> vector<8x32xf32>
    %c0_277 = arith.constant 0 : index
    %c0_278 = arith.constant 0 : index
    %c0_279 = arith.constant 0 : index
    %593 = vector.load %arg5[%c0_277, %c0_278, %c0_279] : memref<2x32x128xf32, #tpu.memory_space<vmem>>, vector<1x32x128xf32>
    %594 = vector.shape_cast %593 : vector<1x32x128xf32> to vector<32x128xf32>
    %cst_280 = arith.constant dense<0.000000e+00> : vector<8x128xf32>
    %595 = tpu.matmul %592, %594, %cst_280 {dimension_numbers = #tpu.dot_dimension_numbers<[1], [0], [0], [1], [0, 0, 1, 1], [], []>} : vector<8x32xf32>, vector<32x128xf32>, vector<8x128xf32> -> vector<8x128xf32>
    %c0_281 = arith.constant 0 : index
    %c0_282 = arith.constant 0 : index
    %c0_283 = arith.constant 0 : index
    %596 = vector.load %arg6[%c0_281, %c0_282, %c0_283] : memref<2x32x128xf32, #tpu.memory_space<vmem>>, vector<1x32x128xf32>
    %597 = vector.shape_cast %596 : vector<1x32x128xf32> to vector<32x128xf32>
    %cst_284 = arith.constant dense<0.000000e+00> : vector<8x128xf32>
    %598 = tpu.matmul %546, %597, %cst_284 {dimension_numbers = #tpu.dot_dimension_numbers<[1], [0], [0], [1], [0, 0, 1, 1], [], []>} : vector<8x32xf32>, vector<32x128xf32>, vector<8x128xf32> -> vector<8x128xf32>
    %599 = arith.addf %595, %598 : vector<8x128xf32>
    %c0_285 = arith.constant 0 : index
    %c0_286 = arith.constant 0 : index
    %c0_287 = arith.constant 0 : index
    %600 = vector.load %arg7[%c0_285, %c0_286, %c0_287] : memref<2x1x128xf32, #tpu.memory_space<vmem>>, vector<1x1x128xf32>
    %601 = vector.shape_cast %600 : vector<1x1x128xf32> to vector<1x128xf32>
    %602 = vector.broadcast %601 : vector<1x128xf32> to vector<8x128xf32>
    %603 = arith.addf %599, %602 : vector<8x128xf32>
    %604 = vector.extract_strided_slice %603 {offsets = [0, 0], sizes = [8, 32], strides = [1, 1]} : vector<8x128xf32> to vector<8x32xf32>
    %605 = arith.negf %604 : vector<8x32xf32>
    %606 = math.exp %605 : vector<8x32xf32>
    %cst_288 = arith.constant 1.000000e+00 : f32
    %607 = vector.broadcast %cst_288 : f32 to vector<8x32xf32>
    %608 = arith.addf %607, %606 : vector<8x32xf32>
    %609 = arith.divf %607, %608 : vector<8x32xf32>
    %610 = vector.extract_strided_slice %603 {offsets = [0, 32], sizes = [8, 32], strides = [1, 1]} : vector<8x128xf32> to vector<8x32xf32>
    %611 = arith.negf %610 : vector<8x32xf32>
    %612 = math.exp %611 : vector<8x32xf32>
    %cst_289 = arith.constant 1.000000e+00 : f32
    %613 = vector.broadcast %cst_289 : f32 to vector<8x32xf32>
    %614 = arith.addf %613, %612 : vector<8x32xf32>
    %615 = arith.divf %613, %614 : vector<8x32xf32>
    %616 = vector.extract_strided_slice %603 {offsets = [0, 64], sizes = [8, 32], strides = [1, 1]} : vector<8x128xf32> to vector<8x32xf32>
    %617 = vector.extract_strided_slice %603 {offsets = [0, 96], sizes = [8, 32], strides = [1, 1]} : vector<8x128xf32> to vector<8x32xf32>
    %c0_290 = arith.constant 0 : index
    %c0_291 = arith.constant 0 : index
    %c0_292 = arith.constant 0 : index
    %618 = vector.load %arg8[%c0_290, %c0_291, %c0_292] : memref<2x1x32xf32, #tpu.memory_space<vmem>>, vector<1x1x32xf32>
    %619 = vector.shape_cast %618 : vector<1x1x32xf32> to vector<1x32xf32>
    %620 = vector.broadcast %619 : vector<1x32xf32> to vector<8x32xf32>
    %621 = arith.addf %617, %620 : vector<8x32xf32>
    %622 = arith.mulf %609, %621 : vector<8x32xf32>
    %623 = arith.addf %616, %622 : vector<8x32xf32>
    %624 = math.tanh %623 : vector<8x32xf32>
    %cst_293 = arith.constant 1.000000e+00 : f32
    %625 = vector.broadcast %cst_293 : f32 to vector<8x32xf32>
    %626 = arith.subf %625, %615 : vector<8x32xf32>
    %627 = arith.mulf %626, %624 : vector<8x32xf32>
    %628 = arith.mulf %615, %546 : vector<8x32xf32>
    %629 = arith.addf %627, %628 : vector<8x32xf32>
    %c1_294 = arith.constant 1 : index
    %c0_295 = arith.constant 0 : index
    %c0_296 = arith.constant 0 : index
    %630 = vector.load %arg5[%c1_294, %c0_295, %c0_296] : memref<2x32x128xf32, #tpu.memory_space<vmem>>, vector<1x32x128xf32>
    %631 = vector.shape_cast %630 : vector<1x32x128xf32> to vector<32x128xf32>
    %cst_297 = arith.constant dense<0.000000e+00> : vector<8x128xf32>
    %632 = tpu.matmul %629, %631, %cst_297 {dimension_numbers = #tpu.dot_dimension_numbers<[1], [0], [0], [1], [0, 0, 1, 1], [], []>} : vector<8x32xf32>, vector<32x128xf32>, vector<8x128xf32> -> vector<8x128xf32>
    %c1_298 = arith.constant 1 : index
    %c0_299 = arith.constant 0 : index
    %c0_300 = arith.constant 0 : index
    %633 = vector.load %arg6[%c1_298, %c0_299, %c0_300] : memref<2x32x128xf32, #tpu.memory_space<vmem>>, vector<1x32x128xf32>
    %634 = vector.shape_cast %633 : vector<1x32x128xf32> to vector<32x128xf32>
    %cst_301 = arith.constant dense<0.000000e+00> : vector<8x128xf32>
    %635 = tpu.matmul %583, %634, %cst_301 {dimension_numbers = #tpu.dot_dimension_numbers<[1], [0], [0], [1], [0, 0, 1, 1], [], []>} : vector<8x32xf32>, vector<32x128xf32>, vector<8x128xf32> -> vector<8x128xf32>
    %636 = arith.addf %632, %635 : vector<8x128xf32>
    %c1_302 = arith.constant 1 : index
    %c0_303 = arith.constant 0 : index
    %c0_304 = arith.constant 0 : index
    %637 = vector.load %arg7[%c1_302, %c0_303, %c0_304] : memref<2x1x128xf32, #tpu.memory_space<vmem>>, vector<1x1x128xf32>
    %638 = vector.shape_cast %637 : vector<1x1x128xf32> to vector<1x128xf32>
    %639 = vector.broadcast %638 : vector<1x128xf32> to vector<8x128xf32>
    %640 = arith.addf %636, %639 : vector<8x128xf32>
    %641 = vector.extract_strided_slice %640 {offsets = [0, 0], sizes = [8, 32], strides = [1, 1]} : vector<8x128xf32> to vector<8x32xf32>
    %642 = arith.negf %641 : vector<8x32xf32>
    %643 = math.exp %642 : vector<8x32xf32>
    %cst_305 = arith.constant 1.000000e+00 : f32
    %644 = vector.broadcast %cst_305 : f32 to vector<8x32xf32>
    %645 = arith.addf %644, %643 : vector<8x32xf32>
    %646 = arith.divf %644, %645 : vector<8x32xf32>
    %647 = vector.extract_strided_slice %640 {offsets = [0, 32], sizes = [8, 32], strides = [1, 1]} : vector<8x128xf32> to vector<8x32xf32>
    %648 = arith.negf %647 : vector<8x32xf32>
    %649 = math.exp %648 : vector<8x32xf32>
    %cst_306 = arith.constant 1.000000e+00 : f32
    %650 = vector.broadcast %cst_306 : f32 to vector<8x32xf32>
    %651 = arith.addf %650, %649 : vector<8x32xf32>
    %652 = arith.divf %650, %651 : vector<8x32xf32>
    %653 = vector.extract_strided_slice %640 {offsets = [0, 64], sizes = [8, 32], strides = [1, 1]} : vector<8x128xf32> to vector<8x32xf32>
    %654 = vector.extract_strided_slice %640 {offsets = [0, 96], sizes = [8, 32], strides = [1, 1]} : vector<8x128xf32> to vector<8x32xf32>
    %c1_307 = arith.constant 1 : index
    %c0_308 = arith.constant 0 : index
    %c0_309 = arith.constant 0 : index
    %655 = vector.load %arg8[%c1_307, %c0_308, %c0_309] : memref<2x1x32xf32, #tpu.memory_space<vmem>>, vector<1x1x32xf32>
    %656 = vector.shape_cast %655 : vector<1x1x32xf32> to vector<1x32xf32>
    %657 = vector.broadcast %656 : vector<1x32xf32> to vector<8x32xf32>
    %658 = arith.addf %654, %657 : vector<8x32xf32>
    %659 = arith.mulf %646, %658 : vector<8x32xf32>
    %660 = arith.addf %653, %659 : vector<8x32xf32>
    %661 = math.tanh %660 : vector<8x32xf32>
    %cst_310 = arith.constant 1.000000e+00 : f32
    %662 = vector.broadcast %cst_310 : f32 to vector<8x32xf32>
    %663 = arith.subf %662, %652 : vector<8x32xf32>
    %664 = arith.mulf %663, %661 : vector<8x32xf32>
    %665 = arith.mulf %652, %583 : vector<8x32xf32>
    %666 = arith.addf %664, %665 : vector<8x32xf32>
    %c8_i32 = arith.constant 8 : i32
    %cst_311 = arith.constant 0.000000e+00 : f32
    %667 = vector.broadcast %cst_311 : f32 to vector<8x128xf32>
    %c0_312 = arith.constant 0 : index
    %c0_313 = arith.constant 0 : index
    %c0_314 = arith.constant 0 : index
    %668 = vector.load %arg15[%c0_312, %c0_313, %c0_314] : memref<8x8x128xf32, #tpu.memory_space<vmem>>, vector<1x8x128xf32>
    %669 = vector.shape_cast %668 : vector<1x8x128xf32> to vector<8x128xf32>
    %670 = vector.shape_cast %667 : vector<8x128xf32> to vector<1x8x128xf32>
    tpu.vector_store %arg15[%c0_312, %c0_313, %c0_314], %670 {strides = array<i32>} : memref<8x8x128xf32, #tpu.memory_space<vmem>>, vector<1x8x128xf32>,
    %c0_315 = arith.constant 0 : index
    %c0_316 = arith.constant 0 : index
    %c0_317 = arith.constant 0 : index
    %671 = vector.load %arg1[%c0_315, %c0_316, %c0_317] : memref<8x8x1xi32, #tpu.memory_space<vmem>>, vector<1x8x1xi32>
    %672 = vector.shape_cast %671 : vector<1x8x1xi32> to vector<8x1xi32>
    %673 = vector.broadcast %672 : vector<8x1xi32> to vector<8x128xi32>
    %674 = arith.cmpi eq, %673, %0 : vector<8x128xi32>
    %675 = arith.extui %674 : vector<8x128xi1> to vector<8x128xi32>
    %676 = arith.sitofp %675 : vector<8x128xi32> to vector<8x128xf32>
    %c0_318 = arith.constant 0 : index
    %c0_319 = arith.constant 0 : index
    %677 = vector.load %arg4[%c0_318, %c0_319] : memref<128x32xf32, #tpu.memory_space<vmem>>, vector<128x32xf32>
    %cst_320 = arith.constant dense<0.000000e+00> : vector<8x32xf32>
    %678 = tpu.matmul %676, %677, %cst_320 {dimension_numbers = #tpu.dot_dimension_numbers<[1], [0], [0], [1], [0, 0, 1, 1], [], []>} : vector<8x128xf32>, vector<128x32xf32>, vector<8x32xf32> -> vector<8x32xf32>
    %c0_i32_321 = arith.constant 0 : i32
    %c0_322 = arith.constant 0 : index
    %c0_323 = arith.constant 0 : index
    %c0_324 = arith.constant 0 : index
    %679 = vector.load %arg9[%c0_322, %c0_323, %c0_324] : memref<2x32x128xf32, #tpu.memory_space<vmem>>, vector<1x32x128xf32>
    %680 = vector.shape_cast %679 : vector<1x32x128xf32> to vector<32x128xf32>
    %cst_325 = arith.constant dense<0.000000e+00> : vector<8x128xf32>
    %681 = tpu.matmul %678, %680, %cst_325 {dimension_numbers = #tpu.dot_dimension_numbers<[1], [0], [0], [1], [0, 0, 1, 1], [], []>} : vector<8x32xf32>, vector<32x128xf32>, vector<8x128xf32> -> vector<8x128xf32>
    %c0_326 = arith.constant 0 : index
    %c0_327 = arith.constant 0 : index
    %c0_328 = arith.constant 0 : index
    %682 = vector.load %arg10[%c0_326, %c0_327, %c0_328] : memref<2x32x128xf32, #tpu.memory_space<vmem>>, vector<1x32x128xf32>
    %683 = vector.shape_cast %682 : vector<1x32x128xf32> to vector<32x128xf32>
    %cst_329 = arith.constant dense<0.000000e+00> : vector<8x128xf32>
    %684 = tpu.matmul %629, %683, %cst_329 {dimension_numbers = #tpu.dot_dimension_numbers<[1], [0], [0], [1], [0, 0, 1, 1], [], []>} : vector<8x32xf32>, vector<32x128xf32>, vector<8x128xf32> -> vector<8x128xf32>
    %685 = arith.addf %681, %684 : vector<8x128xf32>
    %c0_330 = arith.constant 0 : index
    %c0_331 = arith.constant 0 : index
    %c0_332 = arith.constant 0 : index
    %686 = vector.load %arg11[%c0_330, %c0_331, %c0_332] : memref<2x1x128xf32, #tpu.memory_space<vmem>>, vector<1x1x128xf32>
    %687 = vector.shape_cast %686 : vector<1x1x128xf32> to vector<1x128xf32>
    %688 = vector.broadcast %687 : vector<1x128xf32> to vector<8x128xf32>
    %689 = arith.addf %685, %688 : vector<8x128xf32>
    %690 = vector.extract_strided_slice %689 {offsets = [0, 0], sizes = [8, 32], strides = [1, 1]} : vector<8x128xf32> to vector<8x32xf32>
    %691 = arith.negf %690 : vector<8x32xf32>
    %692 = math.exp %691 : vector<8x32xf32>
    %cst_333 = arith.constant 1.000000e+00 : f32
    %693 = vector.broadcast %cst_333 : f32 to vector<8x32xf32>
    %694 = arith.addf %693, %692 : vector<8x32xf32>
    %695 = arith.divf %693, %694 : vector<8x32xf32>
    %696 = vector.extract_strided_slice %689 {offsets = [0, 32], sizes = [8, 32], strides = [1, 1]} : vector<8x128xf32> to vector<8x32xf32>
    %697 = arith.negf %696 : vector<8x32xf32>
    %698 = math.exp %697 : vector<8x32xf32>
    %cst_334 = arith.constant 1.000000e+00 : f32
    %699 = vector.broadcast %cst_334 : f32 to vector<8x32xf32>
    %700 = arith.addf %699, %698 : vector<8x32xf32>
    %701 = arith.divf %699, %700 : vector<8x32xf32>
    %702 = vector.extract_strided_slice %689 {offsets = [0, 64], sizes = [8, 32], strides = [1, 1]} : vector<8x128xf32> to vector<8x32xf32>
    %703 = vector.extract_strided_slice %689 {offsets = [0, 96], sizes = [8, 32], strides = [1, 1]} : vector<8x128xf32> to vector<8x32xf32>
    %c0_335 = arith.constant 0 : index
    %c0_336 = arith.constant 0 : index
    %c0_337 = arith.constant 0 : index
    %704 = vector.load %arg12[%c0_335, %c0_336, %c0_337] : memref<2x1x32xf32, #tpu.memory_space<vmem>>, vector<1x1x32xf32>
    %705 = vector.shape_cast %704 : vector<1x1x32xf32> to vector<1x32xf32>
    %706 = vector.broadcast %705 : vector<1x32xf32> to vector<8x32xf32>
    %707 = arith.addf %703, %706 : vector<8x32xf32>
    %708 = arith.mulf %695, %707 : vector<8x32xf32>
    %709 = arith.addf %702, %708 : vector<8x32xf32>
    %710 = math.tanh %709 : vector<8x32xf32>
    %cst_338 = arith.constant 1.000000e+00 : f32
    %711 = vector.broadcast %cst_338 : f32 to vector<8x32xf32>
    %712 = arith.subf %711, %701 : vector<8x32xf32>
    %713 = arith.mulf %712, %710 : vector<8x32xf32>
    %714 = arith.mulf %701, %629 : vector<8x32xf32>
    %715 = arith.addf %713, %714 : vector<8x32xf32>
    %c1_339 = arith.constant 1 : index
    %c0_340 = arith.constant 0 : index
    %c0_341 = arith.constant 0 : index
    %716 = vector.load %arg9[%c1_339, %c0_340, %c0_341] : memref<2x32x128xf32, #tpu.memory_space<vmem>>, vector<1x32x128xf32>
    %717 = vector.shape_cast %716 : vector<1x32x128xf32> to vector<32x128xf32>
    %cst_342 = arith.constant dense<0.000000e+00> : vector<8x128xf32>
    %718 = tpu.matmul %715, %717, %cst_342 {dimension_numbers = #tpu.dot_dimension_numbers<[1], [0], [0], [1], [0, 0, 1, 1], [], []>} : vector<8x32xf32>, vector<32x128xf32>, vector<8x128xf32> -> vector<8x128xf32>
    %c1_343 = arith.constant 1 : index
    %c0_344 = arith.constant 0 : index
    %c0_345 = arith.constant 0 : index
    %719 = vector.load %arg10[%c1_343, %c0_344, %c0_345] : memref<2x32x128xf32, #tpu.memory_space<vmem>>, vector<1x32x128xf32>
    %720 = vector.shape_cast %719 : vector<1x32x128xf32> to vector<32x128xf32>
    %cst_346 = arith.constant dense<0.000000e+00> : vector<8x128xf32>
    %721 = tpu.matmul %666, %720, %cst_346 {dimension_numbers = #tpu.dot_dimension_numbers<[1], [0], [0], [1], [0, 0, 1, 1], [], []>} : vector<8x32xf32>, vector<32x128xf32>, vector<8x128xf32> -> vector<8x128xf32>
    %722 = arith.addf %718, %721 : vector<8x128xf32>
    %c1_347 = arith.constant 1 : index
    %c0_348 = arith.constant 0 : index
    %c0_349 = arith.constant 0 : index
    %723 = vector.load %arg11[%c1_347, %c0_348, %c0_349] : memref<2x1x128xf32, #tpu.memory_space<vmem>>, vector<1x1x128xf32>
    %724 = vector.shape_cast %723 : vector<1x1x128xf32> to vector<1x128xf32>
    %725 = vector.broadcast %724 : vector<1x128xf32> to vector<8x128xf32>
    %726 = arith.addf %722, %725 : vector<8x128xf32>
    %727 = vector.extract_strided_slice %726 {offsets = [0, 0], sizes = [8, 32], strides = [1, 1]} : vector<8x128xf32> to vector<8x32xf32>
    %728 = arith.negf %727 : vector<8x32xf32>
    %729 = math.exp %728 : vector<8x32xf32>
    %cst_350 = arith.constant 1.000000e+00 : f32
    %730 = vector.broadcast %cst_350 : f32 to vector<8x32xf32>
    %731 = arith.addf %730, %729 : vector<8x32xf32>
    %732 = arith.divf %730, %731 : vector<8x32xf32>
    %733 = vector.extract_strided_slice %726 {offsets = [0, 32], sizes = [8, 32], strides = [1, 1]} : vector<8x128xf32> to vector<8x32xf32>
    %734 = arith.negf %733 : vector<8x32xf32>
    %735 = math.exp %734 : vector<8x32xf32>
    %cst_351 = arith.constant 1.000000e+00 : f32
    %736 = vector.broadcast %cst_351 : f32 to vector<8x32xf32>
    %737 = arith.addf %736, %735 : vector<8x32xf32>
    %738 = arith.divf %736, %737 : vector<8x32xf32>
    %739 = vector.extract_strided_slice %726 {offsets = [0, 64], sizes = [8, 32], strides = [1, 1]} : vector<8x128xf32> to vector<8x32xf32>
    %740 = vector.extract_strided_slice %726 {offsets = [0, 96], sizes = [8, 32], strides = [1, 1]} : vector<8x128xf32> to vector<8x32xf32>
    %c1_352 = arith.constant 1 : index
    %c0_353 = arith.constant 0 : index
    %c0_354 = arith.constant 0 : index
    %741 = vector.load %arg12[%c1_352, %c0_353, %c0_354] : memref<2x1x32xf32, #tpu.memory_space<vmem>>, vector<1x1x32xf32>
    %742 = vector.shape_cast %741 : vector<1x1x32xf32> to vector<1x32xf32>
    %743 = vector.broadcast %742 : vector<1x32xf32> to vector<8x32xf32>
    %744 = arith.addf %740, %743 : vector<8x32xf32>
    %745 = arith.mulf %732, %744 : vector<8x32xf32>
    %746 = arith.addf %739, %745 : vector<8x32xf32>
    %747 = math.tanh %746 : vector<8x32xf32>
    %cst_355 = arith.constant 1.000000e+00 : f32
    %748 = vector.broadcast %cst_355 : f32 to vector<8x32xf32>
    %749 = arith.subf %748, %738 : vector<8x32xf32>
    %750 = arith.mulf %749, %747 : vector<8x32xf32>
    %751 = arith.mulf %738, %666 : vector<8x32xf32>
    %752 = arith.addf %750, %751 : vector<8x32xf32>
    %c0_356 = arith.constant 0 : index
    %c0_357 = arith.constant 0 : index
    %753 = vector.load %arg13[%c0_356, %c0_357] : memref<32x128xf32, #tpu.memory_space<vmem>>, vector<32x128xf32>
    %cst_358 = arith.constant dense<0.000000e+00> : vector<8x128xf32>
    %754 = tpu.matmul %752, %753, %cst_358 {dimension_numbers = #tpu.dot_dimension_numbers<[1], [0], [0], [1], [0, 0, 1, 1], [], []>} : vector<8x32xf32>, vector<32x128xf32>, vector<8x128xf32> -> vector<8x128xf32>
    %c0_359 = arith.constant 0 : index
    %c0_360 = arith.constant 0 : index
    %755 = vector.load %arg14[%c0_359, %c0_360] : memref<1x128xf32, #tpu.memory_space<vmem>>, vector<1x128xf32>
    %756 = vector.broadcast %755 : vector<1x128xf32> to vector<8x128xf32>
    %757 = arith.addf %754, %756 : vector<8x128xf32>
    %c1_i32_361 = arith.constant 1 : i32
    %758 = arith.addi %c0_i32_321, %c1_i32_361 : i32
    %759 = arith.index_cast %758 : i32 to index
    %c0_362 = arith.constant 0 : index
    %c0_363 = arith.constant 0 : index
    %760 = vector.load %arg15[%759, %c0_362, %c0_363] : memref<8x8x128xf32, #tpu.memory_space<vmem>>, vector<1x8x128xf32>
    %761 = vector.shape_cast %760 : vector<1x8x128xf32> to vector<8x128xf32>
    %762 = vector.shape_cast %757 : vector<8x128xf32> to vector<1x8x128xf32>
    tpu.vector_store %arg15[%759, %c0_362, %c0_363], %762 {strides = array<i32>} : memref<8x8x128xf32, #tpu.memory_space<vmem>>, vector<1x8x128xf32>,
    %cst_364 = arith.constant dense<0xFF800000> : vector<8xf32>
    %763 = vector.multi_reduction <maximumf>, %757, %cst_364 [1] : vector<8x128xf32> to vector<8xf32>
    %764 = vector.shape_cast %763 : vector<8xf32> to vector<8x1xf32>
    %765 = vector.broadcast %764 : vector<8x1xf32> to vector<8x128xf32>
    %766 = arith.cmpf oge, %757, %765 : vector<8x128xf32>
    %c128_i32 = arith.constant 128 : i32
    %767 = vector.broadcast %c128_i32 : i32 to vector<8x128xi32>
    %768 = arith.select %766, %0, %767 : vector<8x128xi1>, vector<8x128xi32>
    %cst_365 = arith.constant dense<2147483647> : vector<8xi32>
    %769 = vector.multi_reduction <minsi>, %768, %cst_365 [1] : vector<8x128xi32> to vector<8xi32>
    %770 = vector.shape_cast %769 : vector<8xi32> to vector<8x1xi32>
    %771 = vector.broadcast %770 : vector<8x1xi32> to vector<8x128xi32>
    %772 = arith.cmpi eq, %0, %771 : vector<8x128xi32>
    %773 = arith.extui %772 : vector<8x128xi1> to vector<8x128xi32>
    %774 = arith.sitofp %773 : vector<8x128xi32> to vector<8x128xf32>
    %c0_366 = arith.constant 0 : index
    %c0_367 = arith.constant 0 : index
    %775 = vector.load %arg4[%c0_366, %c0_367] : memref<128x32xf32, #tpu.memory_space<vmem>>, vector<128x32xf32>
    %cst_368 = arith.constant dense<0.000000e+00> : vector<8x32xf32>
    %776 = tpu.matmul %774, %775, %cst_368 {dimension_numbers = #tpu.dot_dimension_numbers<[1], [0], [0], [1], [0, 0, 1, 1], [], []>} : vector<8x128xf32>, vector<128x32xf32>, vector<8x32xf32> -> vector<8x32xf32>
    %c1_i32_369 = arith.constant 1 : i32
    %777 = arith.addi %c0_i32_321, %c1_i32_369 : i32
    %778 = arith.index_cast %777 : i32 to index
    %c0_370 = arith.constant 0 : index
    %c0_371 = arith.constant 0 : index
    %779 = vector.load %arg1[%778, %c0_370, %c0_371] : memref<8x8x1xi32, #tpu.memory_space<vmem>>, vector<1x8x1xi32>
    %780 = vector.shape_cast %779 : vector<1x8x1xi32> to vector<8x1xi32>
    %781 = vector.broadcast %780 : vector<8x1xi32> to vector<8x128xi32>
    %782 = arith.cmpi eq, %781, %0 : vector<8x128xi32>
    %783 = arith.extui %782 : vector<8x128xi1> to vector<8x128xi32>
    %784 = arith.sitofp %783 : vector<8x128xi32> to vector<8x128xf32>
    %c0_372 = arith.constant 0 : index
    %c0_373 = arith.constant 0 : index
    %785 = vector.load %arg4[%c0_372, %c0_373] : memref<128x32xf32, #tpu.memory_space<vmem>>, vector<128x32xf32>
    %cst_374 = arith.constant dense<0.000000e+00> : vector<8x32xf32>
    %786 = tpu.matmul %784, %785, %cst_374 {dimension_numbers = #tpu.dot_dimension_numbers<[1], [0], [0], [1], [0, 0, 1, 1], [], []>} : vector<8x128xf32>, vector<128x32xf32>, vector<8x32xf32> -> vector<8x32xf32>
    %787 = arith.index_cast %c0_i32_321 : i32 to index
    %788 = memref.load %arg2[%787] : memref<7xi32, #tpu.memory_space<smem>>
    %789 = arith.sitofp %788 : i32 to f32
    %790 = vector.broadcast %789 : f32 to vector<8x32xf32>
    %791 = arith.mulf %790, %786 : vector<8x32xf32>
    %cst_375 = arith.constant 1.000000e+00 : f32
    %792 = arith.subf %cst_375, %789 : f32
    %793 = vector.broadcast %792 : f32 to vector<8x32xf32>
    %794 = arith.mulf %793, %776 : vector<8x32xf32>
    %795 = arith.addf %791, %794 : vector<8x32xf32>
    %c1_i32_376 = arith.constant 1 : i32
    %c0_377 = arith.constant 0 : index
    %c0_378 = arith.constant 0 : index
    %c0_379 = arith.constant 0 : index
    %796 = vector.load %arg9[%c0_377, %c0_378, %c0_379] : memref<2x32x128xf32, #tpu.memory_space<vmem>>, vector<1x32x128xf32>
    %797 = vector.shape_cast %796 : vector<1x32x128xf32> to vector<32x128xf32>
    %cst_380 = arith.constant dense<0.000000e+00> : vector<8x128xf32>
    %798 = tpu.matmul %795, %797, %cst_380 {dimension_numbers = #tpu.dot_dimension_numbers<[1], [0], [0], [1], [0, 0, 1, 1], [], []>} : vector<8x32xf32>, vector<32x128xf32>, vector<8x128xf32> -> vector<8x128xf32>
    %c0_381 = arith.constant 0 : index
    %c0_382 = arith.constant 0 : index
    %c0_383 = arith.constant 0 : index
    %799 = vector.load %arg10[%c0_381, %c0_382, %c0_383] : memref<2x32x128xf32, #tpu.memory_space<vmem>>, vector<1x32x128xf32>
    %800 = vector.shape_cast %799 : vector<1x32x128xf32> to vector<32x128xf32>
    %cst_384 = arith.constant dense<0.000000e+00> : vector<8x128xf32>
    %801 = tpu.matmul %715, %800, %cst_384 {dimension_numbers = #tpu.dot_dimension_numbers<[1], [0], [0], [1], [0, 0, 1, 1], [], []>} : vector<8x32xf32>, vector<32x128xf32>, vector<8x128xf32> -> vector<8x128xf32>
    %802 = arith.addf %798, %801 : vector<8x128xf32>
    %c0_385 = arith.constant 0 : index
    %c0_386 = arith.constant 0 : index
    %c0_387 = arith.constant 0 : index
    %803 = vector.load %arg11[%c0_385, %c0_386, %c0_387] : memref<2x1x128xf32, #tpu.memory_space<vmem>>, vector<1x1x128xf32>
    %804 = vector.shape_cast %803 : vector<1x1x128xf32> to vector<1x128xf32>
    %805 = vector.broadcast %804 : vector<1x128xf32> to vector<8x128xf32>
    %806 = arith.addf %802, %805 : vector<8x128xf32>
    %807 = vector.extract_strided_slice %806 {offsets = [0, 0], sizes = [8, 32], strides = [1, 1]} : vector<8x128xf32> to vector<8x32xf32>
    %808 = arith.negf %807 : vector<8x32xf32>
    %809 = math.exp %808 : vector<8x32xf32>
    %cst_388 = arith.constant 1.000000e+00 : f32
    %810 = vector.broadcast %cst_388 : f32 to vector<8x32xf32>
    %811 = arith.addf %810, %809 : vector<8x32xf32>
    %812 = arith.divf %810, %811 : vector<8x32xf32>
    %813 = vector.extract_strided_slice %806 {offsets = [0, 32], sizes = [8, 32], strides = [1, 1]} : vector<8x128xf32> to vector<8x32xf32>
    %814 = arith.negf %813 : vector<8x32xf32>
    %815 = math.exp %814 : vector<8x32xf32>
    %cst_389 = arith.constant 1.000000e+00 : f32
    %816 = vector.broadcast %cst_389 : f32 to vector<8x32xf32>
    %817 = arith.addf %816, %815 : vector<8x32xf32>
    %818 = arith.divf %816, %817 : vector<8x32xf32>
    %819 = vector.extract_strided_slice %806 {offsets = [0, 64], sizes = [8, 32], strides = [1, 1]} : vector<8x128xf32> to vector<8x32xf32>
    %820 = vector.extract_strided_slice %806 {offsets = [0, 96], sizes = [8, 32], strides = [1, 1]} : vector<8x128xf32> to vector<8x32xf32>
    %c0_390 = arith.constant 0 : index
    %c0_391 = arith.constant 0 : index
    %c0_392 = arith.constant 0 : index
    %821 = vector.load %arg12[%c0_390, %c0_391, %c0_392] : memref<2x1x32xf32, #tpu.memory_space<vmem>>, vector<1x1x32xf32>
    %822 = vector.shape_cast %821 : vector<1x1x32xf32> to vector<1x32xf32>
    %823 = vector.broadcast %822 : vector<1x32xf32> to vector<8x32xf32>
    %824 = arith.addf %820, %823 : vector<8x32xf32>
    %825 = arith.mulf %812, %824 : vector<8x32xf32>
    %826 = arith.addf %819, %825 : vector<8x32xf32>
    %827 = math.tanh %826 : vector<8x32xf32>
    %cst_393 = arith.constant 1.000000e+00 : f32
    %828 = vector.broadcast %cst_393 : f32 to vector<8x32xf32>
    %829 = arith.subf %828, %818 : vector<8x32xf32>
    %830 = arith.mulf %829, %827 : vector<8x32xf32>
    %831 = arith.mulf %818, %715 : vector<8x32xf32>
    %832 = arith.addf %830, %831 : vector<8x32xf32>
    %c1_394 = arith.constant 1 : index
    %c0_395 = arith.constant 0 : index
    %c0_396 = arith.constant 0 : index
    %833 = vector.load %arg9[%c1_394, %c0_395, %c0_396] : memref<2x32x128xf32, #tpu.memory_space<vmem>>, vector<1x32x128xf32>
    %834 = vector.shape_cast %833 : vector<1x32x128xf32> to vector<32x128xf32>
    %cst_397 = arith.constant dense<0.000000e+00> : vector<8x128xf32>
    %835 = tpu.matmul %832, %834, %cst_397 {dimension_numbers = #tpu.dot_dimension_numbers<[1], [0], [0], [1], [0, 0, 1, 1], [], []>} : vector<8x32xf32>, vector<32x128xf32>, vector<8x128xf32> -> vector<8x128xf32>
    %c1_398 = arith.constant 1 : index
    %c0_399 = arith.constant 0 : index
    %c0_400 = arith.constant 0 : index
    %836 = vector.load %arg10[%c1_398, %c0_399, %c0_400] : memref<2x32x128xf32, #tpu.memory_space<vmem>>, vector<1x32x128xf32>
    %837 = vector.shape_cast %836 : vector<1x32x128xf32> to vector<32x128xf32>
    %cst_401 = arith.constant dense<0.000000e+00> : vector<8x128xf32>
    %838 = tpu.matmul %752, %837, %cst_401 {dimension_numbers = #tpu.dot_dimension_numbers<[1], [0], [0], [1], [0, 0, 1, 1], [], []>} : vector<8x32xf32>, vector<32x128xf32>, vector<8x128xf32> -> vector<8x128xf32>
    %839 = arith.addf %835, %838 : vector<8x128xf32>
    %c1_402 = arith.constant 1 : index
    %c0_403 = arith.constant 0 : index
    %c0_404 = arith.constant 0 : index
    %840 = vector.load %arg11[%c1_402, %c0_403, %c0_404] : memref<2x1x128xf32, #tpu.memory_space<vmem>>, vector<1x1x128xf32>
    %841 = vector.shape_cast %840 : vector<1x1x128xf32> to vector<1x128xf32>
    %842 = vector.broadcast %841 : vector<1x128xf32> to vector<8x128xf32>
    %843 = arith.addf %839, %842 : vector<8x128xf32>
    %844 = vector.extract_strided_slice %843 {offsets = [0, 0], sizes = [8, 32], strides = [1, 1]} : vector<8x128xf32> to vector<8x32xf32>
    %845 = arith.negf %844 : vector<8x32xf32>
    %846 = math.exp %845 : vector<8x32xf32>
    %cst_405 = arith.constant 1.000000e+00 : f32
    %847 = vector.broadcast %cst_405 : f32 to vector<8x32xf32>
    %848 = arith.addf %847, %846 : vector<8x32xf32>
    %849 = arith.divf %847, %848 : vector<8x32xf32>
    %850 = vector.extract_strided_slice %843 {offsets = [0, 32], sizes = [8, 32], strides = [1, 1]} : vector<8x128xf32> to vector<8x32xf32>
    %851 = arith.negf %850 : vector<8x32xf32>
    %852 = math.exp %851 : vector<8x32xf32>
    %cst_406 = arith.constant 1.000000e+00 : f32
    %853 = vector.broadcast %cst_406 : f32 to vector<8x32xf32>
    %854 = arith.addf %853, %852 : vector<8x32xf32>
    %855 = arith.divf %853, %854 : vector<8x32xf32>
    %856 = vector.extract_strided_slice %843 {offsets = [0, 64], sizes = [8, 32], strides = [1, 1]} : vector<8x128xf32> to vector<8x32xf32>
    %857 = vector.extract_strided_slice %843 {offsets = [0, 96], sizes = [8, 32], strides = [1, 1]} : vector<8x128xf32> to vector<8x32xf32>
    %c1_407 = arith.constant 1 : index
    %c0_408 = arith.constant 0 : index
    %c0_409 = arith.constant 0 : index
    %858 = vector.load %arg12[%c1_407, %c0_408, %c0_409] : memref<2x1x32xf32, #tpu.memory_space<vmem>>, vector<1x1x32xf32>
    %859 = vector.shape_cast %858 : vector<1x1x32xf32> to vector<1x32xf32>
    %860 = vector.broadcast %859 : vector<1x32xf32> to vector<8x32xf32>
    %861 = arith.addf %857, %860 : vector<8x32xf32>
    %862 = arith.mulf %849, %861 : vector<8x32xf32>
    %863 = arith.addf %856, %862 : vector<8x32xf32>
    %864 = math.tanh %863 : vector<8x32xf32>
    %cst_410 = arith.constant 1.000000e+00 : f32
    %865 = vector.broadcast %cst_410 : f32 to vector<8x32xf32>
    %866 = arith.subf %865, %855 : vector<8x32xf32>
    %867 = arith.mulf %866, %864 : vector<8x32xf32>
    %868 = arith.mulf %855, %752 : vector<8x32xf32>
    %869 = arith.addf %867, %868 : vector<8x32xf32>
    %c0_411 = arith.constant 0 : index
    %c0_412 = arith.constant 0 : index
    %870 = vector.load %arg13[%c0_411, %c0_412] : memref<32x128xf32, #tpu.memory_space<vmem>>, vector<32x128xf32>
    %cst_413 = arith.constant dense<0.000000e+00> : vector<8x128xf32>
    %871 = tpu.matmul %869, %870, %cst_413 {dimension_numbers = #tpu.dot_dimension_numbers<[1], [0], [0], [1], [0, 0, 1, 1], [], []>} : vector<8x32xf32>, vector<32x128xf32>, vector<8x128xf32> -> vector<8x128xf32>
    %c0_414 = arith.constant 0 : index
    %c0_415 = arith.constant 0 : index
    %872 = vector.load %arg14[%c0_414, %c0_415] : memref<1x128xf32, #tpu.memory_space<vmem>>, vector<1x128xf32>
    %873 = vector.broadcast %872 : vector<1x128xf32> to vector<8x128xf32>
    %874 = arith.addf %871, %873 : vector<8x128xf32>
    %c1_i32_416 = arith.constant 1 : i32
    %875 = arith.addi %c1_i32_376, %c1_i32_416 : i32
    %876 = arith.index_cast %875 : i32 to index
    %c0_417 = arith.constant 0 : index
    %c0_418 = arith.constant 0 : index
    %877 = vector.load %arg15[%876, %c0_417, %c0_418] : memref<8x8x128xf32, #tpu.memory_space<vmem>>, vector<1x8x128xf32>
    %878 = vector.shape_cast %877 : vector<1x8x128xf32> to vector<8x128xf32>
    %879 = vector.shape_cast %874 : vector<8x128xf32> to vector<1x8x128xf32>
    tpu.vector_store %arg15[%876, %c0_417, %c0_418], %879 {strides = array<i32>} : memref<8x8x128xf32, #tpu.memory_space<vmem>>, vector<1x8x128xf32>,
    %cst_419 = arith.constant dense<0xFF800000> : vector<8xf32>
    %880 = vector.multi_reduction <maximumf>, %874, %cst_419 [1] : vector<8x128xf32> to vector<8xf32>
    %881 = vector.shape_cast %880 : vector<8xf32> to vector<8x1xf32>
    %882 = vector.broadcast %881 : vector<8x1xf32> to vector<8x128xf32>
    %883 = arith.cmpf oge, %874, %882 : vector<8x128xf32>
    %c128_i32_420 = arith.constant 128 : i32
    %884 = vector.broadcast %c128_i32_420 : i32 to vector<8x128xi32>
    %885 = arith.select %883, %0, %884 : vector<8x128xi1>, vector<8x128xi32>
    %cst_421 = arith.constant dense<2147483647> : vector<8xi32>
    %886 = vector.multi_reduction <minsi>, %885, %cst_421 [1] : vector<8x128xi32> to vector<8xi32>
    %887 = vector.shape_cast %886 : vector<8xi32> to vector<8x1xi32>
    %888 = vector.broadcast %887 : vector<8x1xi32> to vector<8x128xi32>
    %889 = arith.cmpi eq, %0, %888 : vector<8x128xi32>
    %890 = arith.extui %889 : vector<8x128xi1> to vector<8x128xi32>
    %891 = arith.sitofp %890 : vector<8x128xi32> to vector<8x128xf32>
    %c0_422 = arith.constant 0 : index
    %c0_423 = arith.constant 0 : index
    %892 = vector.load %arg4[%c0_422, %c0_423] : memref<128x32xf32, #tpu.memory_space<vmem>>, vector<128x32xf32>
    %cst_424 = arith.constant dense<0.000000e+00> : vector<8x32xf32>
    %893 = tpu.matmul %891, %892, %cst_424 {dimension_numbers = #tpu.dot_dimension_numbers<[1], [0], [0], [1], [0, 0, 1, 1], [], []>} : vector<8x128xf32>, vector<128x32xf32>, vector<8x32xf32> -> vector<8x32xf32>
    %c1_i32_425 = arith.constant 1 : i32
    %894 = arith.addi %c1_i32_376, %c1_i32_425 : i32
    %895 = arith.index_cast %894 : i32 to index
    %c0_426 = arith.constant 0 : index
    %c0_427 = arith.constant 0 : index
    %896 = vector.load %arg1[%895, %c0_426, %c0_427] : memref<8x8x1xi32, #tpu.memory_space<vmem>>, vector<1x8x1xi32>
    %897 = vector.shape_cast %896 : vector<1x8x1xi32> to vector<8x1xi32>
    %898 = vector.broadcast %897 : vector<8x1xi32> to vector<8x128xi32>
    %899 = arith.cmpi eq, %898, %0 : vector<8x128xi32>
    %900 = arith.extui %899 : vector<8x128xi1> to vector<8x128xi32>
    %901 = arith.sitofp %900 : vector<8x128xi32> to vector<8x128xf32>
    %c0_428 = arith.constant 0 : index
    %c0_429 = arith.constant 0 : index
    %902 = vector.load %arg4[%c0_428, %c0_429] : memref<128x32xf32, #tpu.memory_space<vmem>>, vector<128x32xf32>
    %cst_430 = arith.constant dense<0.000000e+00> : vector<8x32xf32>
    %903 = tpu.matmul %901, %902, %cst_430 {dimension_numbers = #tpu.dot_dimension_numbers<[1], [0], [0], [1], [0, 0, 1, 1], [], []>} : vector<8x128xf32>, vector<128x32xf32>, vector<8x32xf32> -> vector<8x32xf32>
    %904 = arith.index_cast %c1_i32_376 : i32 to index
    %905 = memref.load %arg2[%904] : memref<7xi32, #tpu.memory_space<smem>>
    %906 = arith.sitofp %905 : i32 to f32
    %907 = vector.broadcast %906 : f32 to vector<8x32xf32>
    %908 = arith.mulf %907, %903 : vector<8x32xf32>
    %cst_431 = arith.constant 1.000000e+00 : f32
    %909 = arith.subf %cst_431, %906 : f32
    %910 = vector.broadcast %909 : f32 to vector<8x32xf32>
    %911 = arith.mulf %910, %893 : vector<8x32xf32>
    %912 = arith.addf %908, %911 : vector<8x32xf32>
    %c2_i32_432 = arith.constant 2 : i32
    %c0_433 = arith.constant 0 : index
    %c0_434 = arith.constant 0 : index
    %c0_435 = arith.constant 0 : index
    %913 = vector.load %arg9[%c0_433, %c0_434, %c0_435] : memref<2x32x128xf32, #tpu.memory_space<vmem>>, vector<1x32x128xf32>
    %914 = vector.shape_cast %913 : vector<1x32x128xf32> to vector<32x128xf32>
    %cst_436 = arith.constant dense<0.000000e+00> : vector<8x128xf32>
    %915 = tpu.matmul %912, %914, %cst_436 {dimension_numbers = #tpu.dot_dimension_numbers<[1], [0], [0], [1], [0, 0, 1, 1], [], []>} : vector<8x32xf32>, vector<32x128xf32>, vector<8x128xf32> -> vector<8x128xf32>
    %c0_437 = arith.constant 0 : index
    %c0_438 = arith.constant 0 : index
    %c0_439 = arith.constant 0 : index
    %916 = vector.load %arg10[%c0_437, %c0_438, %c0_439] : memref<2x32x128xf32, #tpu.memory_space<vmem>>, vector<1x32x128xf32>
    %917 = vector.shape_cast %916 : vector<1x32x128xf32> to vector<32x128xf32>
    %cst_440 = arith.constant dense<0.000000e+00> : vector<8x128xf32>
    %918 = tpu.matmul %832, %917, %cst_440 {dimension_numbers = #tpu.dot_dimension_numbers<[1], [0], [0], [1], [0, 0, 1, 1], [], []>} : vector<8x32xf32>, vector<32x128xf32>, vector<8x128xf32> -> vector<8x128xf32>
    %919 = arith.addf %915, %918 : vector<8x128xf32>
    %c0_441 = arith.constant 0 : index
    %c0_442 = arith.constant 0 : index
    %c0_443 = arith.constant 0 : index
    %920 = vector.load %arg11[%c0_441, %c0_442, %c0_443] : memref<2x1x128xf32, #tpu.memory_space<vmem>>, vector<1x1x128xf32>
    %921 = vector.shape_cast %920 : vector<1x1x128xf32> to vector<1x128xf32>
    %922 = vector.broadcast %921 : vector<1x128xf32> to vector<8x128xf32>
    %923 = arith.addf %919, %922 : vector<8x128xf32>
    %924 = vector.extract_strided_slice %923 {offsets = [0, 0], sizes = [8, 32], strides = [1, 1]} : vector<8x128xf32> to vector<8x32xf32>
    %925 = arith.negf %924 : vector<8x32xf32>
    %926 = math.exp %925 : vector<8x32xf32>
    %cst_444 = arith.constant 1.000000e+00 : f32
    %927 = vector.broadcast %cst_444 : f32 to vector<8x32xf32>
    %928 = arith.addf %927, %926 : vector<8x32xf32>
    %929 = arith.divf %927, %928 : vector<8x32xf32>
    %930 = vector.extract_strided_slice %923 {offsets = [0, 32], sizes = [8, 32], strides = [1, 1]} : vector<8x128xf32> to vector<8x32xf32>
    %931 = arith.negf %930 : vector<8x32xf32>
    %932 = math.exp %931 : vector<8x32xf32>
    %cst_445 = arith.constant 1.000000e+00 : f32
    %933 = vector.broadcast %cst_445 : f32 to vector<8x32xf32>
    %934 = arith.addf %933, %932 : vector<8x32xf32>
    %935 = arith.divf %933, %934 : vector<8x32xf32>
    %936 = vector.extract_strided_slice %923 {offsets = [0, 64], sizes = [8, 32], strides = [1, 1]} : vector<8x128xf32> to vector<8x32xf32>
    %937 = vector.extract_strided_slice %923 {offsets = [0, 96], sizes = [8, 32], strides = [1, 1]} : vector<8x128xf32> to vector<8x32xf32>
    %c0_446 = arith.constant 0 : index
    %c0_447 = arith.constant 0 : index
    %c0_448 = arith.constant 0 : index
    %938 = vector.load %arg12[%c0_446, %c0_447, %c0_448] : memref<2x1x32xf32, #tpu.memory_space<vmem>>, vector<1x1x32xf32>
    %939 = vector.shape_cast %938 : vector<1x1x32xf32> to vector<1x32xf32>
    %940 = vector.broadcast %939 : vector<1x32xf32> to vector<8x32xf32>
    %941 = arith.addf %937, %940 : vector<8x32xf32>
    %942 = arith.mulf %929, %941 : vector<8x32xf32>
    %943 = arith.addf %936, %942 : vector<8x32xf32>
    %944 = math.tanh %943 : vector<8x32xf32>
    %cst_449 = arith.constant 1.000000e+00 : f32
    %945 = vector.broadcast %cst_449 : f32 to vector<8x32xf32>
    %946 = arith.subf %945, %935 : vector<8x32xf32>
    %947 = arith.mulf %946, %944 : vector<8x32xf32>
    %948 = arith.mulf %935, %832 : vector<8x32xf32>
    %949 = arith.addf %947, %948 : vector<8x32xf32>
    %c1_450 = arith.constant 1 : index
    %c0_451 = arith.constant 0 : index
    %c0_452 = arith.constant 0 : index
    %950 = vector.load %arg9[%c1_450, %c0_451, %c0_452] : memref<2x32x128xf32, #tpu.memory_space<vmem>>, vector<1x32x128xf32>
    %951 = vector.shape_cast %950 : vector<1x32x128xf32> to vector<32x128xf32>
    %cst_453 = arith.constant dense<0.000000e+00> : vector<8x128xf32>
    %952 = tpu.matmul %949, %951, %cst_453 {dimension_numbers = #tpu.dot_dimension_numbers<[1], [0], [0], [1], [0, 0, 1, 1], [], []>} : vector<8x32xf32>, vector<32x128xf32>, vector<8x128xf32> -> vector<8x128xf32>
    %c1_454 = arith.constant 1 : index
    %c0_455 = arith.constant 0 : index
    %c0_456 = arith.constant 0 : index
    %953 = vector.load %arg10[%c1_454, %c0_455, %c0_456] : memref<2x32x128xf32, #tpu.memory_space<vmem>>, vector<1x32x128xf32>
    %954 = vector.shape_cast %953 : vector<1x32x128xf32> to vector<32x128xf32>
    %cst_457 = arith.constant dense<0.000000e+00> : vector<8x128xf32>
    %955 = tpu.matmul %869, %954, %cst_457 {dimension_numbers = #tpu.dot_dimension_numbers<[1], [0], [0], [1], [0, 0, 1, 1], [], []>} : vector<8x32xf32>, vector<32x128xf32>, vector<8x128xf32> -> vector<8x128xf32>
    %956 = arith.addf %952, %955 : vector<8x128xf32>
    %c1_458 = arith.constant 1 : index
    %c0_459 = arith.constant 0 : index
    %c0_460 = arith.constant 0 : index
    %957 = vector.load %arg11[%c1_458, %c0_459, %c0_460] : memref<2x1x128xf32, #tpu.memory_space<vmem>>, vector<1x1x128xf32>
    %958 = vector.shape_cast %957 : vector<1x1x128xf32> to vector<1x128xf32>
    %959 = vector.broadcast %958 : vector<1x128xf32> to vector<8x128xf32>
    %960 = arith.addf %956, %959 : vector<8x128xf32>
    %961 = vector.extract_strided_slice %960 {offsets = [0, 0], sizes = [8, 32], strides = [1, 1]} : vector<8x128xf32> to vector<8x32xf32>
    %962 = arith.negf %961 : vector<8x32xf32>
    %963 = math.exp %962 : vector<8x32xf32>
    %cst_461 = arith.constant 1.000000e+00 : f32
    %964 = vector.broadcast %cst_461 : f32 to vector<8x32xf32>
    %965 = arith.addf %964, %963 : vector<8x32xf32>
    %966 = arith.divf %964, %965 : vector<8x32xf32>
    %967 = vector.extract_strided_slice %960 {offsets = [0, 32], sizes = [8, 32], strides = [1, 1]} : vector<8x128xf32> to vector<8x32xf32>
    %968 = arith.negf %967 : vector<8x32xf32>
    %969 = math.exp %968 : vector<8x32xf32>
    %cst_462 = arith.constant 1.000000e+00 : f32
    %970 = vector.broadcast %cst_462 : f32 to vector<8x32xf32>
    %971 = arith.addf %970, %969 : vector<8x32xf32>
    %972 = arith.divf %970, %971 : vector<8x32xf32>
    %973 = vector.extract_strided_slice %960 {offsets = [0, 64], sizes = [8, 32], strides = [1, 1]} : vector<8x128xf32> to vector<8x32xf32>
    %974 = vector.extract_strided_slice %960 {offsets = [0, 96], sizes = [8, 32], strides = [1, 1]} : vector<8x128xf32> to vector<8x32xf32>
    %c1_463 = arith.constant 1 : index
    %c0_464 = arith.constant 0 : index
    %c0_465 = arith.constant 0 : index
    %975 = vector.load %arg12[%c1_463, %c0_464, %c0_465] : memref<2x1x32xf32, #tpu.memory_space<vmem>>, vector<1x1x32xf32>
    %976 = vector.shape_cast %975 : vector<1x1x32xf32> to vector<1x32xf32>
    %977 = vector.broadcast %976 : vector<1x32xf32> to vector<8x32xf32>
    %978 = arith.addf %974, %977 : vector<8x32xf32>
    %979 = arith.mulf %966, %978 : vector<8x32xf32>
    %980 = arith.addf %973, %979 : vector<8x32xf32>
    %981 = math.tanh %980 : vector<8x32xf32>
    %cst_466 = arith.constant 1.000000e+00 : f32
    %982 = vector.broadcast %cst_466 : f32 to vector<8x32xf32>
    %983 = arith.subf %982, %972 : vector<8x32xf32>
    %984 = arith.mulf %983, %981 : vector<8x32xf32>
    %985 = arith.mulf %972, %869 : vector<8x32xf32>
    %986 = arith.addf %984, %985 : vector<8x32xf32>
    %c0_467 = arith.constant 0 : index
    %c0_468 = arith.constant 0 : index
    %987 = vector.load %arg13[%c0_467, %c0_468] : memref<32x128xf32, #tpu.memory_space<vmem>>, vector<32x128xf32>
    %cst_469 = arith.constant dense<0.000000e+00> : vector<8x128xf32>
    %988 = tpu.matmul %986, %987, %cst_469 {dimension_numbers = #tpu.dot_dimension_numbers<[1], [0], [0], [1], [0, 0, 1, 1], [], []>} : vector<8x32xf32>, vector<32x128xf32>, vector<8x128xf32> -> vector<8x128xf32>
    %c0_470 = arith.constant 0 : index
    %c0_471 = arith.constant 0 : index
    %989 = vector.load %arg14[%c0_470, %c0_471] : memref<1x128xf32, #tpu.memory_space<vmem>>, vector<1x128xf32>
    %990 = vector.broadcast %989 : vector<1x128xf32> to vector<8x128xf32>
    %991 = arith.addf %988, %990 : vector<8x128xf32>
    %c1_i32_472 = arith.constant 1 : i32
    %992 = arith.addi %c2_i32_432, %c1_i32_472 : i32
    %993 = arith.index_cast %992 : i32 to index
    %c0_473 = arith.constant 0 : index
    %c0_474 = arith.constant 0 : index
    %994 = vector.load %arg15[%993, %c0_473, %c0_474] : memref<8x8x128xf32, #tpu.memory_space<vmem>>, vector<1x8x128xf32>
    %995 = vector.shape_cast %994 : vector<1x8x128xf32> to vector<8x128xf32>
    %996 = vector.shape_cast %991 : vector<8x128xf32> to vector<1x8x128xf32>
    tpu.vector_store %arg15[%993, %c0_473, %c0_474], %996 {strides = array<i32>} : memref<8x8x128xf32, #tpu.memory_space<vmem>>, vector<1x8x128xf32>,
    %cst_475 = arith.constant dense<0xFF800000> : vector<8xf32>
    %997 = vector.multi_reduction <maximumf>, %991, %cst_475 [1] : vector<8x128xf32> to vector<8xf32>
    %998 = vector.shape_cast %997 : vector<8xf32> to vector<8x1xf32>
    %999 = vector.broadcast %998 : vector<8x1xf32> to vector<8x128xf32>
    %1000 = arith.cmpf oge, %991, %999 : vector<8x128xf32>
    %c128_i32_476 = arith.constant 128 : i32
    %1001 = vector.broadcast %c128_i32_476 : i32 to vector<8x128xi32>
    %1002 = arith.select %1000, %0, %1001 : vector<8x128xi1>, vector<8x128xi32>
    %cst_477 = arith.constant dense<2147483647> : vector<8xi32>
    %1003 = vector.multi_reduction <minsi>, %1002, %cst_477 [1] : vector<8x128xi32> to vector<8xi32>
    %1004 = vector.shape_cast %1003 : vector<8xi32> to vector<8x1xi32>
    %1005 = vector.broadcast %1004 : vector<8x1xi32> to vector<8x128xi32>
    %1006 = arith.cmpi eq, %0, %1005 : vector<8x128xi32>
    %1007 = arith.extui %1006 : vector<8x128xi1> to vector<8x128xi32>
    %1008 = arith.sitofp %1007 : vector<8x128xi32> to vector<8x128xf32>
    %c0_478 = arith.constant 0 : index
    %c0_479 = arith.constant 0 : index
    %1009 = vector.load %arg4[%c0_478, %c0_479] : memref<128x32xf32, #tpu.memory_space<vmem>>, vector<128x32xf32>
    %cst_480 = arith.constant dense<0.000000e+00> : vector<8x32xf32>
    %1010 = tpu.matmul %1008, %1009, %cst_480 {dimension_numbers = #tpu.dot_dimension_numbers<[1], [0], [0], [1], [0, 0, 1, 1], [], []>} : vector<8x128xf32>, vector<128x32xf32>, vector<8x32xf32> -> vector<8x32xf32>
    %c1_i32_481 = arith.constant 1 : i32
    %1011 = arith.addi %c2_i32_432, %c1_i32_481 : i32
    %1012 = arith.index_cast %1011 : i32 to index
    %c0_482 = arith.constant 0 : index
    %c0_483 = arith.constant 0 : index
    %1013 = vector.load %arg1[%1012, %c0_482, %c0_483] : memref<8x8x1xi32, #tpu.memory_space<vmem>>, vector<1x8x1xi32>
    %1014 = vector.shape_cast %1013 : vector<1x8x1xi32> to vector<8x1xi32>
    %1015 = vector.broadcast %1014 : vector<8x1xi32> to vector<8x128xi32>
    %1016 = arith.cmpi eq, %1015, %0 : vector<8x128xi32>
    %1017 = arith.extui %1016 : vector<8x128xi1> to vector<8x128xi32>
    %1018 = arith.sitofp %1017 : vector<8x128xi32> to vector<8x128xf32>
    %c0_484 = arith.constant 0 : index
    %c0_485 = arith.constant 0 : index
    %1019 = vector.load %arg4[%c0_484, %c0_485] : memref<128x32xf32, #tpu.memory_space<vmem>>, vector<128x32xf32>
    %cst_486 = arith.constant dense<0.000000e+00> : vector<8x32xf32>
    %1020 = tpu.matmul %1018, %1019, %cst_486 {dimension_numbers = #tpu.dot_dimension_numbers<[1], [0], [0], [1], [0, 0, 1, 1], [], []>} : vector<8x128xf32>, vector<128x32xf32>, vector<8x32xf32> -> vector<8x32xf32>
    %1021 = arith.index_cast %c2_i32_432 : i32 to index
    %1022 = memref.load %arg2[%1021] : memref<7xi32, #tpu.memory_space<smem>>
    %1023 = arith.sitofp %1022 : i32 to f32
    %1024 = vector.broadcast %1023 : f32 to vector<8x32xf32>
    %1025 = arith.mulf %1024, %1020 : vector<8x32xf32>
    %cst_487 = arith.constant 1.000000e+00 : f32
    %1026 = arith.subf %cst_487, %1023 : f32
    %1027 = vector.broadcast %1026 : f32 to vector<8x32xf32>
    %1028 = arith.mulf %1027, %1010 : vector<8x32xf32>
    %1029 = arith.addf %1025, %1028 : vector<8x32xf32>
    %c3_i32_488 = arith.constant 3 : i32
    %c0_489 = arith.constant 0 : index
    %c0_490 = arith.constant 0 : index
    %c0_491 = arith.constant 0 : index
    %1030 = vector.load %arg9[%c0_489, %c0_490, %c0_491] : memref<2x32x128xf32, #tpu.memory_space<vmem>>, vector<1x32x128xf32>
    %1031 = vector.shape_cast %1030 : vector<1x32x128xf32> to vector<32x128xf32>
    %cst_492 = arith.constant dense<0.000000e+00> : vector<8x128xf32>
    %1032 = tpu.matmul %1029, %1031, %cst_492 {dimension_numbers = #tpu.dot_dimension_numbers<[1], [0], [0], [1], [0, 0, 1, 1], [], []>} : vector<8x32xf32>, vector<32x128xf32>, vector<8x128xf32> -> vector<8x128xf32>
    %c0_493 = arith.constant 0 : index
    %c0_494 = arith.constant 0 : index
    %c0_495 = arith.constant 0 : index
    %1033 = vector.load %arg10[%c0_493, %c0_494, %c0_495] : memref<2x32x128xf32, #tpu.memory_space<vmem>>, vector<1x32x128xf32>
    %1034 = vector.shape_cast %1033 : vector<1x32x128xf32> to vector<32x128xf32>
    %cst_496 = arith.constant dense<0.000000e+00> : vector<8x128xf32>
    %1035 = tpu.matmul %949, %1034, %cst_496 {dimension_numbers = #tpu.dot_dimension_numbers<[1], [0], [0], [1], [0, 0, 1, 1], [], []>} : vector<8x32xf32>, vector<32x128xf32>, vector<8x128xf32> -> vector<8x128xf32>
    %1036 = arith.addf %1032, %1035 : vector<8x128xf32>
    %c0_497 = arith.constant 0 : index
    %c0_498 = arith.constant 0 : index
    %c0_499 = arith.constant 0 : index
    %1037 = vector.load %arg11[%c0_497, %c0_498, %c0_499] : memref<2x1x128xf32, #tpu.memory_space<vmem>>, vector<1x1x128xf32>
    %1038 = vector.shape_cast %1037 : vector<1x1x128xf32> to vector<1x128xf32>
    %1039 = vector.broadcast %1038 : vector<1x128xf32> to vector<8x128xf32>
    %1040 = arith.addf %1036, %1039 : vector<8x128xf32>
    %1041 = vector.extract_strided_slice %1040 {offsets = [0, 0], sizes = [8, 32], strides = [1, 1]} : vector<8x128xf32> to vector<8x32xf32>
    %1042 = arith.negf %1041 : vector<8x32xf32>
    %1043 = math.exp %1042 : vector<8x32xf32>
    %cst_500 = arith.constant 1.000000e+00 : f32
    %1044 = vector.broadcast %cst_500 : f32 to vector<8x32xf32>
    %1045 = arith.addf %1044, %1043 : vector<8x32xf32>
    %1046 = arith.divf %1044, %1045 : vector<8x32xf32>
    %1047 = vector.extract_strided_slice %1040 {offsets = [0, 32], sizes = [8, 32], strides = [1, 1]} : vector<8x128xf32> to vector<8x32xf32>
    %1048 = arith.negf %1047 : vector<8x32xf32>
    %1049 = math.exp %1048 : vector<8x32xf32>
    %cst_501 = arith.constant 1.000000e+00 : f32
    %1050 = vector.broadcast %cst_501 : f32 to vector<8x32xf32>
    %1051 = arith.addf %1050, %1049 : vector<8x32xf32>
    %1052 = arith.divf %1050, %1051 : vector<8x32xf32>
    %1053 = vector.extract_strided_slice %1040 {offsets = [0, 64], sizes = [8, 32], strides = [1, 1]} : vector<8x128xf32> to vector<8x32xf32>
    %1054 = vector.extract_strided_slice %1040 {offsets = [0, 96], sizes = [8, 32], strides = [1, 1]} : vector<8x128xf32> to vector<8x32xf32>
    %c0_502 = arith.constant 0 : index
    %c0_503 = arith.constant 0 : index
    %c0_504 = arith.constant 0 : index
    %1055 = vector.load %arg12[%c0_502, %c0_503, %c0_504] : memref<2x1x32xf32, #tpu.memory_space<vmem>>, vector<1x1x32xf32>
    %1056 = vector.shape_cast %1055 : vector<1x1x32xf32> to vector<1x32xf32>
    %1057 = vector.broadcast %1056 : vector<1x32xf32> to vector<8x32xf32>
    %1058 = arith.addf %1054, %1057 : vector<8x32xf32>
    %1059 = arith.mulf %1046, %1058 : vector<8x32xf32>
    %1060 = arith.addf %1053, %1059 : vector<8x32xf32>
    %1061 = math.tanh %1060 : vector<8x32xf32>
    %cst_505 = arith.constant 1.000000e+00 : f32
    %1062 = vector.broadcast %cst_505 : f32 to vector<8x32xf32>
    %1063 = arith.subf %1062, %1052 : vector<8x32xf32>
    %1064 = arith.mulf %1063, %1061 : vector<8x32xf32>
    %1065 = arith.mulf %1052, %949 : vector<8x32xf32>
    %1066 = arith.addf %1064, %1065 : vector<8x32xf32>
    %c1_506 = arith.constant 1 : index
    %c0_507 = arith.constant 0 : index
    %c0_508 = arith.constant 0 : index
    %1067 = vector.load %arg9[%c1_506, %c0_507, %c0_508] : memref<2x32x128xf32, #tpu.memory_space<vmem>>, vector<1x32x128xf32>
    %1068 = vector.shape_cast %1067 : vector<1x32x128xf32> to vector<32x128xf32>
    %cst_509 = arith.constant dense<0.000000e+00> : vector<8x128xf32>
    %1069 = tpu.matmul %1066, %1068, %cst_509 {dimension_numbers = #tpu.dot_dimension_numbers<[1], [0], [0], [1], [0, 0, 1, 1], [], []>} : vector<8x32xf32>, vector<32x128xf32>, vector<8x128xf32> -> vector<8x128xf32>
    %c1_510 = arith.constant 1 : index
    %c0_511 = arith.constant 0 : index
    %c0_512 = arith.constant 0 : index
    %1070 = vector.load %arg10[%c1_510, %c0_511, %c0_512] : memref<2x32x128xf32, #tpu.memory_space<vmem>>, vector<1x32x128xf32>
    %1071 = vector.shape_cast %1070 : vector<1x32x128xf32> to vector<32x128xf32>
    %cst_513 = arith.constant dense<0.000000e+00> : vector<8x128xf32>
    %1072 = tpu.matmul %986, %1071, %cst_513 {dimension_numbers = #tpu.dot_dimension_numbers<[1], [0], [0], [1], [0, 0, 1, 1], [], []>} : vector<8x32xf32>, vector<32x128xf32>, vector<8x128xf32> -> vector<8x128xf32>
    %1073 = arith.addf %1069, %1072 : vector<8x128xf32>
    %c1_514 = arith.constant 1 : index
    %c0_515 = arith.constant 0 : index
    %c0_516 = arith.constant 0 : index
    %1074 = vector.load %arg11[%c1_514, %c0_515, %c0_516] : memref<2x1x128xf32, #tpu.memory_space<vmem>>, vector<1x1x128xf32>
    %1075 = vector.shape_cast %1074 : vector<1x1x128xf32> to vector<1x128xf32>
    %1076 = vector.broadcast %1075 : vector<1x128xf32> to vector<8x128xf32>
    %1077 = arith.addf %1073, %1076 : vector<8x128xf32>
    %1078 = vector.extract_strided_slice %1077 {offsets = [0, 0], sizes = [8, 32], strides = [1, 1]} : vector<8x128xf32> to vector<8x32xf32>
    %1079 = arith.negf %1078 : vector<8x32xf32>
    %1080 = math.exp %1079 : vector<8x32xf32>
    %cst_517 = arith.constant 1.000000e+00 : f32
    %1081 = vector.broadcast %cst_517 : f32 to vector<8x32xf32>
    %1082 = arith.addf %1081, %1080 : vector<8x32xf32>
    %1083 = arith.divf %1081, %1082 : vector<8x32xf32>
    %1084 = vector.extract_strided_slice %1077 {offsets = [0, 32], sizes = [8, 32], strides = [1, 1]} : vector<8x128xf32> to vector<8x32xf32>
    %1085 = arith.negf %1084 : vector<8x32xf32>
    %1086 = math.exp %1085 : vector<8x32xf32>
    %cst_518 = arith.constant 1.000000e+00 : f32
    %1087 = vector.broadcast %cst_518 : f32 to vector<8x32xf32>
    %1088 = arith.addf %1087, %1086 : vector<8x32xf32>
    %1089 = arith.divf %1087, %1088 : vector<8x32xf32>
    %1090 = vector.extract_strided_slice %1077 {offsets = [0, 64], sizes = [8, 32], strides = [1, 1]} : vector<8x128xf32> to vector<8x32xf32>
    %1091 = vector.extract_strided_slice %1077 {offsets = [0, 96], sizes = [8, 32], strides = [1, 1]} : vector<8x128xf32> to vector<8x32xf32>
    %c1_519 = arith.constant 1 : index
    %c0_520 = arith.constant 0 : index
    %c0_521 = arith.constant 0 : index
    %1092 = vector.load %arg12[%c1_519, %c0_520, %c0_521] : memref<2x1x32xf32, #tpu.memory_space<vmem>>, vector<1x1x32xf32>
    %1093 = vector.shape_cast %1092 : vector<1x1x32xf32> to vector<1x32xf32>
    %1094 = vector.broadcast %1093 : vector<1x32xf32> to vector<8x32xf32>
    %1095 = arith.addf %1091, %1094 : vector<8x32xf32>
    %1096 = arith.mulf %1083, %1095 : vector<8x32xf32>
    %1097 = arith.addf %1090, %1096 : vector<8x32xf32>
    %1098 = math.tanh %1097 : vector<8x32xf32>
    %cst_522 = arith.constant 1.000000e+00 : f32
    %1099 = vector.broadcast %cst_522 : f32 to vector<8x32xf32>
    %1100 = arith.subf %1099, %1089 : vector<8x32xf32>
    %1101 = arith.mulf %1100, %1098 : vector<8x32xf32>
    %1102 = arith.mulf %1089, %986 : vector<8x32xf32>
    %1103 = arith.addf %1101, %1102 : vector<8x32xf32>
    %c0_523 = arith.constant 0 : index
    %c0_524 = arith.constant 0 : index
    %1104 = vector.load %arg13[%c0_523, %c0_524] : memref<32x128xf32, #tpu.memory_space<vmem>>, vector<32x128xf32>
    %cst_525 = arith.constant dense<0.000000e+00> : vector<8x128xf32>
    %1105 = tpu.matmul %1103, %1104, %cst_525 {dimension_numbers = #tpu.dot_dimension_numbers<[1], [0], [0], [1], [0, 0, 1, 1], [], []>} : vector<8x32xf32>, vector<32x128xf32>, vector<8x128xf32> -> vector<8x128xf32>
    %c0_526 = arith.constant 0 : index
    %c0_527 = arith.constant 0 : index
    %1106 = vector.load %arg14[%c0_526, %c0_527] : memref<1x128xf32, #tpu.memory_space<vmem>>, vector<1x128xf32>
    %1107 = vector.broadcast %1106 : vector<1x128xf32> to vector<8x128xf32>
    %1108 = arith.addf %1105, %1107 : vector<8x128xf32>
    %c1_i32_528 = arith.constant 1 : i32
    %1109 = arith.addi %c3_i32_488, %c1_i32_528 : i32
    %1110 = arith.index_cast %1109 : i32 to index
    %c0_529 = arith.constant 0 : index
    %c0_530 = arith.constant 0 : index
    %1111 = vector.load %arg15[%1110, %c0_529, %c0_530] : memref<8x8x128xf32, #tpu.memory_space<vmem>>, vector<1x8x128xf32>
    %1112 = vector.shape_cast %1111 : vector<1x8x128xf32> to vector<8x128xf32>
    %1113 = vector.shape_cast %1108 : vector<8x128xf32> to vector<1x8x128xf32>
    tpu.vector_store %arg15[%1110, %c0_529, %c0_530], %1113 {strides = array<i32>} : memref<8x8x128xf32, #tpu.memory_space<vmem>>, vector<1x8x128xf32>,
    %cst_531 = arith.constant dense<0xFF800000> : vector<8xf32>
    %1114 = vector.multi_reduction <maximumf>, %1108, %cst_531 [1] : vector<8x128xf32> to vector<8xf32>
    %1115 = vector.shape_cast %1114 : vector<8xf32> to vector<8x1xf32>
    %1116 = vector.broadcast %1115 : vector<8x1xf32> to vector<8x128xf32>
    %1117 = arith.cmpf oge, %1108, %1116 : vector<8x128xf32>
    %c128_i32_532 = arith.constant 128 : i32
    %1118 = vector.broadcast %c128_i32_532 : i32 to vector<8x128xi32>
    %1119 = arith.select %1117, %0, %1118 : vector<8x128xi1>, vector<8x128xi32>
    %cst_533 = arith.constant dense<2147483647> : vector<8xi32>
    %1120 = vector.multi_reduction <minsi>, %1119, %cst_533 [1] : vector<8x128xi32> to vector<8xi32>
    %1121 = vector.shape_cast %1120 : vector<8xi32> to vector<8x1xi32>
    %1122 = vector.broadcast %1121 : vector<8x1xi32> to vector<8x128xi32>
    %1123 = arith.cmpi eq, %0, %1122 : vector<8x128xi32>
    %1124 = arith.extui %1123 : vector<8x128xi1> to vector<8x128xi32>
    %1125 = arith.sitofp %1124 : vector<8x128xi32> to vector<8x128xf32>
    %c0_534 = arith.constant 0 : index
    %c0_535 = arith.constant 0 : index
    %1126 = vector.load %arg4[%c0_534, %c0_535] : memref<128x32xf32, #tpu.memory_space<vmem>>, vector<128x32xf32>
    %cst_536 = arith.constant dense<0.000000e+00> : vector<8x32xf32>
    %1127 = tpu.matmul %1125, %1126, %cst_536 {dimension_numbers = #tpu.dot_dimension_numbers<[1], [0], [0], [1], [0, 0, 1, 1], [], []>} : vector<8x128xf32>, vector<128x32xf32>, vector<8x32xf32> -> vector<8x32xf32>
    %c1_i32_537 = arith.constant 1 : i32
    %1128 = arith.addi %c3_i32_488, %c1_i32_537 : i32
    %1129 = arith.index_cast %1128 : i32 to index
    %c0_538 = arith.constant 0 : index
    %c0_539 = arith.constant 0 : index
    %1130 = vector.load %arg1[%1129, %c0_538, %c0_539] : memref<8x8x1xi32, #tpu.memory_space<vmem>>, vector<1x8x1xi32>
    %1131 = vector.shape_cast %1130 : vector<1x8x1xi32> to vector<8x1xi32>
    %1132 = vector.broadcast %1131 : vector<8x1xi32> to vector<8x128xi32>
    %1133 = arith.cmpi eq, %1132, %0 : vector<8x128xi32>
    %1134 = arith.extui %1133 : vector<8x128xi1> to vector<8x128xi32>
    %1135 = arith.sitofp %1134 : vector<8x128xi32> to vector<8x128xf32>
    %c0_540 = arith.constant 0 : index
    %c0_541 = arith.constant 0 : index
    %1136 = vector.load %arg4[%c0_540, %c0_541] : memref<128x32xf32, #tpu.memory_space<vmem>>, vector<128x32xf32>
    %cst_542 = arith.constant dense<0.000000e+00> : vector<8x32xf32>
    %1137 = tpu.matmul %1135, %1136, %cst_542 {dimension_numbers = #tpu.dot_dimension_numbers<[1], [0], [0], [1], [0, 0, 1, 1], [], []>} : vector<8x128xf32>, vector<128x32xf32>, vector<8x32xf32> -> vector<8x32xf32>
    %1138 = arith.index_cast %c3_i32_488 : i32 to index
    %1139 = memref.load %arg2[%1138] : memref<7xi32, #tpu.memory_space<smem>>
    %1140 = arith.sitofp %1139 : i32 to f32
    %1141 = vector.broadcast %1140 : f32 to vector<8x32xf32>
    %1142 = arith.mulf %1141, %1137 : vector<8x32xf32>
    %cst_543 = arith.constant 1.000000e+00 : f32
    %1143 = arith.subf %cst_543, %1140 : f32
    %1144 = vector.broadcast %1143 : f32 to vector<8x32xf32>
    %1145 = arith.mulf %1144, %1127 : vector<8x32xf32>
    %1146 = arith.addf %1142, %1145 : vector<8x32xf32>
    %c4_i32_544 = arith.constant 4 : i32
    %c0_545 = arith.constant 0 : index
    %c0_546 = arith.constant 0 : index
    %c0_547 = arith.constant 0 : index
    %1147 = vector.load %arg9[%c0_545, %c0_546, %c0_547] : memref<2x32x128xf32, #tpu.memory_space<vmem>>, vector<1x32x128xf32>
    %1148 = vector.shape_cast %1147 : vector<1x32x128xf32> to vector<32x128xf32>
    %cst_548 = arith.constant dense<0.000000e+00> : vector<8x128xf32>
    %1149 = tpu.matmul %1146, %1148, %cst_548 {dimension_numbers = #tpu.dot_dimension_numbers<[1], [0], [0], [1], [0, 0, 1, 1], [], []>} : vector<8x32xf32>, vector<32x128xf32>, vector<8x128xf32> -> vector<8x128xf32>
    %c0_549 = arith.constant 0 : index
    %c0_550 = arith.constant 0 : index
    %c0_551 = arith.constant 0 : index
    %1150 = vector.load %arg10[%c0_549, %c0_550, %c0_551] : memref<2x32x128xf32, #tpu.memory_space<vmem>>, vector<1x32x128xf32>
    %1151 = vector.shape_cast %1150 : vector<1x32x128xf32> to vector<32x128xf32>
    %cst_552 = arith.constant dense<0.000000e+00> : vector<8x128xf32>
    %1152 = tpu.matmul %1066, %1151, %cst_552 {dimension_numbers = #tpu.dot_dimension_numbers<[1], [0], [0], [1], [0, 0, 1, 1], [], []>} : vector<8x32xf32>, vector<32x128xf32>, vector<8x128xf32> -> vector<8x128xf32>
    %1153 = arith.addf %1149, %1152 : vector<8x128xf32>
    %c0_553 = arith.constant 0 : index
    %c0_554 = arith.constant 0 : index
    %c0_555 = arith.constant 0 : index
    %1154 = vector.load %arg11[%c0_553, %c0_554, %c0_555] : memref<2x1x128xf32, #tpu.memory_space<vmem>>, vector<1x1x128xf32>
    %1155 = vector.shape_cast %1154 : vector<1x1x128xf32> to vector<1x128xf32>
    %1156 = vector.broadcast %1155 : vector<1x128xf32> to vector<8x128xf32>
    %1157 = arith.addf %1153, %1156 : vector<8x128xf32>
    %1158 = vector.extract_strided_slice %1157 {offsets = [0, 0], sizes = [8, 32], strides = [1, 1]} : vector<8x128xf32> to vector<8x32xf32>
    %1159 = arith.negf %1158 : vector<8x32xf32>
    %1160 = math.exp %1159 : vector<8x32xf32>
    %cst_556 = arith.constant 1.000000e+00 : f32
    %1161 = vector.broadcast %cst_556 : f32 to vector<8x32xf32>
    %1162 = arith.addf %1161, %1160 : vector<8x32xf32>
    %1163 = arith.divf %1161, %1162 : vector<8x32xf32>
    %1164 = vector.extract_strided_slice %1157 {offsets = [0, 32], sizes = [8, 32], strides = [1, 1]} : vector<8x128xf32> to vector<8x32xf32>
    %1165 = arith.negf %1164 : vector<8x32xf32>
    %1166 = math.exp %1165 : vector<8x32xf32>
    %cst_557 = arith.constant 1.000000e+00 : f32
    %1167 = vector.broadcast %cst_557 : f32 to vector<8x32xf32>
    %1168 = arith.addf %1167, %1166 : vector<8x32xf32>
    %1169 = arith.divf %1167, %1168 : vector<8x32xf32>
    %1170 = vector.extract_strided_slice %1157 {offsets = [0, 64], sizes = [8, 32], strides = [1, 1]} : vector<8x128xf32> to vector<8x32xf32>
    %1171 = vector.extract_strided_slice %1157 {offsets = [0, 96], sizes = [8, 32], strides = [1, 1]} : vector<8x128xf32> to vector<8x32xf32>
    %c0_558 = arith.constant 0 : index
    %c0_559 = arith.constant 0 : index
    %c0_560 = arith.constant 0 : index
    %1172 = vector.load %arg12[%c0_558, %c0_559, %c0_560] : memref<2x1x32xf32, #tpu.memory_space<vmem>>, vector<1x1x32xf32>
    %1173 = vector.shape_cast %1172 : vector<1x1x32xf32> to vector<1x32xf32>
    %1174 = vector.broadcast %1173 : vector<1x32xf32> to vector<8x32xf32>
    %1175 = arith.addf %1171, %1174 : vector<8x32xf32>
    %1176 = arith.mulf %1163, %1175 : vector<8x32xf32>
    %1177 = arith.addf %1170, %1176 : vector<8x32xf32>
    %1178 = math.tanh %1177 : vector<8x32xf32>
    %cst_561 = arith.constant 1.000000e+00 : f32
    %1179 = vector.broadcast %cst_561 : f32 to vector<8x32xf32>
    %1180 = arith.subf %1179, %1169 : vector<8x32xf32>
    %1181 = arith.mulf %1180, %1178 : vector<8x32xf32>
    %1182 = arith.mulf %1169, %1066 : vector<8x32xf32>
    %1183 = arith.addf %1181, %1182 : vector<8x32xf32>
    %c1_562 = arith.constant 1 : index
    %c0_563 = arith.constant 0 : index
    %c0_564 = arith.constant 0 : index
    %1184 = vector.load %arg9[%c1_562, %c0_563, %c0_564] : memref<2x32x128xf32, #tpu.memory_space<vmem>>, vector<1x32x128xf32>
    %1185 = vector.shape_cast %1184 : vector<1x32x128xf32> to vector<32x128xf32>
    %cst_565 = arith.constant dense<0.000000e+00> : vector<8x128xf32>
    %1186 = tpu.matmul %1183, %1185, %cst_565 {dimension_numbers = #tpu.dot_dimension_numbers<[1], [0], [0], [1], [0, 0, 1, 1], [], []>} : vector<8x32xf32>, vector<32x128xf32>, vector<8x128xf32> -> vector<8x128xf32>
    %c1_566 = arith.constant 1 : index
    %c0_567 = arith.constant 0 : index
    %c0_568 = arith.constant 0 : index
    %1187 = vector.load %arg10[%c1_566, %c0_567, %c0_568] : memref<2x32x128xf32, #tpu.memory_space<vmem>>, vector<1x32x128xf32>
    %1188 = vector.shape_cast %1187 : vector<1x32x128xf32> to vector<32x128xf32>
    %cst_569 = arith.constant dense<0.000000e+00> : vector<8x128xf32>
    %1189 = tpu.matmul %1103, %1188, %cst_569 {dimension_numbers = #tpu.dot_dimension_numbers<[1], [0], [0], [1], [0, 0, 1, 1], [], []>} : vector<8x32xf32>, vector<32x128xf32>, vector<8x128xf32> -> vector<8x128xf32>
    %1190 = arith.addf %1186, %1189 : vector<8x128xf32>
    %c1_570 = arith.constant 1 : index
    %c0_571 = arith.constant 0 : index
    %c0_572 = arith.constant 0 : index
    %1191 = vector.load %arg11[%c1_570, %c0_571, %c0_572] : memref<2x1x128xf32, #tpu.memory_space<vmem>>, vector<1x1x128xf32>
    %1192 = vector.shape_cast %1191 : vector<1x1x128xf32> to vector<1x128xf32>
    %1193 = vector.broadcast %1192 : vector<1x128xf32> to vector<8x128xf32>
    %1194 = arith.addf %1190, %1193 : vector<8x128xf32>
    %1195 = vector.extract_strided_slice %1194 {offsets = [0, 0], sizes = [8, 32], strides = [1, 1]} : vector<8x128xf32> to vector<8x32xf32>
    %1196 = arith.negf %1195 : vector<8x32xf32>
    %1197 = math.exp %1196 : vector<8x32xf32>
    %cst_573 = arith.constant 1.000000e+00 : f32
    %1198 = vector.broadcast %cst_573 : f32 to vector<8x32xf32>
    %1199 = arith.addf %1198, %1197 : vector<8x32xf32>
    %1200 = arith.divf %1198, %1199 : vector<8x32xf32>
    %1201 = vector.extract_strided_slice %1194 {offsets = [0, 32], sizes = [8, 32], strides = [1, 1]} : vector<8x128xf32> to vector<8x32xf32>
    %1202 = arith.negf %1201 : vector<8x32xf32>
    %1203 = math.exp %1202 : vector<8x32xf32>
    %cst_574 = arith.constant 1.000000e+00 : f32
    %1204 = vector.broadcast %cst_574 : f32 to vector<8x32xf32>
    %1205 = arith.addf %1204, %1203 : vector<8x32xf32>
    %1206 = arith.divf %1204, %1205 : vector<8x32xf32>
    %1207 = vector.extract_strided_slice %1194 {offsets = [0, 64], sizes = [8, 32], strides = [1, 1]} : vector<8x128xf32> to vector<8x32xf32>
    %1208 = vector.extract_strided_slice %1194 {offsets = [0, 96], sizes = [8, 32], strides = [1, 1]} : vector<8x128xf32> to vector<8x32xf32>
    %c1_575 = arith.constant 1 : index
    %c0_576 = arith.constant 0 : index
    %c0_577 = arith.constant 0 : index
    %1209 = vector.load %arg12[%c1_575, %c0_576, %c0_577] : memref<2x1x32xf32, #tpu.memory_space<vmem>>, vector<1x1x32xf32>
    %1210 = vector.shape_cast %1209 : vector<1x1x32xf32> to vector<1x32xf32>
    %1211 = vector.broadcast %1210 : vector<1x32xf32> to vector<8x32xf32>
    %1212 = arith.addf %1208, %1211 : vector<8x32xf32>
    %1213 = arith.mulf %1200, %1212 : vector<8x32xf32>
    %1214 = arith.addf %1207, %1213 : vector<8x32xf32>
    %1215 = math.tanh %1214 : vector<8x32xf32>
    %cst_578 = arith.constant 1.000000e+00 : f32
    %1216 = vector.broadcast %cst_578 : f32 to vector<8x32xf32>
    %1217 = arith.subf %1216, %1206 : vector<8x32xf32>
    %1218 = arith.mulf %1217, %1215 : vector<8x32xf32>
    %1219 = arith.mulf %1206, %1103 : vector<8x32xf32>
    %1220 = arith.addf %1218, %1219 : vector<8x32xf32>
    %c0_579 = arith.constant 0 : index
    %c0_580 = arith.constant 0 : index
    %1221 = vector.load %arg13[%c0_579, %c0_580] : memref<32x128xf32, #tpu.memory_space<vmem>>, vector<32x128xf32>
    %cst_581 = arith.constant dense<0.000000e+00> : vector<8x128xf32>
    %1222 = tpu.matmul %1220, %1221, %cst_581 {dimension_numbers = #tpu.dot_dimension_numbers<[1], [0], [0], [1], [0, 0, 1, 1], [], []>} : vector<8x32xf32>, vector<32x128xf32>, vector<8x128xf32> -> vector<8x128xf32>
    %c0_582 = arith.constant 0 : index
    %c0_583 = arith.constant 0 : index
    %1223 = vector.load %arg14[%c0_582, %c0_583] : memref<1x128xf32, #tpu.memory_space<vmem>>, vector<1x128xf32>
    %1224 = vector.broadcast %1223 : vector<1x128xf32> to vector<8x128xf32>
    %1225 = arith.addf %1222, %1224 : vector<8x128xf32>
    %c1_i32_584 = arith.constant 1 : i32
    %1226 = arith.addi %c4_i32_544, %c1_i32_584 : i32
    %1227 = arith.index_cast %1226 : i32 to index
    %c0_585 = arith.constant 0 : index
    %c0_586 = arith.constant 0 : index
    %1228 = vector.load %arg15[%1227, %c0_585, %c0_586] : memref<8x8x128xf32, #tpu.memory_space<vmem>>, vector<1x8x128xf32>
    %1229 = vector.shape_cast %1228 : vector<1x8x128xf32> to vector<8x128xf32>
    %1230 = vector.shape_cast %1225 : vector<8x128xf32> to vector<1x8x128xf32>
    tpu.vector_store %arg15[%1227, %c0_585, %c0_586], %1230 {strides = array<i32>} : memref<8x8x128xf32, #tpu.memory_space<vmem>>, vector<1x8x128xf32>,
    %cst_587 = arith.constant dense<0xFF800000> : vector<8xf32>
    %1231 = vector.multi_reduction <maximumf>, %1225, %cst_587 [1] : vector<8x128xf32> to vector<8xf32>
    %1232 = vector.shape_cast %1231 : vector<8xf32> to vector<8x1xf32>
    %1233 = vector.broadcast %1232 : vector<8x1xf32> to vector<8x128xf32>
    %1234 = arith.cmpf oge, %1225, %1233 : vector<8x128xf32>
    %c128_i32_588 = arith.constant 128 : i32
    %1235 = vector.broadcast %c128_i32_588 : i32 to vector<8x128xi32>
    %1236 = arith.select %1234, %0, %1235 : vector<8x128xi1>, vector<8x128xi32>
    %cst_589 = arith.constant dense<2147483647> : vector<8xi32>
    %1237 = vector.multi_reduction <minsi>, %1236, %cst_589 [1] : vector<8x128xi32> to vector<8xi32>
    %1238 = vector.shape_cast %1237 : vector<8xi32> to vector<8x1xi32>
    %1239 = vector.broadcast %1238 : vector<8x1xi32> to vector<8x128xi32>
    %1240 = arith.cmpi eq, %0, %1239 : vector<8x128xi32>
    %1241 = arith.extui %1240 : vector<8x128xi1> to vector<8x128xi32>
    %1242 = arith.sitofp %1241 : vector<8x128xi32> to vector<8x128xf32>
    %c0_590 = arith.constant 0 : index
    %c0_591 = arith.constant 0 : index
    %1243 = vector.load %arg4[%c0_590, %c0_591] : memref<128x32xf32, #tpu.memory_space<vmem>>, vector<128x32xf32>
    %cst_592 = arith.constant dense<0.000000e+00> : vector<8x32xf32>
    %1244 = tpu.matmul %1242, %1243, %cst_592 {dimension_numbers = #tpu.dot_dimension_numbers<[1], [0], [0], [1], [0, 0, 1, 1], [], []>} : vector<8x128xf32>, vector<128x32xf32>, vector<8x32xf32> -> vector<8x32xf32>
    %c1_i32_593 = arith.constant 1 : i32
    %1245 = arith.addi %c4_i32_544, %c1_i32_593 : i32
    %1246 = arith.index_cast %1245 : i32 to index
    %c0_594 = arith.constant 0 : index
    %c0_595 = arith.constant 0 : index
    %1247 = vector.load %arg1[%1246, %c0_594, %c0_595] : memref<8x8x1xi32, #tpu.memory_space<vmem>>, vector<1x8x1xi32>
    %1248 = vector.shape_cast %1247 : vector<1x8x1xi32> to vector<8x1xi32>
    %1249 = vector.broadcast %1248 : vector<8x1xi32> to vector<8x128xi32>
    %1250 = arith.cmpi eq, %1249, %0 : vector<8x128xi32>
    %1251 = arith.extui %1250 : vector<8x128xi1> to vector<8x128xi32>
    %1252 = arith.sitofp %1251 : vector<8x128xi32> to vector<8x128xf32>
    %c0_596 = arith.constant 0 : index
    %c0_597 = arith.constant 0 : index
    %1253 = vector.load %arg4[%c0_596, %c0_597] : memref<128x32xf32, #tpu.memory_space<vmem>>, vector<128x32xf32>
    %cst_598 = arith.constant dense<0.000000e+00> : vector<8x32xf32>
    %1254 = tpu.matmul %1252, %1253, %cst_598 {dimension_numbers = #tpu.dot_dimension_numbers<[1], [0], [0], [1], [0, 0, 1, 1], [], []>} : vector<8x128xf32>, vector<128x32xf32>, vector<8x32xf32> -> vector<8x32xf32>
    %1255 = arith.index_cast %c4_i32_544 : i32 to index
    %1256 = memref.load %arg2[%1255] : memref<7xi32, #tpu.memory_space<smem>>
    %1257 = arith.sitofp %1256 : i32 to f32
    %1258 = vector.broadcast %1257 : f32 to vector<8x32xf32>
    %1259 = arith.mulf %1258, %1254 : vector<8x32xf32>
    %cst_599 = arith.constant 1.000000e+00 : f32
    %1260 = arith.subf %cst_599, %1257 : f32
    %1261 = vector.broadcast %1260 : f32 to vector<8x32xf32>
    %1262 = arith.mulf %1261, %1244 : vector<8x32xf32>
    %1263 = arith.addf %1259, %1262 : vector<8x32xf32>
    %c5_i32_600 = arith.constant 5 : i32
    %c0_601 = arith.constant 0 : index
    %c0_602 = arith.constant 0 : index
    %c0_603 = arith.constant 0 : index
    %1264 = vector.load %arg9[%c0_601, %c0_602, %c0_603] : memref<2x32x128xf32, #tpu.memory_space<vmem>>, vector<1x32x128xf32>
    %1265 = vector.shape_cast %1264 : vector<1x32x128xf32> to vector<32x128xf32>
    %cst_604 = arith.constant dense<0.000000e+00> : vector<8x128xf32>
    %1266 = tpu.matmul %1263, %1265, %cst_604 {dimension_numbers = #tpu.dot_dimension_numbers<[1], [0], [0], [1], [0, 0, 1, 1], [], []>} : vector<8x32xf32>, vector<32x128xf32>, vector<8x128xf32> -> vector<8x128xf32>
    %c0_605 = arith.constant 0 : index
    %c0_606 = arith.constant 0 : index
    %c0_607 = arith.constant 0 : index
    %1267 = vector.load %arg10[%c0_605, %c0_606, %c0_607] : memref<2x32x128xf32, #tpu.memory_space<vmem>>, vector<1x32x128xf32>
    %1268 = vector.shape_cast %1267 : vector<1x32x128xf32> to vector<32x128xf32>
    %cst_608 = arith.constant dense<0.000000e+00> : vector<8x128xf32>
    %1269 = tpu.matmul %1183, %1268, %cst_608 {dimension_numbers = #tpu.dot_dimension_numbers<[1], [0], [0], [1], [0, 0, 1, 1], [], []>} : vector<8x32xf32>, vector<32x128xf32>, vector<8x128xf32> -> vector<8x128xf32>
    %1270 = arith.addf %1266, %1269 : vector<8x128xf32>
    %c0_609 = arith.constant 0 : index
    %c0_610 = arith.constant 0 : index
    %c0_611 = arith.constant 0 : index
    %1271 = vector.load %arg11[%c0_609, %c0_610, %c0_611] : memref<2x1x128xf32, #tpu.memory_space<vmem>>, vector<1x1x128xf32>
    %1272 = vector.shape_cast %1271 : vector<1x1x128xf32> to vector<1x128xf32>
    %1273 = vector.broadcast %1272 : vector<1x128xf32> to vector<8x128xf32>
    %1274 = arith.addf %1270, %1273 : vector<8x128xf32>
    %1275 = vector.extract_strided_slice %1274 {offsets = [0, 0], sizes = [8, 32], strides = [1, 1]} : vector<8x128xf32> to vector<8x32xf32>
    %1276 = arith.negf %1275 : vector<8x32xf32>
    %1277 = math.exp %1276 : vector<8x32xf32>
    %cst_612 = arith.constant 1.000000e+00 : f32
    %1278 = vector.broadcast %cst_612 : f32 to vector<8x32xf32>
    %1279 = arith.addf %1278, %1277 : vector<8x32xf32>
    %1280 = arith.divf %1278, %1279 : vector<8x32xf32>
    %1281 = vector.extract_strided_slice %1274 {offsets = [0, 32], sizes = [8, 32], strides = [1, 1]} : vector<8x128xf32> to vector<8x32xf32>
    %1282 = arith.negf %1281 : vector<8x32xf32>
    %1283 = math.exp %1282 : vector<8x32xf32>
    %cst_613 = arith.constant 1.000000e+00 : f32
    %1284 = vector.broadcast %cst_613 : f32 to vector<8x32xf32>
    %1285 = arith.addf %1284, %1283 : vector<8x32xf32>
    %1286 = arith.divf %1284, %1285 : vector<8x32xf32>
    %1287 = vector.extract_strided_slice %1274 {offsets = [0, 64], sizes = [8, 32], strides = [1, 1]} : vector<8x128xf32> to vector<8x32xf32>
    %1288 = vector.extract_strided_slice %1274 {offsets = [0, 96], sizes = [8, 32], strides = [1, 1]} : vector<8x128xf32> to vector<8x32xf32>
    %c0_614 = arith.constant 0 : index
    %c0_615 = arith.constant 0 : index
    %c0_616 = arith.constant 0 : index
    %1289 = vector.load %arg12[%c0_614, %c0_615, %c0_616] : memref<2x1x32xf32, #tpu.memory_space<vmem>>, vector<1x1x32xf32>
    %1290 = vector.shape_cast %1289 : vector<1x1x32xf32> to vector<1x32xf32>
    %1291 = vector.broadcast %1290 : vector<1x32xf32> to vector<8x32xf32>
    %1292 = arith.addf %1288, %1291 : vector<8x32xf32>
    %1293 = arith.mulf %1280, %1292 : vector<8x32xf32>
    %1294 = arith.addf %1287, %1293 : vector<8x32xf32>
    %1295 = math.tanh %1294 : vector<8x32xf32>
    %cst_617 = arith.constant 1.000000e+00 : f32
    %1296 = vector.broadcast %cst_617 : f32 to vector<8x32xf32>
    %1297 = arith.subf %1296, %1286 : vector<8x32xf32>
    %1298 = arith.mulf %1297, %1295 : vector<8x32xf32>
    %1299 = arith.mulf %1286, %1183 : vector<8x32xf32>
    %1300 = arith.addf %1298, %1299 : vector<8x32xf32>
    %c1_618 = arith.constant 1 : index
    %c0_619 = arith.constant 0 : index
    %c0_620 = arith.constant 0 : index
    %1301 = vector.load %arg9[%c1_618, %c0_619, %c0_620] : memref<2x32x128xf32, #tpu.memory_space<vmem>>, vector<1x32x128xf32>
    %1302 = vector.shape_cast %1301 : vector<1x32x128xf32> to vector<32x128xf32>
    %cst_621 = arith.constant dense<0.000000e+00> : vector<8x128xf32>
    %1303 = tpu.matmul %1300, %1302, %cst_621 {dimension_numbers = #tpu.dot_dimension_numbers<[1], [0], [0], [1], [0, 0, 1, 1], [], []>} : vector<8x32xf32>, vector<32x128xf32>, vector<8x128xf32> -> vector<8x128xf32>
    %c1_622 = arith.constant 1 : index
    %c0_623 = arith.constant 0 : index
    %c0_624 = arith.constant 0 : index
    %1304 = vector.load %arg10[%c1_622, %c0_623, %c0_624] : memref<2x32x128xf32, #tpu.memory_space<vmem>>, vector<1x32x128xf32>
    %1305 = vector.shape_cast %1304 : vector<1x32x128xf32> to vector<32x128xf32>
    %cst_625 = arith.constant dense<0.000000e+00> : vector<8x128xf32>
    %1306 = tpu.matmul %1220, %1305, %cst_625 {dimension_numbers = #tpu.dot_dimension_numbers<[1], [0], [0], [1], [0, 0, 1, 1], [], []>} : vector<8x32xf32>, vector<32x128xf32>, vector<8x128xf32> -> vector<8x128xf32>
    %1307 = arith.addf %1303, %1306 : vector<8x128xf32>
    %c1_626 = arith.constant 1 : index
    %c0_627 = arith.constant 0 : index
    %c0_628 = arith.constant 0 : index
    %1308 = vector.load %arg11[%c1_626, %c0_627, %c0_628] : memref<2x1x128xf32, #tpu.memory_space<vmem>>, vector<1x1x128xf32>
    %1309 = vector.shape_cast %1308 : vector<1x1x128xf32> to vector<1x128xf32>
    %1310 = vector.broadcast %1309 : vector<1x128xf32> to vector<8x128xf32>
    %1311 = arith.addf %1307, %1310 : vector<8x128xf32>
    %1312 = vector.extract_strided_slice %1311 {offsets = [0, 0], sizes = [8, 32], strides = [1, 1]} : vector<8x128xf32> to vector<8x32xf32>
    %1313 = arith.negf %1312 : vector<8x32xf32>
    %1314 = math.exp %1313 : vector<8x32xf32>
    %cst_629 = arith.constant 1.000000e+00 : f32
    %1315 = vector.broadcast %cst_629 : f32 to vector<8x32xf32>
    %1316 = arith.addf %1315, %1314 : vector<8x32xf32>
    %1317 = arith.divf %1315, %1316 : vector<8x32xf32>
    %1318 = vector.extract_strided_slice %1311 {offsets = [0, 32], sizes = [8, 32], strides = [1, 1]} : vector<8x128xf32> to vector<8x32xf32>
    %1319 = arith.negf %1318 : vector<8x32xf32>
    %1320 = math.exp %1319 : vector<8x32xf32>
    %cst_630 = arith.constant 1.000000e+00 : f32
    %1321 = vector.broadcast %cst_630 : f32 to vector<8x32xf32>
    %1322 = arith.addf %1321, %1320 : vector<8x32xf32>
    %1323 = arith.divf %1321, %1322 : vector<8x32xf32>
    %1324 = vector.extract_strided_slice %1311 {offsets = [0, 64], sizes = [8, 32], strides = [1, 1]} : vector<8x128xf32> to vector<8x32xf32>
    %1325 = vector.extract_strided_slice %1311 {offsets = [0, 96], sizes = [8, 32], strides = [1, 1]} : vector<8x128xf32> to vector<8x32xf32>
    %c1_631 = arith.constant 1 : index
    %c0_632 = arith.constant 0 : index
    %c0_633 = arith.constant 0 : index
    %1326 = vector.load %arg12[%c1_631, %c0_632, %c0_633] : memref<2x1x32xf32, #tpu.memory_space<vmem>>, vector<1x1x32xf32>
    %1327 = vector.shape_cast %1326 : vector<1x1x32xf32> to vector<1x32xf32>
    %1328 = vector.broadcast %1327 : vector<1x32xf32> to vector<8x32xf32>
    %1329 = arith.addf %1325, %1328 : vector<8x32xf32>
    %1330 = arith.mulf %1317, %1329 : vector<8x32xf32>
    %1331 = arith.addf %1324, %1330 : vector<8x32xf32>
    %1332 = math.tanh %1331 : vector<8x32xf32>
    %cst_634 = arith.constant 1.000000e+00 : f32
    %1333 = vector.broadcast %cst_634 : f32 to vector<8x32xf32>
    %1334 = arith.subf %1333, %1323 : vector<8x32xf32>
    %1335 = arith.mulf %1334, %1332 : vector<8x32xf32>
    %1336 = arith.mulf %1323, %1220 : vector<8x32xf32>
    %1337 = arith.addf %1335, %1336 : vector<8x32xf32>
    %c0_635 = arith.constant 0 : index
    %c0_636 = arith.constant 0 : index
    %1338 = vector.load %arg13[%c0_635, %c0_636] : memref<32x128xf32, #tpu.memory_space<vmem>>, vector<32x128xf32>
    %cst_637 = arith.constant dense<0.000000e+00> : vector<8x128xf32>
    %1339 = tpu.matmul %1337, %1338, %cst_637 {dimension_numbers = #tpu.dot_dimension_numbers<[1], [0], [0], [1], [0, 0, 1, 1], [], []>} : vector<8x32xf32>, vector<32x128xf32>, vector<8x128xf32> -> vector<8x128xf32>
    %c0_638 = arith.constant 0 : index
    %c0_639 = arith.constant 0 : index
    %1340 = vector.load %arg14[%c0_638, %c0_639] : memref<1x128xf32, #tpu.memory_space<vmem>>, vector<1x128xf32>
    %1341 = vector.broadcast %1340 : vector<1x128xf32> to vector<8x128xf32>
    %1342 = arith.addf %1339, %1341 : vector<8x128xf32>
    %c1_i32_640 = arith.constant 1 : i32
    %1343 = arith.addi %c5_i32_600, %c1_i32_640 : i32
    %1344 = arith.index_cast %1343 : i32 to index
    %c0_641 = arith.constant 0 : index
    %c0_642 = arith.constant 0 : index
    %1345 = vector.load %arg15[%1344, %c0_641, %c0_642] : memref<8x8x128xf32, #tpu.memory_space<vmem>>, vector<1x8x128xf32>
    %1346 = vector.shape_cast %1345 : vector<1x8x128xf32> to vector<8x128xf32>
    %1347 = vector.shape_cast %1342 : vector<8x128xf32> to vector<1x8x128xf32>
    tpu.vector_store %arg15[%1344, %c0_641, %c0_642], %1347 {strides = array<i32>} : memref<8x8x128xf32, #tpu.memory_space<vmem>>, vector<1x8x128xf32>,
    %cst_643 = arith.constant dense<0xFF800000> : vector<8xf32>
    %1348 = vector.multi_reduction <maximumf>, %1342, %cst_643 [1] : vector<8x128xf32> to vector<8xf32>
    %1349 = vector.shape_cast %1348 : vector<8xf32> to vector<8x1xf32>
    %1350 = vector.broadcast %1349 : vector<8x1xf32> to vector<8x128xf32>
    %1351 = arith.cmpf oge, %1342, %1350 : vector<8x128xf32>
    %c128_i32_644 = arith.constant 128 : i32
    %1352 = vector.broadcast %c128_i32_644 : i32 to vector<8x128xi32>
    %1353 = arith.select %1351, %0, %1352 : vector<8x128xi1>, vector<8x128xi32>
    %cst_645 = arith.constant dense<2147483647> : vector<8xi32>
    %1354 = vector.multi_reduction <minsi>, %1353, %cst_645 [1] : vector<8x128xi32> to vector<8xi32>
    %1355 = vector.shape_cast %1354 : vector<8xi32> to vector<8x1xi32>
    %1356 = vector.broadcast %1355 : vector<8x1xi32> to vector<8x128xi32>
    %1357 = arith.cmpi eq, %0, %1356 : vector<8x128xi32>
    %1358 = arith.extui %1357 : vector<8x128xi1> to vector<8x128xi32>
    %1359 = arith.sitofp %1358 : vector<8x128xi32> to vector<8x128xf32>
    %c0_646 = arith.constant 0 : index
    %c0_647 = arith.constant 0 : index
    %1360 = vector.load %arg4[%c0_646, %c0_647] : memref<128x32xf32, #tpu.memory_space<vmem>>, vector<128x32xf32>
    %cst_648 = arith.constant dense<0.000000e+00> : vector<8x32xf32>
    %1361 = tpu.matmul %1359, %1360, %cst_648 {dimension_numbers = #tpu.dot_dimension_numbers<[1], [0], [0], [1], [0, 0, 1, 1], [], []>} : vector<8x128xf32>, vector<128x32xf32>, vector<8x32xf32> -> vector<8x32xf32>
    %c1_i32_649 = arith.constant 1 : i32
    %1362 = arith.addi %c5_i32_600, %c1_i32_649 : i32
    %1363 = arith.index_cast %1362 : i32 to index
    %c0_650 = arith.constant 0 : index
    %c0_651 = arith.constant 0 : index
    %1364 = vector.load %arg1[%1363, %c0_650, %c0_651] : memref<8x8x1xi32, #tpu.memory_space<vmem>>, vector<1x8x1xi32>
    %1365 = vector.shape_cast %1364 : vector<1x8x1xi32> to vector<8x1xi32>
    %1366 = vector.broadcast %1365 : vector<8x1xi32> to vector<8x128xi32>
    %1367 = arith.cmpi eq, %1366, %0 : vector<8x128xi32>
    %1368 = arith.extui %1367 : vector<8x128xi1> to vector<8x128xi32>
    %1369 = arith.sitofp %1368 : vector<8x128xi32> to vector<8x128xf32>
    %c0_652 = arith.constant 0 : index
    %c0_653 = arith.constant 0 : index
    %1370 = vector.load %arg4[%c0_652, %c0_653] : memref<128x32xf32, #tpu.memory_space<vmem>>, vector<128x32xf32>
    %cst_654 = arith.constant dense<0.000000e+00> : vector<8x32xf32>
    %1371 = tpu.matmul %1369, %1370, %cst_654 {dimension_numbers = #tpu.dot_dimension_numbers<[1], [0], [0], [1], [0, 0, 1, 1], [], []>} : vector<8x128xf32>, vector<128x32xf32>, vector<8x32xf32> -> vector<8x32xf32>
    %1372 = arith.index_cast %c5_i32_600 : i32 to index
    %1373 = memref.load %arg2[%1372] : memref<7xi32, #tpu.memory_space<smem>>
    %1374 = arith.sitofp %1373 : i32 to f32
    %1375 = vector.broadcast %1374 : f32 to vector<8x32xf32>
    %1376 = arith.mulf %1375, %1371 : vector<8x32xf32>
    %cst_655 = arith.constant 1.000000e+00 : f32
    %1377 = arith.subf %cst_655, %1374 : f32
    %1378 = vector.broadcast %1377 : f32 to vector<8x32xf32>
    %1379 = arith.mulf %1378, %1361 : vector<8x32xf32>
    %1380 = arith.addf %1376, %1379 : vector<8x32xf32>
    %c6_i32_656 = arith.constant 6 : i32
    %c0_657 = arith.constant 0 : index
    %c0_658 = arith.constant 0 : index
    %c0_659 = arith.constant 0 : index
    %1381 = vector.load %arg9[%c0_657, %c0_658, %c0_659] : memref<2x32x128xf32, #tpu.memory_space<vmem>>, vector<1x32x128xf32>
    %1382 = vector.shape_cast %1381 : vector<1x32x128xf32> to vector<32x128xf32>
    %cst_660 = arith.constant dense<0.000000e+00> : vector<8x128xf32>
    %1383 = tpu.matmul %1380, %1382, %cst_660 {dimension_numbers = #tpu.dot_dimension_numbers<[1], [0], [0], [1], [0, 0, 1, 1], [], []>} : vector<8x32xf32>, vector<32x128xf32>, vector<8x128xf32> -> vector<8x128xf32>
    %c0_661 = arith.constant 0 : index
    %c0_662 = arith.constant 0 : index
    %c0_663 = arith.constant 0 : index
    %1384 = vector.load %arg10[%c0_661, %c0_662, %c0_663] : memref<2x32x128xf32, #tpu.memory_space<vmem>>, vector<1x32x128xf32>
    %1385 = vector.shape_cast %1384 : vector<1x32x128xf32> to vector<32x128xf32>
    %cst_664 = arith.constant dense<0.000000e+00> : vector<8x128xf32>
    %1386 = tpu.matmul %1300, %1385, %cst_664 {dimension_numbers = #tpu.dot_dimension_numbers<[1], [0], [0], [1], [0, 0, 1, 1], [], []>} : vector<8x32xf32>, vector<32x128xf32>, vector<8x128xf32> -> vector<8x128xf32>
    %1387 = arith.addf %1383, %1386 : vector<8x128xf32>
    %c0_665 = arith.constant 0 : index
    %c0_666 = arith.constant 0 : index
    %c0_667 = arith.constant 0 : index
    %1388 = vector.load %arg11[%c0_665, %c0_666, %c0_667] : memref<2x1x128xf32, #tpu.memory_space<vmem>>, vector<1x1x128xf32>
    %1389 = vector.shape_cast %1388 : vector<1x1x128xf32> to vector<1x128xf32>
    %1390 = vector.broadcast %1389 : vector<1x128xf32> to vector<8x128xf32>
    %1391 = arith.addf %1387, %1390 : vector<8x128xf32>
    %1392 = vector.extract_strided_slice %1391 {offsets = [0, 0], sizes = [8, 32], strides = [1, 1]} : vector<8x128xf32> to vector<8x32xf32>
    %1393 = arith.negf %1392 : vector<8x32xf32>
    %1394 = math.exp %1393 : vector<8x32xf32>
    %cst_668 = arith.constant 1.000000e+00 : f32
    %1395 = vector.broadcast %cst_668 : f32 to vector<8x32xf32>
    %1396 = arith.addf %1395, %1394 : vector<8x32xf32>
    %1397 = arith.divf %1395, %1396 : vector<8x32xf32>
    %1398 = vector.extract_strided_slice %1391 {offsets = [0, 32], sizes = [8, 32], strides = [1, 1]} : vector<8x128xf32> to vector<8x32xf32>
    %1399 = arith.negf %1398 : vector<8x32xf32>
    %1400 = math.exp %1399 : vector<8x32xf32>
    %cst_669 = arith.constant 1.000000e+00 : f32
    %1401 = vector.broadcast %cst_669 : f32 to vector<8x32xf32>
    %1402 = arith.addf %1401, %1400 : vector<8x32xf32>
    %1403 = arith.divf %1401, %1402 : vector<8x32xf32>
    %1404 = vector.extract_strided_slice %1391 {offsets = [0, 64], sizes = [8, 32], strides = [1, 1]} : vector<8x128xf32> to vector<8x32xf32>
    %1405 = vector.extract_strided_slice %1391 {offsets = [0, 96], sizes = [8, 32], strides = [1, 1]} : vector<8x128xf32> to vector<8x32xf32>
    %c0_670 = arith.constant 0 : index
    %c0_671 = arith.constant 0 : index
    %c0_672 = arith.constant 0 : index
    %1406 = vector.load %arg12[%c0_670, %c0_671, %c0_672] : memref<2x1x32xf32, #tpu.memory_space<vmem>>, vector<1x1x32xf32>
    %1407 = vector.shape_cast %1406 : vector<1x1x32xf32> to vector<1x32xf32>
    %1408 = vector.broadcast %1407 : vector<1x32xf32> to vector<8x32xf32>
    %1409 = arith.addf %1405, %1408 : vector<8x32xf32>
    %1410 = arith.mulf %1397, %1409 : vector<8x32xf32>
    %1411 = arith.addf %1404, %1410 : vector<8x32xf32>
    %1412 = math.tanh %1411 : vector<8x32xf32>
    %cst_673 = arith.constant 1.000000e+00 : f32
    %1413 = vector.broadcast %cst_673 : f32 to vector<8x32xf32>
    %1414 = arith.subf %1413, %1403 : vector<8x32xf32>
    %1415 = arith.mulf %1414, %1412 : vector<8x32xf32>
    %1416 = arith.mulf %1403, %1300 : vector<8x32xf32>
    %1417 = arith.addf %1415, %1416 : vector<8x32xf32>
    %c1_674 = arith.constant 1 : index
    %c0_675 = arith.constant 0 : index
    %c0_676 = arith.constant 0 : index
    %1418 = vector.load %arg9[%c1_674, %c0_675, %c0_676] : memref<2x32x128xf32, #tpu.memory_space<vmem>>, vector<1x32x128xf32>
    %1419 = vector.shape_cast %1418 : vector<1x32x128xf32> to vector<32x128xf32>
    %cst_677 = arith.constant dense<0.000000e+00> : vector<8x128xf32>
    %1420 = tpu.matmul %1417, %1419, %cst_677 {dimension_numbers = #tpu.dot_dimension_numbers<[1], [0], [0], [1], [0, 0, 1, 1], [], []>} : vector<8x32xf32>, vector<32x128xf32>, vector<8x128xf32> -> vector<8x128xf32>
    %c1_678 = arith.constant 1 : index
    %c0_679 = arith.constant 0 : index
    %c0_680 = arith.constant 0 : index
    %1421 = vector.load %arg10[%c1_678, %c0_679, %c0_680] : memref<2x32x128xf32, #tpu.memory_space<vmem>>, vector<1x32x128xf32>
    %1422 = vector.shape_cast %1421 : vector<1x32x128xf32> to vector<32x128xf32>
    %cst_681 = arith.constant dense<0.000000e+00> : vector<8x128xf32>
    %1423 = tpu.matmul %1337, %1422, %cst_681 {dimension_numbers = #tpu.dot_dimension_numbers<[1], [0], [0], [1], [0, 0, 1, 1], [], []>} : vector<8x32xf32>, vector<32x128xf32>, vector<8x128xf32> -> vector<8x128xf32>
    %1424 = arith.addf %1420, %1423 : vector<8x128xf32>
    %c1_682 = arith.constant 1 : index
    %c0_683 = arith.constant 0 : index
    %c0_684 = arith.constant 0 : index
    %1425 = vector.load %arg11[%c1_682, %c0_683, %c0_684] : memref<2x1x128xf32, #tpu.memory_space<vmem>>, vector<1x1x128xf32>
    %1426 = vector.shape_cast %1425 : vector<1x1x128xf32> to vector<1x128xf32>
    %1427 = vector.broadcast %1426 : vector<1x128xf32> to vector<8x128xf32>
    %1428 = arith.addf %1424, %1427 : vector<8x128xf32>
    %1429 = vector.extract_strided_slice %1428 {offsets = [0, 0], sizes = [8, 32], strides = [1, 1]} : vector<8x128xf32> to vector<8x32xf32>
    %1430 = arith.negf %1429 : vector<8x32xf32>
    %1431 = math.exp %1430 : vector<8x32xf32>
    %cst_685 = arith.constant 1.000000e+00 : f32
    %1432 = vector.broadcast %cst_685 : f32 to vector<8x32xf32>
    %1433 = arith.addf %1432, %1431 : vector<8x32xf32>
    %1434 = arith.divf %1432, %1433 : vector<8x32xf32>
    %1435 = vector.extract_strided_slice %1428 {offsets = [0, 32], sizes = [8, 32], strides = [1, 1]} : vector<8x128xf32> to vector<8x32xf32>
    %1436 = arith.negf %1435 : vector<8x32xf32>
    %1437 = math.exp %1436 : vector<8x32xf32>
    %cst_686 = arith.constant 1.000000e+00 : f32
    %1438 = vector.broadcast %cst_686 : f32 to vector<8x32xf32>
    %1439 = arith.addf %1438, %1437 : vector<8x32xf32>
    %1440 = arith.divf %1438, %1439 : vector<8x32xf32>
    %1441 = vector.extract_strided_slice %1428 {offsets = [0, 64], sizes = [8, 32], strides = [1, 1]} : vector<8x128xf32> to vector<8x32xf32>
    %1442 = vector.extract_strided_slice %1428 {offsets = [0, 96], sizes = [8, 32], strides = [1, 1]} : vector<8x128xf32> to vector<8x32xf32>
    %c1_687 = arith.constant 1 : index
    %c0_688 = arith.constant 0 : index
    %c0_689 = arith.constant 0 : index
    %1443 = vector.load %arg12[%c1_687, %c0_688, %c0_689] : memref<2x1x32xf32, #tpu.memory_space<vmem>>, vector<1x1x32xf32>
    %1444 = vector.shape_cast %1443 : vector<1x1x32xf32> to vector<1x32xf32>
    %1445 = vector.broadcast %1444 : vector<1x32xf32> to vector<8x32xf32>
    %1446 = arith.addf %1442, %1445 : vector<8x32xf32>
    %1447 = arith.mulf %1434, %1446 : vector<8x32xf32>
    %1448 = arith.addf %1441, %1447 : vector<8x32xf32>
    %1449 = math.tanh %1448 : vector<8x32xf32>
    %cst_690 = arith.constant 1.000000e+00 : f32
    %1450 = vector.broadcast %cst_690 : f32 to vector<8x32xf32>
    %1451 = arith.subf %1450, %1440 : vector<8x32xf32>
    %1452 = arith.mulf %1451, %1449 : vector<8x32xf32>
    %1453 = arith.mulf %1440, %1337 : vector<8x32xf32>
    %1454 = arith.addf %1452, %1453 : vector<8x32xf32>
    %c0_691 = arith.constant 0 : index
    %c0_692 = arith.constant 0 : index
    %1455 = vector.load %arg13[%c0_691, %c0_692] : memref<32x128xf32, #tpu.memory_space<vmem>>, vector<32x128xf32>
    %cst_693 = arith.constant dense<0.000000e+00> : vector<8x128xf32>
    %1456 = tpu.matmul %1454, %1455, %cst_693 {dimension_numbers = #tpu.dot_dimension_numbers<[1], [0], [0], [1], [0, 0, 1, 1], [], []>} : vector<8x32xf32>, vector<32x128xf32>, vector<8x128xf32> -> vector<8x128xf32>
    %c0_694 = arith.constant 0 : index
    %c0_695 = arith.constant 0 : index
    %1457 = vector.load %arg14[%c0_694, %c0_695] : memref<1x128xf32, #tpu.memory_space<vmem>>, vector<1x128xf32>
    %1458 = vector.broadcast %1457 : vector<1x128xf32> to vector<8x128xf32>
    %1459 = arith.addf %1456, %1458 : vector<8x128xf32>
    %c1_i32_696 = arith.constant 1 : i32
    %1460 = arith.addi %c6_i32_656, %c1_i32_696 : i32
    %1461 = arith.index_cast %1460 : i32 to index
    %c0_697 = arith.constant 0 : index
    %c0_698 = arith.constant 0 : index
    %1462 = vector.load %arg15[%1461, %c0_697, %c0_698] : memref<8x8x128xf32, #tpu.memory_space<vmem>>, vector<1x8x128xf32>
    %1463 = vector.shape_cast %1462 : vector<1x8x128xf32> to vector<8x128xf32>
    %1464 = vector.shape_cast %1459 : vector<8x128xf32> to vector<1x8x128xf32>
    tpu.vector_store %arg15[%1461, %c0_697, %c0_698], %1464 {strides = array<i32>} : memref<8x8x128xf32, #tpu.memory_space<vmem>>, vector<1x8x128xf32>,
    %cst_699 = arith.constant dense<0xFF800000> : vector<8xf32>
    %1465 = vector.multi_reduction <maximumf>, %1459, %cst_699 [1] : vector<8x128xf32> to vector<8xf32>
    %1466 = vector.shape_cast %1465 : vector<8xf32> to vector<8x1xf32>
    %1467 = vector.broadcast %1466 : vector<8x1xf32> to vector<8x128xf32>
    %1468 = arith.cmpf oge, %1459, %1467 : vector<8x128xf32>
    %c128_i32_700 = arith.constant 128 : i32
    %1469 = vector.broadcast %c128_i32_700 : i32 to vector<8x128xi32>
    %1470 = arith.select %1468, %0, %1469 : vector<8x128xi1>, vector<8x128xi32>
    %cst_701 = arith.constant dense<2147483647> : vector<8xi32>
    %1471 = vector.multi_reduction <minsi>, %1470, %cst_701 [1] : vector<8x128xi32> to vector<8xi32>
    %1472 = vector.shape_cast %1471 : vector<8xi32> to vector<8x1xi32>
    %1473 = vector.broadcast %1472 : vector<8x1xi32> to vector<8x128xi32>
    %1474 = arith.cmpi eq, %0, %1473 : vector<8x128xi32>
    %1475 = arith.extui %1474 : vector<8x128xi1> to vector<8x128xi32>
    %1476 = arith.sitofp %1475 : vector<8x128xi32> to vector<8x128xf32>
    %c0_702 = arith.constant 0 : index
    %c0_703 = arith.constant 0 : index
    %1477 = vector.load %arg4[%c0_702, %c0_703] : memref<128x32xf32, #tpu.memory_space<vmem>>, vector<128x32xf32>
    %cst_704 = arith.constant dense<0.000000e+00> : vector<8x32xf32>
    %1478 = tpu.matmul %1476, %1477, %cst_704 {dimension_numbers = #tpu.dot_dimension_numbers<[1], [0], [0], [1], [0, 0, 1, 1], [], []>} : vector<8x128xf32>, vector<128x32xf32>, vector<8x32xf32> -> vector<8x32xf32>
    %c1_i32_705 = arith.constant 1 : i32
    %1479 = arith.addi %c6_i32_656, %c1_i32_705 : i32
    %1480 = arith.index_cast %1479 : i32 to index
    %c0_706 = arith.constant 0 : index
    %c0_707 = arith.constant 0 : index
    %1481 = vector.load %arg1[%1480, %c0_706, %c0_707] : memref<8x8x1xi32, #tpu.memory_space<vmem>>, vector<1x8x1xi32>
    %1482 = vector.shape_cast %1481 : vector<1x8x1xi32> to vector<8x1xi32>
    %1483 = vector.broadcast %1482 : vector<8x1xi32> to vector<8x128xi32>
    %1484 = arith.cmpi eq, %1483, %0 : vector<8x128xi32>
    %1485 = arith.extui %1484 : vector<8x128xi1> to vector<8x128xi32>
    %1486 = arith.sitofp %1485 : vector<8x128xi32> to vector<8x128xf32>
    %c0_708 = arith.constant 0 : index
    %c0_709 = arith.constant 0 : index
    %1487 = vector.load %arg4[%c0_708, %c0_709] : memref<128x32xf32, #tpu.memory_space<vmem>>, vector<128x32xf32>
    %cst_710 = arith.constant dense<0.000000e+00> : vector<8x32xf32>
    %1488 = tpu.matmul %1486, %1487, %cst_710 {dimension_numbers = #tpu.dot_dimension_numbers<[1], [0], [0], [1], [0, 0, 1, 1], [], []>} : vector<8x128xf32>, vector<128x32xf32>, vector<8x32xf32> -> vector<8x32xf32>
    %1489 = arith.index_cast %c6_i32_656 : i32 to index
    %1490 = memref.load %arg2[%1489] : memref<7xi32, #tpu.memory_space<smem>>
    %1491 = arith.sitofp %1490 : i32 to f32
    %1492 = vector.broadcast %1491 : f32 to vector<8x32xf32>
    %1493 = arith.mulf %1492, %1488 : vector<8x32xf32>
    %cst_711 = arith.constant 1.000000e+00 : f32
    %1494 = arith.subf %cst_711, %1491 : f32
    %1495 = vector.broadcast %1494 : f32 to vector<8x32xf32>
    %1496 = arith.mulf %1495, %1478 : vector<8x32xf32>
    %1497 = arith.addf %1493, %1496 : vector<8x32xf32>
    %c7_i32_712 = arith.constant 7 : i32
    return
  }
}

</mosaic_0001>

<llo_original>
// kernel: seq2seq_forward.1
$region0: #{seq2seq_forward.1}
  #allocation0 [shape = 'u32[]', space=smem, size = 0x4, offset = 0x4, fixed_abs, tag = 'smem constant byte address 0x4 - core index']
  #allocation1 [shape = 'u32[144,128]{1,0:T(1,128)}', space=vmem, size = 0x12000, scoped, tag = 'internal scratch']
  %s0 = inlined_call_operand.vmem [shape: s32[8,8,1], index: 0, kind: input, shape index: {}]
  %s1 = inlined_call_operand.vmem [shape: s32[8,8,1], index: 1, kind: input, shape index: {}]
  %s2 = inlined_call_operand.vmem [shape: s32[7], index: 2, kind: input, shape index: {}]
  %s3 = inlined_call_operand.vmem [shape: f32[128,32], index: 3, kind: input, shape index: {}]
  %s4 = inlined_call_operand.vmem [shape: f32[128,32], index: 4, kind: input, shape index: {}]
  %s5 = inlined_call_operand.vmem [shape: f32[2,32,128], index: 5, kind: input, shape index: {}]
  %s6 = inlined_call_operand.vmem [shape: f32[2,32,128], index: 6, kind: input, shape index: {}]
  %s7 = inlined_call_operand.vmem [shape: f32[2,1,128], index: 7, kind: input, shape index: {}]
  %s8 = inlined_call_operand.vmem [shape: f32[2,1,32], index: 8, kind: input, shape index: {}]
  %s9 = inlined_call_operand.vmem [shape: f32[2,32,128], index: 9, kind: input, shape index: {}]
  %s10 = inlined_call_operand.vmem [shape: f32[2,32,128], index: 10, kind: input, shape index: {}]
  %s11 = inlined_call_operand.vmem [shape: f32[2,1,128], index: 11, kind: input, shape index: {}]
  %s12 = inlined_call_operand.vmem [shape: f32[2,1,32], index: 12, kind: input, shape index: {}]
  %s13 = inlined_call_operand.vmem [shape: f32[32,128], index: 13, kind: input, shape index: {}]
  %s14 = inlined_call_operand.vmem [shape: f32[1,128], index: 14, kind: input, shape index: {}]
  %s15 = inlined_call_operand.hbm [shape: f32[8,8,128], index: 15, kind: output, shape index: {}]
  %s16 = sld [smem:[#allocation0]]
  $region74: #{seq2seq_forward.1} parent=0
    _
  %s18 = ssub.s32 1, %s16
  %s19 = scalar_select 0, %s18, %s16
  $region1: #{seq2seq_forward.1} parent=0
    #allocation2 [shape = 'u8[512]{0}', space=smem, size = 0x200, scoped, tag = 'input window, operand 2, single buffered']
    #allocation3 [shape = 's32[1]{0}', space=sflag, size = 0x4, scoped, tag = 'scoped memory for seq2seq_forward.1']
    #allocation4 [shape = 's32[1]{0}', space=sflag, size = 0x4, scoped, tag = 'scoped memory for seq2seq_forward.1']
    #allocation5 [shape = 'u8[32768]{0}', space=vmem, size = 0x8000, scoped, tag = 'output window, operand 0, single buffered']
    %20 = vsyncpa [#allocation4], 0
    %21 = vsyncpa [#allocation3], 0
    // Predicated region
    $region2: #{seq2seq_forward.1} parent=1 // pred_check
      _
    $region3: #{seq2seq_forward.1} parent=1 // pred_check_branch
      %23 = sbr.rel (0) target = $region5
    $region4: #{seq2seq_forward.1} parent=1 // pred_region
      _
    $region5: #{seq2seq_forward.1} parent=1 // pred_fallthru
      _
    // Predicated region
    $region6: #{seq2seq_forward.1} parent=1 // pred_check
      _
    $region7: #{seq2seq_forward.1} parent=1 // pred_check_branch
      %25 = sbr.rel (0) target = $region9
    $region8: #{seq2seq_forward.1} parent=1 // pred_region
      _
    $region9: #{seq2seq_forward.1} parent=1 // pred_fallthru
      _
    // Predicated region
    $region10: #{seq2seq_forward.1} parent=1 // pred_check
      _
    $region11: #{seq2seq_forward.1} parent=1 // pred_check_branch
      %27 = sbr.rel (0) target = $region13
    $region12: #{seq2seq_forward.1} parent=1 // pred_region
      %s29 = ssub.s32 16, 16
      %30 = vsyncadd [#allocation4], %s29
      %s32 = sshll.u32 %s2, 4
      %s33 = int_to_ptr.vmem [resolvable:$true] %s32
      %35 = dma.vmem_to_smem %s33, 16, [#allocation2], [#allocation4]
    $region13: #{seq2seq_forward.1} parent=1 // pred_fallthru
      _
    // Predicated region
    $region14: #{seq2seq_forward.1} parent=1 // pred_check
      _
    $region15: #{seq2seq_forward.1} parent=1 // pred_check_branch
      %37 = sbr.rel (0) target = $region17
    $region16: #{seq2seq_forward.1} parent=1 // pred_region
      _
    $region17: #{seq2seq_forward.1} parent=1 // pred_fallthru
      _
    // Predicated region
    $region18: #{seq2seq_forward.1} parent=1 // pred_check
      _
    $region19: #{seq2seq_forward.1} parent=1 // pred_check_branch
      %39 = sbr.rel (0) target = $region21
    $region20: #{seq2seq_forward.1} parent=1 // pred_region
      _
    $region21: #{seq2seq_forward.1} parent=1 // pred_fallthru
      _
    // Predicated region
    $region22: #{seq2seq_forward.1} parent=1 // pred_check
      _
    $region23: #{seq2seq_forward.1} parent=1 // pred_check_branch
      %41 = sbr.rel (0) target = $region25
    $region24: #{seq2seq_forward.1} parent=1 // pred_region
      _
    $region25: #{seq2seq_forward.1} parent=1 // pred_fallthru
      _
    // Predicated region
    $region26: #{seq2seq_forward.1} parent=1 // pred_check
      _
    $region27: #{seq2seq_forward.1} parent=1 // pred_check_branch
      %43 = sbr.rel (0) target = $region29
    $region28: #{seq2seq_forward.1} parent=1 // pred_region
      _
    $region29: #{seq2seq_forward.1} parent=1 // pred_fallthru
      _
    // Predicated region
    $region30: #{seq2seq_forward.1} parent=1 // pred_check
      _
    $region31: #{seq2seq_forward.1} parent=1 // pred_check_branch
      %45 = sbr.rel (0) target = $region33
    $region32: #{seq2seq_forward.1} parent=1 // pred_region
      _
    $region33: #{seq2seq_forward.1} parent=1 // pred_fallthru
      _
    // Predicated region
    $region34: #{seq2seq_forward.1} parent=1 // pred_check
      _
    $region35: #{seq2seq_forward.1} parent=1 // pred_check_branch
      %47 = sbr.rel (0) target = $region37
    $region36: #{seq2seq_forward.1} parent=1 // pred_region
      _
    $region37: #{seq2seq_forward.1} parent=1 // pred_fallthru
      _
    // Predicated region
    $region38: #{seq2seq_forward.1} parent=1 // pred_check
      _
    $region39: #{seq2seq_forward.1} parent=1 // pred_check_branch
      %49 = sbr.rel (0) target = $region41
    $region40: #{seq2seq_forward.1} parent=1 // pred_region
      _
    $region41: #{seq2seq_forward.1} parent=1 // pred_fallthru
      _
    // Predicated region
    $region42: #{seq2seq_forward.1} parent=1 // pred_check
      _
    $region43: #{seq2seq_forward.1} parent=1 // pred_check_branch
      %51 = sbr.rel (0) target = $region45
    $region44: #{seq2seq_forward.1} parent=1 // pred_region
      _
    $region45: #{seq2seq_forward.1} parent=1 // pred_fallthru
      _
    // Predicated region
    $region46: #{seq2seq_forward.1} parent=1 // pred_check
      _
    $region47: #{seq2seq_forward.1} parent=1 // pred_check_branch
      %53 = sbr.rel (0) target = $region49
    $region48: #{seq2seq_forward.1} parent=1 // pred_region
      _
    $region49: #{seq2seq_forward.1} parent=1 // pred_fallthru
      _
    // Predicated region
    $region50: #{seq2seq_forward.1} parent=1 // pred_check
      _
    $region51: #{seq2seq_forward.1} parent=1 // pred_check_branch
      %55 = sbr.rel (0) target = $region53
    $region52: #{seq2seq_forward.1} parent=1 // pred_region
      _
    $region53: #{seq2seq_forward.1} parent=1 // pred_fallthru
      _
    // Predicated region
    $region54: #{seq2seq_forward.1} parent=1 // pred_check
      _
    $region55: #{seq2seq_forward.1} parent=1 // pred_check_branch
      %57 = sbr.rel (0) target = $region57
    $region56: #{seq2seq_forward.1} parent=1 // pred_region
      _
    $region57: #{seq2seq_forward.1} parent=1 // pred_fallthru
      _
    // Predicated region
    $region58: #{seq2seq_forward.1} parent=1 // pred_check
      _
    $region59: #{seq2seq_forward.1} parent=1 // pred_check_branch
      %59 = sbr.rel (0) target = $region61
    $region60: #{seq2seq_forward.1} parent=1 // pred_region
      _
    $region61: #{seq2seq_forward.1} parent=1 // pred_fallthru
      _
    // Predicated region
    $region62: #{seq2seq_forward.1} parent=1 // pred_check
      _
    $region63: #{seq2seq_forward.1} parent=1 // pred_check_branch
      %61 = sbr.rel (0) target = $region65
    $region64: #{seq2seq_forward.1} parent=1 // pred_region
      %62 = dma.done [#allocation4], 16
    $region65: #{seq2seq_forward.1} parent=1 // pred_fallthru
      _
    %63 = sfence
    %v64 = vlaneseq
    %v65 = vand.u32 %v64, 127
    %v66 = vld [vmem:[%s0] sm:$0xff]
    %67 = vset.pattern.permute.xlu0 0
    %68 = vperm.xlu0 %67, %v66
    %v69 = vpop.permute.xlu0 %68
    %vm70 = vcmp.eq.s32.totalorder %v69, %v65
    %v71 = vsel %vm70, 1, 0
    %v72 = vcvt.s32.f32 %v71
    %v73 = vld [vmem:[%s3] sm:$0xff]
    %v74 = vld [vmem:[%s3 + $0x8] sm:$0xff]
    %v75 = vld [vmem:[%s3 + $0x10] sm:$0xff]
    %v76 = vld [vmem:[%s3 + $0x18] sm:$0xff]
    %v77 = vld [vmem:[%s3 + $0x20] sm:$0xff]
    %v78 = vld [vmem:[%s3 + $0x28] sm:$0xff]
    %v79 = vld [vmem:[%s3 + $0x30] sm:$0xff]
    %v80 = vld [vmem:[%s3 + $0x38] sm:$0xff]
    %v81 = vld [vmem:[%s3 + $0x40] sm:$0xff]
    %v82 = vld [vmem:[%s3 + $0x48] sm:$0xff]
    %v83 = vld [vmem:[%s3 + $0x50] sm:$0xff]
    %v84 = vld [vmem:[%s3 + $0x58] sm:$0xff]
    %v85 = vld [vmem:[%s3 + $0x60] sm:$0xff]
    %v86 = vld [vmem:[%s3 + $0x68] sm:$0xff]
    %v87 = vld [vmem:[%s3 + $0x70] sm:$0xff]
    %v88 = vld [vmem:[%s3 + $0x78] sm:$0xff]
    %89 = vmatprep.subr.mxu0 0.0
    %90 = vmatpush1.msra.mxu0 %v88
    %91 = vmatprep.subr.mxu0 0.0
    %92 = vmatpush1.msra.mxu0 %v87
    %93 = vmatprep.subr.mxu0 0.0
    %94 = vmatpush1.msra.mxu0 %v86
    %95 = vmatprep.subr.mxu0 0.0
    %96 = vmatpush1.msra.mxu0 %v85
    %97 = vmatprep.subr.mxu0 0.0
    %98 = vmatpush1.msra.mxu0 %v84
    %99 = vmatprep.subr.mxu0 0.0
    %100 = vmatpush1.msra.mxu0 %v83
    %101 = vmatprep.subr.mxu0 0.0
    %102 = vmatpush1.msra.mxu0 %v82
    %103 = vmatprep.subr.mxu0 0.0
    %104 = vmatpush1.msra.mxu0 %v81
    %105 = vmatprep.subr.mxu0 0.0
    %106 = vmatpush1.msra.mxu0 %v80
    %107 = vmatprep.subr.mxu0 0.0
    %108 = vmatpush1.msra.mxu0 %v79
    %109 = vmatprep.subr.mxu0 0.0
    %110 = vmatpush1.msra.mxu0 %v78
    %111 = vmatprep.subr.mxu0 0.0
    %112 = vmatpush1.msra.mxu0 %v77
    %113 = vmatprep.subr.mxu0 0.0
    %114 = vmatpush1.msra.mxu0 %v76
    %115 = vmatprep.subr.mxu0 0.0
    %116 = vmatpush1.msra.mxu0 %v75
    %117 = vmatprep.subr.mxu0 0.0
    %118 = vmatpush1.msra.mxu0 %v74
    %119 = vmatprep.subr.mxu0 0.0
    %120 = vmatpush1.msra.mxu0 %v73
    %121 = vmatprep.subr.mxu0 0.0
    %122 = vmatpush2.msra.mxu0 0.0
    %123 = vmatprep.subr.mxu0 0.0
    %124 = vmatpush2.msra.mxu0 0.0
    %125 = vmatprep.subr.mxu0 0.0
    %126 = vmatpush2.msra.mxu0 0.0
    %127 = vmatprep.subr.mxu0 0.0
    %128 = vmatpush2.msra.mxu0 0.0
    %129 = vmatprep.subr.mxu0 0.0
    %130 = vmatpush2.msra.mxu0 0.0
    %131 = vmatprep.subr.mxu0 0.0
    %132 = vmatpush2.msra.mxu0 0.0
    %133 = vmatprep.subr.mxu0 0.0
    %134 = vmatpush2.msra.mxu0 0.0
    %135 = vmatprep.subr.mxu0 0.0
    %136 = vmatpush2.msra.mxu0 0.0
    %137 = vmatprep.subr.mxu0 0.0
    %138 = vmatpush2.msra.mxu0 0.0
    %139 = vmatprep.subr.mxu0 0.0
    %140 = vmatpush2.msra.mxu0 0.0
    %141 = vmatprep.subr.mxu0 0.0
    %142 = vmatpush2.msra.mxu0 0.0
    %143 = vmatprep.subr.mxu0 0.0
    %144 = vmatpush2.msra.mxu0 0.0
    %145 = vmatprep.subr.mxu0 0.0
    %146 = vmatpush2.msra.mxu0 0.0
    %147 = vmatprep.subr.mxu0 0.0
    %148 = vmatpush2.msra.mxu0 0.0
    %149 = vmatprep.subr.mxu0 0.0
    %150 = vmatpush2.msra.mxu0 0.0
    %151 = vmatprep.subr.mxu0 0.0
    %152 = vmatpush2.msra.mxu0 0.0
    %153 = vmatprep.mubr.f32.mxu0 0.0
    %154 = vmatmul.mubr.f32.gmra.mxu0 %v72
    %v155 = vpop.f32.mrf.mxu0
    %v156 = vadd.f32 0.0, %v155
    %v157 = vpop.f32.mrf.mxu0
    %158 = vdwg.mxu0
    %v159 = vld [vmem:[%s5] sm:$0xff]
    %v160 = vld [vmem:[%s5 + $0x8] sm:$0xff]
    %v161 = vld [vmem:[%s5 + $0x10] sm:$0xff]
    %v162 = vld [vmem:[%s5 + $0x18] sm:$0xff]
    %v163 = vld [vmem:[%s6] sm:$0xff]
    %v164 = vld [vmem:[%s6 + $0x8] sm:$0xff]
    %v165 = vld [vmem:[%s6 + $0x10] sm:$0xff]
    %v166 = vld [vmem:[%s6 + $0x18] sm:$0xff]
    %vm167 = vcmask 261120
    %v169 = vsel %vm167, 0.0, 0
    %171 = vmatprep.subr.mxu0 0.0
    %172 = vmatpush1.msra.mxu0 0.0
    %173 = vmatprep.subr.mxu0 0.0
    %174 = vmatpush1.msra.mxu0 0.0
    %175 = vmatprep.subr.mxu0 0.0
    %176 = vmatpush1.msra.mxu0 0.0
    %177 = vmatprep.subr.mxu0 0.0
    %178 = vmatpush1.msra.mxu0 0.0
    %179 = vmatprep.subr.mxu0 0.0
    %180 = vmatpush1.msra.mxu0 0.0
    %181 = vmatprep.subr.mxu0 0.0
    %182 = vmatpush1.msra.mxu0 0.0
    %183 = vmatprep.subr.mxu0 0.0
    %184 = vmatpush1.msra.mxu0 0.0
    %185 = vmatprep.subr.mxu0 0.0
    %186 = vmatpush1.msra.mxu0 0.0
    %187 = vmatprep.subr.mxu0 0.0
    %188 = vmatpush1.msra.mxu0 0.0
    %189 = vmatprep.subr.mxu0 0.0
    %190 = vmatpush1.msra.mxu0 0.0
    %191 = vmatprep.subr.mxu0 0.0
    %192 = vmatpush1.msra.mxu0 0.0
    %193 = vmatprep.subr.mxu0 0.0
    %194 = vmatpush1.msra.mxu0 0.0
    %195 = vmatprep.subr.mxu0 0.0
    %196 = vmatpush1.msra.mxu0 %v166
    %197 = vmatprep.subr.mxu0 0.0
    %198 = vmatpush1.msra.mxu0 %v165
    %199 = vmatprep.subr.mxu0 0.0
    %200 = vmatpush1.msra.mxu0 %v164
    %201 = vmatprep.subr.mxu0 0.0
    %202 = vmatpush1.msra.mxu0 %v163
    %203 = vmatprep.subr.mxu0 0.0
    %204 = vmatpush2.msra.mxu0 0.0
    %205 = vmatprep.subr.mxu0 0.0
    %206 = vmatpush2.msra.mxu0 0.0
    %207 = vmatprep.subr.mxu0 0.0
    %208 = vmatpush2.msra.mxu0 0.0
    %209 = vmatprep.subr.mxu0 0.0
    %210 = vmatpush2.msra.mxu0 0.0
    %211 = vmatprep.subr.mxu0 0.0
    %212 = vmatpush2.msra.mxu0 0.0
    %213 = vmatprep.subr.mxu0 0.0
    %214 = vmatpush2.msra.mxu0 0.0
    %215 = vmatprep.subr.mxu0 0.0
    %216 = vmatpush2.msra.mxu0 0.0
    %217 = vmatprep.subr.mxu0 0.0
    %218 = vmatpush2.msra.mxu0 0.0
    %219 = vmatprep.subr.mxu0 0.0
    %220 = vmatpush2.msra.mxu0 0.0
    %221 = vmatprep.subr.mxu0 0.0
    %222 = vmatpush2.msra.mxu0 0.0
    %223 = vmatprep.subr.mxu0 0.0
    %224 = vmatpush2.msra.mxu0 0.0
    %225 = vmatprep.subr.mxu0 0.0
    %226 = vmatpush2.msra.mxu0 0.0
    %227 = vmatprep.subr.mxu0 0.0
    %228 = vmatpush2.msra.mxu0 0.0
    %229 = vmatprep.subr.mxu0 0.0
    %230 = vmatpush2.msra.mxu0 0.0
    %231 = vmatprep.subr.mxu0 0.0
    %232 = vmatpush2.msra.mxu0 0.0
    %233 = vmatprep.subr.mxu0 0.0
    %234 = vmatpush2.msra.mxu0 0.0
    %235 = vmatprep.mubr.f32.mxu0 0.0
    %236 = vmatmul.mubr.f32.gmra.mxu0 %v169
    %v237 = vpop.f32.mrf.mxu0
    %v238 = vadd.f32 0.0, %v237
    %v239 = vpop.f32.mrf.mxu0
    %240 = vdwg.mxu0
    %v242 = vsel %vm167, %v156, 0
    %244 = vmatprep.subr.mxu0 0.0
    %245 = vmatpush1.msra.mxu0 0.0
    %246 = vmatprep.subr.mxu0 0.0
    %247 = vmatpush1.msra.mxu0 0.0
    %248 = vmatprep.subr.mxu0 0.0
    %249 = vmatpush1.msra.mxu0 0.0
    %250 = vmatprep.subr.mxu0 0.0
    %251 = vmatpush1.msra.mxu0 0.0
    %252 = vmatprep.subr.mxu0 0.0
    %253 = vmatpush1.msra.mxu0 0.0
    %254 = vmatprep.subr.mxu0 0.0
    %255 = vmatpush1.msra.mxu0 0.0
    %256 = vmatprep.subr.mxu0 0.0
    %257 = vmatpush1.msra.mxu0 0.0
    %258 = vmatprep.subr.mxu0 0.0
    %259 = vmatpush1.msra.mxu0 0.0
    %260 = vmatprep.subr.mxu0 0.0
    %261 = vmatpush1.msra.mxu0 0.0
    %262 = vmatprep.subr.mxu0 0.0
    %263 = vmatpush1.msra.mxu0 0.0
    %264 = vmatprep.subr.mxu0 0.0
    %265 = vmatpush1.msra.mxu0 0.0
    %266 = vmatprep.subr.mxu0 0.0
    %267 = vmatpush1.msra.mxu0 0.0
    %268 = vmatprep.subr.mxu0 0.0
    %269 = vmatpush1.msra.mxu0 %v162
    %270 = vmatprep.subr.mxu0 0.0
    %271 = vmatpush1.msra.mxu0 %v161
    %272 = vmatprep.subr.mxu0 0.0
    %273 = vmatpush1.msra.mxu0 %v160
    %274 = vmatprep.subr.mxu0 0.0
    %275 = vmatpush1.msra.mxu0 %v159
    %276 = vmatprep.subr.mxu0 0.0
    %277 = vmatpush2.msra.mxu0 0.0
    %278 = vmatprep.subr.mxu0 0.0
    %279 = vmatpush2.msra.mxu0 0.0
    %280 = vmatprep.subr.mxu0 0.0
    %281 = vmatpush2.msra.mxu0 0.0
    %282 = vmatprep.subr.mxu0 0.0
    %283 = vmatpush2.msra.mxu0 0.0
    %284 = vmatprep.subr.mxu0 0.0
    %285 = vmatpush2.msra.mxu0 0.0
    %286 = vmatprep.subr.mxu0 0.0
    %287 = vmatpush2.msra.mxu0 0.0
    %288 = vmatprep.subr.mxu0 0.0
    %289 = vmatpush2.msra.mxu0 0.0
    %290 = vmatprep.subr.mxu0 0.0
    %291 = vmatpush2.msra.mxu0 0.0
    %292 = vmatprep.subr.mxu0 0.0
    %293 = vmatpush2.msra.mxu0 0.0
    %294 = vmatprep.subr.mxu0 0.0
    %295 = vmatpush2.msra.mxu0 0.0
    %296 = vmatprep.subr.mxu0 0.0
    %297 = vmatpush2.msra.mxu0 0.0
    %298 = vmatprep.subr.mxu0 0.0
    %299 = vmatpush2.msra.mxu0 0.0
    %300 = vmatprep.subr.mxu0 0.0
    %301 = vmatpush2.msra.mxu0 0.0
    %302 = vmatprep.subr.mxu0 0.0
    %303 = vmatpush2.msra.mxu0 0.0
    %304 = vmatprep.subr.mxu0 0.0
    %305 = vmatpush2.msra.mxu0 0.0
    %306 = vmatprep.subr.mxu0 0.0
    %307 = vmatpush2.msra.mxu0 0.0
    %308 = vmatprep.mubr.f32.mxu0 0.0
    %309 = vmatmul.mubr.f32.gmra.mxu0 %v242
    %v310 = vpop.f32.mrf.mxu0
    %v311 = vadd.f32 %v238, %v310
    %v312 = vpop.f32.mrf.mxu0
    %313 = vdwg.mxu0
    %v314 = vld [vmem:[%s7] sm:$0x1]
    %v316 = vlaneseq
    %v317 = vshrl.u32 %v316, 7
    %v318 = vsub.s32 0, %v317
    %v319 = vrot.slane %v314, %v318
    %v321 = vadd.f32 %v311, %v319
    %v322 = vxor.u32 %v321, 2147483648
    %v323 = vmul.f32 %v322, 1.442695
    %v324 = vpow.pop %v323
    %v325 = vadd.f32 %v324, 1.0
    %v326 = vrcp.pop %v325
    %v327 = vmul.f32 1.0, %v326
    %v328 = vld [vmem:[%s8] sm:$0x1]
    %v330 = vlaneseq
    %v331 = vshrl.u32 %v330, 7
    %v332 = vsub.s32 0, %v331
    %v333 = vrot.slane %v328, %v332
    %334 = vrot.lane.b32.xlu0 %v333, 96
    %v335 = vpop.permute.xlu0 %334
    %v337 = vadd.f32 %v321, %v335
    %339 = vrot.lane.b32.xlu0 %v337, 32
    %v340 = vpop.permute.xlu0 %339
    %v342 = vmul.f32 %v327, %v340
    %344 = vrot.lane.b32.xlu0 %v342, 64
    %v345 = vpop.permute.xlu0 %344
    %v347 = vadd.f32 %v321, %v345
    %v348 = vtanh.pop %v347
    %v349 = vsub.f32 1.0, %v327
    %351 = vrot.lane.b32.xlu0 %v348, 96
    %v352 = vpop.permute.xlu0 %351
    %v354 = vmul.f32 %v349, %v352
    %v355 = vmul.f32 %v327, 0.0
    %v356 = vadd.f32 %v354, %v355
    %s357 = scalar_lea.vmem %s5, 32
    %v358 = vld [vmem:[%s357] sm:$0xff]
    %v359 = vld [vmem:[%s357 + $0x8] sm:$0xff]
    %v360 = vld [vmem:[%s357 + $0x10] sm:$0xff]
    %v361 = vld [vmem:[%s357 + $0x18] sm:$0xff]
    %s362 = scalar_lea.vmem %s6, 32
    %v363 = vld [vmem:[%s362] sm:$0xff]
    %v364 = vld [vmem:[%s362 + $0x8] sm:$0xff]
    %v365 = vld [vmem:[%s362 + $0x10] sm:$0xff]
    %v366 = vld [vmem:[%s362 + $0x18] sm:$0xff]
    %367 = vmatprep.subr.mxu0 0.0
    %368 = vmatpush1.msra.mxu0 0.0
    %369 = vmatprep.subr.mxu0 0.0
    %370 = vmatpush1.msra.mxu0 0.0
    %371 = vmatprep.subr.mxu0 0.0
    %372 = vmatpush1.msra.mxu0 0.0
    %373 = vmatprep.subr.mxu0 0.0
    %374 = vmatpush1.msra.mxu0 0.0
    %375 = vmatprep.subr.mxu0 0.0
    %376 = vmatpush1.msra.mxu0 0.0
    %377 = vmatprep.subr.mxu0 0.0
    %378 = vmatpush1.msra.mxu0 0.0
    %379 = vmatprep.subr.mxu0 0.0
    %380 = vmatpush1.msra.mxu0 0.0
    %381 = vmatprep.subr.mxu0 0.0
    %382 = vmatpush1.msra.mxu0 0.0
    %383 = vmatprep.subr.mxu0 0.0
    %384 = vmatpush1.msra.mxu0 0.0
    %385 = vmatprep.subr.mxu0 0.0
    %386 = vmatpush1.msra.mxu0 0.0
    %387 = vmatprep.subr.mxu0 0.0
    %388 = vmatpush1.msra.mxu0 0.0
    %389 = vmatprep.subr.mxu0 0.0
    %390 = vmatpush1.msra.mxu0 0.0
    %391 = vmatprep.subr.mxu0 0.0
    %392 = vmatpush1.msra.mxu0 %v366
    %393 = vmatprep.subr.mxu0 0.0
    %394 = vmatpush1.msra.mxu0 %v365
    %395 = vmatprep.subr.mxu0 0.0
    %396 = vmatpush1.msra.mxu0 %v364
    %397 = vmatprep.subr.mxu0 0.0
    %398 = vmatpush1.msra.mxu0 %v363
    %399 = vmatprep.subr.mxu0 0.0
    %400 = vmatpush2.msra.mxu0 0.0
    %401 = vmatprep.subr.mxu0 0.0
    %402 = vmatpush2.msra.mxu0 0.0
    %403 = vmatprep.subr.mxu0 0.0
    %404 = vmatpush2.msra.mxu0 0.0
    %405 = vmatprep.subr.mxu0 0.0
    %406 = vmatpush2.msra.mxu0 0.0
    %407 = vmatprep.subr.mxu0 0.0
    %408 = vmatpush2.msra.mxu0 0.0
    %409 = vmatprep.subr.mxu0 0.0
    %410 = vmatpush2.msra.mxu0 0.0
    %411 = vmatprep.subr.mxu0 0.0
    %412 = vmatpush2.msra.mxu0 0.0
    %413 = vmatprep.subr.mxu0 0.0
    %414 = vmatpush2.msra.mxu0 0.0
    %415 = vmatprep.subr.mxu0 0.0
    %416 = vmatpush2.msra.mxu0 0.0
    %417 = vmatprep.subr.mxu0 0.0
    %418 = vmatpush2.msra.mxu0 0.0
    %419 = vmatprep.subr.mxu0 0.0
    %420 = vmatpush2.msra.mxu0 0.0
    %421 = vmatprep.subr.mxu0 0.0
    %422 = vmatpush2.msra.mxu0 0.0
    %423 = vmatprep.subr.mxu0 0.0
    %424 = vmatpush2.msra.mxu0 0.0
    %425 = vmatprep.subr.mxu0 0.0
    %426 = vmatpush2.msra.mxu0 0.0
    %427 = vmatprep.subr.mxu0 0.0
    %428 = vmatpush2.msra.mxu0 0.0
    %429 = vmatprep.subr.mxu0 0.0
    %430 = vmatpush2.msra.mxu0 0.0
    %431 = vmatprep.mubr.f32.mxu0 0.0
    %432 = vmatmul.mubr.f32.gmra.mxu0 %v169
    %v433 = vpop.f32.mrf.mxu0
    %v434 = vadd.f32 0.0, %v433
    %v435 = vpop.f32.mrf.mxu0
    %436 = vdwg.mxu0
    %438 = vrot.lane.b32.xlu0 %v356, 96
    %v439 = vpop.permute.xlu0 %438
    %v440 = vsel %vm167, %v439, 0
    %442 = vmatprep.subr.mxu0 0.0
    %443 = vmatpush1.msra.mxu0 0.0
    %444 = vmatprep.subr.mxu0 0.0
    %445 = vmatpush1.msra.mxu0 0.0
    %446 = vmatprep.subr.mxu0 0.0
    %447 = vmatpush1.msra.mxu0 0.0
    %448 = vmatprep.subr.mxu0 0.0
    %449 = vmatpush1.msra.mxu0 0.0
    %450 = vmatprep.subr.mxu0 0.0
    %451 = vmatpush1.msra.mxu0 0.0
    %452 = vmatprep.subr.mxu0 0.0
    %453 = vmatpush1.msra.mxu0 0.0
    %454 = vmatprep.subr.mxu0 0.0
    %455 = vmatpush1.msra.mxu0 0.0
    %456 = vmatprep.subr.mxu0 0.0
    %457 = vmatpush1.msra.mxu0 0.0
    %458 = vmatprep.subr.mxu0 0.0
    %459 = vmatpush1.msra.mxu0 0.0
    %460 = vmatprep.subr.mxu0 0.0
    %461 = vmatpush1.msra.mxu0 0.0
    %462 = vmatprep.subr.mxu0 0.0
    %463 = vmatpush1.msra.mxu0 0.0
    %464 = vmatprep.subr.mxu0 0.0
    %465 = vmatpush1.msra.mxu0 0.0
    %466 = vmatprep.subr.mxu0 0.0
    %467 = vmatpush1.msra.mxu0 %v361
    %468 = vmatprep.subr.mxu0 0.0
    %469 = vmatpush1.msra.mxu0 %v360
    %470 = vmatprep.subr.mxu0 0.0
    %471 = vmatpush1.msra.mxu0 %v359
    %472 = vmatprep.subr.mxu0 0.0
    %473 = vmatpush1.msra.mxu0 %v358
    %474 = vmatprep.subr.mxu0 0.0
    %475 = vmatpush2.msra.mxu0 0.0
    %476 = vmatprep.subr.mxu0 0.0
    %477 = vmatpush2.msra.mxu0 0.0
    %478 = vmatprep.subr.mxu0 0.0
    %479 = vmatpush2.msra.mxu0 0.0
    %480 = vmatprep.subr.mxu0 0.0
    %481 = vmatpush2.msra.mxu0 0.0
    %482 = vmatprep.subr.mxu0 0.0
    %483 = vmatpush2.msra.mxu0 0.0
    %484 = vmatprep.subr.mxu0 0.0
    %485 = vmatpush2.msra.mxu0 0.0
    %486 = vmatprep.subr.mxu0 0.0
    %487 = vmatpush2.msra.mxu0 0.0
    %488 = vmatprep.subr.mxu0 0.0
    %489 = vmatpush2.msra.mxu0 0.0
    %490 = vmatprep.subr.mxu0 0.0
    %491 = vmatpush2.msra.mxu0 0.0
    %492 = vmatprep.subr.mxu0 0.0
    %493 = vmatpush2.msra.mxu0 0.0
    %494 = vmatprep.subr.mxu0 0.0
    %495 = vmatpush2.msra.mxu0 0.0
    %496 = vmatprep.subr.mxu0 0.0
    %497 = vmatpush2.msra.mxu0 0.0
    %498 = vmatprep.subr.mxu0 0.0
    %499 = vmatpush2.msra.mxu0 0.0
    %500 = vmatprep.subr.mxu0 0.0
    %501 = vmatpush2.msra.mxu0 0.0
    %502 = vmatprep.subr.mxu0 0.0
    %503 = vmatpush2.msra.mxu0 0.0
    %504 = vmatprep.subr.mxu0 0.0
    %505 = vmatpush2.msra.mxu0 0.0
    %506 = vmatprep.mubr.f32.mxu0 0.0
    %507 = vmatmul.mubr.f32.gmra.mxu0 %v440
    %v508 = vpop.f32.mrf.mxu0
    %v509 = vadd.f32 %v434, %v508
    %v510 = vpop.f32.mrf.mxu0
    %511 = vdwg.mxu0
    %s512 = scalar_lea.vmem %s7, 1
    %v513 = vld [vmem:[%s512] sm:$0x1]
    %v515 = vlaneseq
    %v516 = vshrl.u32 %v515, 7
    %v517 = vsub.s32 0, %v516
    %v518 = vrot.slane %v513, %v517
    %v520 = vadd.f32 %v509, %v518
    %v521 = vxor.u32 %v520, 2147483648
    %v522 = vmul.f32 %v521, 1.442695
    %v523 = vpow.pop %v522
    %v524 = vadd.f32 %v523, 1.0
    %v525 = vrcp.pop %v524
    %v526 = vmul.f32 1.0, %v525
    %s527 = scalar_lea.vmem %s8, 1
    %v528 = vld [vmem:[%s527] sm:$0x1]
    %v530 = vlaneseq
    %v531 = vshrl.u32 %v530, 7
    %v532 = vsub.s32 0, %v531
    %v533 = vrot.slane %v528, %v532
    %534 = vrot.lane.b32.xlu0 %v533, 96
    %v535 = vpop.permute.xlu0 %534
    %v537 = vadd.f32 %v520, %v535
    %539 = vrot.lane.b32.xlu0 %v537, 32
    %v540 = vpop.permute.xlu0 %539
    %v542 = vmul.f32 %v526, %v540
    %544 = vrot.lane.b32.xlu0 %v542, 64
    %v545 = vpop.permute.xlu0 %544
    %v547 = vadd.f32 %v520, %v545
    %v548 = vtanh.pop %v547
    %v549 = vsub.f32 1.0, %v526
    %551 = vrot.lane.b32.xlu0 %v548, 96
    %v552 = vpop.permute.xlu0 %551
    %v554 = vmul.f32 %v549, %v552
    %v555 = vmul.f32 %v526, 0.0
    %v556 = vadd.f32 %v554, %v555
    %s557 = scalar_lea.vmem %s0, 8
    %v558 = vld [vmem:[%s557] sm:$0xff]
    %559 = vset.pattern.permute.xlu0 0
    %560 = vperm.xlu0 %559, %v558
    %v561 = vpop.permute.xlu0 %560
    %vm562 = vcmp.eq.s32.totalorder %v561, %v65
    %v563 = vsel %vm562, 1, 0
    %v564 = vcvt.s32.f32 %v563
    %565 = vmatprep.subr.mxu0 0.0
    %566 = vmatpush1.msra.mxu0 %v88
    %567 = vmatprep.subr.mxu0 0.0
    %568 = vmatpush1.msra.mxu0 %v87
    %569 = vmatprep.subr.mxu0 0.0
    %570 = vmatpush1.msra.mxu0 %v86
    %571 = vmatprep.subr.mxu0 0.0
    %572 = vmatpush1.msra.mxu0 %v85
    %573 = vmatprep.subr.mxu0 0.0
    %574 = vmatpush1.msra.mxu0 %v84
    %575 = vmatprep.subr.mxu0 0.0
    %576 = vmatpush1.msra.mxu0 %v83
    %577 = vmatprep.subr.mxu0 0.0
    %578 = vmatpush1.msra.mxu0 %v82
    %579 = vmatprep.subr.mxu0 0.0
    %580 = vmatpush1.msra.mxu0 %v81
    %581 = vmatprep.subr.mxu0 0.0
    %582 = vmatpush1.msra.mxu0 %v80
    %583 = vmatprep.subr.mxu0 0.0
    %584 = vmatpush1.msra.mxu0 %v79
    %585 = vmatprep.subr.mxu0 0.0
    %586 = vmatpush1.msra.mxu0 %v78
    %587 = vmatprep.subr.mxu0 0.0
    %588 = vmatpush1.msra.mxu0 %v77
    %589 = vmatprep.subr.mxu0 0.0
    %590 = vmatpush1.msra.mxu0 %v76
    %591 = vmatprep.subr.mxu0 0.0
    %592 = vmatpush1.msra.mxu0 %v75
    %593 = vmatprep.subr.mxu0 0.0
    %594 = vmatpush1.msra.mxu0 %v74
    %595 = vmatprep.subr.mxu0 0.0
    %596 = vmatpush1.msra.mxu0 %v73
    %597 = vmatprep.subr.mxu0 0.0
    %598 = vmatpush2.msra.mxu0 0.0
    %599 = vmatprep.subr.mxu0 0.0
    %600 = vmatpush2.msra.mxu0 0.0
    %601 = vmatprep.subr.mxu0 0.0
    %602 = vmatpush2.msra.mxu0 0.0
    %603 = vmatprep.subr.mxu0 0.0
    %604 = vmatpush2.msra.mxu0 0.0
    %605 = vmatprep.subr.mxu0 0.0
    %606 = vmatpush2.msra.mxu0 0.0
    %607 = vmatprep.subr.mxu0 0.0
    %608 = vmatpush2.msra.mxu0 0.0
    %609 = vmatprep.subr.mxu0 0.0
    %610 = vmatpush2.msra.mxu0 0.0
    %611 = vmatprep.subr.mxu0 0.0
    %612 = vmatpush2.msra.mxu0 0.0
    %613 = vmatprep.subr.mxu0 0.0
    %614 = vmatpush2.msra.mxu0 0.0
    %615 = vmatprep.subr.mxu0 0.0
    %616 = vmatpush2.msra.mxu0 0.0
    %617 = vmatprep.subr.mxu0 0.0
    %618 = vmatpush2.msra.mxu0 0.0
    %619 = vmatprep.subr.mxu0 0.0
    %620 = vmatpush2.msra.mxu0 0.0
    %621 = vmatprep.subr.mxu0 0.0
    %622 = vmatpush2.msra.mxu0 0.0
    %623 = vmatprep.subr.mxu0 0.0
    %624 = vmatpush2.msra.mxu0 0.0
    %625 = vmatprep.subr.mxu0 0.0
    %626 = vmatpush2.msra.mxu0 0.0
    %627 = vmatprep.subr.mxu0 0.0
    %628 = vmatpush2.msra.mxu0 0.0
    %629 = vmatprep.mubr.f32.mxu0 0.0
    %630 = vmatmul.mubr.f32.gmra.mxu0 %v564
    %v631 = vpop.f32.mrf.mxu0
    %v632 = vadd.f32 0.0, %v631
    %v633 = vpop.f32.mrf.mxu0
    %634 = vdwg.mxu0
    %635 = vmatprep.subr.mxu0 0.0
    %636 = vmatpush1.msra.mxu0 0.0
    %637 = vmatprep.subr.mxu0 0.0
    %638 = vmatpush1.msra.mxu0 0.0
    %639 = vmatprep.subr.mxu0 0.0
    %640 = vmatpush1.msra.mxu0 0.0
    %641 = vmatprep.subr.mxu0 0.0
    %642 = vmatpush1.msra.mxu0 0.0
    %643 = vmatprep.subr.mxu0 0.0
    %644 = vmatpush1.msra.mxu0 0.0
    %645 = vmatprep.subr.mxu0 0.0
    %646 = vmatpush1.msra.mxu0 0.0
    %647 = vmatprep.subr.mxu0 0.0
    %648 = vmatpush1.msra.mxu0 0.0
    %649 = vmatprep.subr.mxu0 0.0
    %650 = vmatpush1.msra.mxu0 0.0
    %651 = vmatprep.subr.mxu0 0.0
    %652 = vmatpush1.msra.mxu0 0.0
    %653 = vmatprep.subr.mxu0 0.0
    %654 = vmatpush1.msra.mxu0 0.0
    %655 = vmatprep.subr.mxu0 0.0
    %656 = vmatpush1.msra.mxu0 0.0
    %657 = vmatprep.subr.mxu0 0.0
    %658 = vmatpush1.msra.mxu0 0.0
    %659 = vmatprep.subr.mxu0 0.0
    %660 = vmatpush1.msra.mxu0 %v166
    %661 = vmatprep.subr.mxu0 0.0
    %662 = vmatpush1.msra.mxu0 %v165
    %663 = vmatprep.subr.mxu0 0.0
    %664 = vmatpush1.msra.mxu0 %v164
    %665 = vmatprep.subr.mxu0 0.0
    %666 = vmatpush1.msra.mxu0 %v163
    %667 = vmatprep.subr.mxu0 0.0
    %668 = vmatpush2.msra.mxu0 0.0
    %669 = vmatprep.subr.mxu0 0.0
    %670 = vmatpush2.msra.mxu0 0.0
    %671 = vmatprep.subr.mxu0 0.0
    %672 = vmatpush2.msra.mxu0 0.0
    %673 = vmatprep.subr.mxu0 0.0
    %674 = vmatpush2.msra.mxu0 0.0
    %675 = vmatprep.subr.mxu0 0.0
    %676 = vmatpush2.msra.mxu0 0.0
    %677 = vmatprep.subr.mxu0 0.0
    %678 = vmatpush2.msra.mxu0 0.0
    %679 = vmatprep.subr.mxu0 0.0
    %680 = vmatpush2.msra.mxu0 0.0
    %681 = vmatprep.subr.mxu0 0.0
    %682 = vmatpush2.msra.mxu0 0.0
    %683 = vmatprep.subr.mxu0 0.0
    %684 = vmatpush2.msra.mxu0 0.0
    %685 = vmatprep.subr.mxu0 0.0
    %686 = vmatpush2.msra.mxu0 0.0
    %687 = vmatprep.subr.mxu0 0.0
    %688 = vmatpush2.msra.mxu0 0.0
    %689 = vmatprep.subr.mxu0 0.0
    %690 = vmatpush2.msra.mxu0 0.0
    %691 = vmatprep.subr.mxu0 0.0
    %692 = vmatpush2.msra.mxu0 0.0
    %693 = vmatprep.subr.mxu0 0.0
    %694 = vmatpush2.msra.mxu0 0.0
    %695 = vmatprep.subr.mxu0 0.0
    %696 = vmatpush2.msra.mxu0 0.0
    %697 = vmatprep.subr.mxu0 0.0
    %698 = vmatpush2.msra.mxu0 0.0
    %699 = vmatprep.mubr.f32.mxu0 0.0
    %700 = vmatmul.mubr.f32.gmra.mxu0 %v440
    %v701 = vpop.f32.mrf.mxu0
    %v702 = vadd.f32 0.0, %v701
    %v703 = vpop.f32.mrf.mxu0
    %704 = vdwg.mxu0
    %v706 = vsel %vm167, %v632, 0
    %708 = vmatprep.subr.mxu0 0.0
    %709 = vmatpush1.msra.mxu0 0.0
    %710 = vmatprep.subr.mxu0 0.0
    %711 = vmatpush1.msra.mxu0 0.0
    %712 = vmatprep.subr.mxu0 0.0
    %713 = vmatpush1.msra.mxu0 0.0
    %714 = vmatprep.subr.mxu0 0.0
    %715 = vmatpush1.msra.mxu0 0.0
    %716 = vmatprep.subr.mxu0 0.0
    %717 = vmatpush1.msra.mxu0 0.0
    %718 = vmatprep.subr.mxu0 0.0
    %719 = vmatpush1.msra.mxu0 0.0
    %720 = vmatprep.subr.mxu0 0.0
    %721 = vmatpush1.msra.mxu0 0.0
    %722 = vmatprep.subr.mxu0 0.0
    %723 = vmatpush1.msra.mxu0 0.0
    %724 = vmatprep.subr.mxu0 0.0
    %725 = vmatpush1.msra.mxu0 0.0
    %726 = vmatprep.subr.mxu0 0.0
    %727 = vmatpush1.msra.mxu0 0.0
    %728 = vmatprep.subr.mxu0 0.0
    %729 = vmatpush1.msra.mxu0 0.0
    %730 = vmatprep.subr.mxu0 0.0
    %731 = vmatpush1.msra.mxu0 0.0
    %732 = vmatprep.subr.mxu0 0.0
    %733 = vmatpush1.msra.mxu0 %v162
    %734 = vmatprep.subr.mxu0 0.0
    %735 = vmatpush1.msra.mxu0 %v161
    %736 = vmatprep.subr.mxu0 0.0
    %737 = vmatpush1.msra.mxu0 %v160
    %738 = vmatprep.subr.mxu0 0.0
    %739 = vmatpush1.msra.mxu0 %v159
    %740 = vmatprep.subr.mxu0 0.0
    %741 = vmatpush2.msra.mxu0 0.0
    %742 = vmatprep.subr.mxu0 0.0
    %743 = vmatpush2.msra.mxu0 0.0
    %744 = vmatprep.subr.mxu0 0.0
    %745 = vmatpush2.msra.mxu0 0.0
    %746 = vmatprep.subr.mxu0 0.0
    %747 = vmatpush2.msra.mxu0 0.0
    %748 = vmatprep.subr.mxu0 0.0
    %749 = vmatpush2.msra.mxu0 0.0
    %750 = vmatprep.subr.mxu0 0.0
    %751 = vmatpush2.msra.mxu0 0.0
    %752 = vmatprep.subr.mxu0 0.0
    %753 = vmatpush2.msra.mxu0 0.0
    %754 = vmatprep.subr.mxu0 0.0
    %755 = vmatpush2.msra.mxu0 0.0
    %756 = vmatprep.subr.mxu0 0.0
    %757 = vmatpush2.msra.mxu0 0.0
    %758 = vmatprep.subr.mxu0 0.0
    %759 = vmatpush2.msra.mxu0 0.0
    %760 = vmatprep.subr.mxu0 0.0
    %761 = vmatpush2.msra.mxu0 0.0
    %762 = vmatprep.subr.mxu0 0.0
    %763 = vmatpush2.msra.mxu0 0.0
    %764 = vmatprep.subr.mxu0 0.0
    %765 = vmatpush2.msra.mxu0 0.0
    %766 = vmatprep.subr.mxu0 0.0
    %767 = vmatpush2.msra.mxu0 0.0
    %768 = vmatprep.subr.mxu0 0.0
    %769 = vmatpush2.msra.mxu0 0.0
    %770 = vmatprep.subr.mxu0 0.0
    %771 = vmatpush2.msra.mxu0 0.0
    %772 = vmatprep.mubr.f32.mxu0 0.0
    %773 = vmatmul.mubr.f32.gmra.mxu0 %v706
    %v774 = vpop.f32.mrf.mxu0
    %v775 = vadd.f32 %v702, %v774
    %v776 = vpop.f32.mrf.mxu0
    %777 = vdwg.mxu0
    %v778 = vadd.f32 %v775, %v319
    %v779 = vxor.u32 %v778, 2147483648
    %v780 = vmul.f32 %v779, 1.442695
    %v781 = vpow.pop %v780
    %v782 = vadd.f32 %v781, 1.0
    %v783 = vrcp.pop %v782
    %v784 = vmul.f32 1.0, %v783
    %v785 = vadd.f32 %v778, %v335
    %787 = vrot.lane.b32.xlu0 %v785, 32
    %v788 = vpop.permute.xlu0 %787
    %v790 = vmul.f32 %v784, %v788
    %792 = vrot.lane.b32.xlu0 %v790, 64
    %v793 = vpop.permute.xlu0 %792
    %v795 = vadd.f32 %v778, %v793
    %v796 = vtanh.pop %v795
    %v797 = vsub.f32 1.0, %v784
    %799 = vrot.lane.b32.xlu0 %v796, 96
    %v800 = vpop.permute.xlu0 %799
    %v802 = vmul.f32 %v797, %v800
    %v803 = vmul.f32 %v784, %v356
    %v804 = vadd.f32 %v802, %v803
    %806 = vrot.lane.b32.xlu0 %v556, 96
    %v807 = vpop.permute.xlu0 %806
    %v808 = vsel %vm167, %v807, 0
    %810 = vmatprep.subr.mxu0 0.0
    %811 = vmatpush1.msra.mxu0 0.0
    %812 = vmatprep.subr.mxu0 0.0
    %813 = vmatpush1.msra.mxu0 0.0
    %814 = vmatprep.subr.mxu0 0.0
    %815 = vmatpush1.msra.mxu0 0.0
    %816 = vmatprep.subr.mxu0 0.0
    %817 = vmatpush1.msra.mxu0 0.0
    %818 = vmatprep.subr.mxu0 0.0
    %819 = vmatpush1.msra.mxu0 0.0
    %820 = vmatprep.subr.mxu0 0.0
    %821 = vmatpush1.msra.mxu0 0.0
    %822 = vmatprep.subr.mxu0 0.0
    %823 = vmatpush1.msra.mxu0 0.0
    %824 = vmatprep.subr.mxu0 0.0
    %825 = vmatpush1.msra.mxu0 0.0
    %826 = vmatprep.subr.mxu0 0.0
    %827 = vmatpush1.msra.mxu0 0.0
    %828 = vmatprep.subr.mxu0 0.0
    %829 = vmatpush1.msra.mxu0 0.0
    %830 = vmatprep.subr.mxu0 0.0
    %831 = vmatpush1.msra.mxu0 0.0
    %832 = vmatprep.subr.mxu0 0.0
    %833 = vmatpush1.msra.mxu0 0.0
    %834 = vmatprep.subr.mxu0 0.0
    %835 = vmatpush1.msra.mxu0 %v366
    %836 = vmatprep.subr.mxu0 0.0
    %837 = vmatpush1.msra.mxu0 %v365
    %838 = vmatprep.subr.mxu0 0.0
    %839 = vmatpush1.msra.mxu0 %v364
    %840 = vmatprep.subr.mxu0 0.0
    %841 = vmatpush1.msra.mxu0 %v363
    %842 = vmatprep.subr.mxu0 0.0
    %843 = vmatpush2.msra.mxu0 0.0
    %844 = vmatprep.subr.mxu0 0.0
    %845 = vmatpush2.msra.mxu0 0.0
    %846 = vmatprep.subr.mxu0 0.0
    %847 = vmatpush2.msra.mxu0 0.0
    %848 = vmatprep.subr.mxu0 0.0
    %849 = vmatpush2.msra.mxu0 0.0
    %850 = vmatprep.subr.mxu0 0.0
    %851 = vmatpush2.msra.mxu0 0.0
    %852 = vmatprep.subr.mxu0 0.0
    %853 = vmatpush2.msra.mxu0 0.0
    %854 = vmatprep.subr.mxu0 0.0
    %855 = vmatpush2.msra.mxu0 0.0
    %856 = vmatprep.subr.mxu0 0.0
    %857 = vmatpush2.msra.mxu0 0.0
    %858 = vmatprep.subr.mxu0 0.0
    %859 = vmatpush2.msra.mxu0 0.0
    %860 = vmatprep.subr.mxu0 0.0
    %861 = vmatpush2.msra.mxu0 0.0
    %862 = vmatprep.subr.mxu0 0.0
    %863 = vmatpush2.msra.mxu0 0.0
    %864 = vmatprep.subr.mxu0 0.0
    %865 = vmatpush2.msra.mxu0 0.0
    %866 = vmatprep.subr.mxu0 0.0
    %867 = vmatpush2.msra.mxu0 0.0
    %868 = vmatprep.subr.mxu0 0.0
    %869 = vmatpush2.msra.mxu0 0.0
    %870 = vmatprep.subr.mxu0 0.0
    %871 = vmatpush2.msra.mxu0 0.0
    %872 = vmatprep.subr.mxu0 0.0
    %873 = vmatpush2.msra.mxu0 0.0
    %874 = vmatprep.mubr.f32.mxu0 0.0
    %875 = vmatmul.mubr.f32.gmra.mxu0 %v808
    %v876 = vpop.f32.mrf.mxu0
    %v877 = vadd.f32 0.0, %v876
    %v878 = vpop.f32.mrf.mxu0
    %879 = vdwg.mxu0
    %881 = vrot.lane.b32.xlu0 %v804, 96
    %v882 = vpop.permute.xlu0 %881
    %v883 = vsel %vm167, %v882, 0
    %885 = vmatprep.subr.mxu0 0.0
    %886 = vmatpush1.msra.mxu0 0.0
    %887 = vmatprep.subr.mxu0 0.0
    %888 = vmatpush1.msra.mxu0 0.0
    %889 = vmatprep.subr.mxu0 0.0
    %890 = vmatpush1.msra.mxu0 0.0
    %891 = vmatprep.subr.mxu0 0.0
    %892 = vmatpush1.msra.mxu0 0.0
    %893 = vmatprep.subr.mxu0 0.0
    %894 = vmatpush1.msra.mxu0 0.0
    %895 = vmatprep.subr.mxu0 0.0
    %896 = vmatpush1.msra.mxu0 0.0
    %897 = vmatprep.subr.mxu0 0.0
    %898 = vmatpush1.msra.mxu0 0.0
    %899 = vmatprep.subr.mxu0 0.0
    %900 = vmatpush1.msra.mxu0 0.0
    %901 = vmatprep.subr.mxu0 0.0
    %902 = vmatpush1.msra.mxu0 0.0
    %903 = vmatprep.subr.mxu0 0.0
    %904 = vmatpush1.msra.mxu0 0.0
    %905 = vmatprep.subr.mxu0 0.0
    %906 = vmatpush1.msra.mxu0 0.0
    %907 = vmatprep.subr.mxu0 0.0
    %908 = vmatpush1.msra.mxu0 0.0
    %909 = vmatprep.subr.mxu0 0.0
    %910 = vmatpush1.msra.mxu0 %v361
    %911 = vmatprep.subr.mxu0 0.0
    %912 = vmatpush1.msra.mxu0 %v360
    %913 = vmatprep.subr.mxu0 0.0
    %914 = vmatpush1.msra.mxu0 %v359
    %915 = vmatprep.subr.mxu0 0.0
    %916 = vmatpush1.msra.mxu0 %v358
    %917 = vmatprep.subr.mxu0 0.0
    %918 = vmatpush2.msra.mxu0 0.0
    %919 = vmatprep.subr.mxu0 0.0
    %920 = vmatpush2.msra.mxu0 0.0
    %921 = vmatprep.subr.mxu0 0.0
    %922 = vmatpush2.msra.mxu0 0.0
    %923 = vmatprep.subr.mxu0 0.0
    %924 = vmatpush2.msra.mxu0 0.0
    %925 = vmatprep.subr.mxu0 0.0
    %926 = vmatpush2.msra.mxu0 0.0
    %927 = vmatprep.subr.mxu0 0.0
    %928 = vmatpush2.msra.mxu0 0.0
    %929 = vmatprep.subr.mxu0 0.0
    %930 = vmatpush2.msra.mxu0 0.0
    %931 = vmatprep.subr.mxu0 0.0
    %932 = vmatpush2.msra.mxu0 0.0
    %933 = vmatprep.subr.mxu0 0.0
    %934 = vmatpush2.msra.mxu0 0.0
    %935 = vmatprep.subr.mxu0 0.0
    %936 = vmatpush2.msra.mxu0 0.0
    %937 = vmatprep.subr.mxu0 0.0
    %938 = vmatpush2.msra.mxu0 0.0
    %939 = vmatprep.subr.mxu0 0.0
    %940 = vmatpush2.msra.mxu0 0.0
    %941 = vmatprep.subr.mxu0 0.0
    %942 = vmatpush2.msra.mxu0 0.0
    %943 = vmatprep.subr.mxu0 0.0
    %944 = vmatpush2.msra.mxu0 0.0
    %945 = vmatprep.subr.mxu0 0.0
    %946 = vmatpush2.msra.mxu0 0.0
    %947 = vmatprep.subr.mxu0 0.0
    %948 = vmatpush2.msra.mxu0 0.0
    %949 = vmatprep.mubr.f32.mxu0 0.0
    %950 = vmatmul.mubr.f32.gmra.mxu0 %v883
    %v951 = vpop.f32.mrf.mxu0
    %v952 = vadd.f32 %v877, %v951
    %v953 = vpop.f32.mrf.mxu0
    %954 = vdwg.mxu0
    %v955 = vadd.f32 %v952, %v518
    %v956 = vxor.u32 %v955, 2147483648
    %v957 = vmul.f32 %v956, 1.442695
    %v958 = vpow.pop %v957
    %v959 = vadd.f32 %v958, 1.0
    %v960 = vrcp.pop %v959
    %v961 = vmul.f32 1.0, %v960
    %v962 = vadd.f32 %v955, %v535
    %964 = vrot.lane.b32.xlu0 %v962, 32
    %v965 = vpop.permute.xlu0 %964
    %v967 = vmul.f32 %v961, %v965
    %969 = vrot.lane.b32.xlu0 %v967, 64
    %v970 = vpop.permute.xlu0 %969
    %v972 = vadd.f32 %v955, %v970
    %v973 = vtanh.pop %v972
    %v974 = vsub.f32 1.0, %v961
    %976 = vrot.lane.b32.xlu0 %v973, 96
    %v977 = vpop.permute.xlu0 %976
    %v979 = vmul.f32 %v974, %v977
    %v980 = vmul.f32 %v961, %v556
    %v981 = vadd.f32 %v979, %v980
    %s982 = scalar_lea.vmem %s0, 16
    %v983 = vld [vmem:[%s982] sm:$0xff]
    %984 = vset.pattern.permute.xlu0 0
    %985 = vperm.xlu0 %984, %v983
    %v986 = vpop.permute.xlu0 %985
    %vm987 = vcmp.eq.s32.totalorder %v986, %v65
    %v988 = vsel %vm987, 1, 0
    %v989 = vcvt.s32.f32 %v988
    %990 = vmatprep.subr.mxu0 0.0
    %991 = vmatpush1.msra.mxu0 %v88
    %992 = vmatprep.subr.mxu0 0.0
    %993 = vmatpush1.msra.mxu0 %v87
    %994 = vmatprep.subr.mxu0 0.0
    %995 = vmatpush1.msra.mxu0 %v86
    %996 = vmatprep.subr.mxu0 0.0
    %997 = vmatpush1.msra.mxu0 %v85
    %998 = vmatprep.subr.mxu0 0.0
    %999 = vmatpush1.msra.mxu0 %v84
    %1000 = vmatprep.subr.mxu0 0.0
    %1001 = vmatpush1.msra.mxu0 %v83
    %1002 = vmatprep.subr.mxu0 0.0
    %1003 = vmatpush1.msra.mxu0 %v82
    %1004 = vmatprep.subr.mxu0 0.0
    %1005 = vmatpush1.msra.mxu0 %v81
    %1006 = vmatprep.subr.mxu0 0.0
    %1007 = vmatpush1.msra.mxu0 %v80
    %1008 = vmatprep.subr.mxu0 0.0
    %1009 = vmatpush1.msra.mxu0 %v79
    %1010 = vmatprep.subr.mxu0 0.0
    %1011 = vmatpush1.msra.mxu0 %v78
    %1012 = vmatprep.subr.mxu0 0.0
    %1013 = vmatpush1.msra.mxu0 %v77
    %1014 = vmatprep.subr.mxu0 0.0
    %1015 = vmatpush1.msra.mxu0 %v76
    %1016 = vmatprep.subr.mxu0 0.0
    %1017 = vmatpush1.msra.mxu0 %v75
    %1018 = vmatprep.subr.mxu0 0.0
    %1019 = vmatpush1.msra.mxu0 %v74
    %1020 = vmatprep.subr.mxu0 0.0
    %1021 = vmatpush1.msra.mxu0 %v73
    %1022 = vmatprep.subr.mxu0 0.0
    %1023 = vmatpush2.msra.mxu0 0.0
    %1024 = vmatprep.subr.mxu0 0.0
    %1025 = vmatpush2.msra.mxu0 0.0
    %1026 = vmatprep.subr.mxu0 0.0
    %1027 = vmatpush2.msra.mxu0 0.0
    %1028 = vmatprep.subr.mxu0 0.0
    %1029 = vmatpush2.msra.mxu0 0.0
    %1030 = vmatprep.subr.mxu0 0.0
    %1031 = vmatpush2.msra.mxu0 0.0
    %1032 = vmatprep.subr.mxu0 0.0
    %1033 = vmatpush2.msra.mxu0 0.0
    %1034 = vmatprep.subr.mxu0 0.0
    %1035 = vmatpush2.msra.mxu0 0.0
    %1036 = vmatprep.subr.mxu0 0.0
    %1037 = vmatpush2.msra.mxu0 0.0
    %1038 = vmatprep.subr.mxu0 0.0
    %1039 = vmatpush2.msra.mxu0 0.0
    %1040 = vmatprep.subr.mxu0 0.0
    %1041 = vmatpush2.msra.mxu0 0.0
    %1042 = vmatprep.subr.mxu0 0.0
    %1043 = vmatpush2.msra.mxu0 0.0
    %1044 = vmatprep.subr.mxu0 0.0
    %1045 = vmatpush2.msra.mxu0 0.0
    %1046 = vmatprep.subr.mxu0 0.0
    %1047 = vmatpush2.msra.mxu0 0.0
    %1048 = vmatprep.subr.mxu0 0.0
    %1049 = vmatpush2.msra.mxu0 0.0
    %1050 = vmatprep.subr.mxu0 0.0
    %1051 = vmatpush2.msra.mxu0 0.0
    %1052 = vmatprep.subr.mxu0 0.0
    %1053 = vmatpush2.msra.mxu0 0.0
    %1054 = vmatprep.mubr.f32.mxu0 0.0
    %1055 = vmatmul.mubr.f32.gmra.mxu0 %v989
    %v1056 = vpop.f32.mrf.mxu0
    %v1057 = vadd.f32 0.0, %v1056
    %v1058 = vpop.f32.mrf.mxu0
    %1059 = vdwg.mxu0
    %1060 = vmatprep.subr.mxu0 0.0
    %1061 = vmatpush1.msra.mxu0 0.0
    %1062 = vmatprep.subr.mxu0 0.0
    %1063 = vmatpush1.msra.mxu0 0.0
    %1064 = vmatprep.subr.mxu0 0.0
    %1065 = vmatpush1.msra.mxu0 0.0
    %1066 = vmatprep.subr.mxu0 0.0
    %1067 = vmatpush1.msra.mxu0 0.0
    %1068 = vmatprep.subr.mxu0 0.0
    %1069 = vmatpush1.msra.mxu0 0.0
    %1070 = vmatprep.subr.mxu0 0.0
    %1071 = vmatpush1.msra.mxu0 0.0
    %1072 = vmatprep.subr.mxu0 0.0
    %1073 = vmatpush1.msra.mxu0 0.0
    %1074 = vmatprep.subr.mxu0 0.0
    %1075 = vmatpush1.msra.mxu0 0.0
    %1076 = vmatprep.subr.mxu0 0.0
    %1077 = vmatpush1.msra.mxu0 0.0
    %1078 = vmatprep.subr.mxu0 0.0
    %1079 = vmatpush1.msra.mxu0 0.0
    %1080 = vmatprep.subr.mxu0 0.0
    %1081 = vmatpush1.msra.mxu0 0.0
    %1082 = vmatprep.subr.mxu0 0.0
    %1083 = vmatpush1.msra.mxu0 0.0
    %1084 = vmatprep.subr.mxu0 0.0
    %1085 = vmatpush1.msra.mxu0 %v166
    %1086 = vmatprep.subr.mxu0 0.0
    %1087 = vmatpush1.msra.mxu0 %v165
    %1088 = vmatprep.subr.mxu0 0.0
    %1089 = vmatpush1.msra.mxu0 %v164
    %1090 = vmatprep.subr.mxu0 0.0
    %1091 = vmatpush1.msra.mxu0 %v163
    %1092 = vmatprep.subr.mxu0 0.0
    %1093 = vmatpush2.msra.mxu0 0.0
    %1094 = vmatprep.subr.mxu0 0.0
    %1095 = vmatpush2.msra.mxu0 0.0
    %1096 = vmatprep.subr.mxu0 0.0
    %1097 = vmatpush2.msra.mxu0 0.0
    %1098 = vmatprep.subr.mxu0 0.0
    %1099 = vmatpush2.msra.mxu0 0.0
    %1100 = vmatprep.subr.mxu0 0.0
    %1101 = vmatpush2.msra.mxu0 0.0
    %1102 = vmatprep.subr.mxu0 0.0
    %1103 = vmatpush2.msra.mxu0 0.0
    %1104 = vmatprep.subr.mxu0 0.0
    %1105 = vmatpush2.msra.mxu0 0.0
    %1106 = vmatprep.subr.mxu0 0.0
    %1107 = vmatpush2.msra.mxu0 0.0
    %1108 = vmatprep.subr.mxu0 0.0
    %1109 = vmatpush2.msra.mxu0 0.0
    %1110 = vmatprep.subr.mxu0 0.0
    %1111 = vmatpush2.msra.mxu0 0.0
    %1112 = vmatprep.subr.mxu0 0.0
    %1113 = vmatpush2.msra.mxu0 0.0
    %1114 = vmatprep.subr.mxu0 0.0
    %1115 = vmatpush2.msra.mxu0 0.0
    %1116 = vmatprep.subr.mxu0 0.0
    %1117 = vmatpush2.msra.mxu0 0.0
    %1118 = vmatprep.subr.mxu0 0.0
    %1119 = vmatpush2.msra.mxu0 0.0
    %1120 = vmatprep.subr.mxu0 0.0
    %1121 = vmatpush2.msra.mxu0 0.0
    %1122 = vmatprep.subr.mxu0 0.0
    %1123 = vmatpush2.msra.mxu0 0.0
    %1124 = vmatprep.mubr.f32.mxu0 0.0
    %1125 = vmatmul.mubr.f32.gmra.mxu0 %v883
    %v1126 = vpop.f32.mrf.mxu0
    %v1127 = vadd.f32 0.0, %v1126
    %v1128 = vpop.f32.mrf.mxu0
    %1129 = vdwg.mxu0
    %v1131 = vsel %vm167, %v1057, 0
    %1133 = vmatprep.subr.mxu0 0.0
    %1134 = vmatpush1.msra.mxu0 0.0
    %1135 = vmatprep.subr.mxu0 0.0
    %1136 = vmatpush1.msra.mxu0 0.0
    %1137 = vmatprep.subr.mxu0 0.0
    %1138 = vmatpush1.msra.mxu0 0.0
    %1139 = vmatprep.subr.mxu0 0.0
    %1140 = vmatpush1.msra.mxu0 0.0
    %1141 = vmatprep.subr.mxu0 0.0
    %1142 = vmatpush1.msra.mxu0 0.0
    %1143 = vmatprep.subr.mxu0 0.0
    %1144 = vmatpush1.msra.mxu0 0.0
    %1145 = vmatprep.subr.mxu0 0.0
    %1146 = vmatpush1.msra.mxu0 0.0
    %1147 = vmatprep.subr.mxu0 0.0
    %1148 = vmatpush1.msra.mxu0 0.0
    %1149 = vmatprep.subr.mxu0 0.0
    %1150 = vmatpush1.msra.mxu0 0.0
    %1151 = vmatprep.subr.mxu0 0.0
    %1152 = vmatpush1.msra.mxu0 0.0
    %1153 = vmatprep.subr.mxu0 0.0
    %1154 = vmatpush1.msra.mxu0 0.0
    %1155 = vmatprep.subr.mxu0 0.0
    %1156 = vmatpush1.msra.mxu0 0.0
    %1157 = vmatprep.subr.mxu0 0.0
    %1158 = vmatpush1.msra.mxu0 %v162
    %1159 = vmatprep.subr.mxu0 0.0
    %1160 = vmatpush1.msra.mxu0 %v161
    %1161 = vmatprep.subr.mxu0 0.0
    %1162 = vmatpush1.msra.mxu0 %v160
    %1163 = vmatprep.subr.mxu0 0.0
    %1164 = vmatpush1.msra.mxu0 %v159
    %1165 = vmatprep.subr.mxu0 0.0
    %1166 = vmatpush2.msra.mxu0 0.0
    %1167 = vmatprep.subr.mxu0 0.0
    %1168 = vmatpush2.msra.mxu0 0.0
    %1169 = vmatprep.subr.mxu0 0.0
    %1170 = vmatpush2.msra.mxu0 0.0
    %1171 = vmatprep.subr.mxu0 0.0
    %1172 = vmatpush2.msra.mxu0 0.0
    %1173 = vmatprep.subr.mxu0 0.0
    %1174 = vmatpush2.msra.mxu0 0.0
    %1175 = vmatprep.subr.mxu0 0.0
    %1176 = vmatpush2.msra.mxu0 0.0
    %1177 = vmatprep.subr.mxu0 0.0
    %1178 = vmatpush2.msra.mxu0 0.0
    %1179 = vmatprep.subr.mxu0 0.0
    %1180 = vmatpush2.msra.mxu0 0.0
    %1181 = vmatprep.subr.mxu0 0.0
    %1182 = vmatpush2.msra.mxu0 0.0
    %1183 = vmatprep.subr.mxu0 0.0
    %1184 = vmatpush2.msra.mxu0 0.0
    %1185 = vmatprep.subr.mxu0 0.0
    %1186 = vmatpush2.msra.mxu0 0.0
    %1187 = vmatprep.subr.mxu0 0.0
    %1188 = vmatpush2.msra.mxu0 0.0
    %1189 = vmatprep.subr.mxu0 0.0
    %1190 = vmatpush2.msra.mxu0 0.0
    %1191 = vmatprep.subr.mxu0 0.0
    %1192 = vmatpush2.msra.mxu0 0.0
    %1193 = vmatprep.subr.mxu0 0.0
    %1194 = vmatpush2.msra.mxu0 0.0
    %1195 = vmatprep.subr.mxu0 0.0
    %1196 = vmatpush2.msra.mxu0 0.0
    %1197 = vmatprep.mubr.f32.mxu0 0.0
    %1198 = vmatmul.mubr.f32.gmra.mxu0 %v1131
    %v1199 = vpop.f32.mrf.mxu0
    %v1200 = vadd.f32 %v1127, %v1199
    %v1201 = vpop.f32.mrf.mxu0
    %1202 = vdwg.mxu0
    %v1203 = vadd.f32 %v1200, %v319
    %v1204 = vxor.u32 %v1203, 2147483648
    %v1205 = vmul.f32 %v1204, 1.442695
    %v1206 = vpow.pop %v1205
    %v1207 = vadd.f32 %v1206, 1.0
    %v1208 = vrcp.pop %v1207
    %v1209 = vmul.f32 1.0, %v1208
    %v1210 = vadd.f32 %v1203, %v335
    %1212 = vrot.lane.b32.xlu0 %v1210, 32
    %v1213 = vpop.permute.xlu0 %1212
    %v1215 = vmul.f32 %v1209, %v1213
    %1217 = vrot.lane.b32.xlu0 %v1215, 64
    %v1218 = vpop.permute.xlu0 %1217
    %v1220 = vadd.f32 %v1203, %v1218
    %v1221 = vtanh.pop %v1220
    %v1222 = vsub.f32 1.0, %v1209
    %1224 = vrot.lane.b32.xlu0 %v1221, 96
    %v1225 = vpop.permute.xlu0 %1224
    %v1227 = vmul.f32 %v1222, %v1225
    %v1228 = vmul.f32 %v1209, %v804
    %v1229 = vadd.f32 %v1227, %v1228
    %1231 = vrot.lane.b32.xlu0 %v981, 96
    %v1232 = vpop.permute.xlu0 %1231
    %v1233 = vsel %vm167, %v1232, 0
    %1235 = vmatprep.subr.mxu0 0.0
    %1236 = vmatpush1.msra.mxu0 0.0
    %1237 = vmatprep.subr.mxu0 0.0
    %1238 = vmatpush1.msra.mxu0 0.0
    %1239 = vmatprep.subr.mxu0 0.0
    %1240 = vmatpush1.msra.mxu0 0.0
    %1241 = vmatprep.subr.mxu0 0.0
    %1242 = vmatpush1.msra.mxu0 0.0
    %1243 = vmatprep.subr.mxu0 0.0
    %1244 = vmatpush1.msra.mxu0 0.0
    %1245 = vmatprep.subr.mxu0 0.0
    %1246 = vmatpush1.msra.mxu0 0.0
    %1247 = vmatprep.subr.mxu0 0.0
    %1248 = vmatpush1.msra.mxu0 0.0
    %1249 = vmatprep.subr.mxu0 0.0
    %1250 = vmatpush1.msra.mxu0 0.0
    %1251 = vmatprep.subr.mxu0 0.0
    %1252 = vmatpush1.msra.mxu0 0.0
    %1253 = vmatprep.subr.mxu0 0.0
    %1254 = vmatpush1.msra.mxu0 0.0
    %1255 = vmatprep.subr.mxu0 0.0
    %1256 = vmatpush1.msra.mxu0 0.0
    %1257 = vmatprep.subr.mxu0 0.0
    %1258 = vmatpush1.msra.mxu0 0.0
    %1259 = vmatprep.subr.mxu0 0.0
    %1260 = vmatpush1.msra.mxu0 %v366
    %1261 = vmatprep.subr.mxu0 0.0
    %1262 = vmatpush1.msra.mxu0 %v365
    %1263 = vmatprep.subr.mxu0 0.0
    %1264 = vmatpush1.msra.mxu0 %v364
    %1265 = vmatprep.subr.mxu0 0.0
    %1266 = vmatpush1.msra.mxu0 %v363
    %1267 = vmatprep.subr.mxu0 0.0
    %1268 = vmatpush2.msra.mxu0 0.0
    %1269 = vmatprep.subr.mxu0 0.0
    %1270 = vmatpush2.msra.mxu0 0.0
    %1271 = vmatprep.subr.mxu0 0.0
    %1272 = vmatpush2.msra.mxu0 0.0
    %1273 = vmatprep.subr.mxu0 0.0
    %1274 = vmatpush2.msra.mxu0 0.0
    %1275 = vmatprep.subr.mxu0 0.0
    %1276 = vmatpush2.msra.mxu0 0.0
    %1277 = vmatprep.subr.mxu0 0.0
    %1278 = vmatpush2.msra.mxu0 0.0
    %1279 = vmatprep.subr.mxu0 0.0
    %1280 = vmatpush2.msra.mxu0 0.0
    %1281 = vmatprep.subr.mxu0 0.0
    %1282 = vmatpush2.msra.mxu0 0.0
    %1283 = vmatprep.subr.mxu0 0.0
    %1284 = vmatpush2.msra.mxu0 0.0
    %1285 = vmatprep.subr.mxu0 0.0
    %1286 = vmatpush2.msra.mxu0 0.0
    %1287 = vmatprep.subr.mxu0 0.0
    %1288 = vmatpush2.msra.mxu0 0.0
    %1289 = vmatprep.subr.mxu0 0.0
    %1290 = vmatpush2.msra.mxu0 0.0
    %1291 = vmatprep.subr.mxu0 0.0
    %1292 = vmatpush2.msra.mxu0 0.0
    %1293 = vmatprep.subr.mxu0 0.0
    %1294 = vmatpush2.msra.mxu0 0.0
    %1295 = vmatprep.subr.mxu0 0.0
    %1296 = vmatpush2.msra.mxu0 0.0
    %1297 = vmatprep.subr.mxu0 0.0
    %1298 = vmatpush2.msra.mxu0 0.0
    %1299 = vmatprep.mubr.f32.mxu0 0.0
    %1300 = vmatmul.mubr.f32.gmra.mxu0 %v1233
    %v1301 = vpop.f32.mrf.mxu0
    %v1302 = vadd.f32 0.0, %v1301
    %v1303 = vpop.f32.mrf.mxu0
    %1304 = vdwg.mxu0
    %1306 = vrot.lane.b32.xlu0 %v1229, 96
    %v1307 = vpop.permute.xlu0 %1306
    %v1308 = vsel %vm167, %v1307, 0
    %1310 = vmatprep.subr.mxu0 0.0
    %1311 = vmatpush1.msra.mxu0 0.0
    %1312 = vmatprep.subr.mxu0 0.0
    %1313 = vmatpush1.msra.mxu0 0.0
    %1314 = vmatprep.subr.mxu0 0.0
    %1315 = vmatpush1.msra.mxu0 0.0
    %1316 = vmatprep.subr.mxu0 0.0
    %1317 = vmatpush1.msra.mxu0 0.0
    %1318 = vmatprep.subr.mxu0 0.0
    %1319 = vmatpush1.msra.mxu0 0.0
    %1320 = vmatprep.subr.mxu0 0.0
    %1321 = vmatpush1.msra.mxu0 0.0
    %1322 = vmatprep.subr.mxu0 0.0
    %1323 = vmatpush1.msra.mxu0 0.0
    %1324 = vmatprep.subr.mxu0 0.0
    %1325 = vmatpush1.msra.mxu0 0.0
    %1326 = vmatprep.subr.mxu0 0.0
    %1327 = vmatpush1.msra.mxu0 0.0
    %1328 = vmatprep.subr.mxu0 0.0
    %1329 = vmatpush1.msra.mxu0 0.0
    %1330 = vmatprep.subr.mxu0 0.0
    %1331 = vmatpush1.msra.mxu0 0.0
    %1332 = vmatprep.subr.mxu0 0.0
    %1333 = vmatpush1.msra.mxu0 0.0
    %1334 = vmatprep.subr.mxu0 0.0
    %1335 = vmatpush1.msra.mxu0 %v361
    %1336 = vmatprep.subr.mxu0 0.0
    %1337 = vmatpush1.msra.mxu0 %v360
    %1338 = vmatprep.subr.mxu0 0.0
    %1339 = vmatpush1.msra.mxu0 %v359
    %1340 = vmatprep.subr.mxu0 0.0
    %1341 = vmatpush1.msra.mxu0 %v358
    %1342 = vmatprep.subr.mxu0 0.0
    %1343 = vmatpush2.msra.mxu0 0.0
    %1344 = vmatprep.subr.mxu0 0.0
    %1345 = vmatpush2.msra.mxu0 0.0
    %1346 = vmatprep.subr.mxu0 0.0
    %1347 = vmatpush2.msra.mxu0 0.0
    %1348 = vmatprep.subr.mxu0 0.0
    %1349 = vmatpush2.msra.mxu0 0.0
    %1350 = vmatprep.subr.mxu0 0.0
    %1351 = vmatpush2.msra.mxu0 0.0
    %1352 = vmatprep.subr.mxu0 0.0
    %1353 = vmatpush2.msra.mxu0 0.0
    %1354 = vmatprep.subr.mxu0 0.0
    %1355 = vmatpush2.msra.mxu0 0.0
    %1356 = vmatprep.subr.mxu0 0.0
    %1357 = vmatpush2.msra.mxu0 0.0
    %1358 = vmatprep.subr.mxu0 0.0
    %1359 = vmatpush2.msra.mxu0 0.0
    %1360 = vmatprep.subr.mxu0 0.0
    %1361 = vmatpush2.msra.mxu0 0.0
    %1362 = vmatprep.subr.mxu0 0.0
    %1363 = vmatpush2.msra.mxu0 0.0
    %1364 = vmatprep.subr.mxu0 0.0
    %1365 = vmatpush2.msra.mxu0 0.0
    %1366 = vmatprep.subr.mxu0 0.0
    %1367 = vmatpush2.msra.mxu0 0.0
    %1368 = vmatprep.subr.mxu0 0.0
    %1369 = vmatpush2.msra.mxu0 0.0
    %1370 = vmatprep.subr.mxu0 0.0
    %1371 = vmatpush2.msra.mxu0 0.0
    %1372 = vmatprep.subr.mxu0 0.0
    %1373 = vmatpush2.msra.mxu0 0.0
    %1374 = vmatprep.mubr.f32.mxu0 0.0
    %1375 = vmatmul.mubr.f32.gmra.mxu0 %v1308
    %v1376 = vpop.f32.mrf.mxu0
    %v1377 = vadd.f32 %v1302, %v1376
    %v1378 = vpop.f32.mrf.mxu0
    %1379 = vdwg.mxu0
    %v1380 = vadd.f32 %v1377, %v518
    %v1381 = vxor.u32 %v1380, 2147483648
    %v1382 = vmul.f32 %v1381, 1.442695
    %v1383 = vpow.pop %v1382
    %v1384 = vadd.f32 %v1383, 1.0
    %v1385 = vrcp.pop %v1384
    %v1386 = vmul.f32 1.0, %v1385
    %v1387 = vadd.f32 %v1380, %v535
    %1389 = vrot.lane.b32.xlu0 %v1387, 32
    %v1390 = vpop.permute.xlu0 %1389
    %v1392 = vmul.f32 %v1386, %v1390
    %1394 = vrot.lane.b32.xlu0 %v1392, 64
    %v1395 = vpop.permute.xlu0 %1394
    %v1397 = vadd.f32 %v1380, %v1395
    %v1398 = vtanh.pop %v1397
    %v1399 = vsub.f32 1.0, %v1386
    %1401 = vrot.lane.b32.xlu0 %v1398, 96
    %v1402 = vpop.permute.xlu0 %1401
    %v1404 = vmul.f32 %v1399, %v1402
    %v1405 = vmul.f32 %v1386, %v981
    %v1406 = vadd.f32 %v1404, %v1405
    %s1407 = scalar_lea.vmem %s0, 24
    %v1408 = vld [vmem:[%s1407] sm:$0xff]
    %1409 = vset.pattern.permute.xlu0 0
    %1410 = vperm.xlu0 %1409, %v1408
    %v1411 = vpop.permute.xlu0 %1410
    %vm1412 = vcmp.eq.s32.totalorder %v1411, %v65
    %v1413 = vsel %vm1412, 1, 0
    %v1414 = vcvt.s32.f32 %v1413
    %1415 = vmatprep.subr.mxu0 0.0
    %1416 = vmatpush1.msra.mxu0 %v88
    %1417 = vmatprep.subr.mxu0 0.0
    %1418 = vmatpush1.msra.mxu0 %v87
    %1419 = vmatprep.subr.mxu0 0.0
    %1420 = vmatpush1.msra.mxu0 %v86
    %1421 = vmatprep.subr.mxu0 0.0
    %1422 = vmatpush1.msra.mxu0 %v85
    %1423 = vmatprep.subr.mxu0 0.0
    %1424 = vmatpush1.msra.mxu0 %v84
    %1425 = vmatprep.subr.mxu0 0.0
    %1426 = vmatpush1.msra.mxu0 %v83
    %1427 = vmatprep.subr.mxu0 0.0
    %1428 = vmatpush1.msra.mxu0 %v82
    %1429 = vmatprep.subr.mxu0 0.0
    %1430 = vmatpush1.msra.mxu0 %v81
    %1431 = vmatprep.subr.mxu0 0.0
    %1432 = vmatpush1.msra.mxu0 %v80
    %1433 = vmatprep.subr.mxu0 0.0
    %1434 = vmatpush1.msra.mxu0 %v79
    %1435 = vmatprep.subr.mxu0 0.0
    %1436 = vmatpush1.msra.mxu0 %v78
    %1437 = vmatprep.subr.mxu0 0.0
    %1438 = vmatpush1.msra.mxu0 %v77
    %1439 = vmatprep.subr.mxu0 0.0
    %1440 = vmatpush1.msra.mxu0 %v76
    %1441 = vmatprep.subr.mxu0 0.0
    %1442 = vmatpush1.msra.mxu0 %v75
    %1443 = vmatprep.subr.mxu0 0.0
    %1444 = vmatpush1.msra.mxu0 %v74
    %1445 = vmatprep.subr.mxu0 0.0
    %1446 = vmatpush1.msra.mxu0 %v73
    %1447 = vmatprep.subr.mxu0 0.0
    %1448 = vmatpush2.msra.mxu0 0.0
    %1449 = vmatprep.subr.mxu0 0.0
    %1450 = vmatpush2.msra.mxu0 0.0
    %1451 = vmatprep.subr.mxu0 0.0
    %1452 = vmatpush2.msra.mxu0 0.0
    %1453 = vmatprep.subr.mxu0 0.0
    %1454 = vmatpush2.msra.mxu0 0.0
    %1455 = vmatprep.subr.mxu0 0.0
    %1456 = vmatpush2.msra.mxu0 0.0
    %1457 = vmatprep.subr.mxu0 0.0
    %1458 = vmatpush2.msra.mxu0 0.0
    %1459 = vmatprep.subr.mxu0 0.0
    %1460 = vmatpush2.msra.mxu0 0.0
    %1461 = vmatprep.subr.mxu0 0.0
    %1462 = vmatpush2.msra.mxu0 0.0
    %1463 = vmatprep.subr.mxu0 0.0
    %1464 = vmatpush2.msra.mxu0 0.0
    %1465 = vmatprep.subr.mxu0 0.0
    %1466 = vmatpush2.msra.mxu0 0.0
    %1467 = vmatprep.subr.mxu0 0.0
    %1468 = vmatpush2.msra.mxu0 0.0
    %1469 = vmatprep.subr.mxu0 0.0
    %1470 = vmatpush2.msra.mxu0 0.0
    %1471 = vmatprep.subr.mxu0 0.0
    %1472 = vmatpush2.msra.mxu0 0.0
    %1473 = vmatprep.subr.mxu0 0.0
    %1474 = vmatpush2.msra.mxu0 0.0
    %1475 = vmatprep.subr.mxu0 0.0
    %1476 = vmatpush2.msra.mxu0 0.0
    %1477 = vmatprep.subr.mxu0 0.0
    %1478 = vmatpush2.msra.mxu0 0.0
    %1479 = vmatprep.mubr.f32.mxu0 0.0
    %1480 = vmatmul.mubr.f32.gmra.mxu0 %v1414
    %v1481 = vpop.f32.mrf.mxu0
    %v1482 = vadd.f32 0.0, %v1481
    %v1483 = vpop.f32.mrf.mxu0
    %1484 = vdwg.mxu0
    %1485 = vmatprep.subr.mxu0 0.0
    %1486 = vmatpush1.msra.mxu0 0.0
    %1487 = vmatprep.subr.mxu0 0.0
    %1488 = vmatpush1.msra.mxu0 0.0
    %1489 = vmatprep.subr.mxu0 0.0
    %1490 = vmatpush1.msra.mxu0 0.0
    %1491 = vmatprep.subr.mxu0 0.0
    %1492 = vmatpush1.msra.mxu0 0.0
    %1493 = vmatprep.subr.mxu0 0.0
    %1494 = vmatpush1.msra.mxu0 0.0
    %1495 = vmatprep.subr.mxu0 0.0
    %1496 = vmatpush1.msra.mxu0 0.0
    %1497 = vmatprep.subr.mxu0 0.0
    %1498 = vmatpush1.msra.mxu0 0.0
    %1499 = vmatprep.subr.mxu0 0.0
    %1500 = vmatpush1.msra.mxu0 0.0
    %1501 = vmatprep.subr.mxu0 0.0
    %1502 = vmatpush1.msra.mxu0 0.0
    %1503 = vmatprep.subr.mxu0 0.0
    %1504 = vmatpush1.msra.mxu0 0.0
    %1505 = vmatprep.subr.mxu0 0.0
    %1506 = vmatpush1.msra.mxu0 0.0
    %1507 = vmatprep.subr.mxu0 0.0
    %1508 = vmatpush1.msra.mxu0 0.0
    %1509 = vmatprep.subr.mxu0 0.0
    %1510 = vmatpush1.msra.mxu0 %v166
    %1511 = vmatprep.subr.mxu0 0.0
    %1512 = vmatpush1.msra.mxu0 %v165
    %1513 = vmatprep.subr.mxu0 0.0
    %1514 = vmatpush1.msra.mxu0 %v164
    %1515 = vmatprep.subr.mxu0 0.0
    %1516 = vmatpush1.msra.mxu0 %v163
    %1517 = vmatprep.subr.mxu0 0.0
    %1518 = vmatpush2.msra.mxu0 0.0
    %1519 = vmatprep.subr.mxu0 0.0
    %1520 = vmatpush2.msra.mxu0 0.0
    %1521 = vmatprep.subr.mxu0 0.0
    %1522 = vmatpush2.msra.mxu0 0.0
    %1523 = vmatprep.subr.mxu0 0.0
    %1524 = vmatpush2.msra.mxu0 0.0
    %1525 = vmatprep.subr.mxu0 0.0
    %1526 = vmatpush2.msra.mxu0 0.0
    %1527 = vmatprep.subr.mxu0 0.0
    %1528 = vmatpush2.msra.mxu0 0.0
    %1529 = vmatprep.subr.mxu0 0.0
    %1530 = vmatpush2.msra.mxu0 0.0
    %1531 = vmatprep.subr.mxu0 0.0
    %1532 = vmatpush2.msra.mxu0 0.0
    %1533 = vmatprep.subr.mxu0 0.0
    %1534 = vmatpush2.msra.mxu0 0.0
    %1535 = vmatprep.subr.mxu0 0.0
    %1536 = vmatpush2.msra.mxu0 0.0
    %1537 = vmatprep.subr.mxu0 0.0
    %1538 = vmatpush2.msra.mxu0 0.0
    %1539 = vmatprep.subr.mxu0 0.0
    %1540 = vmatpush2.msra.mxu0 0.0
    %1541 = vmatprep.subr.mxu0 0.0
    %1542 = vmatpush2.msra.mxu0 0.0
    %1543 = vmatprep.subr.mxu0 0.0
    %1544 = vmatpush2.msra.mxu0 0.0
    %1545 = vmatprep.subr.mxu0 0.0
    %1546 = vmatpush2.msra.mxu0 0.0
    %1547 = vmatprep.subr.mxu0 0.0
    %1548 = vmatpush2.msra.mxu0 0.0
    %1549 = vmatprep.mubr.f32.mxu0 0.0
    %1550 = vmatmul.mubr.f32.gmra.mxu0 %v1308
    %v1551 = vpop.f32.mrf.mxu0
    %v1552 = vadd.f32 0.0, %v1551
    %v1553 = vpop.f32.mrf.mxu0
    %1554 = vdwg.mxu0
    %v1556 = vsel %vm167, %v1482, 0
    %1558 = vmatprep.subr.mxu0 0.0
    %1559 = vmatpush1.msra.mxu0 0.0
    %1560 = vmatprep.subr.mxu0 0.0
    %1561 = vmatpush1.msra.mxu0 0.0
    %1562 = vmatprep.subr.mxu0 0.0
    %1563 = vmatpush1.msra.mxu0 0.0
    %1564 = vmatprep.subr.mxu0 0.0
    %1565 = vmatpush1.msra.mxu0 0.0
    %1566 = vmatprep.subr.mxu0 0.0
    %1567 = vmatpush1.msra.mxu0 0.0
    %1568 = vmatprep.subr.mxu0 0.0
    %1569 = vmatpush1.msra.mxu0 0.0
    %1570 = vmatprep.subr.mxu0 0.0
    %1571 = vmatpush1.msra.mxu0 0.0
    %1572 = vmatprep.subr.mxu0 0.0
    %1573 = vmatpush1.msra.mxu0 0.0
    %1574 = vmatprep.subr.mxu0 0.0
    %1575 = vmatpush1.msra.mxu0 0.0
    %1576 = vmatprep.subr.mxu0 0.0
    %1577 = vmatpush1.msra.mxu0 0.0
    %1578 = vmatprep.subr.mxu0 0.0
    %1579 = vmatpush1.msra.mxu0 0.0
    %1580 = vmatprep.subr.mxu0 0.0
    %1581 = vmatpush1.msra.mxu0 0.0
    %1582 = vmatprep.subr.mxu0 0.0
    %1583 = vmatpush1.msra.mxu0 %v162
    %1584 = vmatprep.subr.mxu0 0.0
    %1585 = vmatpush1.msra.mxu0 %v161
    %1586 = vmatprep.subr.mxu0 0.0
    %1587 = vmatpush1.msra.mxu0 %v160
    %1588 = vmatprep.subr.mxu0 0.0
    %1589 = vmatpush1.msra.mxu0 %v159
    %1590 = vmatprep.subr.mxu0 0.0
    %1591 = vmatpush2.msra.mxu0 0.0
    %1592 = vmatprep.subr.mxu0 0.0
    %1593 = vmatpush2.msra.mxu0 0.0
    %1594 = vmatprep.subr.mxu0 0.0
    %1595 = vmatpush2.msra.mxu0 0.0
    %1596 = vmatprep.subr.mxu0 0.0
    %1597 = vmatpush2.msra.mxu0 0.0
    %1598 = vmatprep.subr.mxu0 0.0
    %1599 = vmatpush2.msra.mxu0 0.0
    %1600 = vmatprep.subr.mxu0 0.0
    %1601 = vmatpush2.msra.mxu0 0.0
    %1602 = vmatprep.subr.mxu0 0.0
    %1603 = vmatpush2.msra.mxu0 0.0
    %1604 = vmatprep.subr.mxu0 0.0
    %1605 = vmatpush2.msra.mxu0 0.0
    %1606 = vmatprep.subr.mxu0 0.0
    %1607 = vmatpush2.msra.mxu0 0.0
    %1608 = vmatprep.subr.mxu0 0.0
    %1609 = vmatpush2.msra.mxu0 0.0
    %1610 = vmatprep.subr.mxu0 0.0
    %1611 = vmatpush2.msra.mxu0 0.0
    %1612 = vmatprep.subr.mxu0 0.0
    %1613 = vmatpush2.msra.mxu0 0.0
    %1614 = vmatprep.subr.mxu0 0.0
    %1615 = vmatpush2.msra.mxu0 0.0
    %1616 = vmatprep.subr.mxu0 0.0
    %1617 = vmatpush2.msra.mxu0 0.0
    %1618 = vmatprep.subr.mxu0 0.0
    %1619 = vmatpush2.msra.mxu0 0.0
    %1620 = vmatprep.subr.mxu0 0.0
    %1621 = vmatpush2.msra.mxu0 0.0
    %1622 = vmatprep.mubr.f32.mxu0 0.0
    %1623 = vmatmul.mubr.f32.gmra.mxu0 %v1556
    %v1624 = vpop.f32.mrf.mxu0
    %v1625 = vadd.f32 %v1552, %v1624
    %v1626 = vpop.f32.mrf.mxu0
    %1627 = vdwg.mxu0
    %v1628 = vadd.f32 %v1625, %v319
    %v1629 = vxor.u32 %v1628, 2147483648
    %v1630 = vmul.f32 %v1629, 1.442695
    %v1631 = vpow.pop %v1630
    %v1632 = vadd.f32 %v1631, 1.0
    %v1633 = vrcp.pop %v1632
    %v1634 = vmul.f32 1.0, %v1633
    %v1635 = vadd.f32 %v1628, %v335
    %1637 = vrot.lane.b32.xlu0 %v1635, 32
    %v1638 = vpop.permute.xlu0 %1637
    %v1640 = vmul.f32 %v1634, %v1638
    %1642 = vrot.lane.b32.xlu0 %v1640, 64
    %v1643 = vpop.permute.xlu0 %1642
    %v1645 = vadd.f32 %v1628, %v1643
    %v1646 = vtanh.pop %v1645
    %v1647 = vsub.f32 1.0, %v1634
    %1649 = vrot.lane.b32.xlu0 %v1646, 96
    %v1650 = vpop.permute.xlu0 %1649
    %v1652 = vmul.f32 %v1647, %v1650
    %v1653 = vmul.f32 %v1634, %v1229
    %v1654 = vadd.f32 %v1652, %v1653
    %1656 = vrot.lane.b32.xlu0 %v1406, 96
    %v1657 = vpop.permute.xlu0 %1656
    %v1658 = vsel %vm167, %v1657, 0
    %1660 = vmatprep.subr.mxu0 0.0
    %1661 = vmatpush1.msra.mxu0 0.0
    %1662 = vmatprep.subr.mxu0 0.0
    %1663 = vmatpush1.msra.mxu0 0.0
    %1664 = vmatprep.subr.mxu0 0.0
    %1665 = vmatpush1.msra.mxu0 0.0
    %1666 = vmatprep.subr.mxu0 0.0
    %1667 = vmatpush1.msra.mxu0 0.0
    %1668 = vmatprep.subr.mxu0 0.0
    %1669 = vmatpush1.msra.mxu0 0.0
    %1670 = vmatprep.subr.mxu0 0.0
    %1671 = vmatpush1.msra.mxu0 0.0
    %1672 = vmatprep.subr.mxu0 0.0
    %1673 = vmatpush1.msra.mxu0 0.0
    %1674 = vmatprep.subr.mxu0 0.0
    %1675 = vmatpush1.msra.mxu0 0.0
    %1676 = vmatprep.subr.mxu0 0.0
    %1677 = vmatpush1.msra.mxu0 0.0
    %1678 = vmatprep.subr.mxu0 0.0
    %1679 = vmatpush1.msra.mxu0 0.0
    %1680 = vmatprep.subr.mxu0 0.0
    %1681 = vmatpush1.msra.mxu0 0.0
    %1682 = vmatprep.subr.mxu0 0.0
    %1683 = vmatpush1.msra.mxu0 0.0
    %1684 = vmatprep.subr.mxu0 0.0
    %1685 = vmatpush1.msra.mxu0 %v366
    %1686 = vmatprep.subr.mxu0 0.0
    %1687 = vmatpush1.msra.mxu0 %v365
    %1688 = vmatprep.subr.mxu0 0.0
    %1689 = vmatpush1.msra.mxu0 %v364
    %1690 = vmatprep.subr.mxu0 0.0
    %1691 = vmatpush1.msra.mxu0 %v363
    %1692 = vmatprep.subr.mxu0 0.0
    %1693 = vmatpush2.msra.mxu0 0.0
    %1694 = vmatprep.subr.mxu0 0.0
    %1695 = vmatpush2.msra.mxu0 0.0
    %1696 = vmatprep.subr.mxu0 0.0
    %1697 = vmatpush2.msra.mxu0 0.0
    %1698 = vmatprep.subr.mxu0 0.0
    %1699 = vmatpush2.msra.mxu0 0.0
    %1700 = vmatprep.subr.mxu0 0.0
    %1701 = vmatpush2.msra.mxu0 0.0
    %1702 = vmatprep.subr.mxu0 0.0
    %1703 = vmatpush2.msra.mxu0 0.0
    %1704 = vmatprep.subr.mxu0 0.0
    %1705 = vmatpush2.msra.mxu0 0.0
    %1706 = vmatprep.subr.mxu0 0.0
    %1707 = vmatpush2.msra.mxu0 0.0
    %1708 = vmatprep.subr.mxu0 0.0
    %1709 = vmatpush2.msra.mxu0 0.0
    %1710 = vmatprep.subr.mxu0 0.0
    %1711 = vmatpush2.msra.mxu0 0.0
    %1712 = vmatprep.subr.mxu0 0.0
    %1713 = vmatpush2.msra.mxu0 0.0
    %1714 = vmatprep.subr.mxu0 0.0
    %1715 = vmatpush2.msra.mxu0 0.0
    %1716 = vmatprep.subr.mxu0 0.0
    %1717 = vmatpush2.msra.mxu0 0.0
    %1718 = vmatprep.subr.mxu0 0.0
    %1719 = vmatpush2.msra.mxu0 0.0
    %1720 = vmatprep.subr.mxu0 0.0
    %1721 = vmatpush2.msra.mxu0 0.0
    %1722 = vmatprep.subr.mxu0 0.0
    %1723 = vmatpush2.msra.mxu0 0.0
    %1724 = vmatprep.mubr.f32.mxu0 0.0
    %1725 = vmatmul.mubr.f32.gmra.mxu0 %v1658
    %v1726 = vpop.f32.mrf.mxu0
    %v1727 = vadd.f32 0.0, %v1726
    %v1728 = vpop.f32.mrf.mxu0
    %1729 = vdwg.mxu0
    %1731 = vrot.lane.b32.xlu0 %v1654, 96
    %v1732 = vpop.permute.xlu0 %1731
    %v1733 = vsel %vm167, %v1732, 0
    %1735 = vmatprep.subr.mxu0 0.0
    %1736 = vmatpush1.msra.mxu0 0.0
    %1737 = vmatprep.subr.mxu0 0.0
    %1738 = vmatpush1.msra.mxu0 0.0
    %1739 = vmatprep.subr.mxu0 0.0
    %1740 = vmatpush1.msra.mxu0 0.0
    %1741 = vmatprep.subr.mxu0 0.0
    %1742 = vmatpush1.msra.mxu0 0.0
    %1743 = vmatprep.subr.mxu0 0.0
    %1744 = vmatpush1.msra.mxu0 0.0
    %1745 = vmatprep.subr.mxu0 0.0
    %1746 = vmatpush1.msra.mxu0 0.0
    %1747 = vmatprep.subr.mxu0 0.0
    %1748 = vmatpush1.msra.mxu0 0.0
    %1749 = vmatprep.subr.mxu0 0.0
    %1750 = vmatpush1.msra.mxu0 0.0
    %1751 = vmatprep.subr.mxu0 0.0
    %1752 = vmatpush1.msra.mxu0 0.0
    %1753 = vmatprep.subr.mxu0 0.0
    %1754 = vmatpush1.msra.mxu0 0.0
    %1755 = vmatprep.subr.mxu0 0.0
    %1756 = vmatpush1.msra.mxu0 0.0
    %1757 = vmatprep.subr.mxu0 0.0
    %1758 = vmatpush1.msra.mxu0 0.0
    %1759 = vmatprep.subr.mxu0 0.0
    %1760 = vmatpush1.msra.mxu0 %v361
    %1761 = vmatprep.subr.mxu0 0.0
    %1762 = vmatpush1.msra.mxu0 %v360
    %1763 = vmatprep.subr.mxu0 0.0
    %1764 = vmatpush1.msra.mxu0 %v359
    %1765 = vmatprep.subr.mxu0 0.0
    %1766 = vmatpush1.msra.mxu0 %v358
    %1767 = vmatprep.subr.mxu0 0.0
    %1768 = vmatpush2.msra.mxu0 0.0
    %1769 = vmatprep.subr.mxu0 0.0
    %1770 = vmatpush2.msra.mxu0 0.0
    %1771 = vmatprep.subr.mxu0 0.0
    %1772 = vmatpush2.msra.mxu0 0.0
    %1773 = vmatprep.subr.mxu0 0.0
    %1774 = vmatpush2.msra.mxu0 0.0
    %1775 = vmatprep.subr.mxu0 0.0
    %1776 = vmatpush2.msra.mxu0 0.0
    %1777 = vmatprep.subr.mxu0 0.0
    %1778 = vmatpush2.msra.mxu0 0.0
    %1779 = vmatprep.subr.mxu0 0.0
    %1780 = vmatpush2.msra.mxu0 0.0
    %1781 = vmatprep.subr.mxu0 0.0
    %1782 = vmatpush2.msra.mxu0 0.0
    %1783 = vmatprep.subr.mxu0 0.0
    %1784 = vmatpush2.msra.mxu0 0.0
    %1785 = vmatprep.subr.mxu0 0.0
    %1786 = vmatpush2.msra.mxu0 0.0
    %1787 = vmatprep.subr.mxu0 0.0
    %1788 = vmatpush2.msra.mxu0 0.0
    %1789 = vmatprep.subr.mxu0 0.0
    %1790 = vmatpush2.msra.mxu0 0.0
    %1791 = vmatprep.subr.mxu0 0.0
    %1792 = vmatpush2.msra.mxu0 0.0
    %1793 = vmatprep.subr.mxu0 0.0
    %1794 = vmatpush2.msra.mxu0 0.0
    %1795 = vmatprep.subr.mxu0 0.0
    %1796 = vmatpush2.msra.mxu0 0.0
    %1797 = vmatprep.subr.mxu0 0.0
    %1798 = vmatpush2.msra.mxu0 0.0
    %1799 = vmatprep.mubr.f32.mxu0 0.0
    %1800 = vmatmul.mubr.f32.gmra.mxu0 %v1733
    %v1801 = vpop.f32.mrf.mxu0
    %v1802 = vadd.f32 %v1727, %v1801
    %v1803 = vpop.f32.mrf.mxu0
    %1804 = vdwg.mxu0
    %v1805 = vadd.f32 %v1802, %v518
    %v1806 = vxor.u32 %v1805, 2147483648
    %v1807 = vmul.f32 %v1806, 1.442695
    %v1808 = vpow.pop %v1807
    %v1809 = vadd.f32 %v1808, 1.0
    %v1810 = vrcp.pop %v1809
    %v1811 = vmul.f32 1.0, %v1810
    %v1812 = vadd.f32 %v1805, %v535
    %1814 = vrot.lane.b32.xlu0 %v1812, 32
    %v1815 = vpop.permute.xlu0 %1814
    %v1817 = vmul.f32 %v1811, %v1815
    %1819 = vrot.lane.b32.xlu0 %v1817, 64
    %v1820 = vpop.permute.xlu0 %1819
    %v1822 = vadd.f32 %v1805, %v1820
    %v1823 = vtanh.pop %v1822
    %v1824 = vsub.f32 1.0, %v1811
    %1826 = vrot.lane.b32.xlu0 %v1823, 96
    %v1827 = vpop.permute.xlu0 %1826
    %v1829 = vmul.f32 %v1824, %v1827
    %v1830 = vmul.f32 %v1811, %v1406
    %v1831 = vadd.f32 %v1829, %v1830
    %s1832 = scalar_lea.vmem %s0, 32
    %v1833 = vld [vmem:[%s1832] sm:$0xff]
    %1834 = vset.pattern.permute.xlu0 0
    %1835 = vperm.xlu0 %1834, %v1833
    %v1836 = vpop.permute.xlu0 %1835
    %vm1837 = vcmp.eq.s32.totalorder %v1836, %v65
    %v1838 = vsel %vm1837, 1, 0
    %v1839 = vcvt.s32.f32 %v1838
    %1840 = vmatprep.subr.mxu0 0.0
    %1841 = vmatpush1.msra.mxu0 %v88
    %1842 = vmatprep.subr.mxu0 0.0
    %1843 = vmatpush1.msra.mxu0 %v87
    %1844 = vmatprep.subr.mxu0 0.0
    %1845 = vmatpush1.msra.mxu0 %v86
    %1846 = vmatprep.subr.mxu0 0.0
    %1847 = vmatpush1.msra.mxu0 %v85
    %1848 = vmatprep.subr.mxu0 0.0
    %1849 = vmatpush1.msra.mxu0 %v84
    %1850 = vmatprep.subr.mxu0 0.0
    %1851 = vmatpush1.msra.mxu0 %v83
    %1852 = vmatprep.subr.mxu0 0.0
    %1853 = vmatpush1.msra.mxu0 %v82
    %1854 = vmatprep.subr.mxu0 0.0
    %1855 = vmatpush1.msra.mxu0 %v81
    %1856 = vmatprep.subr.mxu0 0.0
    %1857 = vmatpush1.msra.mxu0 %v80
    %1858 = vmatprep.subr.mxu0 0.0
    %1859 = vmatpush1.msra.mxu0 %v79
    %1860 = vmatprep.subr.mxu0 0.0
    %1861 = vmatpush1.msra.mxu0 %v78
    %1862 = vmatprep.subr.mxu0 0.0
    %1863 = vmatpush1.msra.mxu0 %v77
    %1864 = vmatprep.subr.mxu0 0.0
    %1865 = vmatpush1.msra.mxu0 %v76
    %1866 = vmatprep.subr.mxu0 0.0
    %1867 = vmatpush1.msra.mxu0 %v75
    %1868 = vmatprep.subr.mxu0 0.0
    %1869 = vmatpush1.msra.mxu0 %v74
    %1870 = vmatprep.subr.mxu0 0.0
    %1871 = vmatpush1.msra.mxu0 %v73
    %1872 = vmatprep.subr.mxu0 0.0
    %1873 = vmatpush2.msra.mxu0 0.0
    %1874 = vmatprep.subr.mxu0 0.0
    %1875 = vmatpush2.msra.mxu0 0.0
    %1876 = vmatprep.subr.mxu0 0.0
    %1877 = vmatpush2.msra.mxu0 0.0
    %1878 = vmatprep.subr.mxu0 0.0
    %1879 = vmatpush2.msra.mxu0 0.0
    %1880 = vmatprep.subr.mxu0 0.0
    %1881 = vmatpush2.msra.mxu0 0.0
    %1882 = vmatprep.subr.mxu0 0.0
    %1883 = vmatpush2.msra.mxu0 0.0
    %1884 = vmatprep.subr.mxu0 0.0
    %1885 = vmatpush2.msra.mxu0 0.0
    %1886 = vmatprep.subr.mxu0 0.0
    %1887 = vmatpush2.msra.mxu0 0.0
    %1888 = vmatprep.subr.mxu0 0.0
    %1889 = vmatpush2.msra.mxu0 0.0
    %1890 = vmatprep.subr.mxu0 0.0
    %1891 = vmatpush2.msra.mxu0 0.0
    %1892 = vmatprep.subr.mxu0 0.0
    %1893 = vmatpush2.msra.mxu0 0.0
    %1894 = vmatprep.subr.mxu0 0.0
    %1895 = vmatpush2.msra.mxu0 0.0
    %1896 = vmatprep.subr.mxu0 0.0
    %1897 = vmatpush2.msra.mxu0 0.0
    %1898 = vmatprep.subr.mxu0 0.0
    %1899 = vmatpush2.msra.mxu0 0.0
    %1900 = vmatprep.subr.mxu0 0.0
    %1901 = vmatpush2.msra.mxu0 0.0
    %1902 = vmatprep.subr.mxu0 0.0
    %1903 = vmatpush2.msra.mxu0 0.0
    %1904 = vmatprep.mubr.f32.mxu0 0.0
    %1905 = vmatmul.mubr.f32.gmra.mxu0 %v1839
    %v1906 = vpop.f32.mrf.mxu0
    %v1907 = vadd.f32 0.0, %v1906
    %v1908 = vpop.f32.mrf.mxu0
    %1909 = vdwg.mxu0
    %1910 = vmatprep.subr.mxu0 0.0
    %1911 = vmatpush1.msra.mxu0 0.0
    %1912 = vmatprep.subr.mxu0 0.0
    %1913 = vmatpush1.msra.mxu0 0.0
    %1914 = vmatprep.subr.mxu0 0.0
    %1915 = vmatpush1.msra.mxu0 0.0
    %1916 = vmatprep.subr.mxu0 0.0
    %1917 = vmatpush1.msra.mxu0 0.0
    %1918 = vmatprep.subr.mxu0 0.0
    %1919 = vmatpush1.msra.mxu0 0.0
    %1920 = vmatprep.subr.mxu0 0.0
    %1921 = vmatpush1.msra.mxu0 0.0
    %1922 = vmatprep.subr.mxu0 0.0
    %1923 = vmatpush1.msra.mxu0 0.0
    %1924 = vmatprep.subr.mxu0 0.0
    %1925 = vmatpush1.msra.mxu0 0.0
    %1926 = vmatprep.subr.mxu0 0.0
    %1927 = vmatpush1.msra.mxu0 0.0
    %1928 = vmatprep.subr.mxu0 0.0
    %1929 = vmatpush1.msra.mxu0 0.0
    %1930 = vmatprep.subr.mxu0 0.0
    %1931 = vmatpush1.msra.mxu0 0.0
    %1932 = vmatprep.subr.mxu0 0.0
    %1933 = vmatpush1.msra.mxu0 0.0
    %1934 = vmatprep.subr.mxu0 0.0
    %1935 = vmatpush1.msra.mxu0 %v166
    %1936 = vmatprep.subr.mxu0 0.0
    %1937 = vmatpush1.msra.mxu0 %v165
    %1938 = vmatprep.subr.mxu0 0.0
    %1939 = vmatpush1.msra.mxu0 %v164
    %1940 = vmatprep.subr.mxu0 0.0
    %1941 = vmatpush1.msra.mxu0 %v163
    %1942 = vmatprep.subr.mxu0 0.0
    %1943 = vmatpush2.msra.mxu0 0.0
    %1944 = vmatprep.subr.mxu0 0.0
    %1945 = vmatpush2.msra.mxu0 0.0
    %1946 = vmatprep.subr.mxu0 0.0
    %1947 = vmatpush2.msra.mxu0 0.0
    %1948 = vmatprep.subr.mxu0 0.0
    %1949 = vmatpush2.msra.mxu0 0.0
    %1950 = vmatprep.subr.mxu0 0.0
    %1951 = vmatpush2.msra.mxu0 0.0
    %1952 = vmatprep.subr.mxu0 0.0
    %1953 = vmatpush2.msra.mxu0 0.0
    %1954 = vmatprep.subr.mxu0 0.0
    %1955 = vmatpush2.msra.mxu0 0.0
    %1956 = vmatprep.subr.mxu0 0.0
    %1957 = vmatpush2.msra.mxu0 0.0
    %1958 = vmatprep.subr.mxu0 0.0
    %1959 = vmatpush2.msra.mxu0 0.0
    %1960 = vmatprep.subr.mxu0 0.0
    %1961 = vmatpush2.msra.mxu0 0.0
    %1962 = vmatprep.subr.mxu0 0.0
    %1963 = vmatpush2.msra.mxu0 0.0
    %1964 = vmatprep.subr.mxu0 0.0
    %1965 = vmatpush2.msra.mxu0 0.0
    %1966 = vmatprep.subr.mxu0 0.0
    %1967 = vmatpush2.msra.mxu0 0.0
    %1968 = vmatprep.subr.mxu0 0.0
    %1969 = vmatpush2.msra.mxu0 0.0
    %1970 = vmatprep.subr.mxu0 0.0
    %1971 = vmatpush2.msra.mxu0 0.0
    %1972 = vmatprep.subr.mxu0 0.0
    %1973 = vmatpush2.msra.mxu0 0.0
    %1974 = vmatprep.mubr.f32.mxu0 0.0
    %1975 = vmatmul.mubr.f32.gmra.mxu0 %v1733
    %v1976 = vpop.f32.mrf.mxu0
    %v1977 = vadd.f32 0.0, %v1976
    %v1978 = vpop.f32.mrf.mxu0
    %1979 = vdwg.mxu0
    %v1981 = vsel %vm167, %v1907, 0
    %1983 = vmatprep.subr.mxu0 0.0
    %1984 = vmatpush1.msra.mxu0 0.0
    %1985 = vmatprep.subr.mxu0 0.0
    %1986 = vmatpush1.msra.mxu0 0.0
    %1987 = vmatprep.subr.mxu0 0.0
    %1988 = vmatpush1.msra.mxu0 0.0
    %1989 = vmatprep.subr.mxu0 0.0
    %1990 = vmatpush1.msra.mxu0 0.0
    %1991 = vmatprep.subr.mxu0 0.0
    %1992 = vmatpush1.msra.mxu0 0.0
    %1993 = vmatprep.subr.mxu0 0.0
    %1994 = vmatpush1.msra.mxu0 0.0
    %1995 = vmatprep.subr.mxu0 0.0
    %1996 = vmatpush1.msra.mxu0 0.0
    %1997 = vmatprep.subr.mxu0 0.0
    %1998 = vmatpush1.msra.mxu0 0.0
    %1999 = vmatprep.subr.mxu0 0.0
    %2000 = vmatpush1.msra.mxu0 0.0
    %2001 = vmatprep.subr.mxu0 0.0
    %2002 = vmatpush1.msra.mxu0 0.0
    %2003 = vmatprep.subr.mxu0 0.0
    %2004 = vmatpush1.msra.mxu0 0.0
    %2005 = vmatprep.subr.mxu0 0.0
    %2006 = vmatpush1.msra.mxu0 0.0
    %2007 = vmatprep.subr.mxu0 0.0
    %2008 = vmatpush1.msra.mxu0 %v162
    %2009 = vmatprep.subr.mxu0 0.0
    %2010 = vmatpush1.msra.mxu0 %v161
    %2011 = vmatprep.subr.mxu0 0.0
    %2012 = vmatpush1.msra.mxu0 %v160
    %2013 = vmatprep.subr.mxu0 0.0
    %2014 = vmatpush1.msra.mxu0 %v159
    %2015 = vmatprep.subr.mxu0 0.0
    %2016 = vmatpush2.msra.mxu0 0.0
    %2017 = vmatprep.subr.mxu0 0.0
    %2018 = vmatpush2.msra.mxu0 0.0
    %2019 = vmatprep.subr.mxu0 0.0
    %2020 = vmatpush2.msra.mxu0 0.0
    %2021 = vmatprep.subr.mxu0 0.0
    %2022 = vmatpush2.msra.mxu0 0.0
    %2023 = vmatprep.subr.mxu0 0.0
    %2024 = vmatpush2.msra.mxu0 0.0
    %2025 = vmatprep.subr.mxu0 0.0
    %2026 = vmatpush2.msra.mxu0 0.0
    %2027 = vmatprep.subr.mxu0 0.0
    %2028 = vmatpush2.msra.mxu0 0.0
    %2029 = vmatprep.subr.mxu0 0.0
    %2030 = vmatpush2.msra.mxu0 0.0
    %2031 = vmatprep.subr.mxu0 0.0
    %2032 = vmatpush2.msra.mxu0 0.0
    %2033 = vmatprep.subr.mxu0 0.0
    %2034 = vmatpush2.msra.mxu0 0.0
    %2035 = vmatprep.subr.mxu0 0.0
    %2036 = vmatpush2.msra.mxu0 0.0
    %2037 = vmatprep.subr.mxu0 0.0
    %2038 = vmatpush2.msra.mxu0 0.0
    %2039 = vmatprep.subr.mxu0 0.0
    %2040 = vmatpush2.msra.mxu0 0.0
    %2041 = vmatprep.subr.mxu0 0.0
    %2042 = vmatpush2.msra.mxu0 0.0
    %2043 = vmatprep.subr.mxu0 0.0
    %2044 = vmatpush2.msra.mxu0 0.0
    %2045 = vmatprep.subr.mxu0 0.0
    %2046 = vmatpush2.msra.mxu0 0.0
    %2047 = vmatprep.mubr.f32.mxu0 0.0
    %2048 = vmatmul.mubr.f32.gmra.mxu0 %v1981
    %v2049 = vpop.f32.mrf.mxu0
    %v2050 = vadd.f32 %v1977, %v2049
    %v2051 = vpop.f32.mrf.mxu0
    %2052 = vdwg.mxu0
    %v2053 = vadd.f32 %v2050, %v319
    %v2054 = vxor.u32 %v2053, 2147483648
    %v2055 = vmul.f32 %v2054, 1.442695
    %v2056 = vpow.pop %v2055
    %v2057 = vadd.f32 %v2056, 1.0
    %v2058 = vrcp.pop %v2057
    %v2059 = vmul.f32 1.0, %v2058
    %v2060 = vadd.f32 %v2053, %v335
    %2062 = vrot.lane.b32.xlu0 %v2060, 32
    %v2063 = vpop.permute.xlu0 %2062
    %v2065 = vmul.f32 %v2059, %v2063
    %2067 = vrot.lane.b32.xlu0 %v2065, 64
    %v2068 = vpop.permute.xlu0 %2067
    %v2070 = vadd.f32 %v2053, %v2068
    %v2071 = vtanh.pop %v2070
    %v2072 = vsub.f32 1.0, %v2059
    %2074 = vrot.lane.b32.xlu0 %v2071, 96
    %v2075 = vpop.permute.xlu0 %2074
    %v2077 = vmul.f32 %v2072, %v2075
    %v2078 = vmul.f32 %v2059, %v1654
    %v2079 = vadd.f32 %v2077, %v2078
    %2081 = vrot.lane.b32.xlu0 %v1831, 96
    %v2082 = vpop.permute.xlu0 %2081
    %v2083 = vsel %vm167, %v2082, 0
    %2085 = vmatprep.subr.mxu0 0.0
    %2086 = vmatpush1.msra.mxu0 0.0
    %2087 = vmatprep.subr.mxu0 0.0
    %2088 = vmatpush1.msra.mxu0 0.0
    %2089 = vmatprep.subr.mxu0 0.0
    %2090 = vmatpush1.msra.mxu0 0.0
    %2091 = vmatprep.subr.mxu0 0.0
    %2092 = vmatpush1.msra.mxu0 0.0
    %2093 = vmatprep.subr.mxu0 0.0
    %2094 = vmatpush1.msra.mxu0 0.0
    %2095 = vmatprep.subr.mxu0 0.0
    %2096 = vmatpush1.msra.mxu0 0.0
    %2097 = vmatprep.subr.mxu0 0.0
    %2098 = vmatpush1.msra.mxu0 0.0
    %2099 = vmatprep.subr.mxu0 0.0
    %2100 = vmatpush1.msra.mxu0 0.0
    %2101 = vmatprep.subr.mxu0 0.0
    %2102 = vmatpush1.msra.mxu0 0.0
    %2103 = vmatprep.subr.mxu0 0.0
    %2104 = vmatpush1.msra.mxu0 0.0
    %2105 = vmatprep.subr.mxu0 0.0
    %2106 = vmatpush1.msra.mxu0 0.0
    %2107 = vmatprep.subr.mxu0 0.0
    %2108 = vmatpush1.msra.mxu0 0.0
    %2109 = vmatprep.subr.mxu0 0.0
    %2110 = vmatpush1.msra.mxu0 %v366
    %2111 = vmatprep.subr.mxu0 0.0
    %2112 = vmatpush1.msra.mxu0 %v365
    %2113 = vmatprep.subr.mxu0 0.0
    %2114 = vmatpush1.msra.mxu0 %v364
    %2115 = vmatprep.subr.mxu0 0.0
    %2116 = vmatpush1.msra.mxu0 %v363
    %2117 = vmatprep.subr.mxu0 0.0
    %2118 = vmatpush2.msra.mxu0 0.0
    %2119 = vmatprep.subr.mxu0 0.0
    %2120 = vmatpush2.msra.mxu0 0.0
    %2121 = vmatprep.subr.mxu0 0.0
    %2122 = vmatpush2.msra.mxu0 0.0
    %2123 = vmatprep.subr.mxu0 0.0
    %2124 = vmatpush2.msra.mxu0 0.0
    %2125 = vmatprep.subr.mxu0 0.0
    %2126 = vmatpush2.msra.mxu0 0.0
    %2127 = vmatprep.subr.mxu0 0.0
    %2128 = vmatpush2.msra.mxu0 0.0
    %2129 = vmatprep.subr.mxu0 0.0
    %2130 = vmatpush2.msra.mxu0 0.0
    %2131 = vmatprep.subr.mxu0 0.0
    %2132 = vmatpush2.msra.mxu0 0.0
    %2133 = vmatprep.subr.mxu0 0.0
    %2134 = vmatpush2.msra.mxu0 0.0
    %2135 = vmatprep.subr.mxu0 0.0
    %2136 = vmatpush2.msra.mxu0 0.0
    %2137 = vmatprep.subr.mxu0 0.0
    %2138 = vmatpush2.msra.mxu0 0.0
    %2139 = vmatprep.subr.mxu0 0.0
    %2140 = vmatpush2.msra.mxu0 0.0
    %2141 = vmatprep.subr.mxu0 0.0
    %2142 = vmatpush2.msra.mxu0 0.0
    %2143 = vmatprep.subr.mxu0 0.0
    %2144 = vmatpush2.msra.mxu0 0.0
    %2145 = vmatprep.subr.mxu0 0.0
    %2146 = vmatpush2.msra.mxu0 0.0
    %2147 = vmatprep.subr.mxu0 0.0
    %2148 = vmatpush2.msra.mxu0 0.0
    %2149 = vmatprep.mubr.f32.mxu0 0.0
    %2150 = vmatmul.mubr.f32.gmra.mxu0 %v2083
    %v2151 = vpop.f32.mrf.mxu0
    %v2152 = vadd.f32 0.0, %v2151
    %v2153 = vpop.f32.mrf.mxu0
    %2154 = vdwg.mxu0
    %2156 = vrot.lane.b32.xlu0 %v2079, 96
    %v2157 = vpop.permute.xlu0 %2156
    %v2158 = vsel %vm167, %v2157, 0
    %2160 = vmatprep.subr.mxu0 0.0
    %2161 = vmatpush1.msra.mxu0 0.0
    %2162 = vmatprep.subr.mxu0 0.0
    %2163 = vmatpush1.msra.mxu0 0.0
    %2164 = vmatprep.subr.mxu0 0.0
    %2165 = vmatpush1.msra.mxu0 0.0
    %2166 = vmatprep.subr.mxu0 0.0
    %2167 = vmatpush1.msra.mxu0 0.0
    %2168 = vmatprep.subr.mxu0 0.0
    %2169 = vmatpush1.msra.mxu0 0.0
    %2170 = vmatprep.subr.mxu0 0.0
    %2171 = vmatpush1.msra.mxu0 0.0
    %2172 = vmatprep.subr.mxu0 0.0
    %2173 = vmatpush1.msra.mxu0 0.0
    %2174 = vmatprep.subr.mxu0 0.0
    %2175 = vmatpush1.msra.mxu0 0.0
    %2176 = vmatprep.subr.mxu0 0.0
    %2177 = vmatpush1.msra.mxu0 0.0
    %2178 = vmatprep.subr.mxu0 0.0
    %2179 = vmatpush1.msra.mxu0 0.0
    %2180 = vmatprep.subr.mxu0 0.0
    %2181 = vmatpush1.msra.mxu0 0.0
    %2182 = vmatprep.subr.mxu0 0.0
    %2183 = vmatpush1.msra.mxu0 0.0
    %2184 = vmatprep.subr.mxu0 0.0
    %2185 = vmatpush1.msra.mxu0 %v361
    %2186 = vmatprep.subr.mxu0 0.0
    %2187 = vmatpush1.msra.mxu0 %v360
    %2188 = vmatprep.subr.mxu0 0.0
    %2189 = vmatpush1.msra.mxu0 %v359
    %2190 = vmatprep.subr.mxu0 0.0
    %2191 = vmatpush1.msra.mxu0 %v358
    %2192 = vmatprep.subr.mxu0 0.0
    %2193 = vmatpush2.msra.mxu0 0.0
    %2194 = vmatprep.subr.mxu0 0.0
    %2195 = vmatpush2.msra.mxu0 0.0
    %2196 = vmatprep.subr.mxu0 0.0
    %2197 = vmatpush2.msra.mxu0 0.0
    %2198 = vmatprep.subr.mxu0 0.0
    %2199 = vmatpush2.msra.mxu0 0.0
    %2200 = vmatprep.subr.mxu0 0.0
    %2201 = vmatpush2.msra.mxu0 0.0
    %2202 = vmatprep.subr.mxu0 0.0
    %2203 = vmatpush2.msra.mxu0 0.0
    %2204 = vmatprep.subr.mxu0 0.0
    %2205 = vmatpush2.msra.mxu0 0.0
    %2206 = vmatprep.subr.mxu0 0.0
    %2207 = vmatpush2.msra.mxu0 0.0
    %2208 = vmatprep.subr.mxu0 0.0
    %2209 = vmatpush2.msra.mxu0 0.0
    %2210 = vmatprep.subr.mxu0 0.0
    %2211 = vmatpush2.msra.mxu0 0.0
    %2212 = vmatprep.subr.mxu0 0.0
    %2213 = vmatpush2.msra.mxu0 0.0
    %2214 = vmatprep.subr.mxu0 0.0
    %2215 = vmatpush2.msra.mxu0 0.0
    %2216 = vmatprep.subr.mxu0 0.0
    %2217 = vmatpush2.msra.mxu0 0.0
    %2218 = vmatprep.subr.mxu0 0.0
    %2219 = vmatpush2.msra.mxu0 0.0
    %2220 = vmatprep.subr.mxu0 0.0
    %2221 = vmatpush2.msra.mxu0 0.0
    %2222 = vmatprep.subr.mxu0 0.0
    %2223 = vmatpush2.msra.mxu0 0.0
    %2224 = vmatprep.mubr.f32.mxu0 0.0
    %2225 = vmatmul.mubr.f32.gmra.mxu0 %v2158
    %v2226 = vpop.f32.mrf.mxu0
    %v2227 = vadd.f32 %v2152, %v2226
    %v2228 = vpop.f32.mrf.mxu0
    %2229 = vdwg.mxu0
    %v2230 = vadd.f32 %v2227, %v518
    %v2231 = vxor.u32 %v2230, 2147483648
    %v2232 = vmul.f32 %v2231, 1.442695
    %v2233 = vpow.pop %v2232
    %v2234 = vadd.f32 %v2233, 1.0
    %v2235 = vrcp.pop %v2234
    %v2236 = vmul.f32 1.0, %v2235
    %v2237 = vadd.f32 %v2230, %v535
    %2239 = vrot.lane.b32.xlu0 %v2237, 32
    %v2240 = vpop.permute.xlu0 %2239
    %v2242 = vmul.f32 %v2236, %v2240
    %2244 = vrot.lane.b32.xlu0 %v2242, 64
    %v2245 = vpop.permute.xlu0 %2244
    %v2247 = vadd.f32 %v2230, %v2245
    %v2248 = vtanh.pop %v2247
    %v2249 = vsub.f32 1.0, %v2236
    %2251 = vrot.lane.b32.xlu0 %v2248, 96
    %v2252 = vpop.permute.xlu0 %2251
    %v2254 = vmul.f32 %v2249, %v2252
    %v2255 = vmul.f32 %v2236, %v1831
    %v2256 = vadd.f32 %v2254, %v2255
    %s2257 = scalar_lea.vmem %s0, 40
    %v2258 = vld [vmem:[%s2257] sm:$0xff]
    %2259 = vset.pattern.permute.xlu0 0
    %2260 = vperm.xlu0 %2259, %v2258
    %v2261 = vpop.permute.xlu0 %2260
    %vm2262 = vcmp.eq.s32.totalorder %v2261, %v65
    %v2263 = vsel %vm2262, 1, 0
    %v2264 = vcvt.s32.f32 %v2263
    %2265 = vmatprep.subr.mxu0 0.0
    %2266 = vmatpush1.msra.mxu0 %v88
    %2267 = vmatprep.subr.mxu0 0.0
    %2268 = vmatpush1.msra.mxu0 %v87
    %2269 = vmatprep.subr.mxu0 0.0
    %2270 = vmatpush1.msra.mxu0 %v86
    %2271 = vmatprep.subr.mxu0 0.0
    %2272 = vmatpush1.msra.mxu0 %v85
    %2273 = vmatprep.subr.mxu0 0.0
    %2274 = vmatpush1.msra.mxu0 %v84
    %2275 = vmatprep.subr.mxu0 0.0
    %2276 = vmatpush1.msra.mxu0 %v83
    %2277 = vmatprep.subr.mxu0 0.0
    %2278 = vmatpush1.msra.mxu0 %v82
    %2279 = vmatprep.subr.mxu0 0.0
    %2280 = vmatpush1.msra.mxu0 %v81
    %2281 = vmatprep.subr.mxu0 0.0
    %2282 = vmatpush1.msra.mxu0 %v80
    %2283 = vmatprep.subr.mxu0 0.0
    %2284 = vmatpush1.msra.mxu0 %v79
    %2285 = vmatprep.subr.mxu0 0.0
    %2286 = vmatpush1.msra.mxu0 %v78
    %2287 = vmatprep.subr.mxu0 0.0
    %2288 = vmatpush1.msra.mxu0 %v77
    %2289 = vmatprep.subr.mxu0 0.0
    %2290 = vmatpush1.msra.mxu0 %v76
    %2291 = vmatprep.subr.mxu0 0.0
    %2292 = vmatpush1.msra.mxu0 %v75
    %2293 = vmatprep.subr.mxu0 0.0
    %2294 = vmatpush1.msra.mxu0 %v74
    %2295 = vmatprep.subr.mxu0 0.0
    %2296 = vmatpush1.msra.mxu0 %v73
    %2297 = vmatprep.subr.mxu0 0.0
    %2298 = vmatpush2.msra.mxu0 0.0
    %2299 = vmatprep.subr.mxu0 0.0
    %2300 = vmatpush2.msra.mxu0 0.0
    %2301 = vmatprep.subr.mxu0 0.0
    %2302 = vmatpush2.msra.mxu0 0.0
    %2303 = vmatprep.subr.mxu0 0.0
    %2304 = vmatpush2.msra.mxu0 0.0
    %2305 = vmatprep.subr.mxu0 0.0
    %2306 = vmatpush2.msra.mxu0 0.0
    %2307 = vmatprep.subr.mxu0 0.0
    %2308 = vmatpush2.msra.mxu0 0.0
    %2309 = vmatprep.subr.mxu0 0.0
    %2310 = vmatpush2.msra.mxu0 0.0
    %2311 = vmatprep.subr.mxu0 0.0
    %2312 = vmatpush2.msra.mxu0 0.0
    %2313 = vmatprep.subr.mxu0 0.0
    %2314 = vmatpush2.msra.mxu0 0.0
    %2315 = vmatprep.subr.mxu0 0.0
    %2316 = vmatpush2.msra.mxu0 0.0
    %2317 = vmatprep.subr.mxu0 0.0
    %2318 = vmatpush2.msra.mxu0 0.0
    %2319 = vmatprep.subr.mxu0 0.0
    %2320 = vmatpush2.msra.mxu0 0.0
    %2321 = vmatprep.subr.mxu0 0.0
    %2322 = vmatpush2.msra.mxu0 0.0
    %2323 = vmatprep.subr.mxu0 0.0
    %2324 = vmatpush2.msra.mxu0 0.0
    %2325 = vmatprep.subr.mxu0 0.0
    %2326 = vmatpush2.msra.mxu0 0.0
    %2327 = vmatprep.subr.mxu0 0.0
    %2328 = vmatpush2.msra.mxu0 0.0
    %2329 = vmatprep.mubr.f32.mxu0 0.0
    %2330 = vmatmul.mubr.f32.gmra.mxu0 %v2264
    %v2331 = vpop.f32.mrf.mxu0
    %v2332 = vadd.f32 0.0, %v2331
    %v2333 = vpop.f32.mrf.mxu0
    %2334 = vdwg.mxu0
    %2335 = vmatprep.subr.mxu0 0.0
    %2336 = vmatpush1.msra.mxu0 0.0
    %2337 = vmatprep.subr.mxu0 0.0
    %2338 = vmatpush1.msra.mxu0 0.0
    %2339 = vmatprep.subr.mxu0 0.0
    %2340 = vmatpush1.msra.mxu0 0.0
    %2341 = vmatprep.subr.mxu0 0.0
    %2342 = vmatpush1.msra.mxu0 0.0
    %2343 = vmatprep.subr.mxu0 0.0
    %2344 = vmatpush1.msra.mxu0 0.0
    %2345 = vmatprep.subr.mxu0 0.0
    %2346 = vmatpush1.msra.mxu0 0.0
    %2347 = vmatprep.subr.mxu0 0.0
    %2348 = vmatpush1.msra.mxu0 0.0
    %2349 = vmatprep.subr.mxu0 0.0
    %2350 = vmatpush1.msra.mxu0 0.0
    %2351 = vmatprep.subr.mxu0 0.0
    %2352 = vmatpush1.msra.mxu0 0.0
    %2353 = vmatprep.subr.mxu0 0.0
    %2354 = vmatpush1.msra.mxu0 0.0
    %2355 = vmatprep.subr.mxu0 0.0
    %2356 = vmatpush1.msra.mxu0 0.0
    %2357 = vmatprep.subr.mxu0 0.0
    %2358 = vmatpush1.msra.mxu0 0.0
    %2359 = vmatprep.subr.mxu0 0.0
    %2360 = vmatpush1.msra.mxu0 %v166
    %2361 = vmatprep.subr.mxu0 0.0
    %2362 = vmatpush1.msra.mxu0 %v165
    %2363 = vmatprep.subr.mxu0 0.0
    %2364 = vmatpush1.msra.mxu0 %v164
    %2365 = vmatprep.subr.mxu0 0.0
    %2366 = vmatpush1.msra.mxu0 %v163
    %2367 = vmatprep.subr.mxu0 0.0
    %2368 = vmatpush2.msra.mxu0 0.0
    %2369 = vmatprep.subr.mxu0 0.0
    %2370 = vmatpush2.msra.mxu0 0.0
    %2371 = vmatprep.subr.mxu0 0.0
    %2372 = vmatpush2.msra.mxu0 0.0
    %2373 = vmatprep.subr.mxu0 0.0
    %2374 = vmatpush2.msra.mxu0 0.0
    %2375 = vmatprep.subr.mxu0 0.0
    %2376 = vmatpush2.msra.mxu0 0.0
    %2377 = vmatprep.subr.mxu0 0.0
    %2378 = vmatpush2.msra.mxu0 0.0
    %2379 = vmatprep.subr.mxu0 0.0
    %2380 = vmatpush2.msra.mxu0 0.0
    %2381 = vmatprep.subr.mxu0 0.0
    %2382 = vmatpush2.msra.mxu0 0.0
    %2383 = vmatprep.subr.mxu0 0.0
    %2384 = vmatpush2.msra.mxu0 0.0
    %2385 = vmatprep.subr.mxu0 0.0
    %2386 = vmatpush2.msra.mxu0 0.0
    %2387 = vmatprep.subr.mxu0 0.0
    %2388 = vmatpush2.msra.mxu0 0.0
    %2389 = vmatprep.subr.mxu0 0.0
    %2390 = vmatpush2.msra.mxu0 0.0
    %2391 = vmatprep.subr.mxu0 0.0
    %2392 = vmatpush2.msra.mxu0 0.0
    %2393 = vmatprep.subr.mxu0 0.0
    %2394 = vmatpush2.msra.mxu0 0.0
    %2395 = vmatprep.subr.mxu0 0.0
    %2396 = vmatpush2.msra.mxu0 0.0
    %2397 = vmatprep.subr.mxu0 0.0
    %2398 = vmatpush2.msra.mxu0 0.0
    %2399 = vmatprep.mubr.f32.mxu0 0.0
    %2400 = vmatmul.mubr.f32.gmra.mxu0 %v2158
    %v2401 = vpop.f32.mrf.mxu0
    %v2402 = vadd.f32 0.0, %v2401
    %v2403 = vpop.f32.mrf.mxu0
    %2404 = vdwg.mxu0
    %v2406 = vsel %vm167, %v2332, 0
    %2408 = vmatprep.subr.mxu0 0.0
    %2409 = vmatpush1.msra.mxu0 0.0
    %2410 = vmatprep.subr.mxu0 0.0
    %2411 = vmatpush1.msra.mxu0 0.0
    %2412 = vmatprep.subr.mxu0 0.0
    %2413 = vmatpush1.msra.mxu0 0.0
    %2414 = vmatprep.subr.mxu0 0.0
    %2415 = vmatpush1.msra.mxu0 0.0
    %2416 = vmatprep.subr.mxu0 0.0
    %2417 = vmatpush1.msra.mxu0 0.0
    %2418 = vmatprep.subr.mxu0 0.0
    %2419 = vmatpush1.msra.mxu0 0.0
    %2420 = vmatprep.subr.mxu0 0.0
    %2421 = vmatpush1.msra.mxu0 0.0
    %2422 = vmatprep.subr.mxu0 0.0
    %2423 = vmatpush1.msra.mxu0 0.0
    %2424 = vmatprep.subr.mxu0 0.0
    %2425 = vmatpush1.msra.mxu0 0.0
    %2426 = vmatprep.subr.mxu0 0.0
    %2427 = vmatpush1.msra.mxu0 0.0
    %2428 = vmatprep.subr.mxu0 0.0
    %2429 = vmatpush1.msra.mxu0 0.0
    %2430 = vmatprep.subr.mxu0 0.0
    %2431 = vmatpush1.msra.mxu0 0.0
    %2432 = vmatprep.subr.mxu0 0.0
    %2433 = vmatpush1.msra.mxu0 %v162
    %2434 = vmatprep.subr.mxu0 0.0
    %2435 = vmatpush1.msra.mxu0 %v161
    %2436 = vmatprep.subr.mxu0 0.0
    %2437 = vmatpush1.msra.mxu0 %v160
    %2438 = vmatprep.subr.mxu0 0.0
    %2439 = vmatpush1.msra.mxu0 %v159
    %2440 = vmatprep.subr.mxu0 0.0
    %2441 = vmatpush2.msra.mxu0 0.0
    %2442 = vmatprep.subr.mxu0 0.0
    %2443 = vmatpush2.msra.mxu0 0.0
    %2444 = vmatprep.subr.mxu0 0.0
    %2445 = vmatpush2.msra.mxu0 0.0
    %2446 = vmatprep.subr.mxu0 0.0
    %2447 = vmatpush2.msra.mxu0 0.0
    %2448 = vmatprep.subr.mxu0 0.0
    %2449 = vmatpush2.msra.mxu0 0.0
    %2450 = vmatprep.subr.mxu0 0.0
    %2451 = vmatpush2.msra.mxu0 0.0
    %2452 = vmatprep.subr.mxu0 0.0
    %2453 = vmatpush2.msra.mxu0 0.0
    %2454 = vmatprep.subr.mxu0 0.0
    %2455 = vmatpush2.msra.mxu0 0.0
    %2456 = vmatprep.subr.mxu0 0.0
    %2457 = vmatpush2.msra.mxu0 0.0
    %2458 = vmatprep.subr.mxu0 0.0
    %2459 = vmatpush2.msra.mxu0 0.0
    %2460 = vmatprep.subr.mxu0 0.0
    %2461 = vmatpush2.msra.mxu0 0.0
    %2462 = vmatprep.subr.mxu0 0.0
    %2463 = vmatpush2.msra.mxu0 0.0
    %2464 = vmatprep.subr.mxu0 0.0
    %2465 = vmatpush2.msra.mxu0 0.0
    %2466 = vmatprep.subr.mxu0 0.0
    %2467 = vmatpush2.msra.mxu0 0.0
    %2468 = vmatprep.subr.mxu0 0.0
    %2469 = vmatpush2.msra.mxu0 0.0
    %2470 = vmatprep.subr.mxu0 0.0
    %2471 = vmatpush2.msra.mxu0 0.0
    %2472 = vmatprep.mubr.f32.mxu0 0.0
    %2473 = vmatmul.mubr.f32.gmra.mxu0 %v2406
    %v2474 = vpop.f32.mrf.mxu0
    %v2475 = vadd.f32 %v2402, %v2474
    %v2476 = vpop.f32.mrf.mxu0
    %2477 = vdwg.mxu0
    %v2478 = vadd.f32 %v2475, %v319
    %v2479 = vxor.u32 %v2478, 2147483648
    %v2480 = vmul.f32 %v2479, 1.442695
    %v2481 = vpow.pop %v2480
    %v2482 = vadd.f32 %v2481, 1.0
    %v2483 = vrcp.pop %v2482
    %v2484 = vmul.f32 1.0, %v2483
    %v2485 = vadd.f32 %v2478, %v335
    %2487 = vrot.lane.b32.xlu0 %v2485, 32
    %v2488 = vpop.permute.xlu0 %2487
    %v2490 = vmul.f32 %v2484, %v2488
    %2492 = vrot.lane.b32.xlu0 %v2490, 64
    %v2493 = vpop.permute.xlu0 %2492
    %v2495 = vadd.f32 %v2478, %v2493
    %v2496 = vtanh.pop %v2495
    %v2497 = vsub.f32 1.0, %v2484
    %2499 = vrot.lane.b32.xlu0 %v2496, 96
    %v2500 = vpop.permute.xlu0 %2499
    %v2502 = vmul.f32 %v2497, %v2500
    %v2503 = vmul.f32 %v2484, %v2079
    %v2504 = vadd.f32 %v2502, %v2503
    %2506 = vrot.lane.b32.xlu0 %v2256, 96
    %v2507 = vpop.permute.xlu0 %2506
    %v2508 = vsel %vm167, %v2507, 0
    %2510 = vmatprep.subr.mxu0 0.0
    %2511 = vmatpush1.msra.mxu0 0.0
    %2512 = vmatprep.subr.mxu0 0.0
    %2513 = vmatpush1.msra.mxu0 0.0
    %2514 = vmatprep.subr.mxu0 0.0
    %2515 = vmatpush1.msra.mxu0 0.0
    %2516 = vmatprep.subr.mxu0 0.0
    %2517 = vmatpush1.msra.mxu0 0.0
    %2518 = vmatprep.subr.mxu0 0.0
    %2519 = vmatpush1.msra.mxu0 0.0
    %2520 = vmatprep.subr.mxu0 0.0
    %2521 = vmatpush1.msra.mxu0 0.0
    %2522 = vmatprep.subr.mxu0 0.0
    %2523 = vmatpush1.msra.mxu0 0.0
    %2524 = vmatprep.subr.mxu0 0.0
    %2525 = vmatpush1.msra.mxu0 0.0
    %2526 = vmatprep.subr.mxu0 0.0
    %2527 = vmatpush1.msra.mxu0 0.0
    %2528 = vmatprep.subr.mxu0 0.0
    %2529 = vmatpush1.msra.mxu0 0.0
    %2530 = vmatprep.subr.mxu0 0.0
    %2531 = vmatpush1.msra.mxu0 0.0
    %2532 = vmatprep.subr.mxu0 0.0
    %2533 = vmatpush1.msra.mxu0 0.0
    %2534 = vmatprep.subr.mxu0 0.0
    %2535 = vmatpush1.msra.mxu0 %v366
    %2536 = vmatprep.subr.mxu0 0.0
    %2537 = vmatpush1.msra.mxu0 %v365
    %2538 = vmatprep.subr.mxu0 0.0
    %2539 = vmatpush1.msra.mxu0 %v364
    %2540 = vmatprep.subr.mxu0 0.0
    %2541 = vmatpush1.msra.mxu0 %v363
    %2542 = vmatprep.subr.mxu0 0.0
    %2543 = vmatpush2.msra.mxu0 0.0
    %2544 = vmatprep.subr.mxu0 0.0
    %2545 = vmatpush2.msra.mxu0 0.0
    %2546 = vmatprep.subr.mxu0 0.0
    %2547 = vmatpush2.msra.mxu0 0.0
    %2548 = vmatprep.subr.mxu0 0.0
    %2549 = vmatpush2.msra.mxu0 0.0
    %2550 = vmatprep.subr.mxu0 0.0
    %2551 = vmatpush2.msra.mxu0 0.0
    %2552 = vmatprep.subr.mxu0 0.0
    %2553 = vmatpush2.msra.mxu0 0.0
    %2554 = vmatprep.subr.mxu0 0.0
    %2555 = vmatpush2.msra.mxu0 0.0
    %2556 = vmatprep.subr.mxu0 0.0
    %2557 = vmatpush2.msra.mxu0 0.0
    %2558 = vmatprep.subr.mxu0 0.0
    %2559 = vmatpush2.msra.mxu0 0.0
    %2560 = vmatprep.subr.mxu0 0.0
    %2561 = vmatpush2.msra.mxu0 0.0
    %2562 = vmatprep.subr.mxu0 0.0
    %2563 = vmatpush2.msra.mxu0 0.0
    %2564 = vmatprep.subr.mxu0 0.0
    %2565 = vmatpush2.msra.mxu0 0.0
    %2566 = vmatprep.subr.mxu0 0.0
    %2567 = vmatpush2.msra.mxu0 0.0
    %2568 = vmatprep.subr.mxu0 0.0
    %2569 = vmatpush2.msra.mxu0 0.0
    %2570 = vmatprep.subr.mxu0 0.0
    %2571 = vmatpush2.msra.mxu0 0.0
    %2572 = vmatprep.subr.mxu0 0.0
    %2573 = vmatpush2.msra.mxu0 0.0
    %2574 = vmatprep.mubr.f32.mxu0 0.0
    %2575 = vmatmul.mubr.f32.gmra.mxu0 %v2508
    %v2576 = vpop.f32.mrf.mxu0
    %v2577 = vadd.f32 0.0, %v2576
    %v2578 = vpop.f32.mrf.mxu0
    %2579 = vdwg.mxu0
    %2581 = vrot.lane.b32.xlu0 %v2504, 96
    %v2582 = vpop.permute.xlu0 %2581
    %v2583 = vsel %vm167, %v2582, 0
    %2585 = vmatprep.subr.mxu0 0.0
    %2586 = vmatpush1.msra.mxu0 0.0
    %2587 = vmatprep.subr.mxu0 0.0
    %2588 = vmatpush1.msra.mxu0 0.0
    %2589 = vmatprep.subr.mxu0 0.0
    %2590 = vmatpush1.msra.mxu0 0.0
    %2591 = vmatprep.subr.mxu0 0.0
    %2592 = vmatpush1.msra.mxu0 0.0
    %2593 = vmatprep.subr.mxu0 0.0
    %2594 = vmatpush1.msra.mxu0 0.0
    %2595 = vmatprep.subr.mxu0 0.0
    %2596 = vmatpush1.msra.mxu0 0.0
    %2597 = vmatprep.subr.mxu0 0.0
    %2598 = vmatpush1.msra.mxu0 0.0
    %2599 = vmatprep.subr.mxu0 0.0
    %2600 = vmatpush1.msra.mxu0 0.0
    %2601 = vmatprep.subr.mxu0 0.0
    %2602 = vmatpush1.msra.mxu0 0.0
    %2603 = vmatprep.subr.mxu0 0.0
    %2604 = vmatpush1.msra.mxu0 0.0
    %2605 = vmatprep.subr.mxu0 0.0
    %2606 = vmatpush1.msra.mxu0 0.0
    %2607 = vmatprep.subr.mxu0 0.0
    %2608 = vmatpush1.msra.mxu0 0.0
    %2609 = vmatprep.subr.mxu0 0.0
    %2610 = vmatpush1.msra.mxu0 %v361
    %2611 = vmatprep.subr.mxu0 0.0
    %2612 = vmatpush1.msra.mxu0 %v360
    %2613 = vmatprep.subr.mxu0 0.0
    %2614 = vmatpush1.msra.mxu0 %v359
    %2615 = vmatprep.subr.mxu0 0.0
    %2616 = vmatpush1.msra.mxu0 %v358
    %2617 = vmatprep.subr.mxu0 0.0
    %2618 = vmatpush2.msra.mxu0 0.0
    %2619 = vmatprep.subr.mxu0 0.0
    %2620 = vmatpush2.msra.mxu0 0.0
    %2621 = vmatprep.subr.mxu0 0.0
    %2622 = vmatpush2.msra.mxu0 0.0
    %2623 = vmatprep.subr.mxu0 0.0
    %2624 = vmatpush2.msra.mxu0 0.0
    %2625 = vmatprep.subr.mxu0 0.0
    %2626 = vmatpush2.msra.mxu0 0.0
    %2627 = vmatprep.subr.mxu0 0.0
    %2628 = vmatpush2.msra.mxu0 0.0
    %2629 = vmatprep.subr.mxu0 0.0
    %2630 = vmatpush2.msra.mxu0 0.0
    %2631 = vmatprep.subr.mxu0 0.0
    %2632 = vmatpush2.msra.mxu0 0.0
    %2633 = vmatprep.subr.mxu0 0.0
    %2634 = vmatpush2.msra.mxu0 0.0
    %2635 = vmatprep.subr.mxu0 0.0
    %2636 = vmatpush2.msra.mxu0 0.0
    %2637 = vmatprep.subr.mxu0 0.0
    %2638 = vmatpush2.msra.mxu0 0.0
    %2639 = vmatprep.subr.mxu0 0.0
    %2640 = vmatpush2.msra.mxu0 0.0
    %2641 = vmatprep.subr.mxu0 0.0
    %2642 = vmatpush2.msra.mxu0 0.0
    %2643 = vmatprep.subr.mxu0 0.0
    %2644 = vmatpush2.msra.mxu0 0.0
    %2645 = vmatprep.subr.mxu0 0.0
    %2646 = vmatpush2.msra.mxu0 0.0
    %2647 = vmatprep.subr.mxu0 0.0
    %2648 = vmatpush2.msra.mxu0 0.0
    %2649 = vmatprep.mubr.f32.mxu0 0.0
    %2650 = vmatmul.mubr.f32.gmra.mxu0 %v2583
    %v2651 = vpop.f32.mrf.mxu0
    %v2652 = vadd.f32 %v2577, %v2651
    %v2653 = vpop.f32.mrf.mxu0
    %2654 = vdwg.mxu0
    %v2655 = vadd.f32 %v2652, %v518
    %v2656 = vxor.u32 %v2655, 2147483648
    %v2657 = vmul.f32 %v2656, 1.442695
    %v2658 = vpow.pop %v2657
    %v2659 = vadd.f32 %v2658, 1.0
    %v2660 = vrcp.pop %v2659
    %v2661 = vmul.f32 1.0, %v2660
    %v2662 = vadd.f32 %v2655, %v535
    %2664 = vrot.lane.b32.xlu0 %v2662, 32
    %v2665 = vpop.permute.xlu0 %2664
    %v2667 = vmul.f32 %v2661, %v2665
    %2669 = vrot.lane.b32.xlu0 %v2667, 64
    %v2670 = vpop.permute.xlu0 %2669
    %v2672 = vadd.f32 %v2655, %v2670
    %v2673 = vtanh.pop %v2672
    %v2674 = vsub.f32 1.0, %v2661
    %2676 = vrot.lane.b32.xlu0 %v2673, 96
    %v2677 = vpop.permute.xlu0 %2676
    %v2679 = vmul.f32 %v2674, %v2677
    %v2680 = vmul.f32 %v2661, %v2256
    %v2681 = vadd.f32 %v2679, %v2680
    %s2682 = scalar_lea.vmem %s0, 48
    %v2683 = vld [vmem:[%s2682] sm:$0xff]
    %2684 = vset.pattern.permute.xlu0 0
    %2685 = vperm.xlu0 %2684, %v2683
    %v2686 = vpop.permute.xlu0 %2685
    %vm2687 = vcmp.eq.s32.totalorder %v2686, %v65
    %v2688 = vsel %vm2687, 1, 0
    %v2689 = vcvt.s32.f32 %v2688
    %2690 = vmatprep.subr.mxu0 0.0
    %2691 = vmatpush1.msra.mxu0 %v88
    %2692 = vmatprep.subr.mxu0 0.0
    %2693 = vmatpush1.msra.mxu0 %v87
    %2694 = vmatprep.subr.mxu0 0.0
    %2695 = vmatpush1.msra.mxu0 %v86
    %2696 = vmatprep.subr.mxu0 0.0
    %2697 = vmatpush1.msra.mxu0 %v85
    %2698 = vmatprep.subr.mxu0 0.0
    %2699 = vmatpush1.msra.mxu0 %v84
    %2700 = vmatprep.subr.mxu0 0.0
    %2701 = vmatpush1.msra.mxu0 %v83
    %2702 = vmatprep.subr.mxu0 0.0
    %2703 = vmatpush1.msra.mxu0 %v82
    %2704 = vmatprep.subr.mxu0 0.0
    %2705 = vmatpush1.msra.mxu0 %v81
    %2706 = vmatprep.subr.mxu0 0.0
    %2707 = vmatpush1.msra.mxu0 %v80
    %2708 = vmatprep.subr.mxu0 0.0
    %2709 = vmatpush1.msra.mxu0 %v79
    %2710 = vmatprep.subr.mxu0 0.0
    %2711 = vmatpush1.msra.mxu0 %v78
    %2712 = vmatprep.subr.mxu0 0.0
    %2713 = vmatpush1.msra.mxu0 %v77
    %2714 = vmatprep.subr.mxu0 0.0
    %2715 = vmatpush1.msra.mxu0 %v76
    %2716 = vmatprep.subr.mxu0 0.0
    %2717 = vmatpush1.msra.mxu0 %v75
    %2718 = vmatprep.subr.mxu0 0.0
    %2719 = vmatpush1.msra.mxu0 %v74
    %2720 = vmatprep.subr.mxu0 0.0
    %2721 = vmatpush1.msra.mxu0 %v73
    %2722 = vmatprep.subr.mxu0 0.0
    %2723 = vmatpush2.msra.mxu0 0.0
    %2724 = vmatprep.subr.mxu0 0.0
    %2725 = vmatpush2.msra.mxu0 0.0
    %2726 = vmatprep.subr.mxu0 0.0
    %2727 = vmatpush2.msra.mxu0 0.0
    %2728 = vmatprep.subr.mxu0 0.0
    %2729 = vmatpush2.msra.mxu0 0.0
    %2730 = vmatprep.subr.mxu0 0.0
    %2731 = vmatpush2.msra.mxu0 0.0
    %2732 = vmatprep.subr.mxu0 0.0
    %2733 = vmatpush2.msra.mxu0 0.0
    %2734 = vmatprep.subr.mxu0 0.0
    %2735 = vmatpush2.msra.mxu0 0.0
    %2736 = vmatprep.subr.mxu0 0.0
    %2737 = vmatpush2.msra.mxu0 0.0
    %2738 = vmatprep.subr.mxu0 0.0
    %2739 = vmatpush2.msra.mxu0 0.0
    %2740 = vmatprep.subr.mxu0 0.0
    %2741 = vmatpush2.msra.mxu0 0.0
    %2742 = vmatprep.subr.mxu0 0.0
    %2743 = vmatpush2.msra.mxu0 0.0
    %2744 = vmatprep.subr.mxu0 0.0
    %2745 = vmatpush2.msra.mxu0 0.0
    %2746 = vmatprep.subr.mxu0 0.0
    %2747 = vmatpush2.msra.mxu0 0.0
    %2748 = vmatprep.subr.mxu0 0.0
    %2749 = vmatpush2.msra.mxu0 0.0
    %2750 = vmatprep.subr.mxu0 0.0
    %2751 = vmatpush2.msra.mxu0 0.0
    %2752 = vmatprep.subr.mxu0 0.0
    %2753 = vmatpush2.msra.mxu0 0.0
    %2754 = vmatprep.mubr.f32.mxu0 0.0
    %2755 = vmatmul.mubr.f32.gmra.mxu0 %v2689
    %v2756 = vpop.f32.mrf.mxu0
    %v2757 = vadd.f32 0.0, %v2756
    %v2758 = vpop.f32.mrf.mxu0
    %2759 = vdwg.mxu0
    %2760 = vmatprep.subr.mxu0 0.0
    %2761 = vmatpush1.msra.mxu0 0.0
    %2762 = vmatprep.subr.mxu0 0.0
    %2763 = vmatpush1.msra.mxu0 0.0
    %2764 = vmatprep.subr.mxu0 0.0
    %2765 = vmatpush1.msra.mxu0 0.0
    %2766 = vmatprep.subr.mxu0 0.0
    %2767 = vmatpush1.msra.mxu0 0.0
    %2768 = vmatprep.subr.mxu0 0.0
    %2769 = vmatpush1.msra.mxu0 0.0
    %2770 = vmatprep.subr.mxu0 0.0
    %2771 = vmatpush1.msra.mxu0 0.0
    %2772 = vmatprep.subr.mxu0 0.0
    %2773 = vmatpush1.msra.mxu0 0.0
    %2774 = vmatprep.subr.mxu0 0.0
    %2775 = vmatpush1.msra.mxu0 0.0
    %2776 = vmatprep.subr.mxu0 0.0
    %2777 = vmatpush1.msra.mxu0 0.0
    %2778 = vmatprep.subr.mxu0 0.0
    %2779 = vmatpush1.msra.mxu0 0.0
    %2780 = vmatprep.subr.mxu0 0.0
    %2781 = vmatpush1.msra.mxu0 0.0
    %2782 = vmatprep.subr.mxu0 0.0
    %2783 = vmatpush1.msra.mxu0 0.0
    %2784 = vmatprep.subr.mxu0 0.0
    %2785 = vmatpush1.msra.mxu0 %v166
    %2786 = vmatprep.subr.mxu0 0.0
    %2787 = vmatpush1.msra.mxu0 %v165
    %2788 = vmatprep.subr.mxu0 0.0
    %2789 = vmatpush1.msra.mxu0 %v164
    %2790 = vmatprep.subr.mxu0 0.0
    %2791 = vmatpush1.msra.mxu0 %v163
    %2792 = vmatprep.subr.mxu0 0.0
    %2793 = vmatpush2.msra.mxu0 0.0
    %2794 = vmatprep.subr.mxu0 0.0
    %2795 = vmatpush2.msra.mxu0 0.0
    %2796 = vmatprep.subr.mxu0 0.0
    %2797 = vmatpush2.msra.mxu0 0.0
    %2798 = vmatprep.subr.mxu0 0.0
    %2799 = vmatpush2.msra.mxu0 0.0
    %2800 = vmatprep.subr.mxu0 0.0
    %2801 = vmatpush2.msra.mxu0 0.0
    %2802 = vmatprep.subr.mxu0 0.0
    %2803 = vmatpush2.msra.mxu0 0.0
    %2804 = vmatprep.subr.mxu0 0.0
    %2805 = vmatpush2.msra.mxu0 0.0
    %2806 = vmatprep.subr.mxu0 0.0
    %2807 = vmatpush2.msra.mxu0 0.0
    %2808 = vmatprep.subr.mxu0 0.0
    %2809 = vmatpush2.msra.mxu0 0.0
    %2810 = vmatprep.subr.mxu0 0.0
    %2811 = vmatpush2.msra.mxu0 0.0
    %2812 = vmatprep.subr.mxu0 0.0
    %2813 = vmatpush2.msra.mxu0 0.0
    %2814 = vmatprep.subr.mxu0 0.0
    %2815 = vmatpush2.msra.mxu0 0.0
    %2816 = vmatprep.subr.mxu0 0.0
    %2817 = vmatpush2.msra.mxu0 0.0
    %2818 = vmatprep.subr.mxu0 0.0
    %2819 = vmatpush2.msra.mxu0 0.0
    %2820 = vmatprep.subr.mxu0 0.0
    %2821 = vmatpush2.msra.mxu0 0.0
    %2822 = vmatprep.subr.mxu0 0.0
    %2823 = vmatpush2.msra.mxu0 0.0
    %2824 = vmatprep.mubr.f32.mxu0 0.0
    %2825 = vmatmul.mubr.f32.gmra.mxu0 %v2583
    %v2826 = vpop.f32.mrf.mxu0
    %v2827 = vadd.f32 0.0, %v2826
    %v2828 = vpop.f32.mrf.mxu0
    %2829 = vdwg.mxu0
    %v2831 = vsel %vm167, %v2757, 0
    %2833 = vmatprep.subr.mxu0 0.0
    %2834 = vmatpush1.msra.mxu0 0.0
    %2835 = vmatprep.subr.mxu0 0.0
    %2836 = vmatpush1.msra.mxu0 0.0
    %2837 = vmatprep.subr.mxu0 0.0
    %2838 = vmatpush1.msra.mxu0 0.0
    %2839 = vmatprep.subr.mxu0 0.0
    %2840 = vmatpush1.msra.mxu0 0.0
    %2841 = vmatprep.subr.mxu0 0.0
    %2842 = vmatpush1.msra.mxu0 0.0
    %2843 = vmatprep.subr.mxu0 0.0
    %2844 = vmatpush1.msra.mxu0 0.0
    %2845 = vmatprep.subr.mxu0 0.0
    %2846 = vmatpush1.msra.mxu0 0.0
    %2847 = vmatprep.subr.mxu0 0.0
    %2848 = vmatpush1.msra.mxu0 0.0
    %2849 = vmatprep.subr.mxu0 0.0
    %2850 = vmatpush1.msra.mxu0 0.0
    %2851 = vmatprep.subr.mxu0 0.0
    %2852 = vmatpush1.msra.mxu0 0.0
    %2853 = vmatprep.subr.mxu0 0.0
    %2854 = vmatpush1.msra.mxu0 0.0
    %2855 = vmatprep.subr.mxu0 0.0
    %2856 = vmatpush1.msra.mxu0 0.0
    %2857 = vmatprep.subr.mxu0 0.0
    %2858 = vmatpush1.msra.mxu0 %v162
    %2859 = vmatprep.subr.mxu0 0.0
    %2860 = vmatpush1.msra.mxu0 %v161
    %2861 = vmatprep.subr.mxu0 0.0
    %2862 = vmatpush1.msra.mxu0 %v160
    %2863 = vmatprep.subr.mxu0 0.0
    %2864 = vmatpush1.msra.mxu0 %v159
    %2865 = vmatprep.subr.mxu0 0.0
    %2866 = vmatpush2.msra.mxu0 0.0
    %2867 = vmatprep.subr.mxu0 0.0
    %2868 = vmatpush2.msra.mxu0 0.0
    %2869 = vmatprep.subr.mxu0 0.0
    %2870 = vmatpush2.msra.mxu0 0.0
    %2871 = vmatprep.subr.mxu0 0.0
    %2872 = vmatpush2.msra.mxu0 0.0
    %2873 = vmatprep.subr.mxu0 0.0
    %2874 = vmatpush2.msra.mxu0 0.0
    %2875 = vmatprep.subr.mxu0 0.0
    %2876 = vmatpush2.msra.mxu0 0.0
    %2877 = vmatprep.subr.mxu0 0.0
    %2878 = vmatpush2.msra.mxu0 0.0
    %2879 = vmatprep.subr.mxu0 0.0
    %2880 = vmatpush2.msra.mxu0 0.0
    %2881 = vmatprep.subr.mxu0 0.0
    %2882 = vmatpush2.msra.mxu0 0.0
    %2883 = vmatprep.subr.mxu0 0.0
    %2884 = vmatpush2.msra.mxu0 0.0
    %2885 = vmatprep.subr.mxu0 0.0
    %2886 = vmatpush2.msra.mxu0 0.0
    %2887 = vmatprep.subr.mxu0 0.0
    %2888 = vmatpush2.msra.mxu0 0.0
    %2889 = vmatprep.subr.mxu0 0.0
    %2890 = vmatpush2.msra.mxu0 0.0
    %2891 = vmatprep.subr.mxu0 0.0
    %2892 = vmatpush2.msra.mxu0 0.0
    %2893 = vmatprep.subr.mxu0 0.0
    %2894 = vmatpush2.msra.mxu0 0.0
    %2895 = vmatprep.subr.mxu0 0.0
    %2896 = vmatpush2.msra.mxu0 0.0
    %2897 = vmatprep.mubr.f32.mxu0 0.0
    %2898 = vmatmul.mubr.f32.gmra.mxu0 %v2831
    %v2899 = vpop.f32.mrf.mxu0
    %v2900 = vadd.f32 %v2827, %v2899
    %v2901 = vpop.f32.mrf.mxu0
    %2902 = vdwg.mxu0
    %v2903 = vadd.f32 %v2900, %v319
    %v2904 = vxor.u32 %v2903, 2147483648
    %v2905 = vmul.f32 %v2904, 1.442695
    %v2906 = vpow.pop %v2905
    %v2907 = vadd.f32 %v2906, 1.0
    %v2908 = vrcp.pop %v2907
    %v2909 = vmul.f32 1.0, %v2908
    %v2910 = vadd.f32 %v2903, %v335
    %2912 = vrot.lane.b32.xlu0 %v2910, 32
    %v2913 = vpop.permute.xlu0 %2912
    %v2915 = vmul.f32 %v2909, %v2913
    %2917 = vrot.lane.b32.xlu0 %v2915, 64
    %v2918 = vpop.permute.xlu0 %2917
    %v2920 = vadd.f32 %v2903, %v2918
    %v2921 = vtanh.pop %v2920
    %v2922 = vsub.f32 1.0, %v2909
    %2924 = vrot.lane.b32.xlu0 %v2921, 96
    %v2925 = vpop.permute.xlu0 %2924
    %v2927 = vmul.f32 %v2922, %v2925
    %v2928 = vmul.f32 %v2909, %v2504
    %v2929 = vadd.f32 %v2927, %v2928
    %2931 = vrot.lane.b32.xlu0 %v2681, 96
    %v2932 = vpop.permute.xlu0 %2931
    %v2933 = vsel %vm167, %v2932, 0
    %2935 = vmatprep.subr.mxu0 0.0
    %2936 = vmatpush1.msra.mxu0 0.0
    %2937 = vmatprep.subr.mxu0 0.0
    %2938 = vmatpush1.msra.mxu0 0.0
    %2939 = vmatprep.subr.mxu0 0.0
    %2940 = vmatpush1.msra.mxu0 0.0
    %2941 = vmatprep.subr.mxu0 0.0
    %2942 = vmatpush1.msra.mxu0 0.0
    %2943 = vmatprep.subr.mxu0 0.0
    %2944 = vmatpush1.msra.mxu0 0.0
    %2945 = vmatprep.subr.mxu0 0.0
    %2946 = vmatpush1.msra.mxu0 0.0
    %2947 = vmatprep.subr.mxu0 0.0
    %2948 = vmatpush1.msra.mxu0 0.0
    %2949 = vmatprep.subr.mxu0 0.0
    %2950 = vmatpush1.msra.mxu0 0.0
    %2951 = vmatprep.subr.mxu0 0.0
    %2952 = vmatpush1.msra.mxu0 0.0
    %2953 = vmatprep.subr.mxu0 0.0
    %2954 = vmatpush1.msra.mxu0 0.0
    %2955 = vmatprep.subr.mxu0 0.0
    %2956 = vmatpush1.msra.mxu0 0.0
    %2957 = vmatprep.subr.mxu0 0.0
    %2958 = vmatpush1.msra.mxu0 0.0
    %2959 = vmatprep.subr.mxu0 0.0
    %2960 = vmatpush1.msra.mxu0 %v366
    %2961 = vmatprep.subr.mxu0 0.0
    %2962 = vmatpush1.msra.mxu0 %v365
    %2963 = vmatprep.subr.mxu0 0.0
    %2964 = vmatpush1.msra.mxu0 %v364
    %2965 = vmatprep.subr.mxu0 0.0
    %2966 = vmatpush1.msra.mxu0 %v363
    %2967 = vmatprep.subr.mxu0 0.0
    %2968 = vmatpush2.msra.mxu0 0.0
    %2969 = vmatprep.subr.mxu0 0.0
    %2970 = vmatpush2.msra.mxu0 0.0
    %2971 = vmatprep.subr.mxu0 0.0
    %2972 = vmatpush2.msra.mxu0 0.0
    %2973 = vmatprep.subr.mxu0 0.0
    %2974 = vmatpush2.msra.mxu0 0.0
    %2975 = vmatprep.subr.mxu0 0.0
    %2976 = vmatpush2.msra.mxu0 0.0
    %2977 = vmatprep.subr.mxu0 0.0
    %2978 = vmatpush2.msra.mxu0 0.0
    %2979 = vmatprep.subr.mxu0 0.0
    %2980 = vmatpush2.msra.mxu0 0.0
    %2981 = vmatprep.subr.mxu0 0.0
    %2982 = vmatpush2.msra.mxu0 0.0
    %2983 = vmatprep.subr.mxu0 0.0
    %2984 = vmatpush2.msra.mxu0 0.0
    %2985 = vmatprep.subr.mxu0 0.0
    %2986 = vmatpush2.msra.mxu0 0.0
    %2987 = vmatprep.subr.mxu0 0.0
    %2988 = vmatpush2.msra.mxu0 0.0
    %2989 = vmatprep.subr.mxu0 0.0
    %2990 = vmatpush2.msra.mxu0 0.0
    %2991 = vmatprep.subr.mxu0 0.0
    %2992 = vmatpush2.msra.mxu0 0.0
    %2993 = vmatprep.subr.mxu0 0.0
    %2994 = vmatpush2.msra.mxu0 0.0
    %2995 = vmatprep.subr.mxu0 0.0
    %2996 = vmatpush2.msra.mxu0 0.0
    %2997 = vmatprep.subr.mxu0 0.0
    %2998 = vmatpush2.msra.mxu0 0.0
    %2999 = vmatprep.mubr.f32.mxu0 0.0
    %3000 = vmatmul.mubr.f32.gmra.mxu0 %v2933
    %v3001 = vpop.f32.mrf.mxu0
    %v3002 = vadd.f32 0.0, %v3001
    %v3003 = vpop.f32.mrf.mxu0
    %3004 = vdwg.mxu0
    %3006 = vrot.lane.b32.xlu0 %v2929, 96
    %v3007 = vpop.permute.xlu0 %3006
    %v3008 = vsel %vm167, %v3007, 0
    %3010 = vmatprep.subr.mxu0 0.0
    %3011 = vmatpush1.msra.mxu0 0.0
    %3012 = vmatprep.subr.mxu0 0.0
    %3013 = vmatpush1.msra.mxu0 0.0
    %3014 = vmatprep.subr.mxu0 0.0
    %3015 = vmatpush1.msra.mxu0 0.0
    %3016 = vmatprep.subr.mxu0 0.0
    %3017 = vmatpush1.msra.mxu0 0.0
    %3018 = vmatprep.subr.mxu0 0.0
    %3019 = vmatpush1.msra.mxu0 0.0
    %3020 = vmatprep.subr.mxu0 0.0
    %3021 = vmatpush1.msra.mxu0 0.0
    %3022 = vmatprep.subr.mxu0 0.0
    %3023 = vmatpush1.msra.mxu0 0.0
    %3024 = vmatprep.subr.mxu0 0.0
    %3025 = vmatpush1.msra.mxu0 0.0
    %3026 = vmatprep.subr.mxu0 0.0
    %3027 = vmatpush1.msra.mxu0 0.0
    %3028 = vmatprep.subr.mxu0 0.0
    %3029 = vmatpush1.msra.mxu0 0.0
    %3030 = vmatprep.subr.mxu0 0.0
    %3031 = vmatpush1.msra.mxu0 0.0
    %3032 = vmatprep.subr.mxu0 0.0
    %3033 = vmatpush1.msra.mxu0 0.0
    %3034 = vmatprep.subr.mxu0 0.0
    %3035 = vmatpush1.msra.mxu0 %v361
    %3036 = vmatprep.subr.mxu0 0.0
    %3037 = vmatpush1.msra.mxu0 %v360
    %3038 = vmatprep.subr.mxu0 0.0
    %3039 = vmatpush1.msra.mxu0 %v359
    %3040 = vmatprep.subr.mxu0 0.0
    %3041 = vmatpush1.msra.mxu0 %v358
    %3042 = vmatprep.subr.mxu0 0.0
    %3043 = vmatpush2.msra.mxu0 0.0
    %3044 = vmatprep.subr.mxu0 0.0
    %3045 = vmatpush2.msra.mxu0 0.0
    %3046 = vmatprep.subr.mxu0 0.0
    %3047 = vmatpush2.msra.mxu0 0.0
    %3048 = vmatprep.subr.mxu0 0.0
    %3049 = vmatpush2.msra.mxu0 0.0
    %3050 = vmatprep.subr.mxu0 0.0
    %3051 = vmatpush2.msra.mxu0 0.0
    %3052 = vmatprep.subr.mxu0 0.0
    %3053 = vmatpush2.msra.mxu0 0.0
    %3054 = vmatprep.subr.mxu0 0.0
    %3055 = vmatpush2.msra.mxu0 0.0
    %3056 = vmatprep.subr.mxu0 0.0
    %3057 = vmatpush2.msra.mxu0 0.0
    %3058 = vmatprep.subr.mxu0 0.0
    %3059 = vmatpush2.msra.mxu0 0.0
    %3060 = vmatprep.subr.mxu0 0.0
    %3061 = vmatpush2.msra.mxu0 0.0
    %3062 = vmatprep.subr.mxu0 0.0
    %3063 = vmatpush2.msra.mxu0 0.0
    %3064 = vmatprep.subr.mxu0 0.0
    %3065 = vmatpush2.msra.mxu0 0.0
    %3066 = vmatprep.subr.mxu0 0.0
    %3067 = vmatpush2.msra.mxu0 0.0
    %3068 = vmatprep.subr.mxu0 0.0
    %3069 = vmatpush2.msra.mxu0 0.0
    %3070 = vmatprep.subr.mxu0 0.0
    %3071 = vmatpush2.msra.mxu0 0.0
    %3072 = vmatprep.subr.mxu0 0.0
    %3073 = vmatpush2.msra.mxu0 0.0
    %3074 = vmatprep.mubr.f32.mxu0 0.0
    %3075 = vmatmul.mubr.f32.gmra.mxu0 %v3008
    %v3076 = vpop.f32.mrf.mxu0
    %v3077 = vadd.f32 %v3002, %v3076
    %v3078 = vpop.f32.mrf.mxu0
    %3079 = vdwg.mxu0
    %v3080 = vadd.f32 %v3077, %v518
    %v3081 = vxor.u32 %v3080, 2147483648
    %v3082 = vmul.f32 %v3081, 1.442695
    %v3083 = vpow.pop %v3082
    %v3084 = vadd.f32 %v3083, 1.0
    %v3085 = vrcp.pop %v3084
    %v3086 = vmul.f32 1.0, %v3085
    %v3087 = vadd.f32 %v3080, %v535
    %3089 = vrot.lane.b32.xlu0 %v3087, 32
    %v3090 = vpop.permute.xlu0 %3089
    %v3092 = vmul.f32 %v3086, %v3090
    %3094 = vrot.lane.b32.xlu0 %v3092, 64
    %v3095 = vpop.permute.xlu0 %3094
    %v3097 = vadd.f32 %v3080, %v3095
    %v3098 = vtanh.pop %v3097
    %v3099 = vsub.f32 1.0, %v3086
    %3101 = vrot.lane.b32.xlu0 %v3098, 96
    %v3102 = vpop.permute.xlu0 %3101
    %v3104 = vmul.f32 %v3099, %v3102
    %v3105 = vmul.f32 %v3086, %v2681
    %v3106 = vadd.f32 %v3104, %v3105
    %s3107 = scalar_lea.vmem %s0, 56
    %v3108 = vld [vmem:[%s3107] sm:$0xff]
    %3109 = vset.pattern.permute.xlu0 0
    %3110 = vperm.xlu0 %3109, %v3108
    %v3111 = vpop.permute.xlu0 %3110
    %vm3112 = vcmp.eq.s32.totalorder %v3111, %v65
    %v3113 = vsel %vm3112, 1, 0
    %v3114 = vcvt.s32.f32 %v3113
    %3115 = vmatprep.subr.mxu0 0.0
    %3116 = vmatpush1.msra.mxu0 %v88
    %3117 = vmatprep.subr.mxu0 0.0
    %3118 = vmatpush1.msra.mxu0 %v87
    %3119 = vmatprep.subr.mxu0 0.0
    %3120 = vmatpush1.msra.mxu0 %v86
    %3121 = vmatprep.subr.mxu0 0.0
    %3122 = vmatpush1.msra.mxu0 %v85
    %3123 = vmatprep.subr.mxu0 0.0
    %3124 = vmatpush1.msra.mxu0 %v84
    %3125 = vmatprep.subr.mxu0 0.0
    %3126 = vmatpush1.msra.mxu0 %v83
    %3127 = vmatprep.subr.mxu0 0.0
    %3128 = vmatpush1.msra.mxu0 %v82
    %3129 = vmatprep.subr.mxu0 0.0
    %3130 = vmatpush1.msra.mxu0 %v81
    %3131 = vmatprep.subr.mxu0 0.0
    %3132 = vmatpush1.msra.mxu0 %v80
    %3133 = vmatprep.subr.mxu0 0.0
    %3134 = vmatpush1.msra.mxu0 %v79
    %3135 = vmatprep.subr.mxu0 0.0
    %3136 = vmatpush1.msra.mxu0 %v78
    %3137 = vmatprep.subr.mxu0 0.0
    %3138 = vmatpush1.msra.mxu0 %v77
    %3139 = vmatprep.subr.mxu0 0.0
    %3140 = vmatpush1.msra.mxu0 %v76
    %3141 = vmatprep.subr.mxu0 0.0
    %3142 = vmatpush1.msra.mxu0 %v75
    %3143 = vmatprep.subr.mxu0 0.0
    %3144 = vmatpush1.msra.mxu0 %v74
    %3145 = vmatprep.subr.mxu0 0.0
    %3146 = vmatpush1.msra.mxu0 %v73
    %3147 = vmatprep.subr.mxu0 0.0
    %3148 = vmatpush2.msra.mxu0 0.0
    %3149 = vmatprep.subr.mxu0 0.0
    %3150 = vmatpush2.msra.mxu0 0.0
    %3151 = vmatprep.subr.mxu0 0.0
    %3152 = vmatpush2.msra.mxu0 0.0
    %3153 = vmatprep.subr.mxu0 0.0
    %3154 = vmatpush2.msra.mxu0 0.0
    %3155 = vmatprep.subr.mxu0 0.0
    %3156 = vmatpush2.msra.mxu0 0.0
    %3157 = vmatprep.subr.mxu0 0.0
    %3158 = vmatpush2.msra.mxu0 0.0
    %3159 = vmatprep.subr.mxu0 0.0
    %3160 = vmatpush2.msra.mxu0 0.0
    %3161 = vmatprep.subr.mxu0 0.0
    %3162 = vmatpush2.msra.mxu0 0.0
    %3163 = vmatprep.subr.mxu0 0.0
    %3164 = vmatpush2.msra.mxu0 0.0
    %3165 = vmatprep.subr.mxu0 0.0
    %3166 = vmatpush2.msra.mxu0 0.0
    %3167 = vmatprep.subr.mxu0 0.0
    %3168 = vmatpush2.msra.mxu0 0.0
    %3169 = vmatprep.subr.mxu0 0.0
    %3170 = vmatpush2.msra.mxu0 0.0
    %3171 = vmatprep.subr.mxu0 0.0
    %3172 = vmatpush2.msra.mxu0 0.0
    %3173 = vmatprep.subr.mxu0 0.0
    %3174 = vmatpush2.msra.mxu0 0.0
    %3175 = vmatprep.subr.mxu0 0.0
    %3176 = vmatpush2.msra.mxu0 0.0
    %3177 = vmatprep.subr.mxu0 0.0
    %3178 = vmatpush2.msra.mxu0 0.0
    %3179 = vmatprep.mubr.f32.mxu0 0.0
    %3180 = vmatmul.mubr.f32.gmra.mxu0 %v3114
    %v3181 = vpop.f32.mrf.mxu0
    %v3182 = vadd.f32 0.0, %v3181
    %v3183 = vpop.f32.mrf.mxu0
    %3184 = vdwg.mxu0
    %3185 = vmatprep.subr.mxu0 0.0
    %3186 = vmatpush1.msra.mxu0 0.0
    %3187 = vmatprep.subr.mxu0 0.0
    %3188 = vmatpush1.msra.mxu0 0.0
    %3189 = vmatprep.subr.mxu0 0.0
    %3190 = vmatpush1.msra.mxu0 0.0
    %3191 = vmatprep.subr.mxu0 0.0
    %3192 = vmatpush1.msra.mxu0 0.0
    %3193 = vmatprep.subr.mxu0 0.0
    %3194 = vmatpush1.msra.mxu0 0.0
    %3195 = vmatprep.subr.mxu0 0.0
    %3196 = vmatpush1.msra.mxu0 0.0
    %3197 = vmatprep.subr.mxu0 0.0
    %3198 = vmatpush1.msra.mxu0 0.0
    %3199 = vmatprep.subr.mxu0 0.0
    %3200 = vmatpush1.msra.mxu0 0.0
    %3201 = vmatprep.subr.mxu0 0.0
    %3202 = vmatpush1.msra.mxu0 0.0
    %3203 = vmatprep.subr.mxu0 0.0
    %3204 = vmatpush1.msra.mxu0 0.0
    %3205 = vmatprep.subr.mxu0 0.0
    %3206 = vmatpush1.msra.mxu0 0.0
    %3207 = vmatprep.subr.mxu0 0.0
    %3208 = vmatpush1.msra.mxu0 0.0
    %3209 = vmatprep.subr.mxu0 0.0
    %3210 = vmatpush1.msra.mxu0 %v166
    %3211 = vmatprep.subr.mxu0 0.0
    %3212 = vmatpush1.msra.mxu0 %v165
    %3213 = vmatprep.subr.mxu0 0.0
    %3214 = vmatpush1.msra.mxu0 %v164
    %3215 = vmatprep.subr.mxu0 0.0
    %3216 = vmatpush1.msra.mxu0 %v163
    %3217 = vmatprep.subr.mxu0 0.0
    %3218 = vmatpush2.msra.mxu0 0.0
    %3219 = vmatprep.subr.mxu0 0.0
    %3220 = vmatpush2.msra.mxu0 0.0
    %3221 = vmatprep.subr.mxu0 0.0
    %3222 = vmatpush2.msra.mxu0 0.0
    %3223 = vmatprep.subr.mxu0 0.0
    %3224 = vmatpush2.msra.mxu0 0.0
    %3225 = vmatprep.subr.mxu0 0.0
    %3226 = vmatpush2.msra.mxu0 0.0
    %3227 = vmatprep.subr.mxu0 0.0
    %3228 = vmatpush2.msra.mxu0 0.0
    %3229 = vmatprep.subr.mxu0 0.0
    %3230 = vmatpush2.msra.mxu0 0.0
    %3231 = vmatprep.subr.mxu0 0.0
    %3232 = vmatpush2.msra.mxu0 0.0
    %3233 = vmatprep.subr.mxu0 0.0
    %3234 = vmatpush2.msra.mxu0 0.0
    %3235 = vmatprep.subr.mxu0 0.0
    %3236 = vmatpush2.msra.mxu0 0.0
    %3237 = vmatprep.subr.mxu0 0.0
    %3238 = vmatpush2.msra.mxu0 0.0
    %3239 = vmatprep.subr.mxu0 0.0
    %3240 = vmatpush2.msra.mxu0 0.0
    %3241 = vmatprep.subr.mxu0 0.0
    %3242 = vmatpush2.msra.mxu0 0.0
    %3243 = vmatprep.subr.mxu0 0.0
    %3244 = vmatpush2.msra.mxu0 0.0
    %3245 = vmatprep.subr.mxu0 0.0
    %3246 = vmatpush2.msra.mxu0 0.0
    %3247 = vmatprep.subr.mxu0 0.0
    %3248 = vmatpush2.msra.mxu0 0.0
    %3249 = vmatprep.mubr.f32.mxu0 0.0
    %3250 = vmatmul.mubr.f32.gmra.mxu0 %v3008
    %v3251 = vpop.f32.mrf.mxu0
    %v3252 = vadd.f32 0.0, %v3251
    %v3253 = vpop.f32.mrf.mxu0
    %3254 = vdwg.mxu0
    %v3256 = vsel %vm167, %v3182, 0
    %3258 = vmatprep.subr.mxu0 0.0
    %3259 = vmatpush1.msra.mxu0 0.0
    %3260 = vmatprep.subr.mxu0 0.0
    %3261 = vmatpush1.msra.mxu0 0.0
    %3262 = vmatprep.subr.mxu0 0.0
    %3263 = vmatpush1.msra.mxu0 0.0
    %3264 = vmatprep.subr.mxu0 0.0
    %3265 = vmatpush1.msra.mxu0 0.0
    %3266 = vmatprep.subr.mxu0 0.0
    %3267 = vmatpush1.msra.mxu0 0.0
    %3268 = vmatprep.subr.mxu0 0.0
    %3269 = vmatpush1.msra.mxu0 0.0
    %3270 = vmatprep.subr.mxu0 0.0
    %3271 = vmatpush1.msra.mxu0 0.0
    %3272 = vmatprep.subr.mxu0 0.0
    %3273 = vmatpush1.msra.mxu0 0.0
    %3274 = vmatprep.subr.mxu0 0.0
    %3275 = vmatpush1.msra.mxu0 0.0
    %3276 = vmatprep.subr.mxu0 0.0
    %3277 = vmatpush1.msra.mxu0 0.0
    %3278 = vmatprep.subr.mxu0 0.0
    %3279 = vmatpush1.msra.mxu0 0.0
    %3280 = vmatprep.subr.mxu0 0.0
    %3281 = vmatpush1.msra.mxu0 0.0
    %3282 = vmatprep.subr.mxu0 0.0
    %3283 = vmatpush1.msra.mxu0 %v162
    %3284 = vmatprep.subr.mxu0 0.0
    %3285 = vmatpush1.msra.mxu0 %v161
    %3286 = vmatprep.subr.mxu0 0.0
    %3287 = vmatpush1.msra.mxu0 %v160
    %3288 = vmatprep.subr.mxu0 0.0
    %3289 = vmatpush1.msra.mxu0 %v159
    %3290 = vmatprep.subr.mxu0 0.0
    %3291 = vmatpush2.msra.mxu0 0.0
    %3292 = vmatprep.subr.mxu0 0.0
    %3293 = vmatpush2.msra.mxu0 0.0
    %3294 = vmatprep.subr.mxu0 0.0
    %3295 = vmatpush2.msra.mxu0 0.0
    %3296 = vmatprep.subr.mxu0 0.0
    %3297 = vmatpush2.msra.mxu0 0.0
    %3298 = vmatprep.subr.mxu0 0.0
    %3299 = vmatpush2.msra.mxu0 0.0
    %3300 = vmatprep.subr.mxu0 0.0
    %3301 = vmatpush2.msra.mxu0 0.0
    %3302 = vmatprep.subr.mxu0 0.0
    %3303 = vmatpush2.msra.mxu0 0.0
    %3304 = vmatprep.subr.mxu0 0.0
    %3305 = vmatpush2.msra.mxu0 0.0
    %3306 = vmatprep.subr.mxu0 0.0
    %3307 = vmatpush2.msra.mxu0 0.0
    %3308 = vmatprep.subr.mxu0 0.0
    %3309 = vmatpush2.msra.mxu0 0.0
    %3310 = vmatprep.subr.mxu0 0.0
    %3311 = vmatpush2.msra.mxu0 0.0
    %3312 = vmatprep.subr.mxu0 0.0
    %3313 = vmatpush2.msra.mxu0 0.0
    %3314 = vmatprep.subr.mxu0 0.0
    %3315 = vmatpush2.msra.mxu0 0.0
    %3316 = vmatprep.subr.mxu0 0.0
    %3317 = vmatpush2.msra.mxu0 0.0
    %3318 = vmatprep.subr.mxu0 0.0
    %3319 = vmatpush2.msra.mxu0 0.0
    %3320 = vmatprep.subr.mxu0 0.0
    %3321 = vmatpush2.msra.mxu0 0.0
    %3322 = vmatprep.mubr.f32.mxu0 0.0
    %3323 = vmatmul.mubr.f32.gmra.mxu0 %v3256
    %v3324 = vpop.f32.mrf.mxu0
    %v3325 = vadd.f32 %v3252, %v3324
    %v3326 = vpop.f32.mrf.mxu0
    %3327 = vdwg.mxu0
    %v3328 = vadd.f32 %v3325, %v319
    %v3329 = vxor.u32 %v3328, 2147483648
    %v3330 = vmul.f32 %v3329, 1.442695
    %v3331 = vpow.pop %v3330
    %v3332 = vadd.f32 %v3331, 1.0
    %v3333 = vrcp.pop %v3332
    %v3334 = vmul.f32 1.0, %v3333
    %v3335 = vadd.f32 %v3328, %v335
    %3337 = vrot.lane.b32.xlu0 %v3335, 32
    %v3338 = vpop.permute.xlu0 %3337
    %v3340 = vmul.f32 %v3334, %v3338
    %3342 = vrot.lane.b32.xlu0 %v3340, 64
    %v3343 = vpop.permute.xlu0 %3342
    %v3345 = vadd.f32 %v3328, %v3343
    %v3346 = vtanh.pop %v3345
    %v3347 = vsub.f32 1.0, %v3334
    %3349 = vrot.lane.b32.xlu0 %v3346, 96
    %v3350 = vpop.permute.xlu0 %3349
    %v3352 = vmul.f32 %v3347, %v3350
    %v3353 = vmul.f32 %v3334, %v2929
    %v3354 = vadd.f32 %v3352, %v3353
    %3356 = vrot.lane.b32.xlu0 %v3106, 96
    %v3357 = vpop.permute.xlu0 %3356
    %v3358 = vsel %vm167, %v3357, 0
    %3360 = vmatprep.subr.mxu0 0.0
    %3361 = vmatpush1.msra.mxu0 0.0
    %3362 = vmatprep.subr.mxu0 0.0
    %3363 = vmatpush1.msra.mxu0 0.0
    %3364 = vmatprep.subr.mxu0 0.0
    %3365 = vmatpush1.msra.mxu0 0.0
    %3366 = vmatprep.subr.mxu0 0.0
    %3367 = vmatpush1.msra.mxu0 0.0
    %3368 = vmatprep.subr.mxu0 0.0
    %3369 = vmatpush1.msra.mxu0 0.0
    %3370 = vmatprep.subr.mxu0 0.0
    %3371 = vmatpush1.msra.mxu0 0.0
    %3372 = vmatprep.subr.mxu0 0.0
    %3373 = vmatpush1.msra.mxu0 0.0
    %3374 = vmatprep.subr.mxu0 0.0
    %3375 = vmatpush1.msra.mxu0 0.0
    %3376 = vmatprep.subr.mxu0 0.0
    %3377 = vmatpush1.msra.mxu0 0.0
    %3378 = vmatprep.subr.mxu0 0.0
    %3379 = vmatpush1.msra.mxu0 0.0
    %3380 = vmatprep.subr.mxu0 0.0
    %3381 = vmatpush1.msra.mxu0 0.0
    %3382 = vmatprep.subr.mxu0 0.0
    %3383 = vmatpush1.msra.mxu0 0.0
    %3384 = vmatprep.subr.mxu0 0.0
    %3385 = vmatpush1.msra.mxu0 %v366
    %3386 = vmatprep.subr.mxu0 0.0
    %3387 = vmatpush1.msra.mxu0 %v365
    %3388 = vmatprep.subr.mxu0 0.0
    %3389 = vmatpush1.msra.mxu0 %v364
    %3390 = vmatprep.subr.mxu0 0.0
    %3391 = vmatpush1.msra.mxu0 %v363
    %3392 = vmatprep.subr.mxu0 0.0
    %3393 = vmatpush2.msra.mxu0 0.0
    %3394 = vmatprep.subr.mxu0 0.0
    %3395 = vmatpush2.msra.mxu0 0.0
    %3396 = vmatprep.subr.mxu0 0.0
    %3397 = vmatpush2.msra.mxu0 0.0
    %3398 = vmatprep.subr.mxu0 0.0
    %3399 = vmatpush2.msra.mxu0 0.0
    %3400 = vmatprep.subr.mxu0 0.0
    %3401 = vmatpush2.msra.mxu0 0.0
    %3402 = vmatprep.subr.mxu0 0.0
    %3403 = vmatpush2.msra.mxu0 0.0
    %3404 = vmatprep.subr.mxu0 0.0
    %3405 = vmatpush2.msra.mxu0 0.0
    %3406 = vmatprep.subr.mxu0 0.0
    %3407 = vmatpush2.msra.mxu0 0.0
    %3408 = vmatprep.subr.mxu0 0.0
    %3409 = vmatpush2.msra.mxu0 0.0
    %3410 = vmatprep.subr.mxu0 0.0
    %3411 = vmatpush2.msra.mxu0 0.0
    %3412 = vmatprep.subr.mxu0 0.0
    %3413 = vmatpush2.msra.mxu0 0.0
    %3414 = vmatprep.subr.mxu0 0.0
    %3415 = vmatpush2.msra.mxu0 0.0
    %3416 = vmatprep.subr.mxu0 0.0
    %3417 = vmatpush2.msra.mxu0 0.0
    %3418 = vmatprep.subr.mxu0 0.0
    %3419 = vmatpush2.msra.mxu0 0.0
    %3420 = vmatprep.subr.mxu0 0.0
    %3421 = vmatpush2.msra.mxu0 0.0
    %3422 = vmatprep.subr.mxu0 0.0
    %3423 = vmatpush2.msra.mxu0 0.0
    %3424 = vmatprep.mubr.f32.mxu0 0.0
    %3425 = vmatmul.mubr.f32.gmra.mxu0 %v3358
    %v3426 = vpop.f32.mrf.mxu0
    %v3427 = vadd.f32 0.0, %v3426
    %v3428 = vpop.f32.mrf.mxu0
    %3429 = vdwg.mxu0
    %3431 = vrot.lane.b32.xlu0 %v3354, 96
    %v3432 = vpop.permute.xlu0 %3431
    %v3433 = vsel %vm167, %v3432, 0
    %3435 = vmatprep.subr.mxu0 0.0
    %3436 = vmatpush1.msra.mxu0 0.0
    %3437 = vmatprep.subr.mxu0 0.0
    %3438 = vmatpush1.msra.mxu0 0.0
    %3439 = vmatprep.subr.mxu0 0.0
    %3440 = vmatpush1.msra.mxu0 0.0
    %3441 = vmatprep.subr.mxu0 0.0
    %3442 = vmatpush1.msra.mxu0 0.0
    %3443 = vmatprep.subr.mxu0 0.0
    %3444 = vmatpush1.msra.mxu0 0.0
    %3445 = vmatprep.subr.mxu0 0.0
    %3446 = vmatpush1.msra.mxu0 0.0
    %3447 = vmatprep.subr.mxu0 0.0
    %3448 = vmatpush1.msra.mxu0 0.0
    %3449 = vmatprep.subr.mxu0 0.0
    %3450 = vmatpush1.msra.mxu0 0.0
    %3451 = vmatprep.subr.mxu0 0.0
    %3452 = vmatpush1.msra.mxu0 0.0
    %3453 = vmatprep.subr.mxu0 0.0
    %3454 = vmatpush1.msra.mxu0 0.0
    %3455 = vmatprep.subr.mxu0 0.0
    %3456 = vmatpush1.msra.mxu0 0.0
    %3457 = vmatprep.subr.mxu0 0.0
    %3458 = vmatpush1.msra.mxu0 0.0
    %3459 = vmatprep.subr.mxu0 0.0
    %3460 = vmatpush1.msra.mxu0 %v361
    %3461 = vmatprep.subr.mxu0 0.0
    %3462 = vmatpush1.msra.mxu0 %v360
    %3463 = vmatprep.subr.mxu0 0.0
    %3464 = vmatpush1.msra.mxu0 %v359
    %3465 = vmatprep.subr.mxu0 0.0
    %3466 = vmatpush1.msra.mxu0 %v358
    %3467 = vmatprep.subr.mxu0 0.0
    %3468 = vmatpush2.msra.mxu0 0.0
    %3469 = vmatprep.subr.mxu0 0.0
    %3470 = vmatpush2.msra.mxu0 0.0
    %3471 = vmatprep.subr.mxu0 0.0
    %3472 = vmatpush2.msra.mxu0 0.0
    %3473 = vmatprep.subr.mxu0 0.0
    %3474 = vmatpush2.msra.mxu0 0.0
    %3475 = vmatprep.subr.mxu0 0.0
    %3476 = vmatpush2.msra.mxu0 0.0
    %3477 = vmatprep.subr.mxu0 0.0
    %3478 = vmatpush2.msra.mxu0 0.0
    %3479 = vmatprep.subr.mxu0 0.0
    %3480 = vmatpush2.msra.mxu0 0.0
    %3481 = vmatprep.subr.mxu0 0.0
    %3482 = vmatpush2.msra.mxu0 0.0
    %3483 = vmatprep.subr.mxu0 0.0
    %3484 = vmatpush2.msra.mxu0 0.0
    %3485 = vmatprep.subr.mxu0 0.0
    %3486 = vmatpush2.msra.mxu0 0.0
    %3487 = vmatprep.subr.mxu0 0.0
    %3488 = vmatpush2.msra.mxu0 0.0
    %3489 = vmatprep.subr.mxu0 0.0
    %3490 = vmatpush2.msra.mxu0 0.0
    %3491 = vmatprep.subr.mxu0 0.0
    %3492 = vmatpush2.msra.mxu0 0.0
    %3493 = vmatprep.subr.mxu0 0.0
    %3494 = vmatpush2.msra.mxu0 0.0
    %3495 = vmatprep.subr.mxu0 0.0
    %3496 = vmatpush2.msra.mxu0 0.0
    %3497 = vmatprep.subr.mxu0 0.0
    %3498 = vmatpush2.msra.mxu0 0.0
    %3499 = vmatprep.mubr.f32.mxu0 0.0
    %3500 = vmatmul.mubr.f32.gmra.mxu0 %v3433
    %v3501 = vpop.f32.mrf.mxu0
    %v3502 = vadd.f32 %v3427, %v3501
    %v3503 = vpop.f32.mrf.mxu0
    %3504 = vdwg.mxu0
    %v3505 = vadd.f32 %v3502, %v518
    %v3506 = vxor.u32 %v3505, 2147483648
    %v3507 = vmul.f32 %v3506, 1.442695
    %v3508 = vpow.pop %v3507
    %v3509 = vadd.f32 %v3508, 1.0
    %v3510 = vrcp.pop %v3509
    %v3511 = vmul.f32 1.0, %v3510
    %v3512 = vadd.f32 %v3505, %v535
    %3514 = vrot.lane.b32.xlu0 %v3512, 32
    %v3515 = vpop.permute.xlu0 %3514
    %v3517 = vmul.f32 %v3511, %v3515
    %3519 = vrot.lane.b32.xlu0 %v3517, 64
    %v3520 = vpop.permute.xlu0 %3519
    %v3522 = vadd.f32 %v3505, %v3520
    %v3523 = vtanh.pop %v3522
    %v3524 = vsub.f32 1.0, %v3511
    %3526 = vrot.lane.b32.xlu0 %v3523, 96
    %v3527 = vpop.permute.xlu0 %3526
    %v3529 = vmul.f32 %v3524, %v3527
    %v3530 = vmul.f32 %v3511, %v3106
    %v3531 = vadd.f32 %v3529, %v3530
    %3532 = vst [vmem:[#allocation5] sm:$0xff] 0.0
    %v3533 = vld [vmem:[%s1] sm:$0xff]
    %3534 = vset.pattern.permute.xlu0 0
    %3535 = vperm.xlu0 %3534, %v3533
    %v3536 = vpop.permute.xlu0 %3535
    %vm3537 = vcmp.eq.s32.totalorder %v3536, %v65
    %v3538 = vsel %vm3537, 1, 0
    %v3539 = vcvt.s32.f32 %v3538
    %v3540 = vld [vmem:[%s4] sm:$0xff]
    %v3541 = vld [vmem:[%s4 + $0x8] sm:$0xff]
    %v3542 = vld [vmem:[%s4 + $0x10] sm:$0xff]
    %v3543 = vld [vmem:[%s4 + $0x18] sm:$0xff]
    %v3544 = vld [vmem:[%s4 + $0x20] sm:$0xff]
    %v3545 = vld [vmem:[%s4 + $0x28] sm:$0xff]
    %v3546 = vld [vmem:[%s4 + $0x30] sm:$0xff]
    %v3547 = vld [vmem:[%s4 + $0x38] sm:$0xff]
    %v3548 = vld [vmem:[%s4 + $0x40] sm:$0xff]
    %v3549 = vld [vmem:[%s4 + $0x48] sm:$0xff]
    %v3550 = vld [vmem:[%s4 + $0x50] sm:$0xff]
    %v3551 = vld [vmem:[%s4 + $0x58] sm:$0xff]
    %v3552 = vld [vmem:[%s4 + $0x60] sm:$0xff]
    %v3553 = vld [vmem:[%s4 + $0x68] sm:$0xff]
    %v3554 = vld [vmem:[%s4 + $0x70] sm:$0xff]
    %v3555 = vld [vmem:[%s4 + $0x78] sm:$0xff]
    %3556 = vmatprep.subr.mxu0 0.0
    %3557 = vmatpush1.msra.mxu0 %v3555
    %3558 = vmatprep.subr.mxu0 0.0
    %3559 = vmatpush1.msra.mxu0 %v3554
    %3560 = vmatprep.subr.mxu0 0.0
    %3561 = vmatpush1.msra.mxu0 %v3553
    %3562 = vmatprep.subr.mxu0 0.0
    %3563 = vmatpush1.msra.mxu0 %v3552
    %3564 = vmatprep.subr.mxu0 0.0
    %3565 = vmatpush1.msra.mxu0 %v3551
    %3566 = vmatprep.subr.mxu0 0.0
    %3567 = vmatpush1.msra.mxu0 %v3550
    %3568 = vmatprep.subr.mxu0 0.0
    %3569 = vmatpush1.msra.mxu0 %v3549
    %3570 = vmatprep.subr.mxu0 0.0
    %3571 = vmatpush1.msra.mxu0 %v3548
    %3572 = vmatprep.subr.mxu0 0.0
    %3573 = vmatpush1.msra.mxu0 %v3547
    %3574 = vmatprep.subr.mxu0 0.0
    %3575 = vmatpush1.msra.mxu0 %v3546
    %3576 = vmatprep.subr.mxu0 0.0
    %3577 = vmatpush1.msra.mxu0 %v3545
    %3578 = vmatprep.subr.mxu0 0.0
    %3579 = vmatpush1.msra.mxu0 %v3544
    %3580 = vmatprep.subr.mxu0 0.0
    %3581 = vmatpush1.msra.mxu0 %v3543
    %3582 = vmatprep.subr.mxu0 0.0
    %3583 = vmatpush1.msra.mxu0 %v3542
    %3584 = vmatprep.subr.mxu0 0.0
    %3585 = vmatpush1.msra.mxu0 %v3541
    %3586 = vmatprep.subr.mxu0 0.0
    %3587 = vmatpush1.msra.mxu0 %v3540
    %3588 = vmatprep.subr.mxu0 0.0
    %3589 = vmatpush2.msra.mxu0 0.0
    %3590 = vmatprep.subr.mxu0 0.0
    %3591 = vmatpush2.msra.mxu0 0.0
    %3592 = vmatprep.subr.mxu0 0.0
    %3593 = vmatpush2.msra.mxu0 0.0
    %3594 = vmatprep.subr.mxu0 0.0
    %3595 = vmatpush2.msra.mxu0 0.0
    %3596 = vmatprep.subr.mxu0 0.0
    %3597 = vmatpush2.msra.mxu0 0.0
    %3598 = vmatprep.subr.mxu0 0.0
    %3599 = vmatpush2.msra.mxu0 0.0
    %3600 = vmatprep.subr.mxu0 0.0
    %3601 = vmatpush2.msra.mxu0 0.0
    %3602 = vmatprep.subr.mxu0 0.0
    %3603 = vmatpush2.msra.mxu0 0.0
    %3604 = vmatprep.subr.mxu0 0.0
    %3605 = vmatpush2.msra.mxu0 0.0
    %3606 = vmatprep.subr.mxu0 0.0
    %3607 = vmatpush2.msra.mxu0 0.0
    %3608 = vmatprep.subr.mxu0 0.0
    %3609 = vmatpush2.msra.mxu0 0.0
    %3610 = vmatprep.subr.mxu0 0.0
    %3611 = vmatpush2.msra.mxu0 0.0
    %3612 = vmatprep.subr.mxu0 0.0
    %3613 = vmatpush2.msra.mxu0 0.0
    %3614 = vmatprep.subr.mxu0 0.0
    %3615 = vmatpush2.msra.mxu0 0.0
    %3616 = vmatprep.subr.mxu0 0.0
    %3617 = vmatpush2.msra.mxu0 0.0
    %3618 = vmatprep.subr.mxu0 0.0
    %3619 = vmatpush2.msra.mxu0 0.0
    %3620 = vmatprep.mubr.f32.mxu0 0.0
    %3621 = vmatmul.mubr.f32.gmra.mxu0 %v3539
    %v3622 = vpop.f32.mrf.mxu0
    %v3623 = vadd.f32 0.0, %v3622
    %v3624 = vpop.f32.mrf.mxu0
    %3625 = vdwg.mxu0
    %v3626 = vld [vmem:[%s9] sm:$0xff]
    %v3627 = vld [vmem:[%s9 + $0x8] sm:$0xff]
    %v3628 = vld [vmem:[%s9 + $0x10] sm:$0xff]
    %v3629 = vld [vmem:[%s9 + $0x18] sm:$0xff]
    %v3630 = vld [vmem:[%s10] sm:$0xff]
    %v3631 = vld [vmem:[%s10 + $0x8] sm:$0xff]
    %v3632 = vld [vmem:[%s10 + $0x10] sm:$0xff]
    %v3633 = vld [vmem:[%s10 + $0x18] sm:$0xff]
    %3634 = vmatprep.subr.mxu0 0.0
    %3635 = vmatpush1.msra.mxu0 0.0
    %3636 = vmatprep.subr.mxu0 0.0
    %3637 = vmatpush1.msra.mxu0 0.0
    %3638 = vmatprep.subr.mxu0 0.0
    %3639 = vmatpush1.msra.mxu0 0.0
    %3640 = vmatprep.subr.mxu0 0.0
    %3641 = vmatpush1.msra.mxu0 0.0
    %3642 = vmatprep.subr.mxu0 0.0
    %3643 = vmatpush1.msra.mxu0 0.0
    %3644 = vmatprep.subr.mxu0 0.0
    %3645 = vmatpush1.msra.mxu0 0.0
    %3646 = vmatprep.subr.mxu0 0.0
    %3647 = vmatpush1.msra.mxu0 0.0
    %3648 = vmatprep.subr.mxu0 0.0
    %3649 = vmatpush1.msra.mxu0 0.0
    %3650 = vmatprep.subr.mxu0 0.0
    %3651 = vmatpush1.msra.mxu0 0.0
    %3652 = vmatprep.subr.mxu0 0.0
    %3653 = vmatpush1.msra.mxu0 0.0
    %3654 = vmatprep.subr.mxu0 0.0
    %3655 = vmatpush1.msra.mxu0 0.0
    %3656 = vmatprep.subr.mxu0 0.0
    %3657 = vmatpush1.msra.mxu0 0.0
    %3658 = vmatprep.subr.mxu0 0.0
    %3659 = vmatpush1.msra.mxu0 %v3633
    %3660 = vmatprep.subr.mxu0 0.0
    %3661 = vmatpush1.msra.mxu0 %v3632
    %3662 = vmatprep.subr.mxu0 0.0
    %3663 = vmatpush1.msra.mxu0 %v3631
    %3664 = vmatprep.subr.mxu0 0.0
    %3665 = vmatpush1.msra.mxu0 %v3630
    %3666 = vmatprep.subr.mxu0 0.0
    %3667 = vmatpush2.msra.mxu0 0.0
    %3668 = vmatprep.subr.mxu0 0.0
    %3669 = vmatpush2.msra.mxu0 0.0
    %3670 = vmatprep.subr.mxu0 0.0
    %3671 = vmatpush2.msra.mxu0 0.0
    %3672 = vmatprep.subr.mxu0 0.0
    %3673 = vmatpush2.msra.mxu0 0.0
    %3674 = vmatprep.subr.mxu0 0.0
    %3675 = vmatpush2.msra.mxu0 0.0
    %3676 = vmatprep.subr.mxu0 0.0
    %3677 = vmatpush2.msra.mxu0 0.0
    %3678 = vmatprep.subr.mxu0 0.0
    %3679 = vmatpush2.msra.mxu0 0.0
    %3680 = vmatprep.subr.mxu0 0.0
    %3681 = vmatpush2.msra.mxu0 0.0
    %3682 = vmatprep.subr.mxu0 0.0
    %3683 = vmatpush2.msra.mxu0 0.0
    %3684 = vmatprep.subr.mxu0 0.0
    %3685 = vmatpush2.msra.mxu0 0.0
    %3686 = vmatprep.subr.mxu0 0.0
    %3687 = vmatpush2.msra.mxu0 0.0
    %3688 = vmatprep.subr.mxu0 0.0
    %3689 = vmatpush2.msra.mxu0 0.0
    %3690 = vmatprep.subr.mxu0 0.0
    %3691 = vmatpush2.msra.mxu0 0.0
    %3692 = vmatprep.subr.mxu0 0.0
    %3693 = vmatpush2.msra.mxu0 0.0
    %3694 = vmatprep.subr.mxu0 0.0
    %3695 = vmatpush2.msra.mxu0 0.0
    %3696 = vmatprep.subr.mxu0 0.0
    %3697 = vmatpush2.msra.mxu0 0.0
    %3698 = vmatprep.mubr.f32.mxu0 0.0
    %3699 = vmatmul.mubr.f32.gmra.mxu0 %v3433
    %v3700 = vpop.f32.mrf.mxu0
    %v3701 = vadd.f32 0.0, %v3700
    %v3702 = vpop.f32.mrf.mxu0
    %3703 = vdwg.mxu0
    %v3705 = vsel %vm167, %v3623, 0
    %3707 = vmatprep.subr.mxu0 0.0
    %3708 = vmatpush1.msra.mxu0 0.0
    %3709 = vmatprep.subr.mxu0 0.0
    %3710 = vmatpush1.msra.mxu0 0.0
    %3711 = vmatprep.subr.mxu0 0.0
    %3712 = vmatpush1.msra.mxu0 0.0
    %3713 = vmatprep.subr.mxu0 0.0
    %3714 = vmatpush1.msra.mxu0 0.0
    %3715 = vmatprep.subr.mxu0 0.0
    %3716 = vmatpush1.msra.mxu0 0.0
    %3717 = vmatprep.subr.mxu0 0.0
    %3718 = vmatpush1.msra.mxu0 0.0
    %3719 = vmatprep.subr.mxu0 0.0
    %3720 = vmatpush1.msra.mxu0 0.0
    %3721 = vmatprep.subr.mxu0 0.0
    %3722 = vmatpush1.msra.mxu0 0.0
    %3723 = vmatprep.subr.mxu0 0.0
    %3724 = vmatpush1.msra.mxu0 0.0
    %3725 = vmatprep.subr.mxu0 0.0
    %3726 = vmatpush1.msra.mxu0 0.0
    %3727 = vmatprep.subr.mxu0 0.0
    %3728 = vmatpush1.msra.mxu0 0.0
    %3729 = vmatprep.subr.mxu0 0.0
    %3730 = vmatpush1.msra.mxu0 0.0
    %3731 = vmatprep.subr.mxu0 0.0
    %3732 = vmatpush1.msra.mxu0 %v3629
    %3733 = vmatprep.subr.mxu0 0.0
    %3734 = vmatpush1.msra.mxu0 %v3628
    %3735 = vmatprep.subr.mxu0 0.0
    %3736 = vmatpush1.msra.mxu0 %v3627
    %3737 = vmatprep.subr.mxu0 0.0
    %3738 = vmatpush1.msra.mxu0 %v3626
    %3739 = vmatprep.subr.mxu0 0.0
    %3740 = vmatpush2.msra.mxu0 0.0
    %3741 = vmatprep.subr.mxu0 0.0
    %3742 = vmatpush2.msra.mxu0 0.0
    %3743 = vmatprep.subr.mxu0 0.0
    %3744 = vmatpush2.msra.mxu0 0.0
    %3745 = vmatprep.subr.mxu0 0.0
    %3746 = vmatpush2.msra.mxu0 0.0
    %3747 = vmatprep.subr.mxu0 0.0
    %3748 = vmatpush2.msra.mxu0 0.0
    %3749 = vmatprep.subr.mxu0 0.0
    %3750 = vmatpush2.msra.mxu0 0.0
    %3751 = vmatprep.subr.mxu0 0.0
    %3752 = vmatpush2.msra.mxu0 0.0
    %3753 = vmatprep.subr.mxu0 0.0
    %3754 = vmatpush2.msra.mxu0 0.0
    %3755 = vmatprep.subr.mxu0 0.0
    %3756 = vmatpush2.msra.mxu0 0.0
    %3757 = vmatprep.subr.mxu0 0.0
    %3758 = vmatpush2.msra.mxu0 0.0
    %3759 = vmatprep.subr.mxu0 0.0
    %3760 = vmatpush2.msra.mxu0 0.0
    %3761 = vmatprep.subr.mxu0 0.0
    %3762 = vmatpush2.msra.mxu0 0.0
    %3763 = vmatprep.subr.mxu0 0.0
    %3764 = vmatpush2.msra.mxu0 0.0
    %3765 = vmatprep.subr.mxu0 0.0
    %3766 = vmatpush2.msra.mxu0 0.0
    %3767 = vmatprep.subr.mxu0 0.0
    %3768 = vmatpush2.msra.mxu0 0.0
    %3769 = vmatprep.subr.mxu0 0.0
    %3770 = vmatpush2.msra.mxu0 0.0
    %3771 = vmatprep.mubr.f32.mxu0 0.0
    %3772 = vmatmul.mubr.f32.gmra.mxu0 %v3705
    %v3773 = vpop.f32.mrf.mxu0
    %v3774 = vadd.f32 %v3701, %v3773
    %v3775 = vpop.f32.mrf.mxu0
    %3776 = vdwg.mxu0
    %v3777 = vld [vmem:[%s11] sm:$0x1]
    %v3779 = vlaneseq
    %v3780 = vshrl.u32 %v3779, 7
    %v3781 = vsub.s32 0, %v3780
    %v3782 = vrot.slane %v3777, %v3781
    %v3784 = vadd.f32 %v3774, %v3782
    %v3785 = vxor.u32 %v3784, 2147483648
    %v3786 = vmul.f32 %v3785, 1.442695
    %v3787 = vpow.pop %v3786
    %v3788 = vadd.f32 %v3787, 1.0
    %v3789 = vrcp.pop %v3788
    %v3790 = vmul.f32 1.0, %v3789
    %v3791 = vld [vmem:[%s12] sm:$0x1]
    %v3793 = vlaneseq
    %v3794 = vshrl.u32 %v3793, 7
    %v3795 = vsub.s32 0, %v3794
    %v3796 = vrot.slane %v3791, %v3795
    %3797 = vrot.lane.b32.xlu0 %v3796, 96
    %v3798 = vpop.permute.xlu0 %3797
    %v3800 = vadd.f32 %v3784, %v3798
    %3802 = vrot.lane.b32.xlu0 %v3800, 32
    %v3803 = vpop.permute.xlu0 %3802
    %v3805 = vmul.f32 %v3790, %v3803
    %3807 = vrot.lane.b32.xlu0 %v3805, 64
    %v3808 = vpop.permute.xlu0 %3807
    %v3810 = vadd.f32 %v3784, %v3808
    %v3811 = vtanh.pop %v3810
    %v3812 = vsub.f32 1.0, %v3790
    %3814 = vrot.lane.b32.xlu0 %v3811, 96
    %v3815 = vpop.permute.xlu0 %3814
    %v3817 = vmul.f32 %v3812, %v3815
    %v3818 = vmul.f32 %v3790, %v3354
    %v3819 = vadd.f32 %v3817, %v3818
    %s3820 = scalar_lea.vmem %s9, 32
    %v3821 = vld [vmem:[%s3820] sm:$0xff]
    %v3822 = vld [vmem:[%s3820 + $0x8] sm:$0xff]
    %v3823 = vld [vmem:[%s3820 + $0x10] sm:$0xff]
    %v3824 = vld [vmem:[%s3820 + $0x18] sm:$0xff]
    %s3825 = scalar_lea.vmem %s10, 32
    %v3826 = vld [vmem:[%s3825] sm:$0xff]
    %v3827 = vld [vmem:[%s3825 + $0x8] sm:$0xff]
    %v3828 = vld [vmem:[%s3825 + $0x10] sm:$0xff]
    %v3829 = vld [vmem:[%s3825 + $0x18] sm:$0xff]
    %3831 = vrot.lane.b32.xlu0 %v3531, 96
    %v3832 = vpop.permute.xlu0 %3831
    %v3833 = vsel %vm167, %v3832, 0
    %3835 = vmatprep.subr.mxu0 0.0
    %3836 = vmatpush1.msra.mxu0 0.0
    %3837 = vmatprep.subr.mxu0 0.0
    %3838 = vmatpush1.msra.mxu0 0.0
    %3839 = vmatprep.subr.mxu0 0.0
    %3840 = vmatpush1.msra.mxu0 0.0
    %3841 = vmatprep.subr.mxu0 0.0
    %3842 = vmatpush1.msra.mxu0 0.0
    %3843 = vmatprep.subr.mxu0 0.0
    %3844 = vmatpush1.msra.mxu0 0.0
    %3845 = vmatprep.subr.mxu0 0.0
    %3846 = vmatpush1.msra.mxu0 0.0
    %3847 = vmatprep.subr.mxu0 0.0
    %3848 = vmatpush1.msra.mxu0 0.0
    %3849 = vmatprep.subr.mxu0 0.0
    %3850 = vmatpush1.msra.mxu0 0.0
    %3851 = vmatprep.subr.mxu0 0.0
    %3852 = vmatpush1.msra.mxu0 0.0
    %3853 = vmatprep.subr.mxu0 0.0
    %3854 = vmatpush1.msra.mxu0 0.0
    %3855 = vmatprep.subr.mxu0 0.0
    %3856 = vmatpush1.msra.mxu0 0.0
    %3857 = vmatprep.subr.mxu0 0.0
    %3858 = vmatpush1.msra.mxu0 0.0
    %3859 = vmatprep.subr.mxu0 0.0
    %3860 = vmatpush1.msra.mxu0 %v3829
    %3861 = vmatprep.subr.mxu0 0.0
    %3862 = vmatpush1.msra.mxu0 %v3828
    %3863 = vmatprep.subr.mxu0 0.0
    %3864 = vmatpush1.msra.mxu0 %v3827
    %3865 = vmatprep.subr.mxu0 0.0
    %3866 = vmatpush1.msra.mxu0 %v3826
    %3867 = vmatprep.subr.mxu0 0.0
    %3868 = vmatpush2.msra.mxu0 0.0
    %3869 = vmatprep.subr.mxu0 0.0
    %3870 = vmatpush2.msra.mxu0 0.0
    %3871 = vmatprep.subr.mxu0 0.0
    %3872 = vmatpush2.msra.mxu0 0.0
    %3873 = vmatprep.subr.mxu0 0.0
    %3874 = vmatpush2.msra.mxu0 0.0
    %3875 = vmatprep.subr.mxu0 0.0
    %3876 = vmatpush2.msra.mxu0 0.0
    %3877 = vmatprep.subr.mxu0 0.0
    %3878 = vmatpush2.msra.mxu0 0.0
    %3879 = vmatprep.subr.mxu0 0.0
    %3880 = vmatpush2.msra.mxu0 0.0
    %3881 = vmatprep.subr.mxu0 0.0
    %3882 = vmatpush2.msra.mxu0 0.0
    %3883 = vmatprep.subr.mxu0 0.0
    %3884 = vmatpush2.msra.mxu0 0.0
    %3885 = vmatprep.subr.mxu0 0.0
    %3886 = vmatpush2.msra.mxu0 0.0
    %3887 = vmatprep.subr.mxu0 0.0
    %3888 = vmatpush2.msra.mxu0 0.0
    %3889 = vmatprep.subr.mxu0 0.0
    %3890 = vmatpush2.msra.mxu0 0.0
    %3891 = vmatprep.subr.mxu0 0.0
    %3892 = vmatpush2.msra.mxu0 0.0
    %3893 = vmatprep.subr.mxu0 0.0
    %3894 = vmatpush2.msra.mxu0 0.0
    %3895 = vmatprep.subr.mxu0 0.0
    %3896 = vmatpush2.msra.mxu0 0.0
    %3897 = vmatprep.subr.mxu0 0.0
    %3898 = vmatpush2.msra.mxu0 0.0
    %3899 = vmatprep.mubr.f32.mxu0 0.0
    %3900 = vmatmul.mubr.f32.gmra.mxu0 %v3833
    %v3901 = vpop.f32.mrf.mxu0
    %v3902 = vadd.f32 0.0, %v3901
    %v3903 = vpop.f32.mrf.mxu0
    %3904 = vdwg.mxu0
    %3906 = vrot.lane.b32.xlu0 %v3819, 96
    %v3907 = vpop.permute.xlu0 %3906
    %v3908 = vsel %vm167, %v3907, 0
    %3910 = vmatprep.subr.mxu0 0.0
    %3911 = vmatpush1.msra.mxu0 0.0
    %3912 = vmatprep.subr.mxu0 0.0
    %3913 = vmatpush1.msra.mxu0 0.0
    %3914 = vmatprep.subr.mxu0 0.0
    %3915 = vmatpush1.msra.mxu0 0.0
    %3916 = vmatprep.subr.mxu0 0.0
    %3917 = vmatpush1.msra.mxu0 0.0
    %3918 = vmatprep.subr.mxu0 0.0
    %3919 = vmatpush1.msra.mxu0 0.0
    %3920 = vmatprep.subr.mxu0 0.0
    %3921 = vmatpush1.msra.mxu0 0.0
    %3922 = vmatprep.subr.mxu0 0.0
    %3923 = vmatpush1.msra.mxu0 0.0
    %3924 = vmatprep.subr.mxu0 0.0
    %3925 = vmatpush1.msra.mxu0 0.0
    %3926 = vmatprep.subr.mxu0 0.0
    %3927 = vmatpush1.msra.mxu0 0.0
    %3928 = vmatprep.subr.mxu0 0.0
    %3929 = vmatpush1.msra.mxu0 0.0
    %3930 = vmatprep.subr.mxu0 0.0
    %3931 = vmatpush1.msra.mxu0 0.0
    %3932 = vmatprep.subr.mxu0 0.0
    %3933 = vmatpush1.msra.mxu0 0.0
    %3934 = vmatprep.subr.mxu0 0.0
    %3935 = vmatpush1.msra.mxu0 %v3824
    %3936 = vmatprep.subr.mxu0 0.0
    %3937 = vmatpush1.msra.mxu0 %v3823
    %3938 = vmatprep.subr.mxu0 0.0
    %3939 = vmatpush1.msra.mxu0 %v3822
    %3940 = vmatprep.subr.mxu0 0.0
    %3941 = vmatpush1.msra.mxu0 %v3821
    %3942 = vmatprep.subr.mxu0 0.0
    %3943 = vmatpush2.msra.mxu0 0.0
    %3944 = vmatprep.subr.mxu0 0.0
    %3945 = vmatpush2.msra.mxu0 0.0
    %3946 = vmatprep.subr.mxu0 0.0
    %3947 = vmatpush2.msra.mxu0 0.0
    %3948 = vmatprep.subr.mxu0 0.0
    %3949 = vmatpush2.msra.mxu0 0.0
    %3950 = vmatprep.subr.mxu0 0.0
    %3951 = vmatpush2.msra.mxu0 0.0
    %3952 = vmatprep.subr.mxu0 0.0
    %3953 = vmatpush2.msra.mxu0 0.0
    %3954 = vmatprep.subr.mxu0 0.0
    %3955 = vmatpush2.msra.mxu0 0.0
    %3956 = vmatprep.subr.mxu0 0.0
    %3957 = vmatpush2.msra.mxu0 0.0
    %3958 = vmatprep.subr.mxu0 0.0
    %3959 = vmatpush2.msra.mxu0 0.0
    %3960 = vmatprep.subr.mxu0 0.0
    %3961 = vmatpush2.msra.mxu0 0.0
    %3962 = vmatprep.subr.mxu0 0.0
    %3963 = vmatpush2.msra.mxu0 0.0
    %3964 = vmatprep.subr.mxu0 0.0
    %3965 = vmatpush2.msra.mxu0 0.0
    %3966 = vmatprep.subr.mxu0 0.0
    %3967 = vmatpush2.msra.mxu0 0.0
    %3968 = vmatprep.subr.mxu0 0.0
    %3969 = vmatpush2.msra.mxu0 0.0
    %3970 = vmatprep.subr.mxu0 0.0
    %3971 = vmatpush2.msra.mxu0 0.0
    %3972 = vmatprep.subr.mxu0 0.0
    %3973 = vmatpush2.msra.mxu0 0.0
    %3974 = vmatprep.mubr.f32.mxu0 0.0
    %3975 = vmatmul.mubr.f32.gmra.mxu0 %v3908
    %v3976 = vpop.f32.mrf.mxu0
    %v3977 = vadd.f32 %v3902, %v3976
    %v3978 = vpop.f32.mrf.mxu0
    %3979 = vdwg.mxu0
    %s3980 = scalar_lea.vmem %s11, 1
    %v3981 = vld [vmem:[%s3980] sm:$0x1]
    %v3983 = vlaneseq
    %v3984 = vshrl.u32 %v3983, 7
    %v3985 = vsub.s32 0, %v3984
    %v3986 = vrot.slane %v3981, %v3985
    %v3988 = vadd.f32 %v3977, %v3986
    %v3989 = vxor.u32 %v3988, 2147483648
    %v3990 = vmul.f32 %v3989, 1.442695
    %v3991 = vpow.pop %v3990
    %v3992 = vadd.f32 %v3991, 1.0
    %v3993 = vrcp.pop %v3992
    %v3994 = vmul.f32 1.0, %v3993
    %s3995 = scalar_lea.vmem %s12, 1
    %v3996 = vld [vmem:[%s3995] sm:$0x1]
    %v3998 = vlaneseq
    %v3999 = vshrl.u32 %v3998, 7
    %v4000 = vsub.s32 0, %v3999
    %v4001 = vrot.slane %v3996, %v4000
    %4002 = vrot.lane.b32.xlu0 %v4001, 96
    %v4003 = vpop.permute.xlu0 %4002
    %v4005 = vadd.f32 %v3988, %v4003
    %4007 = vrot.lane.b32.xlu0 %v4005, 32
    %v4008 = vpop.permute.xlu0 %4007
    %v4010 = vmul.f32 %v3994, %v4008
    %4012 = vrot.lane.b32.xlu0 %v4010, 64
    %v4013 = vpop.permute.xlu0 %4012
    %v4015 = vadd.f32 %v3988, %v4013
    %v4016 = vtanh.pop %v4015
    %v4017 = vsub.f32 1.0, %v3994
    %4019 = vrot.lane.b32.xlu0 %v4016, 96
    %v4020 = vpop.permute.xlu0 %4019
    %v4022 = vmul.f32 %v4017, %v4020
    %v4023 = vmul.f32 %v3994, %v3531
    %v4024 = vadd.f32 %v4022, %v4023
    %v4025 = vld [vmem:[%s13] sm:$0xff]
    %v4026 = vld [vmem:[%s13 + $0x8] sm:$0xff]
    %v4027 = vld [vmem:[%s13 + $0x10] sm:$0xff]
    %v4028 = vld [vmem:[%s13 + $0x18] sm:$0xff]
    %v4029 = vld [vmem:[%s14] sm:$0x1]
    %v4031 = vlaneseq
    %v4032 = vshrl.u32 %v4031, 7
    %v4033 = vsub.s32 0, %v4032
    %v4034 = vrot.slane %v4029, %v4033
    %4037 = vrot.lane.b32.xlu0 %v4024, 96
    %v4038 = vpop.permute.xlu0 %4037
    %v4039 = vsel %vm167, %v4038, 0
    %4041 = vmatprep.subr.mxu0 0.0
    %4042 = vmatpush1.msra.mxu0 0.0
    %4043 = vmatprep.subr.mxu0 0.0
    %4044 = vmatpush1.msra.mxu0 0.0
    %4045 = vmatprep.subr.mxu0 0.0
    %4046 = vmatpush1.msra.mxu0 0.0
    %4047 = vmatprep.subr.mxu0 0.0
    %4048 = vmatpush1.msra.mxu0 0.0
    %4049 = vmatprep.subr.mxu0 0.0
    %4050 = vmatpush1.msra.mxu0 0.0
    %4051 = vmatprep.subr.mxu0 0.0
    %4052 = vmatpush1.msra.mxu0 0.0
    %4053 = vmatprep.subr.mxu0 0.0
    %4054 = vmatpush1.msra.mxu0 0.0
    %4055 = vmatprep.subr.mxu0 0.0
    %4056 = vmatpush1.msra.mxu0 0.0
    %4057 = vmatprep.subr.mxu0 0.0
    %4058 = vmatpush1.msra.mxu0 0.0
    %4059 = vmatprep.subr.mxu0 0.0
    %4060 = vmatpush1.msra.mxu0 0.0
    %4061 = vmatprep.subr.mxu0 0.0
    %4062 = vmatpush1.msra.mxu0 0.0
    %4063 = vmatprep.subr.mxu0 0.0
    %4064 = vmatpush1.msra.mxu0 0.0
    %4065 = vmatprep.subr.mxu0 0.0
    %4066 = vmatpush1.msra.mxu0 %v4028
    %4067 = vmatprep.subr.mxu0 0.0
    %4068 = vmatpush1.msra.mxu0 %v4027
    %4069 = vmatprep.subr.mxu0 0.0
    %4070 = vmatpush1.msra.mxu0 %v4026
    %4071 = vmatprep.subr.mxu0 0.0
    %4072 = vmatpush1.msra.mxu0 %v4025
    %4073 = vmatprep.subr.mxu0 0.0
    %4074 = vmatpush2.msra.mxu0 0.0
    %4075 = vmatprep.subr.mxu0 0.0
    %4076 = vmatpush2.msra.mxu0 0.0
    %4077 = vmatprep.subr.mxu0 0.0
    %4078 = vmatpush2.msra.mxu0 0.0
    %4079 = vmatprep.subr.mxu0 0.0
    %4080 = vmatpush2.msra.mxu0 0.0
    %4081 = vmatprep.subr.mxu0 0.0
    %4082 = vmatpush2.msra.mxu0 0.0
    %4083 = vmatprep.subr.mxu0 0.0
    %4084 = vmatpush2.msra.mxu0 0.0
    %4085 = vmatprep.subr.mxu0 0.0
    %4086 = vmatpush2.msra.mxu0 0.0
    %4087 = vmatprep.subr.mxu0 0.0
    %4088 = vmatpush2.msra.mxu0 0.0
    %4089 = vmatprep.subr.mxu0 0.0
    %4090 = vmatpush2.msra.mxu0 0.0
    %4091 = vmatprep.subr.mxu0 0.0
    %4092 = vmatpush2.msra.mxu0 0.0
    %4093 = vmatprep.subr.mxu0 0.0
    %4094 = vmatpush2.msra.mxu0 0.0
    %4095 = vmatprep.subr.mxu0 0.0
    %4096 = vmatpush2.msra.mxu0 0.0
    %4097 = vmatprep.subr.mxu0 0.0
    %4098 = vmatpush2.msra.mxu0 0.0
    %4099 = vmatprep.subr.mxu0 0.0
    %4100 = vmatpush2.msra.mxu0 0.0
    %4101 = vmatprep.subr.mxu0 0.0
    %4102 = vmatpush2.msra.mxu0 0.0
    %4103 = vmatprep.subr.mxu0 0.0
    %4104 = vmatpush2.msra.mxu0 0.0
    %4105 = vmatprep.mubr.f32.mxu0 0.0
    %4106 = vmatmul.mubr.f32.gmra.mxu0 %v4039
    %v4107 = vpop.f32.mrf.mxu0
    %v4108 = vadd.f32 %v4034, %v4107
    %v4109 = vpop.f32.mrf.mxu0
    %4110 = vdwg.mxu0
    %s4111 = scalar_lea.vmem [#allocation5], 8
    %4112 = vst [vmem:[%s4111] sm:$0xff] %v4108
    %4113 = vmax.xlane.f32.xlu0 %v4108
    %v4114 = vpop.xlane.xlu0 %4113
    %vm4115 = vcmp.ge.f32.partialorder %v4108, %v4114
    %v4116 = vsel %vm4115, %v65, 128
    %v4117 = vand.u32 %v4116, 65535
    %v4118 = vshra.s32 %v4116, 16
    %v4119 = vcvt.s32.f32 %v4117
    %v4120 = vcvt.s32.f32 %v4118
    %4121 = vmin.xlane.f32.xlu0 %v4120
    %v4122 = vpop.xlane.xlu0 %4121
    %vm4123 = vcmp.eq.f32.partialorder %v4120, %v4122
    %v4124 = vsel %vm4123, %v4119, inf
    %4125 = vmin.xlane.f32.xlu0 %v4124
    %v4126 = vpop.xlane.xlu0 %4125
    %v4127 = vcvt.f32.s32 %v4126
    %v4128 = vcvt.f32.s32 %v4122
    %v4129 = vshll.u32 %v4128, 16
    %v4130 = vadd.s32 %v4129, %v4127
    %vm4131 = vcmp.eq.s32.totalorder %v65, %v4130
    %v4132 = vsel %vm4131, 1, 0
    %v4133 = vcvt.s32.f32 %v4132
    %v4134 = vld [vmem:[%s4] sm:$0xff]
    %v4135 = vld [vmem:[%s4 + $0x8] sm:$0xff]
    %v4136 = vld [vmem:[%s4 + $0x10] sm:$0xff]
    %v4137 = vld [vmem:[%s4 + $0x18] sm:$0xff]
    %v4138 = vld [vmem:[%s4 + $0x20] sm:$0xff]
    %v4139 = vld [vmem:[%s4 + $0x28] sm:$0xff]
    %v4140 = vld [vmem:[%s4 + $0x30] sm:$0xff]
    %v4141 = vld [vmem:[%s4 + $0x38] sm:$0xff]
    %v4142 = vld [vmem:[%s4 + $0x40] sm:$0xff]
    %v4143 = vld [vmem:[%s4 + $0x48] sm:$0xff]
    %v4144 = vld [vmem:[%s4 + $0x50] sm:$0xff]
    %v4145 = vld [vmem:[%s4 + $0x58] sm:$0xff]
    %v4146 = vld [vmem:[%s4 + $0x60] sm:$0xff]
    %v4147 = vld [vmem:[%s4 + $0x68] sm:$0xff]
    %v4148 = vld [vmem:[%s4 + $0x70] sm:$0xff]
    %v4149 = vld [vmem:[%s4 + $0x78] sm:$0xff]
    %4150 = vmatprep.subr.mxu0 0.0
    %4151 = vmatpush1.msra.mxu0 %v4149
    %4152 = vmatprep.subr.mxu0 0.0
    %4153 = vmatpush1.msra.mxu0 %v4148
    %4154 = vmatprep.subr.mxu0 0.0
    %4155 = vmatpush1.msra.mxu0 %v4147
    %4156 = vmatprep.subr.mxu0 0.0
    %4157 = vmatpush1.msra.mxu0 %v4146
    %4158 = vmatprep.subr.mxu0 0.0
    %4159 = vmatpush1.msra.mxu0 %v4145
    %4160 = vmatprep.subr.mxu0 0.0
    %4161 = vmatpush1.msra.mxu0 %v4144
    %4162 = vmatprep.subr.mxu0 0.0
    %4163 = vmatpush1.msra.mxu0 %v4143
    %4164 = vmatprep.subr.mxu0 0.0
    %4165 = vmatpush1.msra.mxu0 %v4142
    %4166 = vmatprep.subr.mxu0 0.0
    %4167 = vmatpush1.msra.mxu0 %v4141
    %4168 = vmatprep.subr.mxu0 0.0
    %4169 = vmatpush1.msra.mxu0 %v4140
    %4170 = vmatprep.subr.mxu0 0.0
    %4171 = vmatpush1.msra.mxu0 %v4139
    %4172 = vmatprep.subr.mxu0 0.0
    %4173 = vmatpush1.msra.mxu0 %v4138
    %4174 = vmatprep.subr.mxu0 0.0
    %4175 = vmatpush1.msra.mxu0 %v4137
    %4176 = vmatprep.subr.mxu0 0.0
    %4177 = vmatpush1.msra.mxu0 %v4136
    %4178 = vmatprep.subr.mxu0 0.0
    %4179 = vmatpush1.msra.mxu0 %v4135
    %4180 = vmatprep.subr.mxu0 0.0
    %4181 = vmatpush1.msra.mxu0 %v4134
    %4182 = vmatprep.subr.mxu0 0.0
    %4183 = vmatpush2.msra.mxu0 0.0
    %4184 = vmatprep.subr.mxu0 0.0
    %4185 = vmatpush2.msra.mxu0 0.0
    %4186 = vmatprep.subr.mxu0 0.0
    %4187 = vmatpush2.msra.mxu0 0.0
    %4188 = vmatprep.subr.mxu0 0.0
    %4189 = vmatpush2.msra.mxu0 0.0
    %4190 = vmatprep.subr.mxu0 0.0
    %4191 = vmatpush2.msra.mxu0 0.0
    %4192 = vmatprep.subr.mxu0 0.0
    %4193 = vmatpush2.msra.mxu0 0.0
    %4194 = vmatprep.subr.mxu0 0.0
    %4195 = vmatpush2.msra.mxu0 0.0
    %4196 = vmatprep.subr.mxu0 0.0
    %4197 = vmatpush2.msra.mxu0 0.0
    %4198 = vmatprep.subr.mxu0 0.0
    %4199 = vmatpush2.msra.mxu0 0.0
    %4200 = vmatprep.subr.mxu0 0.0
    %4201 = vmatpush2.msra.mxu0 0.0
    %4202 = vmatprep.subr.mxu0 0.0
    %4203 = vmatpush2.msra.mxu0 0.0
    %4204 = vmatprep.subr.mxu0 0.0
    %4205 = vmatpush2.msra.mxu0 0.0
    %4206 = vmatprep.subr.mxu0 0.0
    %4207 = vmatpush2.msra.mxu0 0.0
    %4208 = vmatprep.subr.mxu0 0.0
    %4209 = vmatpush2.msra.mxu0 0.0
    %4210 = vmatprep.subr.mxu0 0.0
    %4211 = vmatpush2.msra.mxu0 0.0
    %4212 = vmatprep.subr.mxu0 0.0
    %4213 = vmatpush2.msra.mxu0 0.0
    %4214 = vmatprep.mubr.f32.mxu0 0.0
    %4215 = vmatmul.mubr.f32.gmra.mxu0 %v4133
    %v4216 = vpop.f32.mrf.mxu0
    %v4217 = vadd.f32 0.0, %v4216
    %v4218 = vpop.f32.mrf.mxu0
    %4219 = vdwg.mxu0
    %s4220 = scalar_lea.vmem %s1, 8
    %v4221 = vld [vmem:[%s4220] sm:$0xff]
    %4222 = vset.pattern.permute.xlu0 0
    %4223 = vperm.xlu0 %4222, %v4221
    %v4224 = vpop.permute.xlu0 %4223
    %vm4225 = vcmp.eq.s32.totalorder %v4224, %v65
    %v4226 = vsel %vm4225, 1, 0
    %v4227 = vcvt.s32.f32 %v4226
    %4228 = vmatprep.subr.mxu0 0.0
    %4229 = vmatpush1.msra.mxu0 %v4149
    %4230 = vmatprep.subr.mxu0 0.0
    %4231 = vmatpush1.msra.mxu0 %v4148
    %4232 = vmatprep.subr.mxu0 0.0
    %4233 = vmatpush1.msra.mxu0 %v4147
    %4234 = vmatprep.subr.mxu0 0.0
    %4235 = vmatpush1.msra.mxu0 %v4146
    %4236 = vmatprep.subr.mxu0 0.0
    %4237 = vmatpush1.msra.mxu0 %v4145
    %4238 = vmatprep.subr.mxu0 0.0
    %4239 = vmatpush1.msra.mxu0 %v4144
    %4240 = vmatprep.subr.mxu0 0.0
    %4241 = vmatpush1.msra.mxu0 %v4143
    %4242 = vmatprep.subr.mxu0 0.0
    %4243 = vmatpush1.msra.mxu0 %v4142
    %4244 = vmatprep.subr.mxu0 0.0
    %4245 = vmatpush1.msra.mxu0 %v4141
    %4246 = vmatprep.subr.mxu0 0.0
    %4247 = vmatpush1.msra.mxu0 %v4140
    %4248 = vmatprep.subr.mxu0 0.0
    %4249 = vmatpush1.msra.mxu0 %v4139
    %4250 = vmatprep.subr.mxu0 0.0
    %4251 = vmatpush1.msra.mxu0 %v4138
    %4252 = vmatprep.subr.mxu0 0.0
    %4253 = vmatpush1.msra.mxu0 %v4137
    %4254 = vmatprep.subr.mxu0 0.0
    %4255 = vmatpush1.msra.mxu0 %v4136
    %4256 = vmatprep.subr.mxu0 0.0
    %4257 = vmatpush1.msra.mxu0 %v4135
    %4258 = vmatprep.subr.mxu0 0.0
    %4259 = vmatpush1.msra.mxu0 %v4134
    %4260 = vmatprep.subr.mxu0 0.0
    %4261 = vmatpush2.msra.mxu0 0.0
    %4262 = vmatprep.subr.mxu0 0.0
    %4263 = vmatpush2.msra.mxu0 0.0
    %4264 = vmatprep.subr.mxu0 0.0
    %4265 = vmatpush2.msra.mxu0 0.0
    %4266 = vmatprep.subr.mxu0 0.0
    %4267 = vmatpush2.msra.mxu0 0.0
    %4268 = vmatprep.subr.mxu0 0.0
    %4269 = vmatpush2.msra.mxu0 0.0
    %4270 = vmatprep.subr.mxu0 0.0
    %4271 = vmatpush2.msra.mxu0 0.0
    %4272 = vmatprep.subr.mxu0 0.0
    %4273 = vmatpush2.msra.mxu0 0.0
    %4274 = vmatprep.subr.mxu0 0.0
    %4275 = vmatpush2.msra.mxu0 0.0
    %4276 = vmatprep.subr.mxu0 0.0
    %4277 = vmatpush2.msra.mxu0 0.0
    %4278 = vmatprep.subr.mxu0 0.0
    %4279 = vmatpush2.msra.mxu0 0.0
    %4280 = vmatprep.subr.mxu0 0.0
    %4281 = vmatpush2.msra.mxu0 0.0
    %4282 = vmatprep.subr.mxu0 0.0
    %4283 = vmatpush2.msra.mxu0 0.0
    %4284 = vmatprep.subr.mxu0 0.0
    %4285 = vmatpush2.msra.mxu0 0.0
    %4286 = vmatprep.subr.mxu0 0.0
    %4287 = vmatpush2.msra.mxu0 0.0
    %4288 = vmatprep.subr.mxu0 0.0
    %4289 = vmatpush2.msra.mxu0 0.0
    %4290 = vmatprep.subr.mxu0 0.0
    %4291 = vmatpush2.msra.mxu0 0.0
    %4292 = vmatprep.mubr.f32.mxu0 0.0
    %4293 = vmatmul.mubr.f32.gmra.mxu0 %v4227
    %v4294 = vpop.f32.mrf.mxu0
    %v4295 = vadd.f32 0.0, %v4294
    %v4296 = vpop.f32.mrf.mxu0
    %4297 = vdwg.mxu0
    %s4298 = sld [smem:[#allocation2]]
    %s4299 = scvt.s32.f32 %s4298
    %v4300 = vstv %s4299
    %v4301 = vmul.f32 %v4300, %v4295
    %s4302 = ssub.f32 1.0, %s4299
    %v4303 = vstv %s4302
    %v4304 = vmul.f32 %v4303, %v4217
    %v4305 = vadd.f32 %v4301, %v4304
    %v4306 = vld [vmem:[%s9] sm:$0xff]
    %v4307 = vld [vmem:[%s9 + $0x8] sm:$0xff]
    %v4308 = vld [vmem:[%s9 + $0x10] sm:$0xff]
    %v4309 = vld [vmem:[%s9 + $0x18] sm:$0xff]
    %v4310 = vld [vmem:[%s10] sm:$0xff]
    %v4311 = vld [vmem:[%s10 + $0x8] sm:$0xff]
    %v4312 = vld [vmem:[%s10 + $0x10] sm:$0xff]
    %v4313 = vld [vmem:[%s10 + $0x18] sm:$0xff]
    %4314 = vmatprep.subr.mxu0 0.0
    %4315 = vmatpush1.msra.mxu0 0.0
    %4316 = vmatprep.subr.mxu0 0.0
    %4317 = vmatpush1.msra.mxu0 0.0
    %4318 = vmatprep.subr.mxu0 0.0
    %4319 = vmatpush1.msra.mxu0 0.0
    %4320 = vmatprep.subr.mxu0 0.0
    %4321 = vmatpush1.msra.mxu0 0.0
    %4322 = vmatprep.subr.mxu0 0.0
    %4323 = vmatpush1.msra.mxu0 0.0
    %4324 = vmatprep.subr.mxu0 0.0
    %4325 = vmatpush1.msra.mxu0 0.0
    %4326 = vmatprep.subr.mxu0 0.0
    %4327 = vmatpush1.msra.mxu0 0.0
    %4328 = vmatprep.subr.mxu0 0.0
    %4329 = vmatpush1.msra.mxu0 0.0
    %4330 = vmatprep.subr.mxu0 0.0
    %4331 = vmatpush1.msra.mxu0 0.0
    %4332 = vmatprep.subr.mxu0 0.0
    %4333 = vmatpush1.msra.mxu0 0.0
    %4334 = vmatprep.subr.mxu0 0.0
    %4335 = vmatpush1.msra.mxu0 0.0
    %4336 = vmatprep.subr.mxu0 0.0
    %4337 = vmatpush1.msra.mxu0 0.0
    %4338 = vmatprep.subr.mxu0 0.0
    %4339 = vmatpush1.msra.mxu0 %v4313
    %4340 = vmatprep.subr.mxu0 0.0
    %4341 = vmatpush1.msra.mxu0 %v4312
    %4342 = vmatprep.subr.mxu0 0.0
    %4343 = vmatpush1.msra.mxu0 %v4311
    %4344 = vmatprep.subr.mxu0 0.0
    %4345 = vmatpush1.msra.mxu0 %v4310
    %4346 = vmatprep.subr.mxu0 0.0
    %4347 = vmatpush2.msra.mxu0 0.0
    %4348 = vmatprep.subr.mxu0 0.0
    %4349 = vmatpush2.msra.mxu0 0.0
    %4350 = vmatprep.subr.mxu0 0.0
    %4351 = vmatpush2.msra.mxu0 0.0
    %4352 = vmatprep.subr.mxu0 0.0
    %4353 = vmatpush2.msra.mxu0 0.0
    %4354 = vmatprep.subr.mxu0 0.0
    %4355 = vmatpush2.msra.mxu0 0.0
    %4356 = vmatprep.subr.mxu0 0.0
    %4357 = vmatpush2.msra.mxu0 0.0
    %4358 = vmatprep.subr.mxu0 0.0
    %4359 = vmatpush2.msra.mxu0 0.0
    %4360 = vmatprep.subr.mxu0 0.0
    %4361 = vmatpush2.msra.mxu0 0.0
    %4362 = vmatprep.subr.mxu0 0.0
    %4363 = vmatpush2.msra.mxu0 0.0
    %4364 = vmatprep.subr.mxu0 0.0
    %4365 = vmatpush2.msra.mxu0 0.0
    %4366 = vmatprep.subr.mxu0 0.0
    %4367 = vmatpush2.msra.mxu0 0.0
    %4368 = vmatprep.subr.mxu0 0.0
    %4369 = vmatpush2.msra.mxu0 0.0
    %4370 = vmatprep.subr.mxu0 0.0
    %4371 = vmatpush2.msra.mxu0 0.0
    %4372 = vmatprep.subr.mxu0 0.0
    %4373 = vmatpush2.msra.mxu0 0.0
    %4374 = vmatprep.subr.mxu0 0.0
    %4375 = vmatpush2.msra.mxu0 0.0
    %4376 = vmatprep.subr.mxu0 0.0
    %4377 = vmatpush2.msra.mxu0 0.0
    %4378 = vmatprep.mubr.f32.mxu0 0.0
    %4379 = vmatmul.mubr.f32.gmra.mxu0 %v3908
    %v4380 = vpop.f32.mrf.mxu0
    %v4381 = vadd.f32 0.0, %v4380
    %v4382 = vpop.f32.mrf.mxu0
    %4383 = vdwg.mxu0
    %v4385 = vsel %vm167, %v4305, 0
    %4387 = vmatprep.subr.mxu0 0.0
    %4388 = vmatpush1.msra.mxu0 0.0
    %4389 = vmatprep.subr.mxu0 0.0
    %4390 = vmatpush1.msra.mxu0 0.0
    %4391 = vmatprep.subr.mxu0 0.0
    %4392 = vmatpush1.msra.mxu0 0.0
    %4393 = vmatprep.subr.mxu0 0.0
    %4394 = vmatpush1.msra.mxu0 0.0
    %4395 = vmatprep.subr.mxu0 0.0
    %4396 = vmatpush1.msra.mxu0 0.0
    %4397 = vmatprep.subr.mxu0 0.0
    %4398 = vmatpush1.msra.mxu0 0.0
    %4399 = vmatprep.subr.mxu0 0.0
    %4400 = vmatpush1.msra.mxu0 0.0
    %4401 = vmatprep.subr.mxu0 0.0
    %4402 = vmatpush1.msra.mxu0 0.0
    %4403 = vmatprep.subr.mxu0 0.0
    %4404 = vmatpush1.msra.mxu0 0.0
    %4405 = vmatprep.subr.mxu0 0.0
    %4406 = vmatpush1.msra.mxu0 0.0
    %4407 = vmatprep.subr.mxu0 0.0
    %4408 = vmatpush1.msra.mxu0 0.0
    %4409 = vmatprep.subr.mxu0 0.0
    %4410 = vmatpush1.msra.mxu0 0.0
    %4411 = vmatprep.subr.mxu0 0.0
    %4412 = vmatpush1.msra.mxu0 %v4309
    %4413 = vmatprep.subr.mxu0 0.0
    %4414 = vmatpush1.msra.mxu0 %v4308
    %4415 = vmatprep.subr.mxu0 0.0
    %4416 = vmatpush1.msra.mxu0 %v4307
    %4417 = vmatprep.subr.mxu0 0.0
    %4418 = vmatpush1.msra.mxu0 %v4306
    %4419 = vmatprep.subr.mxu0 0.0
    %4420 = vmatpush2.msra.mxu0 0.0
    %4421 = vmatprep.subr.mxu0 0.0
    %4422 = vmatpush2.msra.mxu0 0.0
    %4423 = vmatprep.subr.mxu0 0.0
    %4424 = vmatpush2.msra.mxu0 0.0
    %4425 = vmatprep.subr.mxu0 0.0
    %4426 = vmatpush2.msra.mxu0 0.0
    %4427 = vmatprep.subr.mxu0 0.0
    %4428 = vmatpush2.msra.mxu0 0.0
    %4429 = vmatprep.subr.mxu0 0.0
    %4430 = vmatpush2.msra.mxu0 0.0
    %4431 = vmatprep.subr.mxu0 0.0
    %4432 = vmatpush2.msra.mxu0 0.0
    %4433 = vmatprep.subr.mxu0 0.0
    %4434 = vmatpush2.msra.mxu0 0.0
    %4435 = vmatprep.subr.mxu0 0.0
    %4436 = vmatpush2.msra.mxu0 0.0
    %4437 = vmatprep.subr.mxu0 0.0
    %4438 = vmatpush2.msra.mxu0 0.0
    %4439 = vmatprep.subr.mxu0 0.0
    %4440 = vmatpush2.msra.mxu0 0.0
    %4441 = vmatprep.subr.mxu0 0.0
    %4442 = vmatpush2.msra.mxu0 0.0
    %4443 = vmatprep.subr.mxu0 0.0
    %4444 = vmatpush2.msra.mxu0 0.0
    %4445 = vmatprep.subr.mxu0 0.0
    %4446 = vmatpush2.msra.mxu0 0.0
    %4447 = vmatprep.subr.mxu0 0.0
    %4448 = vmatpush2.msra.mxu0 0.0
    %4449 = vmatprep.subr.mxu0 0.0
    %4450 = vmatpush2.msra.mxu0 0.0
    %4451 = vmatprep.mubr.f32.mxu0 0.0
    %4452 = vmatmul.mubr.f32.gmra.mxu0 %v4385
    %v4453 = vpop.f32.mrf.mxu0
    %v4454 = vadd.f32 %v4381, %v4453
    %v4455 = vpop.f32.mrf.mxu0
    %4456 = vdwg.mxu0
    %v4457 = vld [vmem:[%s11] sm:$0x1]
    %v4459 = vlaneseq
    %v4460 = vshrl.u32 %v4459, 7
    %v4461 = vsub.s32 0, %v4460
    %v4462 = vrot.slane %v4457, %v4461
    %v4464 = vadd.f32 %v4454, %v4462
    %v4465 = vxor.u32 %v4464, 2147483648
    %v4466 = vmul.f32 %v4465, 1.442695
    %v4467 = vpow.pop %v4466
    %v4468 = vadd.f32 %v4467, 1.0
    %v4469 = vrcp.pop %v4468
    %v4470 = vmul.f32 1.0, %v4469
    %v4471 = vld [vmem:[%s12] sm:$0x1]
    %v4473 = vlaneseq
    %v4474 = vshrl.u32 %v4473, 7
    %v4475 = vsub.s32 0, %v4474
    %v4476 = vrot.slane %v4471, %v4475
    %4477 = vrot.lane.b32.xlu0 %v4476, 96
    %v4478 = vpop.permute.xlu0 %4477
    %v4480 = vadd.f32 %v4464, %v4478
    %4482 = vrot.lane.b32.xlu0 %v4480, 32
    %v4483 = vpop.permute.xlu0 %4482
    %v4485 = vmul.f32 %v4470, %v4483
    %4487 = vrot.lane.b32.xlu0 %v4485, 64
    %v4488 = vpop.permute.xlu0 %4487
    %v4490 = vadd.f32 %v4464, %v4488
    %v4491 = vtanh.pop %v4490
    %v4492 = vsub.f32 1.0, %v4470
    %4494 = vrot.lane.b32.xlu0 %v4491, 96
    %v4495 = vpop.permute.xlu0 %4494
    %v4497 = vmul.f32 %v4492, %v4495
    %v4498 = vmul.f32 %v4470, %v3819
    %v4499 = vadd.f32 %v4497, %v4498
    %v4500 = vld [vmem:[%s3820] sm:$0xff]
    %v4501 = vld [vmem:[%s3820 + $0x8] sm:$0xff]
    %v4502 = vld [vmem:[%s3820 + $0x10] sm:$0xff]
    %v4503 = vld [vmem:[%s3820 + $0x18] sm:$0xff]
    %v4504 = vld [vmem:[%s3825] sm:$0xff]
    %v4505 = vld [vmem:[%s3825 + $0x8] sm:$0xff]
    %v4506 = vld [vmem:[%s3825 + $0x10] sm:$0xff]
    %v4507 = vld [vmem:[%s3825 + $0x18] sm:$0xff]
    %4508 = vmatprep.subr.mxu0 0.0
    %4509 = vmatpush1.msra.mxu0 0.0
    %4510 = vmatprep.subr.mxu0 0.0
    %4511 = vmatpush1.msra.mxu0 0.0
    %4512 = vmatprep.subr.mxu0 0.0
    %4513 = vmatpush1.msra.mxu0 0.0
    %4514 = vmatprep.subr.mxu0 0.0
    %4515 = vmatpush1.msra.mxu0 0.0
    %4516 = vmatprep.subr.mxu0 0.0
    %4517 = vmatpush1.msra.mxu0 0.0
    %4518 = vmatprep.subr.mxu0 0.0
    %4519 = vmatpush1.msra.mxu0 0.0
    %4520 = vmatprep.subr.mxu0 0.0
    %4521 = vmatpush1.msra.mxu0 0.0
    %4522 = vmatprep.subr.mxu0 0.0
    %4523 = vmatpush1.msra.mxu0 0.0
    %4524 = vmatprep.subr.mxu0 0.0
    %4525 = vmatpush1.msra.mxu0 0.0
    %4526 = vmatprep.subr.mxu0 0.0
    %4527 = vmatpush1.msra.mxu0 0.0
    %4528 = vmatprep.subr.mxu0 0.0
    %4529 = vmatpush1.msra.mxu0 0.0
    %4530 = vmatprep.subr.mxu0 0.0
    %4531 = vmatpush1.msra.mxu0 0.0
    %4532 = vmatprep.subr.mxu0 0.0
    %4533 = vmatpush1.msra.mxu0 %v4507
    %4534 = vmatprep.subr.mxu0 0.0
    %4535 = vmatpush1.msra.mxu0 %v4506
    %4536 = vmatprep.subr.mxu0 0.0
    %4537 = vmatpush1.msra.mxu0 %v4505
    %4538 = vmatprep.subr.mxu0 0.0
    %4539 = vmatpush1.msra.mxu0 %v4504
    %4540 = vmatprep.subr.mxu0 0.0
    %4541 = vmatpush2.msra.mxu0 0.0
    %4542 = vmatprep.subr.mxu0 0.0
    %4543 = vmatpush2.msra.mxu0 0.0
    %4544 = vmatprep.subr.mxu0 0.0
    %4545 = vmatpush2.msra.mxu0 0.0
    %4546 = vmatprep.subr.mxu0 0.0
    %4547 = vmatpush2.msra.mxu0 0.0
    %4548 = vmatprep.subr.mxu0 0.0
    %4549 = vmatpush2.msra.mxu0 0.0
    %4550 = vmatprep.subr.mxu0 0.0
    %4551 = vmatpush2.msra.mxu0 0.0
    %4552 = vmatprep.subr.mxu0 0.0
    %4553 = vmatpush2.msra.mxu0 0.0
    %4554 = vmatprep.subr.mxu0 0.0
    %4555 = vmatpush2.msra.mxu0 0.0
    %4556 = vmatprep.subr.mxu0 0.0
    %4557 = vmatpush2.msra.mxu0 0.0
    %4558 = vmatprep.subr.mxu0 0.0
    %4559 = vmatpush2.msra.mxu0 0.0
    %4560 = vmatprep.subr.mxu0 0.0
    %4561 = vmatpush2.msra.mxu0 0.0
    %4562 = vmatprep.subr.mxu0 0.0
    %4563 = vmatpush2.msra.mxu0 0.0
    %4564 = vmatprep.subr.mxu0 0.0
    %4565 = vmatpush2.msra.mxu0 0.0
    %4566 = vmatprep.subr.mxu0 0.0
    %4567 = vmatpush2.msra.mxu0 0.0
    %4568 = vmatprep.subr.mxu0 0.0
    %4569 = vmatpush2.msra.mxu0 0.0
    %4570 = vmatprep.subr.mxu0 0.0
    %4571 = vmatpush2.msra.mxu0 0.0
    %4572 = vmatprep.mubr.f32.mxu0 0.0
    %4573 = vmatmul.mubr.f32.gmra.mxu0 %v4039
    %v4574 = vpop.f32.mrf.mxu0
    %v4575 = vadd.f32 0.0, %v4574
    %v4576 = vpop.f32.mrf.mxu0
    %4577 = vdwg.mxu0
    %4579 = vrot.lane.b32.xlu0 %v4499, 96
    %v4580 = vpop.permute.xlu0 %4579
    %v4581 = vsel %vm167, %v4580, 0
    %4583 = vmatprep.subr.mxu0 0.0
    %4584 = vmatpush1.msra.mxu0 0.0
    %4585 = vmatprep.subr.mxu0 0.0
    %4586 = vmatpush1.msra.mxu0 0.0
    %4587 = vmatprep.subr.mxu0 0.0
    %4588 = vmatpush1.msra.mxu0 0.0
    %4589 = vmatprep.subr.mxu0 0.0
    %4590 = vmatpush1.msra.mxu0 0.0
    %4591 = vmatprep.subr.mxu0 0.0
    %4592 = vmatpush1.msra.mxu0 0.0
    %4593 = vmatprep.subr.mxu0 0.0
    %4594 = vmatpush1.msra.mxu0 0.0
    %4595 = vmatprep.subr.mxu0 0.0
    %4596 = vmatpush1.msra.mxu0 0.0
    %4597 = vmatprep.subr.mxu0 0.0
    %4598 = vmatpush1.msra.mxu0 0.0
    %4599 = vmatprep.subr.mxu0 0.0
    %4600 = vmatpush1.msra.mxu0 0.0
    %4601 = vmatprep.subr.mxu0 0.0
    %4602 = vmatpush1.msra.mxu0 0.0
    %4603 = vmatprep.subr.mxu0 0.0
    %4604 = vmatpush1.msra.mxu0 0.0
    %4605 = vmatprep.subr.mxu0 0.0
    %4606 = vmatpush1.msra.mxu0 0.0
    %4607 = vmatprep.subr.mxu0 0.0
    %4608 = vmatpush1.msra.mxu0 %v4503
    %4609 = vmatprep.subr.mxu0 0.0
    %4610 = vmatpush1.msra.mxu0 %v4502
    %4611 = vmatprep.subr.mxu0 0.0
    %4612 = vmatpush1.msra.mxu0 %v4501
    %4613 = vmatprep.subr.mxu0 0.0
    %4614 = vmatpush1.msra.mxu0 %v4500
    %4615 = vmatprep.subr.mxu0 0.0
    %4616 = vmatpush2.msra.mxu0 0.0
    %4617 = vmatprep.subr.mxu0 0.0
    %4618 = vmatpush2.msra.mxu0 0.0
    %4619 = vmatprep.subr.mxu0 0.0
    %4620 = vmatpush2.msra.mxu0 0.0
    %4621 = vmatprep.subr.mxu0 0.0
    %4622 = vmatpush2.msra.mxu0 0.0
    %4623 = vmatprep.subr.mxu0 0.0
    %4624 = vmatpush2.msra.mxu0 0.0
    %4625 = vmatprep.subr.mxu0 0.0
    %4626 = vmatpush2.msra.mxu0 0.0
    %4627 = vmatprep.subr.mxu0 0.0
    %4628 = vmatpush2.msra.mxu0 0.0
    %4629 = vmatprep.subr.mxu0 0.0
    %4630 = vmatpush2.msra.mxu0 0.0
    %4631 = vmatprep.subr.mxu0 0.0
    %4632 = vmatpush2.msra.mxu0 0.0
    %4633 = vmatprep.subr.mxu0 0.0
    %4634 = vmatpush2.msra.mxu0 0.0
    %4635 = vmatprep.subr.mxu0 0.0
    %4636 = vmatpush2.msra.mxu0 0.0
    %4637 = vmatprep.subr.mxu0 0.0
    %4638 = vmatpush2.msra.mxu0 0.0
    %4639 = vmatprep.subr.mxu0 0.0
    %4640 = vmatpush2.msra.mxu0 0.0
    %4641 = vmatprep.subr.mxu0 0.0
    %4642 = vmatpush2.msra.mxu0 0.0
    %4643 = vmatprep.subr.mxu0 0.0
    %4644 = vmatpush2.msra.mxu0 0.0
    %4645 = vmatprep.subr.mxu0 0.0
    %4646 = vmatpush2.msra.mxu0 0.0
    %4647 = vmatprep.mubr.f32.mxu0 0.0
    %4648 = vmatmul.mubr.f32.gmra.mxu0 %v4581
    %v4649 = vpop.f32.mrf.mxu0
    %v4650 = vadd.f32 %v4575, %v4649
    %v4651 = vpop.f32.mrf.mxu0
    %4652 = vdwg.mxu0
    %v4653 = vld [vmem:[%s3980] sm:$0x1]
    %v4655 = vlaneseq
    %v4656 = vshrl.u32 %v4655, 7
    %v4657 = vsub.s32 0, %v4656
    %v4658 = vrot.slane %v4653, %v4657
    %v4660 = vadd.f32 %v4650, %v4658
    %v4661 = vxor.u32 %v4660, 2147483648
    %v4662 = vmul.f32 %v4661, 1.442695
    %v4663 = vpow.pop %v4662
    %v4664 = vadd.f32 %v4663, 1.0
    %v4665 = vrcp.pop %v4664
    %v4666 = vmul.f32 1.0, %v4665
    %v4667 = vld [vmem:[%s3995] sm:$0x1]
    %v4669 = vlaneseq
    %v4670 = vshrl.u32 %v4669, 7
    %v4671 = vsub.s32 0, %v4670
    %v4672 = vrot.slane %v4667, %v4671
    %4673 = vrot.lane.b32.xlu0 %v4672, 96
    %v4674 = vpop.permute.xlu0 %4673
    %v4676 = vadd.f32 %v4660, %v4674
    %4678 = vrot.lane.b32.xlu0 %v4676, 32
    %v4679 = vpop.permute.xlu0 %4678
    %v4681 = vmul.f32 %v4666, %v4679
    %4683 = vrot.lane.b32.xlu0 %v4681, 64
    %v4684 = vpop.permute.xlu0 %4683
    %v4686 = vadd.f32 %v4660, %v4684
    %v4687 = vtanh.pop %v4686
    %v4688 = vsub.f32 1.0, %v4666
    %4690 = vrot.lane.b32.xlu0 %v4687, 96
    %v4691 = vpop.permute.xlu0 %4690
    %v4693 = vmul.f32 %v4688, %v4691
    %v4694 = vmul.f32 %v4666, %v4024
    %v4695 = vadd.f32 %v4693, %v4694
    %v4696 = vld [vmem:[%s13] sm:$0xff]
    %v4697 = vld [vmem:[%s13 + $0x8] sm:$0xff]
    %v4698 = vld [vmem:[%s13 + $0x10] sm:$0xff]
    %v4699 = vld [vmem:[%s13 + $0x18] sm:$0xff]
    %v4700 = vld [vmem:[%s14] sm:$0x1]
    %v4702 = vlaneseq
    %v4703 = vshrl.u32 %v4702, 7
    %v4704 = vsub.s32 0, %v4703
    %v4705 = vrot.slane %v4700, %v4704
    %4708 = vrot.lane.b32.xlu0 %v4695, 96
    %v4709 = vpop.permute.xlu0 %4708
    %v4710 = vsel %vm167, %v4709, 0
    %4712 = vmatprep.subr.mxu0 0.0
    %4713 = vmatpush1.msra.mxu0 0.0
    %4714 = vmatprep.subr.mxu0 0.0
    %4715 = vmatpush1.msra.mxu0 0.0
    %4716 = vmatprep.subr.mxu0 0.0
    %4717 = vmatpush1.msra.mxu0 0.0
    %4718 = vmatprep.subr.mxu0 0.0
    %4719 = vmatpush1.msra.mxu0 0.0
    %4720 = vmatprep.subr.mxu0 0.0
    %4721 = vmatpush1.msra.mxu0 0.0
    %4722 = vmatprep.subr.mxu0 0.0
    %4723 = vmatpush1.msra.mxu0 0.0
    %4724 = vmatprep.subr.mxu0 0.0
    %4725 = vmatpush1.msra.mxu0 0.0
    %4726 = vmatprep.subr.mxu0 0.0
    %4727 = vmatpush1.msra.mxu0 0.0
    %4728 = vmatprep.subr.mxu0 0.0
    %4729 = vmatpush1.msra.mxu0 0.0
    %4730 = vmatprep.subr.mxu0 0.0
    %4731 = vmatpush1.msra.mxu0 0.0
    %4732 = vmatprep.subr.mxu0 0.0
    %4733 = vmatpush1.msra.mxu0 0.0
    %4734 = vmatprep.subr.mxu0 0.0
    %4735 = vmatpush1.msra.mxu0 0.0
    %4736 = vmatprep.subr.mxu0 0.0
    %4737 = vmatpush1.msra.mxu0 %v4699
    %4738 = vmatprep.subr.mxu0 0.0
    %4739 = vmatpush1.msra.mxu0 %v4698
    %4740 = vmatprep.subr.mxu0 0.0
    %4741 = vmatpush1.msra.mxu0 %v4697
    %4742 = vmatprep.subr.mxu0 0.0
    %4743 = vmatpush1.msra.mxu0 %v4696
    %4744 = vmatprep.subr.mxu0 0.0
    %4745 = vmatpush2.msra.mxu0 0.0
    %4746 = vmatprep.subr.mxu0 0.0
    %4747 = vmatpush2.msra.mxu0 0.0
    %4748 = vmatprep.subr.mxu0 0.0
    %4749 = vmatpush2.msra.mxu0 0.0
    %4750 = vmatprep.subr.mxu0 0.0
    %4751 = vmatpush2.msra.mxu0 0.0
    %4752 = vmatprep.subr.mxu0 0.0
    %4753 = vmatpush2.msra.mxu0 0.0
    %4754 = vmatprep.subr.mxu0 0.0
    %4755 = vmatpush2.msra.mxu0 0.0
    %4756 = vmatprep.subr.mxu0 0.0
    %4757 = vmatpush2.msra.mxu0 0.0
    %4758 = vmatprep.subr.mxu0 0.0
    %4759 = vmatpush2.msra.mxu0 0.0
    %4760 = vmatprep.subr.mxu0 0.0
    %4761 = vmatpush2.msra.mxu0 0.0
    %4762 = vmatprep.subr.mxu0 0.0
    %4763 = vmatpush2.msra.mxu0 0.0
    %4764 = vmatprep.subr.mxu0 0.0
    %4765 = vmatpush2.msra.mxu0 0.0
    %4766 = vmatprep.subr.mxu0 0.0
    %4767 = vmatpush2.msra.mxu0 0.0
    %4768 = vmatprep.subr.mxu0 0.0
    %4769 = vmatpush2.msra.mxu0 0.0
    %4770 = vmatprep.subr.mxu0 0.0
    %4771 = vmatpush2.msra.mxu0 0.0
    %4772 = vmatprep.subr.mxu0 0.0
    %4773 = vmatpush2.msra.mxu0 0.0
    %4774 = vmatprep.subr.mxu0 0.0
    %4775 = vmatpush2.msra.mxu0 0.0
    %4776 = vmatprep.mubr.f32.mxu0 0.0
    %4777 = vmatmul.mubr.f32.gmra.mxu0 %v4710
    %v4778 = vpop.f32.mrf.mxu0
    %v4779 = vadd.f32 %v4705, %v4778
    %v4780 = vpop.f32.mrf.mxu0
    %4781 = vdwg.mxu0
    %s4782 = scalar_lea.vmem [#allocation5], 16
    %4783 = vst [vmem:[%s4782] sm:$0xff] %v4779
    %4784 = vmax.xlane.f32.xlu0 %v4779
    %v4785 = vpop.xlane.xlu0 %4784
    %vm4786 = vcmp.ge.f32.partialorder %v4779, %v4785
    %v4787 = vsel %vm4786, %v65, 128
    %v4788 = vand.u32 %v4787, 65535
    %v4789 = vshra.s32 %v4787, 16
    %v4790 = vcvt.s32.f32 %v4788
    %v4791 = vcvt.s32.f32 %v4789
    %4792 = vmin.xlane.f32.xlu0 %v4791
    %v4793 = vpop.xlane.xlu0 %4792
    %vm4794 = vcmp.eq.f32.partialorder %v4791, %v4793
    %v4795 = vsel %vm4794, %v4790, inf
    %4796 = vmin.xlane.f32.xlu0 %v4795
    %v4797 = vpop.xlane.xlu0 %4796
    %v4798 = vcvt.f32.s32 %v4797
    %v4799 = vcvt.f32.s32 %v4793
    %v4800 = vshll.u32 %v4799, 16
    %v4801 = vadd.s32 %v4800, %v4798
    %vm4802 = vcmp.eq.s32.totalorder %v65, %v4801
    %v4803 = vsel %vm4802, 1, 0
    %v4804 = vcvt.s32.f32 %v4803
    %v4805 = vld [vmem:[%s4] sm:$0xff]
    %v4806 = vld [vmem:[%s4 + $0x8] sm:$0xff]
    %v4807 = vld [vmem:[%s4 + $0x10] sm:$0xff]
    %v4808 = vld [vmem:[%s4 + $0x18] sm:$0xff]
    %v4809 = vld [vmem:[%s4 + $0x20] sm:$0xff]
    %v4810 = vld [vmem:[%s4 + $0x28] sm:$0xff]
    %v4811 = vld [vmem:[%s4 + $0x30] sm:$0xff]
    %v4812 = vld [vmem:[%s4 + $0x38] sm:$0xff]
    %v4813 = vld [vmem:[%s4 + $0x40] sm:$0xff]
    %v4814 = vld [vmem:[%s4 + $0x48] sm:$0xff]
    %v4815 = vld [vmem:[%s4 + $0x50] sm:$0xff]
    %v4816 = vld [vmem:[%s4 + $0x58] sm:$0xff]
    %v4817 = vld [vmem:[%s4 + $0x60] sm:$0xff]
    %v4818 = vld [vmem:[%s4 + $0x68] sm:$0xff]
    %v4819 = vld [vmem:[%s4 + $0x70] sm:$0xff]
    %v4820 = vld [vmem:[%s4 + $0x78] sm:$0xff]
    %4821 = vmatprep.subr.mxu0 0.0
    %4822 = vmatpush1.msra.mxu0 %v4820
    %4823 = vmatprep.subr.mxu0 0.0
    %4824 = vmatpush1.msra.mxu0 %v4819
    %4825 = vmatprep.subr.mxu0 0.0
    %4826 = vmatpush1.msra.mxu0 %v4818
    %4827 = vmatprep.subr.mxu0 0.0
    %4828 = vmatpush1.msra.mxu0 %v4817
    %4829 = vmatprep.subr.mxu0 0.0
    %4830 = vmatpush1.msra.mxu0 %v4816
    %4831 = vmatprep.subr.mxu0 0.0
    %4832 = vmatpush1.msra.mxu0 %v4815
    %4833 = vmatprep.subr.mxu0 0.0
    %4834 = vmatpush1.msra.mxu0 %v4814
    %4835 = vmatprep.subr.mxu0 0.0
    %4836 = vmatpush1.msra.mxu0 %v4813
    %4837 = vmatprep.subr.mxu0 0.0
    %4838 = vmatpush1.msra.mxu0 %v4812
    %4839 = vmatprep.subr.mxu0 0.0
    %4840 = vmatpush1.msra.mxu0 %v4811
    %4841 = vmatprep.subr.mxu0 0.0
    %4842 = vmatpush1.msra.mxu0 %v4810
    %4843 = vmatprep.subr.mxu0 0.0
    %4844 = vmatpush1.msra.mxu0 %v4809
    %4845 = vmatprep.subr.mxu0 0.0
    %4846 = vmatpush1.msra.mxu0 %v4808
    %4847 = vmatprep.subr.mxu0 0.0
    %4848 = vmatpush1.msra.mxu0 %v4807
    %4849 = vmatprep.subr.mxu0 0.0
    %4850 = vmatpush1.msra.mxu0 %v4806
    %4851 = vmatprep.subr.mxu0 0.0
    %4852 = vmatpush1.msra.mxu0 %v4805
    %4853 = vmatprep.subr.mxu0 0.0
    %4854 = vmatpush2.msra.mxu0 0.0
    %4855 = vmatprep.subr.mxu0 0.0
    %4856 = vmatpush2.msra.mxu0 0.0
    %4857 = vmatprep.subr.mxu0 0.0
    %4858 = vmatpush2.msra.mxu0 0.0
    %4859 = vmatprep.subr.mxu0 0.0
    %4860 = vmatpush2.msra.mxu0 0.0
    %4861 = vmatprep.subr.mxu0 0.0
    %4862 = vmatpush2.msra.mxu0 0.0
    %4863 = vmatprep.subr.mxu0 0.0
    %4864 = vmatpush2.msra.mxu0 0.0
    %4865 = vmatprep.subr.mxu0 0.0
    %4866 = vmatpush2.msra.mxu0 0.0
    %4867 = vmatprep.subr.mxu0 0.0
    %4868 = vmatpush2.msra.mxu0 0.0
    %4869 = vmatprep.subr.mxu0 0.0
    %4870 = vmatpush2.msra.mxu0 0.0
    %4871 = vmatprep.subr.mxu0 0.0
    %4872 = vmatpush2.msra.mxu0 0.0
    %4873 = vmatprep.subr.mxu0 0.0
    %4874 = vmatpush2.msra.mxu0 0.0
    %4875 = vmatprep.subr.mxu0 0.0
    %4876 = vmatpush2.msra.mxu0 0.0
    %4877 = vmatprep.subr.mxu0 0.0
    %4878 = vmatpush2.msra.mxu0 0.0
    %4879 = vmatprep.subr.mxu0 0.0
    %4880 = vmatpush2.msra.mxu0 0.0
    %4881 = vmatprep.subr.mxu0 0.0
    %4882 = vmatpush2.msra.mxu0 0.0
    %4883 = vmatprep.subr.mxu0 0.0
    %4884 = vmatpush2.msra.mxu0 0.0
    %4885 = vmatprep.mubr.f32.mxu0 0.0
    %4886 = vmatmul.mubr.f32.gmra.mxu0 %v4804
    %v4887 = vpop.f32.mrf.mxu0
    %v4888 = vadd.f32 0.0, %v4887
    %v4889 = vpop.f32.mrf.mxu0
    %4890 = vdwg.mxu0
    %s4891 = scalar_lea.vmem %s1, 16
    %v4892 = vld [vmem:[%s4891] sm:$0xff]
    %4893 = vset.pattern.permute.xlu0 0
    %4894 = vperm.xlu0 %4893, %v4892
    %v4895 = vpop.permute.xlu0 %4894
    %vm4896 = vcmp.eq.s32.totalorder %v4895, %v65
    %v4897 = vsel %vm4896, 1, 0
    %v4898 = vcvt.s32.f32 %v4897
    %4899 = vmatprep.subr.mxu0 0.0
    %4900 = vmatpush1.msra.mxu0 %v4820
    %4901 = vmatprep.subr.mxu0 0.0
    %4902 = vmatpush1.msra.mxu0 %v4819
    %4903 = vmatprep.subr.mxu0 0.0
    %4904 = vmatpush1.msra.mxu0 %v4818
    %4905 = vmatprep.subr.mxu0 0.0
    %4906 = vmatpush1.msra.mxu0 %v4817
    %4907 = vmatprep.subr.mxu0 0.0
    %4908 = vmatpush1.msra.mxu0 %v4816
    %4909 = vmatprep.subr.mxu0 0.0
    %4910 = vmatpush1.msra.mxu0 %v4815
    %4911 = vmatprep.subr.mxu0 0.0
    %4912 = vmatpush1.msra.mxu0 %v4814
    %4913 = vmatprep.subr.mxu0 0.0
    %4914 = vmatpush1.msra.mxu0 %v4813
    %4915 = vmatprep.subr.mxu0 0.0
    %4916 = vmatpush1.msra.mxu0 %v4812
    %4917 = vmatprep.subr.mxu0 0.0
    %4918 = vmatpush1.msra.mxu0 %v4811
    %4919 = vmatprep.subr.mxu0 0.0
    %4920 = vmatpush1.msra.mxu0 %v4810
    %4921 = vmatprep.subr.mxu0 0.0
    %4922 = vmatpush1.msra.mxu0 %v4809
    %4923 = vmatprep.subr.mxu0 0.0
    %4924 = vmatpush1.msra.mxu0 %v4808
    %4925 = vmatprep.subr.mxu0 0.0
    %4926 = vmatpush1.msra.mxu0 %v4807
    %4927 = vmatprep.subr.mxu0 0.0
    %4928 = vmatpush1.msra.mxu0 %v4806
    %4929 = vmatprep.subr.mxu0 0.0
    %4930 = vmatpush1.msra.mxu0 %v4805
    %4931 = vmatprep.subr.mxu0 0.0
    %4932 = vmatpush2.msra.mxu0 0.0
    %4933 = vmatprep.subr.mxu0 0.0
    %4934 = vmatpush2.msra.mxu0 0.0
    %4935 = vmatprep.subr.mxu0 0.0
    %4936 = vmatpush2.msra.mxu0 0.0
    %4937 = vmatprep.subr.mxu0 0.0
    %4938 = vmatpush2.msra.mxu0 0.0
    %4939 = vmatprep.subr.mxu0 0.0
    %4940 = vmatpush2.msra.mxu0 0.0
    %4941 = vmatprep.subr.mxu0 0.0
    %4942 = vmatpush2.msra.mxu0 0.0
    %4943 = vmatprep.subr.mxu0 0.0
    %4944 = vmatpush2.msra.mxu0 0.0
    %4945 = vmatprep.subr.mxu0 0.0
    %4946 = vmatpush2.msra.mxu0 0.0
    %4947 = vmatprep.subr.mxu0 0.0
    %4948 = vmatpush2.msra.mxu0 0.0
    %4949 = vmatprep.subr.mxu0 0.0
    %4950 = vmatpush2.msra.mxu0 0.0
    %4951 = vmatprep.subr.mxu0 0.0
    %4952 = vmatpush2.msra.mxu0 0.0
    %4953 = vmatprep.subr.mxu0 0.0
    %4954 = vmatpush2.msra.mxu0 0.0
    %4955 = vmatprep.subr.mxu0 0.0
    %4956 = vmatpush2.msra.mxu0 0.0
    %4957 = vmatprep.subr.mxu0 0.0
    %4958 = vmatpush2.msra.mxu0 0.0
    %4959 = vmatprep.subr.mxu0 0.0
    %4960 = vmatpush2.msra.mxu0 0.0
    %4961 = vmatprep.subr.mxu0 0.0
    %4962 = vmatpush2.msra.mxu0 0.0
    %4963 = vmatprep.mubr.f32.mxu0 0.0
    %4964 = vmatmul.mubr.f32.gmra.mxu0 %v4898
    %v4965 = vpop.f32.mrf.mxu0
    %v4966 = vadd.f32 0.0, %v4965
    %v4967 = vpop.f32.mrf.mxu0
    %4968 = vdwg.mxu0
    %s4969 = sld [smem:[#allocation2 + $0x1]]
    %s4970 = scvt.s32.f32 %s4969
    %v4971 = vstv %s4970
    %v4972 = vmul.f32 %v4971, %v4966
    %s4973 = ssub.f32 1.0, %s4970
    %v4974 = vstv %s4973
    %v4975 = vmul.f32 %v4974, %v4888
    %v4976 = vadd.f32 %v4972, %v4975
    %v4977 = vld [vmem:[%s9] sm:$0xff]
    %v4978 = vld [vmem:[%s9 + $0x8] sm:$0xff]
    %v4979 = vld [vmem:[%s9 + $0x10] sm:$0xff]
    %v4980 = vld [vmem:[%s9 + $0x18] sm:$0xff]
    %v4981 = vld [vmem:[%s10] sm:$0xff]
    %v4982 = vld [vmem:[%s10 + $0x8] sm:$0xff]
    %v4983 = vld [vmem:[%s10 + $0x10] sm:$0xff]
    %v4984 = vld [vmem:[%s10 + $0x18] sm:$0xff]
    %4985 = vmatprep.subr.mxu0 0.0
    %4986 = vmatpush1.msra.mxu0 0.0
    %4987 = vmatprep.subr.mxu0 0.0
    %4988 = vmatpush1.msra.mxu0 0.0
    %4989 = vmatprep.subr.mxu0 0.0
    %4990 = vmatpush1.msra.mxu0 0.0
    %4991 = vmatprep.subr.mxu0 0.0
    %4992 = vmatpush1.msra.mxu0 0.0
    %4993 = vmatprep.subr.mxu0 0.0
    %4994 = vmatpush1.msra.mxu0 0.0
    %4995 = vmatprep.subr.mxu0 0.0
    %4996 = vmatpush1.msra.mxu0 0.0
    %4997 = vmatprep.subr.mxu0 0.0
    %4998 = vmatpush1.msra.mxu0 0.0
    %4999 = vmatprep.subr.mxu0 0.0
    %5000 = vmatpush1.msra.mxu0 0.0
    %5001 = vmatprep.subr.mxu0 0.0
    %5002 = vmatpush1.msra.mxu0 0.0
    %5003 = vmatprep.subr.mxu0 0.0
    %5004 = vmatpush1.msra.mxu0 0.0
    %5005 = vmatprep.subr.mxu0 0.0
    %5006 = vmatpush1.msra.mxu0 0.0
    %5007 = vmatprep.subr.mxu0 0.0
    %5008 = vmatpush1.msra.mxu0 0.0
    %5009 = vmatprep.subr.mxu0 0.0
    %5010 = vmatpush1.msra.mxu0 %v4984
    %5011 = vmatprep.subr.mxu0 0.0
    %5012 = vmatpush1.msra.mxu0 %v4983
    %5013 = vmatprep.subr.mxu0 0.0
    %5014 = vmatpush1.msra.mxu0 %v4982
    %5015 = vmatprep.subr.mxu0 0.0
    %5016 = vmatpush1.msra.mxu0 %v4981
    %5017 = vmatprep.subr.mxu0 0.0
    %5018 = vmatpush2.msra.mxu0 0.0
    %5019 = vmatprep.subr.mxu0 0.0
    %5020 = vmatpush2.msra.mxu0 0.0
    %5021 = vmatprep.subr.mxu0 0.0
    %5022 = vmatpush2.msra.mxu0 0.0
    %5023 = vmatprep.subr.mxu0 0.0
    %5024 = vmatpush2.msra.mxu0 0.0
    %5025 = vmatprep.subr.mxu0 0.0
    %5026 = vmatpush2.msra.mxu0 0.0
    %5027 = vmatprep.subr.mxu0 0.0
    %5028 = vmatpush2.msra.mxu0 0.0
    %5029 = vmatprep.subr.mxu0 0.0
    %5030 = vmatpush2.msra.mxu0 0.0
    %5031 = vmatprep.subr.mxu0 0.0
    %5032 = vmatpush2.msra.mxu0 0.0
    %5033 = vmatprep.subr.mxu0 0.0
    %5034 = vmatpush2.msra.mxu0 0.0
    %5035 = vmatprep.subr.mxu0 0.0
    %5036 = vmatpush2.msra.mxu0 0.0
    %5037 = vmatprep.subr.mxu0 0.0
    %5038 = vmatpush2.msra.mxu0 0.0
    %5039 = vmatprep.subr.mxu0 0.0
    %5040 = vmatpush2.msra.mxu0 0.0
    %5041 = vmatprep.subr.mxu0 0.0
    %5042 = vmatpush2.msra.mxu0 0.0
    %5043 = vmatprep.subr.mxu0 0.0
    %5044 = vmatpush2.msra.mxu0 0.0
    %5045 = vmatprep.subr.mxu0 0.0
    %5046 = vmatpush2.msra.mxu0 0.0
    %5047 = vmatprep.subr.mxu0 0.0
    %5048 = vmatpush2.msra.mxu0 0.0
    %5049 = vmatprep.mubr.f32.mxu0 0.0
    %5050 = vmatmul.mubr.f32.gmra.mxu0 %v4581
    %v5051 = vpop.f32.mrf.mxu0
    %v5052 = vadd.f32 0.0, %v5051
    %v5053 = vpop.f32.mrf.mxu0
    %5054 = vdwg.mxu0
    %v5056 = vsel %vm167, %v4976, 0
    %5058 = vmatprep.subr.mxu0 0.0
    %5059 = vmatpush1.msra.mxu0 0.0
    %5060 = vmatprep.subr.mxu0 0.0
    %5061 = vmatpush1.msra.mxu0 0.0
    %5062 = vmatprep.subr.mxu0 0.0
    %5063 = vmatpush1.msra.mxu0 0.0
    %5064 = vmatprep.subr.mxu0 0.0
    %5065 = vmatpush1.msra.mxu0 0.0
    %5066 = vmatprep.subr.mxu0 0.0
    %5067 = vmatpush1.msra.mxu0 0.0
    %5068 = vmatprep.subr.mxu0 0.0
    %5069 = vmatpush1.msra.mxu0 0.0
    %5070 = vmatprep.subr.mxu0 0.0
    %5071 = vmatpush1.msra.mxu0 0.0
    %5072 = vmatprep.subr.mxu0 0.0
    %5073 = vmatpush1.msra.mxu0 0.0
    %5074 = vmatprep.subr.mxu0 0.0
    %5075 = vmatpush1.msra.mxu0 0.0
    %5076 = vmatprep.subr.mxu0 0.0
    %5077 = vmatpush1.msra.mxu0 0.0
    %5078 = vmatprep.subr.mxu0 0.0
    %5079 = vmatpush1.msra.mxu0 0.0
    %5080 = vmatprep.subr.mxu0 0.0
    %5081 = vmatpush1.msra.mxu0 0.0
    %5082 = vmatprep.subr.mxu0 0.0
    %5083 = vmatpush1.msra.mxu0 %v4980
    %5084 = vmatprep.subr.mxu0 0.0
    %5085 = vmatpush1.msra.mxu0 %v4979
    %5086 = vmatprep.subr.mxu0 0.0
    %5087 = vmatpush1.msra.mxu0 %v4978
    %5088 = vmatprep.subr.mxu0 0.0
    %5089 = vmatpush1.msra.mxu0 %v4977
    %5090 = vmatprep.subr.mxu0 0.0
    %5091 = vmatpush2.msra.mxu0 0.0
    %5092 = vmatprep.subr.mxu0 0.0
    %5093 = vmatpush2.msra.mxu0 0.0
    %5094 = vmatprep.subr.mxu0 0.0
    %5095 = vmatpush2.msra.mxu0 0.0
    %5096 = vmatprep.subr.mxu0 0.0
    %5097 = vmatpush2.msra.mxu0 0.0
    %5098 = vmatprep.subr.mxu0 0.0
    %5099 = vmatpush2.msra.mxu0 0.0
    %5100 = vmatprep.subr.mxu0 0.0
    %5101 = vmatpush2.msra.mxu0 0.0
    %5102 = vmatprep.subr.mxu0 0.0
    %5103 = vmatpush2.msra.mxu0 0.0
    %5104 = vmatprep.subr.mxu0 0.0
    %5105 = vmatpush2.msra.mxu0 0.0
    %5106 = vmatprep.subr.mxu0 0.0
    %5107 = vmatpush2.msra.mxu0 0.0
    %5108 = vmatprep.subr.mxu0 0.0
    %5109 = vmatpush2.msra.mxu0 0.0
    %5110 = vmatprep.subr.mxu0 0.0
    %5111 = vmatpush2.msra.mxu0 0.0
    %5112 = vmatprep.subr.mxu0 0.0
    %5113 = vmatpush2.msra.mxu0 0.0
    %5114 = vmatprep.subr.mxu0 0.0
    %5115 = vmatpush2.msra.mxu0 0.0
    %5116 = vmatprep.subr.mxu0 0.0
    %5117 = vmatpush2.msra.mxu0 0.0
    %5118 = vmatprep.subr.mxu0 0.0
    %5119 = vmatpush2.msra.mxu0 0.0
    %5120 = vmatprep.subr.mxu0 0.0
    %5121 = vmatpush2.msra.mxu0 0.0
    %5122 = vmatprep.mubr.f32.mxu0 0.0
    %5123 = vmatmul.mubr.f32.gmra.mxu0 %v5056
    %v5124 = vpop.f32.mrf.mxu0
    %v5125 = vadd.f32 %v5052, %v5124
    %v5126 = vpop.f32.mrf.mxu0
    %5127 = vdwg.mxu0
    %v5128 = vld [vmem:[%s11] sm:$0x1]
    %v5130 = vlaneseq
    %v5131 = vshrl.u32 %v5130, 7
    %v5132 = vsub.s32 0, %v5131
    %v5133 = vrot.slane %v5128, %v5132
    %v5135 = vadd.f32 %v5125, %v5133
    %v5136 = vxor.u32 %v5135, 2147483648
    %v5137 = vmul.f32 %v5136, 1.442695
    %v5138 = vpow.pop %v5137
    %v5139 = vadd.f32 %v5138, 1.0
    %v5140 = vrcp.pop %v5139
    %v5141 = vmul.f32 1.0, %v5140
    %v5142 = vld [vmem:[%s12] sm:$0x1]
    %v5144 = vlaneseq
    %v5145 = vshrl.u32 %v5144, 7
    %v5146 = vsub.s32 0, %v5145
    %v5147 = vrot.slane %v5142, %v5146
    %5148 = vrot.lane.b32.xlu0 %v5147, 96
    %v5149 = vpop.permute.xlu0 %5148
    %v5151 = vadd.f32 %v5135, %v5149
    %5153 = vrot.lane.b32.xlu0 %v5151, 32
    %v5154 = vpop.permute.xlu0 %5153
    %v5156 = vmul.f32 %v5141, %v5154
    %5158 = vrot.lane.b32.xlu0 %v5156, 64
    %v5159 = vpop.permute.xlu0 %5158
    %v5161 = vadd.f32 %v5135, %v5159
    %v5162 = vtanh.pop %v5161
    %v5163 = vsub.f32 1.0, %v5141
    %5165 = vrot.lane.b32.xlu0 %v5162, 96
    %v5166 = vpop.permute.xlu0 %5165
    %v5168 = vmul.f32 %v5163, %v5166
    %v5169 = vmul.f32 %v5141, %v4499
    %v5170 = vadd.f32 %v5168, %v5169
    %v5171 = vld [vmem:[%s3820] sm:$0xff]
    %v5172 = vld [vmem:[%s3820 + $0x8] sm:$0xff]
    %v5173 = vld [vmem:[%s3820 + $0x10] sm:$0xff]
    %v5174 = vld [vmem:[%s3820 + $0x18] sm:$0xff]
    %v5175 = vld [vmem:[%s3825] sm:$0xff]
    %v5176 = vld [vmem:[%s3825 + $0x8] sm:$0xff]
    %v5177 = vld [vmem:[%s3825 + $0x10] sm:$0xff]
    %v5178 = vld [vmem:[%s3825 + $0x18] sm:$0xff]
    %5179 = vmatprep.subr.mxu0 0.0
    %5180 = vmatpush1.msra.mxu0 0.0
    %5181 = vmatprep.subr.mxu0 0.0
    %5182 = vmatpush1.msra.mxu0 0.0
    %5183 = vmatprep.subr.mxu0 0.0
    %5184 = vmatpush1.msra.mxu0 0.0
    %5185 = vmatprep.subr.mxu0 0.0
    %5186 = vmatpush1.msra.mxu0 0.0
    %5187 = vmatprep.subr.mxu0 0.0
    %5188 = vmatpush1.msra.mxu0 0.0
    %5189 = vmatprep.subr.mxu0 0.0
    %5190 = vmatpush1.msra.mxu0 0.0
    %5191 = vmatprep.subr.mxu0 0.0
    %5192 = vmatpush1.msra.mxu0 0.0
    %5193 = vmatprep.subr.mxu0 0.0
    %5194 = vmatpush1.msra.mxu0 0.0
    %5195 = vmatprep.subr.mxu0 0.0
    %5196 = vmatpush1.msra.mxu0 0.0
    %5197 = vmatprep.subr.mxu0 0.0
    %5198 = vmatpush1.msra.mxu0 0.0
    %5199 = vmatprep.subr.mxu0 0.0
    %5200 = vmatpush1.msra.mxu0 0.0
    %5201 = vmatprep.subr.mxu0 0.0
    %5202 = vmatpush1.msra.mxu0 0.0
    %5203 = vmatprep.subr.mxu0 0.0
    %5204 = vmatpush1.msra.mxu0 %v5178
    %5205 = vmatprep.subr.mxu0 0.0
    %5206 = vmatpush1.msra.mxu0 %v5177
    %5207 = vmatprep.subr.mxu0 0.0
    %5208 = vmatpush1.msra.mxu0 %v5176
    %5209 = vmatprep.subr.mxu0 0.0
    %5210 = vmatpush1.msra.mxu0 %v5175
    %5211 = vmatprep.subr.mxu0 0.0
    %5212 = vmatpush2.msra.mxu0 0.0
    %5213 = vmatprep.subr.mxu0 0.0
    %5214 = vmatpush2.msra.mxu0 0.0
    %5215 = vmatprep.subr.mxu0 0.0
    %5216 = vmatpush2.msra.mxu0 0.0
    %5217 = vmatprep.subr.mxu0 0.0
    %5218 = vmatpush2.msra.mxu0 0.0
    %5219 = vmatprep.subr.mxu0 0.0
    %5220 = vmatpush2.msra.mxu0 0.0
    %5221 = vmatprep.subr.mxu0 0.0
    %5222 = vmatpush2.msra.mxu0 0.0
    %5223 = vmatprep.subr.mxu0 0.0
    %5224 = vmatpush2.msra.mxu0 0.0
    %5225 = vmatprep.subr.mxu0 0.0
    %5226 = vmatpush2.msra.mxu0 0.0
    %5227 = vmatprep.subr.mxu0 0.0
    %5228 = vmatpush2.msra.mxu0 0.0
    %5229 = vmatprep.subr.mxu0 0.0
    %5230 = vmatpush2.msra.mxu0 0.0
    %5231 = vmatprep.subr.mxu0 0.0
    %5232 = vmatpush2.msra.mxu0 0.0
    %5233 = vmatprep.subr.mxu0 0.0
    %5234 = vmatpush2.msra.mxu0 0.0
    %5235 = vmatprep.subr.mxu0 0.0
    %5236 = vmatpush2.msra.mxu0 0.0
    %5237 = vmatprep.subr.mxu0 0.0
    %5238 = vmatpush2.msra.mxu0 0.0
    %5239 = vmatprep.subr.mxu0 0.0
    %5240 = vmatpush2.msra.mxu0 0.0
    %5241 = vmatprep.subr.mxu0 0.0
    %5242 = vmatpush2.msra.mxu0 0.0
    %5243 = vmatprep.mubr.f32.mxu0 0.0
    %5244 = vmatmul.mubr.f32.gmra.mxu0 %v4710
    %v5245 = vpop.f32.mrf.mxu0
    %v5246 = vadd.f32 0.0, %v5245
    %v5247 = vpop.f32.mrf.mxu0
    %5248 = vdwg.mxu0
    %5250 = vrot.lane.b32.xlu0 %v5170, 96
    %v5251 = vpop.permute.xlu0 %5250
    %v5252 = vsel %vm167, %v5251, 0
    %5254 = vmatprep.subr.mxu0 0.0
    %5255 = vmatpush1.msra.mxu0 0.0
    %5256 = vmatprep.subr.mxu0 0.0
    %5257 = vmatpush1.msra.mxu0 0.0
    %5258 = vmatprep.subr.mxu0 0.0
    %5259 = vmatpush1.msra.mxu0 0.0
    %5260 = vmatprep.subr.mxu0 0.0
    %5261 = vmatpush1.msra.mxu0 0.0
    %5262 = vmatprep.subr.mxu0 0.0
    %5263 = vmatpush1.msra.mxu0 0.0
    %5264 = vmatprep.subr.mxu0 0.0
    %5265 = vmatpush1.msra.mxu0 0.0
    %5266 = vmatprep.subr.mxu0 0.0
    %5267 = vmatpush1.msra.mxu0 0.0
    %5268 = vmatprep.subr.mxu0 0.0
    %5269 = vmatpush1.msra.mxu0 0.0
    %5270 = vmatprep.subr.mxu0 0.0
    %5271 = vmatpush1.msra.mxu0 0.0
    %5272 = vmatprep.subr.mxu0 0.0
    %5273 = vmatpush1.msra.mxu0 0.0
    %5274 = vmatprep.subr.mxu0 0.0
    %5275 = vmatpush1.msra.mxu0 0.0
    %5276 = vmatprep.subr.mxu0 0.0
    %5277 = vmatpush1.msra.mxu0 0.0
    %5278 = vmatprep.subr.mxu0 0.0
    %5279 = vmatpush1.msra.mxu0 %v5174
    %5280 = vmatprep.subr.mxu0 0.0
    %5281 = vmatpush1.msra.mxu0 %v5173
    %5282 = vmatprep.subr.mxu0 0.0
    %5283 = vmatpush1.msra.mxu0 %v5172
    %5284 = vmatprep.subr.mxu0 0.0
    %5285 = vmatpush1.msra.mxu0 %v5171
    %5286 = vmatprep.subr.mxu0 0.0
    %5287 = vmatpush2.msra.mxu0 0.0
    %5288 = vmatprep.subr.mxu0 0.0
    %5289 = vmatpush2.msra.mxu0 0.0
    %5290 = vmatprep.subr.mxu0 0.0
    %5291 = vmatpush2.msra.mxu0 0.0
    %5292 = vmatprep.subr.mxu0 0.0
    %5293 = vmatpush2.msra.mxu0 0.0
    %5294 = vmatprep.subr.mxu0 0.0
    %5295 = vmatpush2.msra.mxu0 0.0
    %5296 = vmatprep.subr.mxu0 0.0
    %5297 = vmatpush2.msra.mxu0 0.0
    %5298 = vmatprep.subr.mxu0 0.0
    %5299 = vmatpush2.msra.mxu0 0.0
    %5300 = vmatprep.subr.mxu0 0.0
    %5301 = vmatpush2.msra.mxu0 0.0
    %5302 = vmatprep.subr.mxu0 0.0
    %5303 = vmatpush2.msra.mxu0 0.0
    %5304 = vmatprep.subr.mxu0 0.0
    %5305 = vmatpush2.msra.mxu0 0.0
    %5306 = vmatprep.subr.mxu0 0.0
    %5307 = vmatpush2.msra.mxu0 0.0
    %5308 = vmatprep.subr.mxu0 0.0
    %5309 = vmatpush2.msra.mxu0 0.0
    %5310 = vmatprep.subr.mxu0 0.0
    %5311 = vmatpush2.msra.mxu0 0.0
    %5312 = vmatprep.subr.mxu0 0.0
    %5313 = vmatpush2.msra.mxu0 0.0
    %5314 = vmatprep.subr.mxu0 0.0
    %5315 = vmatpush2.msra.mxu0 0.0
    %5316 = vmatprep.subr.mxu0 0.0
    %5317 = vmatpush2.msra.mxu0 0.0
    %5318 = vmatprep.mubr.f32.mxu0 0.0
    %5319 = vmatmul.mubr.f32.gmra.mxu0 %v5252
    %v5320 = vpop.f32.mrf.mxu0
    %v5321 = vadd.f32 %v5246, %v5320
    %v5322 = vpop.f32.mrf.mxu0
    %5323 = vdwg.mxu0
    %v5324 = vld [vmem:[%s3980] sm:$0x1]
    %v5326 = vlaneseq
    %v5327 = vshrl.u32 %v5326, 7
    %v5328 = vsub.s32 0, %v5327
    %v5329 = vrot.slane %v5324, %v5328
    %v5331 = vadd.f32 %v5321, %v5329
    %v5332 = vxor.u32 %v5331, 2147483648
    %v5333 = vmul.f32 %v5332, 1.442695
    %v5334 = vpow.pop %v5333
    %v5335 = vadd.f32 %v5334, 1.0
    %v5336 = vrcp.pop %v5335
    %v5337 = vmul.f32 1.0, %v5336
    %v5338 = vld [vmem:[%s3995] sm:$0x1]
    %v5340 = vlaneseq
    %v5341 = vshrl.u32 %v5340, 7
    %v5342 = vsub.s32 0, %v5341
    %v5343 = vrot.slane %v5338, %v5342
    %5344 = vrot.lane.b32.xlu0 %v5343, 96
    %v5345 = vpop.permute.xlu0 %5344
    %v5347 = vadd.f32 %v5331, %v5345
    %5349 = vrot.lane.b32.xlu0 %v5347, 32
    %v5350 = vpop.permute.xlu0 %5349
    %v5352 = vmul.f32 %v5337, %v5350
    %5354 = vrot.lane.b32.xlu0 %v5352, 64
    %v5355 = vpop.permute.xlu0 %5354
    %v5357 = vadd.f32 %v5331, %v5355
    %v5358 = vtanh.pop %v5357
    %v5359 = vsub.f32 1.0, %v5337
    %5361 = vrot.lane.b32.xlu0 %v5358, 96
    %v5362 = vpop.permute.xlu0 %5361
    %v5364 = vmul.f32 %v5359, %v5362
    %v5365 = vmul.f32 %v5337, %v4695
    %v5366 = vadd.f32 %v5364, %v5365
    %v5367 = vld [vmem:[%s13] sm:$0xff]
    %v5368 = vld [vmem:[%s13 + $0x8] sm:$0xff]
    %v5369 = vld [vmem:[%s13 + $0x10] sm:$0xff]
    %v5370 = vld [vmem:[%s13 + $0x18] sm:$0xff]
    %v5371 = vld [vmem:[%s14] sm:$0x1]
    %v5373 = vlaneseq
    %v5374 = vshrl.u32 %v5373, 7
    %v5375 = vsub.s32 0, %v5374
    %v5376 = vrot.slane %v5371, %v5375
    %5379 = vrot.lane.b32.xlu0 %v5366, 96
    %v5380 = vpop.permute.xlu0 %5379
    %v5381 = vsel %vm167, %v5380, 0
    %5383 = vmatprep.subr.mxu0 0.0
    %5384 = vmatpush1.msra.mxu0 0.0
    %5385 = vmatprep.subr.mxu0 0.0
    %5386 = vmatpush1.msra.mxu0 0.0
    %5387 = vmatprep.subr.mxu0 0.0
    %5388 = vmatpush1.msra.mxu0 0.0
    %5389 = vmatprep.subr.mxu0 0.0
    %5390 = vmatpush1.msra.mxu0 0.0
    %5391 = vmatprep.subr.mxu0 0.0
    %5392 = vmatpush1.msra.mxu0 0.0
    %5393 = vmatprep.subr.mxu0 0.0
    %5394 = vmatpush1.msra.mxu0 0.0
    %5395 = vmatprep.subr.mxu0 0.0
    %5396 = vmatpush1.msra.mxu0 0.0
    %5397 = vmatprep.subr.mxu0 0.0
    %5398 = vmatpush1.msra.mxu0 0.0
    %5399 = vmatprep.subr.mxu0 0.0
    %5400 = vmatpush1.msra.mxu0 0.0
    %5401 = vmatprep.subr.mxu0 0.0
    %5402 = vmatpush1.msra.mxu0 0.0
    %5403 = vmatprep.subr.mxu0 0.0
    %5404 = vmatpush1.msra.mxu0 0.0
    %5405 = vmatprep.subr.mxu0 0.0
    %5406 = vmatpush1.msra.mxu0 0.0
    %5407 = vmatprep.subr.mxu0 0.0
    %5408 = vmatpush1.msra.mxu0 %v5370
    %5409 = vmatprep.subr.mxu0 0.0
    %5410 = vmatpush1.msra.mxu0 %v5369
    %5411 = vmatprep.subr.mxu0 0.0
    %5412 = vmatpush1.msra.mxu0 %v5368
    %5413 = vmatprep.subr.mxu0 0.0
    %5414 = vmatpush1.msra.mxu0 %v5367
    %5415 = vmatprep.subr.mxu0 0.0
    %5416 = vmatpush2.msra.mxu0 0.0
    %5417 = vmatprep.subr.mxu0 0.0
    %5418 = vmatpush2.msra.mxu0 0.0
    %5419 = vmatprep.subr.mxu0 0.0
    %5420 = vmatpush2.msra.mxu0 0.0
    %5421 = vmatprep.subr.mxu0 0.0
    %5422 = vmatpush2.msra.mxu0 0.0
    %5423 = vmatprep.subr.mxu0 0.0
    %5424 = vmatpush2.msra.mxu0 0.0
    %5425 = vmatprep.subr.mxu0 0.0
    %5426 = vmatpush2.msra.mxu0 0.0
    %5427 = vmatprep.subr.mxu0 0.0
    %5428 = vmatpush2.msra.mxu0 0.0
    %5429 = vmatprep.subr.mxu0 0.0
    %5430 = vmatpush2.msra.mxu0 0.0
    %5431 = vmatprep.subr.mxu0 0.0
    %5432 = vmatpush2.msra.mxu0 0.0
    %5433 = vmatprep.subr.mxu0 0.0
    %5434 = vmatpush2.msra.mxu0 0.0
    %5435 = vmatprep.subr.mxu0 0.0
    %5436 = vmatpush2.msra.mxu0 0.0
    %5437 = vmatprep.subr.mxu0 0.0
    %5438 = vmatpush2.msra.mxu0 0.0
    %5439 = vmatprep.subr.mxu0 0.0
    %5440 = vmatpush2.msra.mxu0 0.0
    %5441 = vmatprep.subr.mxu0 0.0
    %5442 = vmatpush2.msra.mxu0 0.0
    %5443 = vmatprep.subr.mxu0 0.0
    %5444 = vmatpush2.msra.mxu0 0.0
    %5445 = vmatprep.subr.mxu0 0.0
    %5446 = vmatpush2.msra.mxu0 0.0
    %5447 = vmatprep.mubr.f32.mxu0 0.0
    %5448 = vmatmul.mubr.f32.gmra.mxu0 %v5381
    %v5449 = vpop.f32.mrf.mxu0
    %v5450 = vadd.f32 %v5376, %v5449
    %v5451 = vpop.f32.mrf.mxu0
    %5452 = vdwg.mxu0
    %s5453 = scalar_lea.vmem [#allocation5], 24
    %5454 = vst [vmem:[%s5453] sm:$0xff] %v5450
    %5455 = vmax.xlane.f32.xlu0 %v5450
    %v5456 = vpop.xlane.xlu0 %5455
    %vm5457 = vcmp.ge.f32.partialorder %v5450, %v5456
    %v5458 = vsel %vm5457, %v65, 128
    %v5459 = vand.u32 %v5458, 65535
    %v5460 = vshra.s32 %v5458, 16
    %v5461 = vcvt.s32.f32 %v5459
    %v5462 = vcvt.s32.f32 %v5460
    %5463 = vmin.xlane.f32.xlu0 %v5462
    %v5464 = vpop.xlane.xlu0 %5463
    %vm5465 = vcmp.eq.f32.partialorder %v5462, %v5464
    %v5466 = vsel %vm5465, %v5461, inf
    %5467 = vmin.xlane.f32.xlu0 %v5466
    %v5468 = vpop.xlane.xlu0 %5467
    %v5469 = vcvt.f32.s32 %v5468
    %v5470 = vcvt.f32.s32 %v5464
    %v5471 = vshll.u32 %v5470, 16
    %v5472 = vadd.s32 %v5471, %v5469
    %vm5473 = vcmp.eq.s32.totalorder %v65, %v5472
    %v5474 = vsel %vm5473, 1, 0
    %v5475 = vcvt.s32.f32 %v5474
    %v5476 = vld [vmem:[%s4] sm:$0xff]
    %v5477 = vld [vmem:[%s4 + $0x8] sm:$0xff]
    %v5478 = vld [vmem:[%s4 + $0x10] sm:$0xff]
    %v5479 = vld [vmem:[%s4 + $0x18] sm:$0xff]
    %v5480 = vld [vmem:[%s4 + $0x20] sm:$0xff]
    %v5481 = vld [vmem:[%s4 + $0x28] sm:$0xff]
    %v5482 = vld [vmem:[%s4 + $0x30] sm:$0xff]
    %v5483 = vld [vmem:[%s4 + $0x38] sm:$0xff]
    %v5484 = vld [vmem:[%s4 + $0x40] sm:$0xff]
    %v5485 = vld [vmem:[%s4 + $0x48] sm:$0xff]
    %v5486 = vld [vmem:[%s4 + $0x50] sm:$0xff]
    %v5487 = vld [vmem:[%s4 + $0x58] sm:$0xff]
    %v5488 = vld [vmem:[%s4 + $0x60] sm:$0xff]
    %v5489 = vld [vmem:[%s4 + $0x68] sm:$0xff]
    %v5490 = vld [vmem:[%s4 + $0x70] sm:$0xff]
    %v5491 = vld [vmem:[%s4 + $0x78] sm:$0xff]
    %5492 = vmatprep.subr.mxu0 0.0
    %5493 = vmatpush1.msra.mxu0 %v5491
    %5494 = vmatprep.subr.mxu0 0.0
    %5495 = vmatpush1.msra.mxu0 %v5490
    %5496 = vmatprep.subr.mxu0 0.0
    %5497 = vmatpush1.msra.mxu0 %v5489
    %5498 = vmatprep.subr.mxu0 0.0
    %5499 = vmatpush1.msra.mxu0 %v5488
    %5500 = vmatprep.subr.mxu0 0.0
    %5501 = vmatpush1.msra.mxu0 %v5487
    %5502 = vmatprep.subr.mxu0 0.0
    %5503 = vmatpush1.msra.mxu0 %v5486
    %5504 = vmatprep.subr.mxu0 0.0
    %5505 = vmatpush1.msra.mxu0 %v5485
    %5506 = vmatprep.subr.mxu0 0.0
    %5507 = vmatpush1.msra.mxu0 %v5484
    %5508 = vmatprep.subr.mxu0 0.0
    %5509 = vmatpush1.msra.mxu0 %v5483
    %5510 = vmatprep.subr.mxu0 0.0
    %5511 = vmatpush1.msra.mxu0 %v5482
    %5512 = vmatprep.subr.mxu0 0.0
    %5513 = vmatpush1.msra.mxu0 %v5481
    %5514 = vmatprep.subr.mxu0 0.0
    %5515 = vmatpush1.msra.mxu0 %v5480
    %5516 = vmatprep.subr.mxu0 0.0
    %5517 = vmatpush1.msra.mxu0 %v5479
    %5518 = vmatprep.subr.mxu0 0.0
    %5519 = vmatpush1.msra.mxu0 %v5478
    %5520 = vmatprep.subr.mxu0 0.0
    %5521 = vmatpush1.msra.mxu0 %v5477
    %5522 = vmatprep.subr.mxu0 0.0
    %5523 = vmatpush1.msra.mxu0 %v5476
    %5524 = vmatprep.subr.mxu0 0.0
    %5525 = vmatpush2.msra.mxu0 0.0
    %5526 = vmatprep.subr.mxu0 0.0
    %5527 = vmatpush2.msra.mxu0 0.0
    %5528 = vmatprep.subr.mxu0 0.0
    %5529 = vmatpush2.msra.mxu0 0.0
    %5530 = vmatprep.subr.mxu0 0.0
    %5531 = vmatpush2.msra.mxu0 0.0
    %5532 = vmatprep.subr.mxu0 0.0
    %5533 = vmatpush2.msra.mxu0 0.0
    %5534 = vmatprep.subr.mxu0 0.0
    %5535 = vmatpush2.msra.mxu0 0.0
    %5536 = vmatprep.subr.mxu0 0.0
    %5537 = vmatpush2.msra.mxu0 0.0
    %5538 = vmatprep.subr.mxu0 0.0
    %5539 = vmatpush2.msra.mxu0 0.0
    %5540 = vmatprep.subr.mxu0 0.0
    %5541 = vmatpush2.msra.mxu0 0.0
    %5542 = vmatprep.subr.mxu0 0.0
    %5543 = vmatpush2.msra.mxu0 0.0
    %5544 = vmatprep.subr.mxu0 0.0
    %5545 = vmatpush2.msra.mxu0 0.0
    %5546 = vmatprep.subr.mxu0 0.0
    %5547 = vmatpush2.msra.mxu0 0.0
    %5548 = vmatprep.subr.mxu0 0.0
    %5549 = vmatpush2.msra.mxu0 0.0
    %5550 = vmatprep.subr.mxu0 0.0
    %5551 = vmatpush2.msra.mxu0 0.0
    %5552 = vmatprep.subr.mxu0 0.0
    %5553 = vmatpush2.msra.mxu0 0.0
    %5554 = vmatprep.subr.mxu0 0.0
    %5555 = vmatpush2.msra.mxu0 0.0
    %5556 = vmatprep.mubr.f32.mxu0 0.0
    %5557 = vmatmul.mubr.f32.gmra.mxu0 %v5475
    %v5558 = vpop.f32.mrf.mxu0
    %v5559 = vadd.f32 0.0, %v5558
    %v5560 = vpop.f32.mrf.mxu0
    %5561 = vdwg.mxu0
    %s5562 = scalar_lea.vmem %s1, 24
    %v5563 = vld [vmem:[%s5562] sm:$0xff]
    %5564 = vset.pattern.permute.xlu0 0
    %5565 = vperm.xlu0 %5564, %v5563
    %v5566 = vpop.permute.xlu0 %5565
    %vm5567 = vcmp.eq.s32.totalorder %v5566, %v65
    %v5568 = vsel %vm5567, 1, 0
    %v5569 = vcvt.s32.f32 %v5568
    %5570 = vmatprep.subr.mxu0 0.0
    %5571 = vmatpush1.msra.mxu0 %v5491
    %5572 = vmatprep.subr.mxu0 0.0
    %5573 = vmatpush1.msra.mxu0 %v5490
    %5574 = vmatprep.subr.mxu0 0.0
    %5575 = vmatpush1.msra.mxu0 %v5489
    %5576 = vmatprep.subr.mxu0 0.0
    %5577 = vmatpush1.msra.mxu0 %v5488
    %5578 = vmatprep.subr.mxu0 0.0
    %5579 = vmatpush1.msra.mxu0 %v5487
    %5580 = vmatprep.subr.mxu0 0.0
    %5581 = vmatpush1.msra.mxu0 %v5486
    %5582 = vmatprep.subr.mxu0 0.0
    %5583 = vmatpush1.msra.mxu0 %v5485
    %5584 = vmatprep.subr.mxu0 0.0
    %5585 = vmatpush1.msra.mxu0 %v5484
    %5586 = vmatprep.subr.mxu0 0.0
    %5587 = vmatpush1.msra.mxu0 %v5483
    %5588 = vmatprep.subr.mxu0 0.0
    %5589 = vmatpush1.msra.mxu0 %v5482
    %5590 = vmatprep.subr.mxu0 0.0
    %5591 = vmatpush1.msra.mxu0 %v5481
    %5592 = vmatprep.subr.mxu0 0.0
    %5593 = vmatpush1.msra.mxu0 %v5480
    %5594 = vmatprep.subr.mxu0 0.0
    %5595 = vmatpush1.msra.mxu0 %v5479
    %5596 = vmatprep.subr.mxu0 0.0
    %5597 = vmatpush1.msra.mxu0 %v5478
    %5598 = vmatprep.subr.mxu0 0.0
    %5599 = vmatpush1.msra.mxu0 %v5477
    %5600 = vmatprep.subr.mxu0 0.0
    %5601 = vmatpush1.msra.mxu0 %v5476
    %5602 = vmatprep.subr.mxu0 0.0
    %5603 = vmatpush2.msra.mxu0 0.0
    %5604 = vmatprep.subr.mxu0 0.0
    %5605 = vmatpush2.msra.mxu0 0.0
    %5606 = vmatprep.subr.mxu0 0.0
    %5607 = vmatpush2.msra.mxu0 0.0
    %5608 = vmatprep.subr.mxu0 0.0
    %5609 = vmatpush2.msra.mxu0 0.0
    %5610 = vmatprep.subr.mxu0 0.0
    %5611 = vmatpush2.msra.mxu0 0.0
    %5612 = vmatprep.subr.mxu0 0.0
    %5613 = vmatpush2.msra.mxu0 0.0
    %5614 = vmatprep.subr.mxu0 0.0
    %5615 = vmatpush2.msra.mxu0 0.0
    %5616 = vmatprep.subr.mxu0 0.0
    %5617 = vmatpush2.msra.mxu0 0.0
    %5618 = vmatprep.subr.mxu0 0.0
    %5619 = vmatpush2.msra.mxu0 0.0
    %5620 = vmatprep.subr.mxu0 0.0
    %5621 = vmatpush2.msra.mxu0 0.0
    %5622 = vmatprep.subr.mxu0 0.0
    %5623 = vmatpush2.msra.mxu0 0.0
    %5624 = vmatprep.subr.mxu0 0.0
    %5625 = vmatpush2.msra.mxu0 0.0
    %5626 = vmatprep.subr.mxu0 0.0
    %5627 = vmatpush2.msra.mxu0 0.0
    %5628 = vmatprep.subr.mxu0 0.0
    %5629 = vmatpush2.msra.mxu0 0.0
    %5630 = vmatprep.subr.mxu0 0.0
    %5631 = vmatpush2.msra.mxu0 0.0
    %5632 = vmatprep.subr.mxu0 0.0
    %5633 = vmatpush2.msra.mxu0 0.0
    %5634 = vmatprep.mubr.f32.mxu0 0.0
    %5635 = vmatmul.mubr.f32.gmra.mxu0 %v5569
    %v5636 = vpop.f32.mrf.mxu0
    %v5637 = vadd.f32 0.0, %v5636
    %v5638 = vpop.f32.mrf.mxu0
    %5639 = vdwg.mxu0
    %s5640 = sld [smem:[#allocation2 + $0x2]]
    %s5641 = scvt.s32.f32 %s5640
    %v5642 = vstv %s5641
    %v5643 = vmul.f32 %v5642, %v5637
    %s5644 = ssub.f32 1.0, %s5641
    %v5645 = vstv %s5644
    %v5646 = vmul.f32 %v5645, %v5559
    %v5647 = vadd.f32 %v5643, %v5646
    %v5648 = vld [vmem:[%s9] sm:$0xff]
    %v5649 = vld [vmem:[%s9 + $0x8] sm:$0xff]
    %v5650 = vld [vmem:[%s9 + $0x10] sm:$0xff]
    %v5651 = vld [vmem:[%s9 + $0x18] sm:$0xff]
    %v5652 = vld [vmem:[%s10] sm:$0xff]
    %v5653 = vld [vmem:[%s10 + $0x8] sm:$0xff]
    %v5654 = vld [vmem:[%s10 + $0x10] sm:$0xff]
    %v5655 = vld [vmem:[%s10 + $0x18] sm:$0xff]
    %5656 = vmatprep.subr.mxu0 0.0
    %5657 = vmatpush1.msra.mxu0 0.0
    %5658 = vmatprep.subr.mxu0 0.0
    %5659 = vmatpush1.msra.mxu0 0.0
    %5660 = vmatprep.subr.mxu0 0.0
    %5661 = vmatpush1.msra.mxu0 0.0
    %5662 = vmatprep.subr.mxu0 0.0
    %5663 = vmatpush1.msra.mxu0 0.0
    %5664 = vmatprep.subr.mxu0 0.0
    %5665 = vmatpush1.msra.mxu0 0.0
    %5666 = vmatprep.subr.mxu0 0.0
    %5667 = vmatpush1.msra.mxu0 0.0
    %5668 = vmatprep.subr.mxu0 0.0
    %5669 = vmatpush1.msra.mxu0 0.0
    %5670 = vmatprep.subr.mxu0 0.0
    %5671 = vmatpush1.msra.mxu0 0.0
    %5672 = vmatprep.subr.mxu0 0.0
    %5673 = vmatpush1.msra.mxu0 0.0
    %5674 = vmatprep.subr.mxu0 0.0
    %5675 = vmatpush1.msra.mxu0 0.0
    %5676 = vmatprep.subr.mxu0 0.0
    %5677 = vmatpush1.msra.mxu0 0.0
    %5678 = vmatprep.subr.mxu0 0.0
    %5679 = vmatpush1.msra.mxu0 0.0
    %5680 = vmatprep.subr.mxu0 0.0
    %5681 = vmatpush1.msra.mxu0 %v5655
    %5682 = vmatprep.subr.mxu0 0.0
    %5683 = vmatpush1.msra.mxu0 %v5654
    %5684 = vmatprep.subr.mxu0 0.0
    %5685 = vmatpush1.msra.mxu0 %v5653
    %5686 = vmatprep.subr.mxu0 0.0
    %5687 = vmatpush1.msra.mxu0 %v5652
    %5688 = vmatprep.subr.mxu0 0.0
    %5689 = vmatpush2.msra.mxu0 0.0
    %5690 = vmatprep.subr.mxu0 0.0
    %5691 = vmatpush2.msra.mxu0 0.0
    %5692 = vmatprep.subr.mxu0 0.0
    %5693 = vmatpush2.msra.mxu0 0.0
    %5694 = vmatprep.subr.mxu0 0.0
    %5695 = vmatpush2.msra.mxu0 0.0
    %5696 = vmatprep.subr.mxu0 0.0
    %5697 = vmatpush2.msra.mxu0 0.0
    %5698 = vmatprep.subr.mxu0 0.0
    %5699 = vmatpush2.msra.mxu0 0.0
    %5700 = vmatprep.subr.mxu0 0.0
    %5701 = vmatpush2.msra.mxu0 0.0
    %5702 = vmatprep.subr.mxu0 0.0
    %5703 = vmatpush2.msra.mxu0 0.0
    %5704 = vmatprep.subr.mxu0 0.0
    %5705 = vmatpush2.msra.mxu0 0.0
    %5706 = vmatprep.subr.mxu0 0.0
    %5707 = vmatpush2.msra.mxu0 0.0
    %5708 = vmatprep.subr.mxu0 0.0
    %5709 = vmatpush2.msra.mxu0 0.0
    %5710 = vmatprep.subr.mxu0 0.0
    %5711 = vmatpush2.msra.mxu0 0.0
    %5712 = vmatprep.subr.mxu0 0.0
    %5713 = vmatpush2.msra.mxu0 0.0
    %5714 = vmatprep.subr.mxu0 0.0
    %5715 = vmatpush2.msra.mxu0 0.0
    %5716 = vmatprep.subr.mxu0 0.0
    %5717 = vmatpush2.msra.mxu0 0.0
    %5718 = vmatprep.subr.mxu0 0.0
    %5719 = vmatpush2.msra.mxu0 0.0
    %5720 = vmatprep.mubr.f32.mxu0 0.0
    %5721 = vmatmul.mubr.f32.gmra.mxu0 %v5252
    %v5722 = vpop.f32.mrf.mxu0
    %v5723 = vadd.f32 0.0, %v5722
    %v5724 = vpop.f32.mrf.mxu0
    %5725 = vdwg.mxu0
    %v5727 = vsel %vm167, %v5647, 0
    %5729 = vmatprep.subr.mxu0 0.0
    %5730 = vmatpush1.msra.mxu0 0.0
    %5731 = vmatprep.subr.mxu0 0.0
    %5732 = vmatpush1.msra.mxu0 0.0
    %5733 = vmatprep.subr.mxu0 0.0
    %5734 = vmatpush1.msra.mxu0 0.0
    %5735 = vmatprep.subr.mxu0 0.0
    %5736 = vmatpush1.msra.mxu0 0.0
    %5737 = vmatprep.subr.mxu0 0.0
    %5738 = vmatpush1.msra.mxu0 0.0
    %5739 = vmatprep.subr.mxu0 0.0
    %5740 = vmatpush1.msra.mxu0 0.0
    %5741 = vmatprep.subr.mxu0 0.0
    %5742 = vmatpush1.msra.mxu0 0.0
    %5743 = vmatprep.subr.mxu0 0.0
    %5744 = vmatpush1.msra.mxu0 0.0
    %5745 = vmatprep.subr.mxu0 0.0
    %5746 = vmatpush1.msra.mxu0 0.0
    %5747 = vmatprep.subr.mxu0 0.0
    %5748 = vmatpush1.msra.mxu0 0.0
    %5749 = vmatprep.subr.mxu0 0.0
    %5750 = vmatpush1.msra.mxu0 0.0
    %5751 = vmatprep.subr.mxu0 0.0
    %5752 = vmatpush1.msra.mxu0 0.0
    %5753 = vmatprep.subr.mxu0 0.0
    %5754 = vmatpush1.msra.mxu0 %v5651
    %5755 = vmatprep.subr.mxu0 0.0
    %5756 = vmatpush1.msra.mxu0 %v5650
    %5757 = vmatprep.subr.mxu0 0.0
    %5758 = vmatpush1.msra.mxu0 %v5649
    %5759 = vmatprep.subr.mxu0 0.0
    %5760 = vmatpush1.msra.mxu0 %v5648
    %5761 = vmatprep.subr.mxu0 0.0
    %5762 = vmatpush2.msra.mxu0 0.0
    %5763 = vmatprep.subr.mxu0 0.0
    %5764 = vmatpush2.msra.mxu0 0.0
    %5765 = vmatprep.subr.mxu0 0.0
    %5766 = vmatpush2.msra.mxu0 0.0
    %5767 = vmatprep.subr.mxu0 0.0
    %5768 = vmatpush2.msra.mxu0 0.0
    %5769 = vmatprep.subr.mxu0 0.0
    %5770 = vmatpush2.msra.mxu0 0.0
    %5771 = vmatprep.subr.mxu0 0.0
    %5772 = vmatpush2.msra.mxu0 0.0
    %5773 = vmatprep.subr.mxu0 0.0
    %5774 = vmatpush2.msra.mxu0 0.0
    %5775 = vmatprep.subr.mxu0 0.0
    %5776 = vmatpush2.msra.mxu0 0.0
    %5777 = vmatprep.subr.mxu0 0.0
    %5778 = vmatpush2.msra.mxu0 0.0
    %5779 = vmatprep.subr.mxu0 0.0
    %5780 = vmatpush2.msra.mxu0 0.0
    %5781 = vmatprep.subr.mxu0 0.0
    %5782 = vmatpush2.msra.mxu0 0.0
    %5783 = vmatprep.subr.mxu0 0.0
    %5784 = vmatpush2.msra.mxu0 0.0
    %5785 = vmatprep.subr.mxu0 0.0
    %5786 = vmatpush2.msra.mxu0 0.0
    %5787 = vmatprep.subr.mxu0 0.0
    %5788 = vmatpush2.msra.mxu0 0.0
    %5789 = vmatprep.subr.mxu0 0.0
    %5790 = vmatpush2.msra.mxu0 0.0
    %5791 = vmatprep.subr.mxu0 0.0
    %5792 = vmatpush2.msra.mxu0 0.0
    %5793 = vmatprep.mubr.f32.mxu0 0.0
    %5794 = vmatmul.mubr.f32.gmra.mxu0 %v5727
    %v5795 = vpop.f32.mrf.mxu0
    %v5796 = vadd.f32 %v5723, %v5795
    %v5797 = vpop.f32.mrf.mxu0
    %5798 = vdwg.mxu0
    %v5799 = vld [vmem:[%s11] sm:$0x1]
    %v5801 = vlaneseq
    %v5802 = vshrl.u32 %v5801, 7
    %v5803 = vsub.s32 0, %v5802
    %v5804 = vrot.slane %v5799, %v5803
    %v5806 = vadd.f32 %v5796, %v5804
    %v5807 = vxor.u32 %v5806, 2147483648
    %v5808 = vmul.f32 %v5807, 1.442695
    %v5809 = vpow.pop %v5808
    %v5810 = vadd.f32 %v5809, 1.0
    %v5811 = vrcp.pop %v5810
    %v5812 = vmul.f32 1.0, %v5811
    %v5813 = vld [vmem:[%s12] sm:$0x1]
    %v5815 = vlaneseq
    %v5816 = vshrl.u32 %v5815, 7
    %v5817 = vsub.s32 0, %v5816
    %v5818 = vrot.slane %v5813, %v5817
    %5819 = vrot.lane.b32.xlu0 %v5818, 96
    %v5820 = vpop.permute.xlu0 %5819
    %v5822 = vadd.f32 %v5806, %v5820
    %5824 = vrot.lane.b32.xlu0 %v5822, 32
    %v5825 = vpop.permute.xlu0 %5824
    %v5827 = vmul.f32 %v5812, %v5825
    %5829 = vrot.lane.b32.xlu0 %v5827, 64
    %v5830 = vpop.permute.xlu0 %5829
    %v5832 = vadd.f32 %v5806, %v5830
    %v5833 = vtanh.pop %v5832
    %v5834 = vsub.f32 1.0, %v5812
    %5836 = vrot.lane.b32.xlu0 %v5833, 96
    %v5837 = vpop.permute.xlu0 %5836
    %v5839 = vmul.f32 %v5834, %v5837
    %v5840 = vmul.f32 %v5812, %v5170
    %v5841 = vadd.f32 %v5839, %v5840
    %v5842 = vld [vmem:[%s3820] sm:$0xff]
    %v5843 = vld [vmem:[%s3820 + $0x8] sm:$0xff]
    %v5844 = vld [vmem:[%s3820 + $0x10] sm:$0xff]
    %v5845 = vld [vmem:[%s3820 + $0x18] sm:$0xff]
    %v5846 = vld [vmem:[%s3825] sm:$0xff]
    %v5847 = vld [vmem:[%s3825 + $0x8] sm:$0xff]
    %v5848 = vld [vmem:[%s3825 + $0x10] sm:$0xff]
    %v5849 = vld [vmem:[%s3825 + $0x18] sm:$0xff]
    %5850 = vmatprep.subr.mxu0 0.0
    %5851 = vmatpush1.msra.mxu0 0.0
    %5852 = vmatprep.subr.mxu0 0.0
    %5853 = vmatpush1.msra.mxu0 0.0
    %5854 = vmatprep.subr.mxu0 0.0
    %5855 = vmatpush1.msra.mxu0 0.0
    %5856 = vmatprep.subr.mxu0 0.0
    %5857 = vmatpush1.msra.mxu0 0.0
    %5858 = vmatprep.subr.mxu0 0.0
    %5859 = vmatpush1.msra.mxu0 0.0
    %5860 = vmatprep.subr.mxu0 0.0
    %5861 = vmatpush1.msra.mxu0 0.0
    %5862 = vmatprep.subr.mxu0 0.0
    %5863 = vmatpush1.msra.mxu0 0.0
    %5864 = vmatprep.subr.mxu0 0.0
    %5865 = vmatpush1.msra.mxu0 0.0
    %5866 = vmatprep.subr.mxu0 0.0
    %5867 = vmatpush1.msra.mxu0 0.0
    %5868 = vmatprep.subr.mxu0 0.0
    %5869 = vmatpush1.msra.mxu0 0.0
    %5870 = vmatprep.subr.mxu0 0.0
    %5871 = vmatpush1.msra.mxu0 0.0
    %5872 = vmatprep.subr.mxu0 0.0
    %5873 = vmatpush1.msra.mxu0 0.0
    %5874 = vmatprep.subr.mxu0 0.0
    %5875 = vmatpush1.msra.mxu0 %v5849
    %5876 = vmatprep.subr.mxu0 0.0
    %5877 = vmatpush1.msra.mxu0 %v5848
    %5878 = vmatprep.subr.mxu0 0.0
    %5879 = vmatpush1.msra.mxu0 %v5847
    %5880 = vmatprep.subr.mxu0 0.0
    %5881 = vmatpush1.msra.mxu0 %v5846
    %5882 = vmatprep.subr.mxu0 0.0
    %5883 = vmatpush2.msra.mxu0 0.0
    %5884 = vmatprep.subr.mxu0 0.0
    %5885 = vmatpush2.msra.mxu0 0.0
    %5886 = vmatprep.subr.mxu0 0.0
    %5887 = vmatpush2.msra.mxu0 0.0
    %5888 = vmatprep.subr.mxu0 0.0
    %5889 = vmatpush2.msra.mxu0 0.0
    %5890 = vmatprep.subr.mxu0 0.0
    %5891 = vmatpush2.msra.mxu0 0.0
    %5892 = vmatprep.subr.mxu0 0.0
    %5893 = vmatpush2.msra.mxu0 0.0
    %5894 = vmatprep.subr.mxu0 0.0
    %5895 = vmatpush2.msra.mxu0 0.0
    %5896 = vmatprep.subr.mxu0 0.0
    %5897 = vmatpush2.msra.mxu0 0.0
    %5898 = vmatprep.subr.mxu0 0.0
    %5899 = vmatpush2.msra.mxu0 0.0
    %5900 = vmatprep.subr.mxu0 0.0
    %5901 = vmatpush2.msra.mxu0 0.0
    %5902 = vmatprep.subr.mxu0 0.0
    %5903 = vmatpush2.msra.mxu0 0.0
    %5904 = vmatprep.subr.mxu0 0.0
    %5905 = vmatpush2.msra.mxu0 0.0
    %5906 = vmatprep.subr.mxu0 0.0
    %5907 = vmatpush2.msra.mxu0 0.0
    %5908 = vmatprep.subr.mxu0 0.0
    %5909 = vmatpush2.msra.mxu0 0.0
    %5910 = vmatprep.subr.mxu0 0.0
    %5911 = vmatpush2.msra.mxu0 0.0
    %5912 = vmatprep.subr.mxu0 0.0
    %5913 = vmatpush2.msra.mxu0 0.0
    %5914 = vmatprep.mubr.f32.mxu0 0.0
    %5915 = vmatmul.mubr.f32.gmra.mxu0 %v5381
    %v5916 = vpop.f32.mrf.mxu0
    %v5917 = vadd.f32 0.0, %v5916
    %v5918 = vpop.f32.mrf.mxu0
    %5919 = vdwg.mxu0
    %5921 = vrot.lane.b32.xlu0 %v5841, 96
    %v5922 = vpop.permute.xlu0 %5921
    %v5923 = vsel %vm167, %v5922, 0
    %5925 = vmatprep.subr.mxu0 0.0
    %5926 = vmatpush1.msra.mxu0 0.0
    %5927 = vmatprep.subr.mxu0 0.0
    %5928 = vmatpush1.msra.mxu0 0.0
    %5929 = vmatprep.subr.mxu0 0.0
    %5930 = vmatpush1.msra.mxu0 0.0
    %5931 = vmatprep.subr.mxu0 0.0
    %5932 = vmatpush1.msra.mxu0 0.0
    %5933 = vmatprep.subr.mxu0 0.0
    %5934 = vmatpush1.msra.mxu0 0.0
    %5935 = vmatprep.subr.mxu0 0.0
    %5936 = vmatpush1.msra.mxu0 0.0
    %5937 = vmatprep.subr.mxu0 0.0
    %5938 = vmatpush1.msra.mxu0 0.0
    %5939 = vmatprep.subr.mxu0 0.0
    %5940 = vmatpush1.msra.mxu0 0.0
    %5941 = vmatprep.subr.mxu0 0.0
    %5942 = vmatpush1.msra.mxu0 0.0
    %5943 = vmatprep.subr.mxu0 0.0
    %5944 = vmatpush1.msra.mxu0 0.0
    %5945 = vmatprep.subr.mxu0 0.0
    %5946 = vmatpush1.msra.mxu0 0.0
    %5947 = vmatprep.subr.mxu0 0.0
    %5948 = vmatpush1.msra.mxu0 0.0
    %5949 = vmatprep.subr.mxu0 0.0
    %5950 = vmatpush1.msra.mxu0 %v5845
    %5951 = vmatprep.subr.mxu0 0.0
    %5952 = vmatpush1.msra.mxu0 %v5844
    %5953 = vmatprep.subr.mxu0 0.0
    %5954 = vmatpush1.msra.mxu0 %v5843
    %5955 = vmatprep.subr.mxu0 0.0
    %5956 = vmatpush1.msra.mxu0 %v5842
    %5957 = vmatprep.subr.mxu0 0.0
    %5958 = vmatpush2.msra.mxu0 0.0
    %5959 = vmatprep.subr.mxu0 0.0
    %5960 = vmatpush2.msra.mxu0 0.0
    %5961 = vmatprep.subr.mxu0 0.0
    %5962 = vmatpush2.msra.mxu0 0.0
    %5963 = vmatprep.subr.mxu0 0.0
    %5964 = vmatpush2.msra.mxu0 0.0
    %5965 = vmatprep.subr.mxu0 0.0
    %5966 = vmatpush2.msra.mxu0 0.0
    %5967 = vmatprep.subr.mxu0 0.0
    %5968 = vmatpush2.msra.mxu0 0.0
    %5969 = vmatprep.subr.mxu0 0.0
    %5970 = vmatpush2.msra.mxu0 0.0
    %5971 = vmatprep.subr.mxu0 0.0
    %5972 = vmatpush2.msra.mxu0 0.0
    %5973 = vmatprep.subr.mxu0 0.0
    %5974 = vmatpush2.msra.mxu0 0.0
    %5975 = vmatprep.subr.mxu0 0.0
    %5976 = vmatpush2.msra.mxu0 0.0
    %5977 = vmatprep.subr.mxu0 0.0
    %5978 = vmatpush2.msra.mxu0 0.0
    %5979 = vmatprep.subr.mxu0 0.0
    %5980 = vmatpush2.msra.mxu0 0.0
    %5981 = vmatprep.subr.mxu0 0.0
    %5982 = vmatpush2.msra.mxu0 0.0
    %5983 = vmatprep.subr.mxu0 0.0
    %5984 = vmatpush2.msra.mxu0 0.0
    %5985 = vmatprep.subr.mxu0 0.0
    %5986 = vmatpush2.msra.mxu0 0.0
    %5987 = vmatprep.subr.mxu0 0.0
    %5988 = vmatpush2.msra.mxu0 0.0
    %5989 = vmatprep.mubr.f32.mxu0 0.0
    %5990 = vmatmul.mubr.f32.gmra.mxu0 %v5923
    %v5991 = vpop.f32.mrf.mxu0
    %v5992 = vadd.f32 %v5917, %v5991
    %v5993 = vpop.f32.mrf.mxu0
    %5994 = vdwg.mxu0
    %v5995 = vld [vmem:[%s3980] sm:$0x1]
    %v5997 = vlaneseq
    %v5998 = vshrl.u32 %v5997, 7
    %v5999 = vsub.s32 0, %v5998
    %v6000 = vrot.slane %v5995, %v5999
    %v6002 = vadd.f32 %v5992, %v6000
    %v6003 = vxor.u32 %v6002, 2147483648
    %v6004 = vmul.f32 %v6003, 1.442695
    %v6005 = vpow.pop %v6004
    %v6006 = vadd.f32 %v6005, 1.0
    %v6007 = vrcp.pop %v6006
    %v6008 = vmul.f32 1.0, %v6007
    %v6009 = vld [vmem:[%s3995] sm:$0x1]
    %v6011 = vlaneseq
    %v6012 = vshrl.u32 %v6011, 7
    %v6013 = vsub.s32 0, %v6012
    %v6014 = vrot.slane %v6009, %v6013
    %6015 = vrot.lane.b32.xlu0 %v6014, 96
    %v6016 = vpop.permute.xlu0 %6015
    %v6018 = vadd.f32 %v6002, %v6016
    %6020 = vrot.lane.b32.xlu0 %v6018, 32
    %v6021 = vpop.permute.xlu0 %6020
    %v6023 = vmul.f32 %v6008, %v6021
    %6025 = vrot.lane.b32.xlu0 %v6023, 64
    %v6026 = vpop.permute.xlu0 %6025
    %v6028 = vadd.f32 %v6002, %v6026
    %v6029 = vtanh.pop %v6028
    %v6030 = vsub.f32 1.0, %v6008
    %6032 = vrot.lane.b32.xlu0 %v6029, 96
    %v6033 = vpop.permute.xlu0 %6032
    %v6035 = vmul.f32 %v6030, %v6033
    %v6036 = vmul.f32 %v6008, %v5366
    %v6037 = vadd.f32 %v6035, %v6036
    %v6038 = vld [vmem:[%s13] sm:$0xff]
    %v6039 = vld [vmem:[%s13 + $0x8] sm:$0xff]
    %v6040 = vld [vmem:[%s13 + $0x10] sm:$0xff]
    %v6041 = vld [vmem:[%s13 + $0x18] sm:$0xff]
    %v6042 = vld [vmem:[%s14] sm:$0x1]
    %v6044 = vlaneseq
    %v6045 = vshrl.u32 %v6044, 7
    %v6046 = vsub.s32 0, %v6045
    %v6047 = vrot.slane %v6042, %v6046
    %6050 = vrot.lane.b32.xlu0 %v6037, 96
    %v6051 = vpop.permute.xlu0 %6050
    %v6052 = vsel %vm167, %v6051, 0
    %6054 = vmatprep.subr.mxu0 0.0
    %6055 = vmatpush1.msra.mxu0 0.0
    %6056 = vmatprep.subr.mxu0 0.0
    %6057 = vmatpush1.msra.mxu0 0.0
    %6058 = vmatprep.subr.mxu0 0.0
    %6059 = vmatpush1.msra.mxu0 0.0
    %6060 = vmatprep.subr.mxu0 0.0
    %6061 = vmatpush1.msra.mxu0 0.0
    %6062 = vmatprep.subr.mxu0 0.0
    %6063 = vmatpush1.msra.mxu0 0.0
    %6064 = vmatprep.subr.mxu0 0.0
    %6065 = vmatpush1.msra.mxu0 0.0
    %6066 = vmatprep.subr.mxu0 0.0
    %6067 = vmatpush1.msra.mxu0 0.0
    %6068 = vmatprep.subr.mxu0 0.0
    %6069 = vmatpush1.msra.mxu0 0.0
    %6070 = vmatprep.subr.mxu0 0.0
    %6071 = vmatpush1.msra.mxu0 0.0
    %6072 = vmatprep.subr.mxu0 0.0
    %6073 = vmatpush1.msra.mxu0 0.0
    %6074 = vmatprep.subr.mxu0 0.0
    %6075 = vmatpush1.msra.mxu0 0.0
    %6076 = vmatprep.subr.mxu0 0.0
    %6077 = vmatpush1.msra.mxu0 0.0
    %6078 = vmatprep.subr.mxu0 0.0
    %6079 = vmatpush1.msra.mxu0 %v6041
    %6080 = vmatprep.subr.mxu0 0.0
    %6081 = vmatpush1.msra.mxu0 %v6040
    %6082 = vmatprep.subr.mxu0 0.0
    %6083 = vmatpush1.msra.mxu0 %v6039
    %6084 = vmatprep.subr.mxu0 0.0
    %6085 = vmatpush1.msra.mxu0 %v6038
    %6086 = vmatprep.subr.mxu0 0.0
    %6087 = vmatpush2.msra.mxu0 0.0
    %6088 = vmatprep.subr.mxu0 0.0
    %6089 = vmatpush2.msra.mxu0 0.0
    %6090 = vmatprep.subr.mxu0 0.0
    %6091 = vmatpush2.msra.mxu0 0.0
    %6092 = vmatprep.subr.mxu0 0.0
    %6093 = vmatpush2.msra.mxu0 0.0
    %6094 = vmatprep.subr.mxu0 0.0
    %6095 = vmatpush2.msra.mxu0 0.0
    %6096 = vmatprep.subr.mxu0 0.0
    %6097 = vmatpush2.msra.mxu0 0.0
    %6098 = vmatprep.subr.mxu0 0.0
    %6099 = vmatpush2.msra.mxu0 0.0
    %6100 = vmatprep.subr.mxu0 0.0
    %6101 = vmatpush2.msra.mxu0 0.0
    %6102 = vmatprep.subr.mxu0 0.0
    %6103 = vmatpush2.msra.mxu0 0.0
    %6104 = vmatprep.subr.mxu0 0.0
    %6105 = vmatpush2.msra.mxu0 0.0
    %6106 = vmatprep.subr.mxu0 0.0
    %6107 = vmatpush2.msra.mxu0 0.0
    %6108 = vmatprep.subr.mxu0 0.0
    %6109 = vmatpush2.msra.mxu0 0.0
    %6110 = vmatprep.subr.mxu0 0.0
    %6111 = vmatpush2.msra.mxu0 0.0
    %6112 = vmatprep.subr.mxu0 0.0
    %6113 = vmatpush2.msra.mxu0 0.0
    %6114 = vmatprep.subr.mxu0 0.0
    %6115 = vmatpush2.msra.mxu0 0.0
    %6116 = vmatprep.subr.mxu0 0.0
    %6117 = vmatpush2.msra.mxu0 0.0
    %6118 = vmatprep.mubr.f32.mxu0 0.0
    %6119 = vmatmul.mubr.f32.gmra.mxu0 %v6052
    %v6120 = vpop.f32.mrf.mxu0
    %v6121 = vadd.f32 %v6047, %v6120
    %v6122 = vpop.f32.mrf.mxu0
    %6123 = vdwg.mxu0
    %s6124 = scalar_lea.vmem [#allocation5], 32
    %6125 = vst [vmem:[%s6124] sm:$0xff] %v6121
    %6126 = vmax.xlane.f32.xlu0 %v6121
    %v6127 = vpop.xlane.xlu0 %6126
    %vm6128 = vcmp.ge.f32.partialorder %v6121, %v6127
    %v6129 = vsel %vm6128, %v65, 128
    %v6130 = vand.u32 %v6129, 65535
    %v6131 = vshra.s32 %v6129, 16
    %v6132 = vcvt.s32.f32 %v6130
    %v6133 = vcvt.s32.f32 %v6131
    %6134 = vmin.xlane.f32.xlu0 %v6133
    %v6135 = vpop.xlane.xlu0 %6134
    %vm6136 = vcmp.eq.f32.partialorder %v6133, %v6135
    %v6137 = vsel %vm6136, %v6132, inf
    %6138 = vmin.xlane.f32.xlu0 %v6137
    %v6139 = vpop.xlane.xlu0 %6138
    %v6140 = vcvt.f32.s32 %v6139
    %v6141 = vcvt.f32.s32 %v6135
    %v6142 = vshll.u32 %v6141, 16
    %v6143 = vadd.s32 %v6142, %v6140
    %vm6144 = vcmp.eq.s32.totalorder %v65, %v6143
    %v6145 = vsel %vm6144, 1, 0
    %v6146 = vcvt.s32.f32 %v6145
    %v6147 = vld [vmem:[%s4] sm:$0xff]
    %v6148 = vld [vmem:[%s4 + $0x8] sm:$0xff]
    %v6149 = vld [vmem:[%s4 + $0x10] sm:$0xff]
    %v6150 = vld [vmem:[%s4 + $0x18] sm:$0xff]
    %v6151 = vld [vmem:[%s4 + $0x20] sm:$0xff]
    %v6152 = vld [vmem:[%s4 + $0x28] sm:$0xff]
    %v6153 = vld [vmem:[%s4 + $0x30] sm:$0xff]
    %v6154 = vld [vmem:[%s4 + $0x38] sm:$0xff]
    %v6155 = vld [vmem:[%s4 + $0x40] sm:$0xff]
    %v6156 = vld [vmem:[%s4 + $0x48] sm:$0xff]
    %v6157 = vld [vmem:[%s4 + $0x50] sm:$0xff]
    %v6158 = vld [vmem:[%s4 + $0x58] sm:$0xff]
    %v6159 = vld [vmem:[%s4 + $0x60] sm:$0xff]
    %v6160 = vld [vmem:[%s4 + $0x68] sm:$0xff]
    %v6161 = vld [vmem:[%s4 + $0x70] sm:$0xff]
    %v6162 = vld [vmem:[%s4 + $0x78] sm:$0xff]
    %6163 = vmatprep.subr.mxu0 0.0
    %6164 = vmatpush1.msra.mxu0 %v6162
    %6165 = vmatprep.subr.mxu0 0.0
    %6166 = vmatpush1.msra.mxu0 %v6161
    %6167 = vmatprep.subr.mxu0 0.0
    %6168 = vmatpush1.msra.mxu0 %v6160
    %6169 = vmatprep.subr.mxu0 0.0
    %6170 = vmatpush1.msra.mxu0 %v6159
    %6171 = vmatprep.subr.mxu0 0.0
    %6172 = vmatpush1.msra.mxu0 %v6158
    %6173 = vmatprep.subr.mxu0 0.0
    %6174 = vmatpush1.msra.mxu0 %v6157
    %6175 = vmatprep.subr.mxu0 0.0
    %6176 = vmatpush1.msra.mxu0 %v6156
    %6177 = vmatprep.subr.mxu0 0.0
    %6178 = vmatpush1.msra.mxu0 %v6155
    %6179 = vmatprep.subr.mxu0 0.0
    %6180 = vmatpush1.msra.mxu0 %v6154
    %6181 = vmatprep.subr.mxu0 0.0
    %6182 = vmatpush1.msra.mxu0 %v6153
    %6183 = vmatprep.subr.mxu0 0.0
    %6184 = vmatpush1.msra.mxu0 %v6152
    %6185 = vmatprep.subr.mxu0 0.0
    %6186 = vmatpush1.msra.mxu0 %v6151
    %6187 = vmatprep.subr.mxu0 0.0
    %6188 = vmatpush1.msra.mxu0 %v6150
    %6189 = vmatprep.subr.mxu0 0.0
    %6190 = vmatpush1.msra.mxu0 %v6149
    %6191 = vmatprep.subr.mxu0 0.0
    %6192 = vmatpush1.msra.mxu0 %v6148
    %6193 = vmatprep.subr.mxu0 0.0
    %6194 = vmatpush1.msra.mxu0 %v6147
    %6195 = vmatprep.subr.mxu0 0.0
    %6196 = vmatpush2.msra.mxu0 0.0
    %6197 = vmatprep.subr.mxu0 0.0
    %6198 = vmatpush2.msra.mxu0 0.0
    %6199 = vmatprep.subr.mxu0 0.0
    %6200 = vmatpush2.msra.mxu0 0.0
    %6201 = vmatprep.subr.mxu0 0.0
    %6202 = vmatpush2.msra.mxu0 0.0
    %6203 = vmatprep.subr.mxu0 0.0
    %6204 = vmatpush2.msra.mxu0 0.0
    %6205 = vmatprep.subr.mxu0 0.0
    %6206 = vmatpush2.msra.mxu0 0.0
    %6207 = vmatprep.subr.mxu0 0.0
    %6208 = vmatpush2.msra.mxu0 0.0
    %6209 = vmatprep.subr.mxu0 0.0
    %6210 = vmatpush2.msra.mxu0 0.0
    %6211 = vmatprep.subr.mxu0 0.0
    %6212 = vmatpush2.msra.mxu0 0.0
    %6213 = vmatprep.subr.mxu0 0.0
    %6214 = vmatpush2.msra.mxu0 0.0
    %6215 = vmatprep.subr.mxu0 0.0
    %6216 = vmatpush2.msra.mxu0 0.0
    %6217 = vmatprep.subr.mxu0 0.0
    %6218 = vmatpush2.msra.mxu0 0.0
    %6219 = vmatprep.subr.mxu0 0.0
    %6220 = vmatpush2.msra.mxu0 0.0
    %6221 = vmatprep.subr.mxu0 0.0
    %6222 = vmatpush2.msra.mxu0 0.0
    %6223 = vmatprep.subr.mxu0 0.0
    %6224 = vmatpush2.msra.mxu0 0.0
    %6225 = vmatprep.subr.mxu0 0.0
    %6226 = vmatpush2.msra.mxu0 0.0
    %6227 = vmatprep.mubr.f32.mxu0 0.0
    %6228 = vmatmul.mubr.f32.gmra.mxu0 %v6146
    %v6229 = vpop.f32.mrf.mxu0
    %v6230 = vadd.f32 0.0, %v6229
    %v6231 = vpop.f32.mrf.mxu0
    %6232 = vdwg.mxu0
    %s6233 = scalar_lea.vmem %s1, 32
    %v6234 = vld [vmem:[%s6233] sm:$0xff]
    %6235 = vset.pattern.permute.xlu0 0
    %6236 = vperm.xlu0 %6235, %v6234
    %v6237 = vpop.permute.xlu0 %6236
    %vm6238 = vcmp.eq.s32.totalorder %v6237, %v65
    %v6239 = vsel %vm6238, 1, 0
    %v6240 = vcvt.s32.f32 %v6239
    %6241 = vmatprep.subr.mxu0 0.0
    %6242 = vmatpush1.msra.mxu0 %v6162
    %6243 = vmatprep.subr.mxu0 0.0
    %6244 = vmatpush1.msra.mxu0 %v6161
    %6245 = vmatprep.subr.mxu0 0.0
    %6246 = vmatpush1.msra.mxu0 %v6160
    %6247 = vmatprep.subr.mxu0 0.0
    %6248 = vmatpush1.msra.mxu0 %v6159
    %6249 = vmatprep.subr.mxu0 0.0
    %6250 = vmatpush1.msra.mxu0 %v6158
    %6251 = vmatprep.subr.mxu0 0.0
    %6252 = vmatpush1.msra.mxu0 %v6157
    %6253 = vmatprep.subr.mxu0 0.0
    %6254 = vmatpush1.msra.mxu0 %v6156
    %6255 = vmatprep.subr.mxu0 0.0
    %6256 = vmatpush1.msra.mxu0 %v6155
    %6257 = vmatprep.subr.mxu0 0.0
    %6258 = vmatpush1.msra.mxu0 %v6154
    %6259 = vmatprep.subr.mxu0 0.0
    %6260 = vmatpush1.msra.mxu0 %v6153
    %6261 = vmatprep.subr.mxu0 0.0
    %6262 = vmatpush1.msra.mxu0 %v6152
    %6263 = vmatprep.subr.mxu0 0.0
    %6264 = vmatpush1.msra.mxu0 %v6151
    %6265 = vmatprep.subr.mxu0 0.0
    %6266 = vmatpush1.msra.mxu0 %v6150
    %6267 = vmatprep.subr.mxu0 0.0
    %6268 = vmatpush1.msra.mxu0 %v6149
    %6269 = vmatprep.subr.mxu0 0.0
    %6270 = vmatpush1.msra.mxu0 %v6148
    %6271 = vmatprep.subr.mxu0 0.0
    %6272 = vmatpush1.msra.mxu0 %v6147
    %6273 = vmatprep.subr.mxu0 0.0
    %6274 = vmatpush2.msra.mxu0 0.0
    %6275 = vmatprep.subr.mxu0 0.0
    %6276 = vmatpush2.msra.mxu0 0.0
    %6277 = vmatprep.subr.mxu0 0.0
    %6278 = vmatpush2.msra.mxu0 0.0
    %6279 = vmatprep.subr.mxu0 0.0
    %6280 = vmatpush2.msra.mxu0 0.0
    %6281 = vmatprep.subr.mxu0 0.0
    %6282 = vmatpush2.msra.mxu0 0.0
    %6283 = vmatprep.subr.mxu0 0.0
    %6284 = vmatpush2.msra.mxu0 0.0
    %6285 = vmatprep.subr.mxu0 0.0
    %6286 = vmatpush2.msra.mxu0 0.0
    %6287 = vmatprep.subr.mxu0 0.0
    %6288 = vmatpush2.msra.mxu0 0.0
    %6289 = vmatprep.subr.mxu0 0.0
    %6290 = vmatpush2.msra.mxu0 0.0
    %6291 = vmatprep.subr.mxu0 0.0
    %6292 = vmatpush2.msra.mxu0 0.0
    %6293 = vmatprep.subr.mxu0 0.0
    %6294 = vmatpush2.msra.mxu0 0.0
    %6295 = vmatprep.subr.mxu0 0.0
    %6296 = vmatpush2.msra.mxu0 0.0
    %6297 = vmatprep.subr.mxu0 0.0
    %6298 = vmatpush2.msra.mxu0 0.0
    %6299 = vmatprep.subr.mxu0 0.0
    %6300 = vmatpush2.msra.mxu0 0.0
    %6301 = vmatprep.subr.mxu0 0.0
    %6302 = vmatpush2.msra.mxu0 0.0
    %6303 = vmatprep.subr.mxu0 0.0
    %6304 = vmatpush2.msra.mxu0 0.0
    %6305 = vmatprep.mubr.f32.mxu0 0.0
    %6306 = vmatmul.mubr.f32.gmra.mxu0 %v6240
    %v6307 = vpop.f32.mrf.mxu0
    %v6308 = vadd.f32 0.0, %v6307
    %v6309 = vpop.f32.mrf.mxu0
    %6310 = vdwg.mxu0
    %s6311 = sld [smem:[#allocation2 + $0x3]]
    %s6312 = scvt.s32.f32 %s6311
    %v6313 = vstv %s6312
    %v6314 = vmul.f32 %v6313, %v6308
    %s6315 = ssub.f32 1.0, %s6312
    %v6316 = vstv %s6315
    %v6317 = vmul.f32 %v6316, %v6230
    %v6318 = vadd.f32 %v6314, %v6317
    %v6319 = vld [vmem:[%s9] sm:$0xff]
    %v6320 = vld [vmem:[%s9 + $0x8] sm:$0xff]
    %v6321 = vld [vmem:[%s9 + $0x10] sm:$0xff]
    %v6322 = vld [vmem:[%s9 + $0x18] sm:$0xff]
    %v6323 = vld [vmem:[%s10] sm:$0xff]
    %v6324 = vld [vmem:[%s10 + $0x8] sm:$0xff]
    %v6325 = vld [vmem:[%s10 + $0x10] sm:$0xff]
    %v6326 = vld [vmem:[%s10 + $0x18] sm:$0xff]
    %6327 = vmatprep.subr.mxu0 0.0
    %6328 = vmatpush1.msra.mxu0 0.0
    %6329 = vmatprep.subr.mxu0 0.0
    %6330 = vmatpush1.msra.mxu0 0.0
    %6331 = vmatprep.subr.mxu0 0.0
    %6332 = vmatpush1.msra.mxu0 0.0
    %6333 = vmatprep.subr.mxu0 0.0
    %6334 = vmatpush1.msra.mxu0 0.0
    %6335 = vmatprep.subr.mxu0 0.0
    %6336 = vmatpush1.msra.mxu0 0.0
    %6337 = vmatprep.subr.mxu0 0.0
    %6338 = vmatpush1.msra.mxu0 0.0
    %6339 = vmatprep.subr.mxu0 0.0
    %6340 = vmatpush1.msra.mxu0 0.0
    %6341 = vmatprep.subr.mxu0 0.0
    %6342 = vmatpush1.msra.mxu0 0.0
    %6343 = vmatprep.subr.mxu0 0.0
    %6344 = vmatpush1.msra.mxu0 0.0
    %6345 = vmatprep.subr.mxu0 0.0
    %6346 = vmatpush1.msra.mxu0 0.0
    %6347 = vmatprep.subr.mxu0 0.0
    %6348 = vmatpush1.msra.mxu0 0.0
    %6349 = vmatprep.subr.mxu0 0.0
    %6350 = vmatpush1.msra.mxu0 0.0
    %6351 = vmatprep.subr.mxu0 0.0
    %6352 = vmatpush1.msra.mxu0 %v6326
    %6353 = vmatprep.subr.mxu0 0.0
    %6354 = vmatpush1.msra.mxu0 %v6325
    %6355 = vmatprep.subr.mxu0 0.0
    %6356 = vmatpush1.msra.mxu0 %v6324
    %6357 = vmatprep.subr.mxu0 0.0
    %6358 = vmatpush1.msra.mxu0 %v6323
    %6359 = vmatprep.subr.mxu0 0.0
    %6360 = vmatpush2.msra.mxu0 0.0
    %6361 = vmatprep.subr.mxu0 0.0
    %6362 = vmatpush2.msra.mxu0 0.0
    %6363 = vmatprep.subr.mxu0 0.0
    %6364 = vmatpush2.msra.mxu0 0.0
    %6365 = vmatprep.subr.mxu0 0.0
    %6366 = vmatpush2.msra.mxu0 0.0
    %6367 = vmatprep.subr.mxu0 0.0
    %6368 = vmatpush2.msra.mxu0 0.0
    %6369 = vmatprep.subr.mxu0 0.0
    %6370 = vmatpush2.msra.mxu0 0.0
    %6371 = vmatprep.subr.mxu0 0.0
    %6372 = vmatpush2.msra.mxu0 0.0
    %6373 = vmatprep.subr.mxu0 0.0
    %6374 = vmatpush2.msra.mxu0 0.0
    %6375 = vmatprep.subr.mxu0 0.0
    %6376 = vmatpush2.msra.mxu0 0.0
    %6377 = vmatprep.subr.mxu0 0.0
    %6378 = vmatpush2.msra.mxu0 0.0
    %6379 = vmatprep.subr.mxu0 0.0
    %6380 = vmatpush2.msra.mxu0 0.0
    %6381 = vmatprep.subr.mxu0 0.0
    %6382 = vmatpush2.msra.mxu0 0.0
    %6383 = vmatprep.subr.mxu0 0.0
    %6384 = vmatpush2.msra.mxu0 0.0
    %6385 = vmatprep.subr.mxu0 0.0
    %6386 = vmatpush2.msra.mxu0 0.0
    %6387 = vmatprep.subr.mxu0 0.0
    %6388 = vmatpush2.msra.mxu0 0.0
    %6389 = vmatprep.subr.mxu0 0.0
    %6390 = vmatpush2.msra.mxu0 0.0
    %6391 = vmatprep.mubr.f32.mxu0 0.0
    %6392 = vmatmul.mubr.f32.gmra.mxu0 %v5923
    %v6393 = vpop.f32.mrf.mxu0
    %v6394 = vadd.f32 0.0, %v6393
    %v6395 = vpop.f32.mrf.mxu0
    %6396 = vdwg.mxu0
    %v6398 = vsel %vm167, %v6318, 0
    %6400 = vmatprep.subr.mxu0 0.0
    %6401 = vmatpush1.msra.mxu0 0.0
    %6402 = vmatprep.subr.mxu0 0.0
    %6403 = vmatpush1.msra.mxu0 0.0
    %6404 = vmatprep.subr.mxu0 0.0
    %6405 = vmatpush1.msra.mxu0 0.0
    %6406 = vmatprep.subr.mxu0 0.0
    %6407 = vmatpush1.msra.mxu0 0.0
    %6408 = vmatprep.subr.mxu0 0.0
    %6409 = vmatpush1.msra.mxu0 0.0
    %6410 = vmatprep.subr.mxu0 0.0
    %6411 = vmatpush1.msra.mxu0 0.0
    %6412 = vmatprep.subr.mxu0 0.0
    %6413 = vmatpush1.msra.mxu0 0.0
    %6414 = vmatprep.subr.mxu0 0.0
    %6415 = vmatpush1.msra.mxu0 0.0
    %6416 = vmatprep.subr.mxu0 0.0
    %6417 = vmatpush1.msra.mxu0 0.0
    %6418 = vmatprep.subr.mxu0 0.0
    %6419 = vmatpush1.msra.mxu0 0.0
    %6420 = vmatprep.subr.mxu0 0.0
    %6421 = vmatpush1.msra.mxu0 0.0
    %6422 = vmatprep.subr.mxu0 0.0
    %6423 = vmatpush1.msra.mxu0 0.0
    %6424 = vmatprep.subr.mxu0 0.0
    %6425 = vmatpush1.msra.mxu0 %v6322
    %6426 = vmatprep.subr.mxu0 0.0
    %6427 = vmatpush1.msra.mxu0 %v6321
    %6428 = vmatprep.subr.mxu0 0.0
    %6429 = vmatpush1.msra.mxu0 %v6320
    %6430 = vmatprep.subr.mxu0 0.0
    %6431 = vmatpush1.msra.mxu0 %v6319
    %6432 = vmatprep.subr.mxu0 0.0
    %6433 = vmatpush2.msra.mxu0 0.0
    %6434 = vmatprep.subr.mxu0 0.0
    %6435 = vmatpush2.msra.mxu0 0.0
    %6436 = vmatprep.subr.mxu0 0.0
    %6437 = vmatpush2.msra.mxu0 0.0
    %6438 = vmatprep.subr.mxu0 0.0
    %6439 = vmatpush2.msra.mxu0 0.0
    %6440 = vmatprep.subr.mxu0 0.0
    %6441 = vmatpush2.msra.mxu0 0.0
    %6442 = vmatprep.subr.mxu0 0.0
    %6443 = vmatpush2.msra.mxu0 0.0
    %6444 = vmatprep.subr.mxu0 0.0
    %6445 = vmatpush2.msra.mxu0 0.0
    %6446 = vmatprep.subr.mxu0 0.0
    %6447 = vmatpush2.msra.mxu0 0.0
    %6448 = vmatprep.subr.mxu0 0.0
    %6449 = vmatpush2.msra.mxu0 0.0
    %6450 = vmatprep.subr.mxu0 0.0
    %6451 = vmatpush2.msra.mxu0 0.0
    %6452 = vmatprep.subr.mxu0 0.0
    %6453 = vmatpush2.msra.mxu0 0.0
    %6454 = vmatprep.subr.mxu0 0.0
    %6455 = vmatpush2.msra.mxu0 0.0
    %6456 = vmatprep.subr.mxu0 0.0
    %6457 = vmatpush2.msra.mxu0 0.0
    %6458 = vmatprep.subr.mxu0 0.0
    %6459 = vmatpush2.msra.mxu0 0.0
    %6460 = vmatprep.subr.mxu0 0.0
    %6461 = vmatpush2.msra.mxu0 0.0
    %6462 = vmatprep.subr.mxu0 0.0
    %6463 = vmatpush2.msra.mxu0 0.0
    %6464 = vmatprep.mubr.f32.mxu0 0.0
    %6465 = vmatmul.mubr.f32.gmra.mxu0 %v6398
    %v6466 = vpop.f32.mrf.mxu0
    %v6467 = vadd.f32 %v6394, %v6466
    %v6468 = vpop.f32.mrf.mxu0
    %6469 = vdwg.mxu0
    %v6470 = vld [vmem:[%s11] sm:$0x1]
    %v6472 = vlaneseq
    %v6473 = vshrl.u32 %v6472, 7
    %v6474 = vsub.s32 0, %v6473
    %v6475 = vrot.slane %v6470, %v6474
    %v6477 = vadd.f32 %v6467, %v6475
    %v6478 = vxor.u32 %v6477, 2147483648
    %v6479 = vmul.f32 %v6478, 1.442695
    %v6480 = vpow.pop %v6479
    %v6481 = vadd.f32 %v6480, 1.0
    %v6482 = vrcp.pop %v6481
    %v6483 = vmul.f32 1.0, %v6482
    %v6484 = vld [vmem:[%s12] sm:$0x1]
    %v6486 = vlaneseq
    %v6487 = vshrl.u32 %v6486, 7
    %v6488 = vsub.s32 0, %v6487
    %v6489 = vrot.slane %v6484, %v6488
    %6490 = vrot.lane.b32.xlu0 %v6489, 96
    %v6491 = vpop.permute.xlu0 %6490
    %v6493 = vadd.f32 %v6477, %v6491
    %6495 = vrot.lane.b32.xlu0 %v6493, 32
    %v6496 = vpop.permute.xlu0 %6495
    %v6498 = vmul.f32 %v6483, %v6496
    %6500 = vrot.lane.b32.xlu0 %v6498, 64
    %v6501 = vpop.permute.xlu0 %6500
    %v6503 = vadd.f32 %v6477, %v6501
    %v6504 = vtanh.pop %v6503
    %v6505 = vsub.f32 1.0, %v6483
    %6507 = vrot.lane.b32.xlu0 %v6504, 96
    %v6508 = vpop.permute.xlu0 %6507
    %v6510 = vmul.f32 %v6505, %v6508
    %v6511 = vmul.f32 %v6483, %v5841
    %v6512 = vadd.f32 %v6510, %v6511
    %v6513 = vld [vmem:[%s3820] sm:$0xff]
    %v6514 = vld [vmem:[%s3820 + $0x8] sm:$0xff]
    %v6515 = vld [vmem:[%s3820 + $0x10] sm:$0xff]
    %v6516 = vld [vmem:[%s3820 + $0x18] sm:$0xff]
    %v6517 = vld [vmem:[%s3825] sm:$0xff]
    %v6518 = vld [vmem:[%s3825 + $0x8] sm:$0xff]
    %v6519 = vld [vmem:[%s3825 + $0x10] sm:$0xff]
    %v6520 = vld [vmem:[%s3825 + $0x18] sm:$0xff]
    %6521 = vmatprep.subr.mxu0 0.0
    %6522 = vmatpush1.msra.mxu0 0.0
    %6523 = vmatprep.subr.mxu0 0.0
    %6524 = vmatpush1.msra.mxu0 0.0
    %6525 = vmatprep.subr.mxu0 0.0
    %6526 = vmatpush1.msra.mxu0 0.0
    %6527 = vmatprep.subr.mxu0 0.0
    %6528 = vmatpush1.msra.mxu0 0.0
    %6529 = vmatprep.subr.mxu0 0.0
    %6530 = vmatpush1.msra.mxu0 0.0
    %6531 = vmatprep.subr.mxu0 0.0
    %6532 = vmatpush1.msra.mxu0 0.0
    %6533 = vmatprep.subr.mxu0 0.0
    %6534 = vmatpush1.msra.mxu0 0.0
    %6535 = vmatprep.subr.mxu0 0.0
    %6536 = vmatpush1.msra.mxu0 0.0
    %6537 = vmatprep.subr.mxu0 0.0
    %6538 = vmatpush1.msra.mxu0 0.0
    %6539 = vmatprep.subr.mxu0 0.0
    %6540 = vmatpush1.msra.mxu0 0.0
    %6541 = vmatprep.subr.mxu0 0.0
    %6542 = vmatpush1.msra.mxu0 0.0
    %6543 = vmatprep.subr.mxu0 0.0
    %6544 = vmatpush1.msra.mxu0 0.0
    %6545 = vmatprep.subr.mxu0 0.0
    %6546 = vmatpush1.msra.mxu0 %v6520
    %6547 = vmatprep.subr.mxu0 0.0
    %6548 = vmatpush1.msra.mxu0 %v6519
    %6549 = vmatprep.subr.mxu0 0.0
    %6550 = vmatpush1.msra.mxu0 %v6518
    %6551 = vmatprep.subr.mxu0 0.0
    %6552 = vmatpush1.msra.mxu0 %v6517
    %6553 = vmatprep.subr.mxu0 0.0
    %6554 = vmatpush2.msra.mxu0 0.0
    %6555 = vmatprep.subr.mxu0 0.0
    %6556 = vmatpush2.msra.mxu0 0.0
    %6557 = vmatprep.subr.mxu0 0.0
    %6558 = vmatpush2.msra.mxu0 0.0
    %6559 = vmatprep.subr.mxu0 0.0
    %6560 = vmatpush2.msra.mxu0 0.0
    %6561 = vmatprep.subr.mxu0 0.0
    %6562 = vmatpush2.msra.mxu0 0.0
    %6563 = vmatprep.subr.mxu0 0.0
    %6564 = vmatpush2.msra.mxu0 0.0
    %6565 = vmatprep.subr.mxu0 0.0
    %6566 = vmatpush2.msra.mxu0 0.0
    %6567 = vmatprep.subr.mxu0 0.0
    %6568 = vmatpush2.msra.mxu0 0.0
    %6569 = vmatprep.subr.mxu0 0.0
    %6570 = vmatpush2.msra.mxu0 0.0
    %6571 = vmatprep.subr.mxu0 0.0
    %6572 = vmatpush2.msra.mxu0 0.0
    %6573 = vmatprep.subr.mxu0 0.0
    %6574 = vmatpush2.msra.mxu0 0.0
    %6575 = vmatprep.subr.mxu0 0.0
    %6576 = vmatpush2.msra.mxu0 0.0
    %6577 = vmatprep.subr.mxu0 0.0
    %6578 = vmatpush2.msra.mxu0 0.0
    %6579 = vmatprep.subr.mxu0 0.0
    %6580 = vmatpush2.msra.mxu0 0.0
    %6581 = vmatprep.subr.mxu0 0.0
    %6582 = vmatpush2.msra.mxu0 0.0
    %6583 = vmatprep.subr.mxu0 0.0
    %6584 = vmatpush2.msra.mxu0 0.0
    %6585 = vmatprep.mubr.f32.mxu0 0.0
    %6586 = vmatmul.mubr.f32.gmra.mxu0 %v6052
    %v6587 = vpop.f32.mrf.mxu0
    %v6588 = vadd.f32 0.0, %v6587
    %v6589 = vpop.f32.mrf.mxu0
    %6590 = vdwg.mxu0
    %6592 = vrot.lane.b32.xlu0 %v6512, 96
    %v6593 = vpop.permute.xlu0 %6592
    %v6594 = vsel %vm167, %v6593, 0
    %6596 = vmatprep.subr.mxu0 0.0
    %6597 = vmatpush1.msra.mxu0 0.0
    %6598 = vmatprep.subr.mxu0 0.0
    %6599 = vmatpush1.msra.mxu0 0.0
    %6600 = vmatprep.subr.mxu0 0.0
    %6601 = vmatpush1.msra.mxu0 0.0
    %6602 = vmatprep.subr.mxu0 0.0
    %6603 = vmatpush1.msra.mxu0 0.0
    %6604 = vmatprep.subr.mxu0 0.0
    %6605 = vmatpush1.msra.mxu0 0.0
    %6606 = vmatprep.subr.mxu0 0.0
    %6607 = vmatpush1.msra.mxu0 0.0
    %6608 = vmatprep.subr.mxu0 0.0
    %6609 = vmatpush1.msra.mxu0 0.0
    %6610 = vmatprep.subr.mxu0 0.0
    %6611 = vmatpush1.msra.mxu0 0.0
    %6612 = vmatprep.subr.mxu0 0.0
    %6613 = vmatpush1.msra.mxu0 0.0
    %6614 = vmatprep.subr.mxu0 0.0
    %6615 = vmatpush1.msra.mxu0 0.0
    %6616 = vmatprep.subr.mxu0 0.0
    %6617 = vmatpush1.msra.mxu0 0.0
    %6618 = vmatprep.subr.mxu0 0.0
    %6619 = vmatpush1.msra.mxu0 0.0
    %6620 = vmatprep.subr.mxu0 0.0
    %6621 = vmatpush1.msra.mxu0 %v6516
    %6622 = vmatprep.subr.mxu0 0.0
    %6623 = vmatpush1.msra.mxu0 %v6515
    %6624 = vmatprep.subr.mxu0 0.0
    %6625 = vmatpush1.msra.mxu0 %v6514
    %6626 = vmatprep.subr.mxu0 0.0
    %6627 = vmatpush1.msra.mxu0 %v6513
    %6628 = vmatprep.subr.mxu0 0.0
    %6629 = vmatpush2.msra.mxu0 0.0
    %6630 = vmatprep.subr.mxu0 0.0
    %6631 = vmatpush2.msra.mxu0 0.0
    %6632 = vmatprep.subr.mxu0 0.0
    %6633 = vmatpush2.msra.mxu0 0.0
    %6634 = vmatprep.subr.mxu0 0.0
    %6635 = vmatpush2.msra.mxu0 0.0
    %6636 = vmatprep.subr.mxu0 0.0
    %6637 = vmatpush2.msra.mxu0 0.0
    %6638 = vmatprep.subr.mxu0 0.0
    %6639 = vmatpush2.msra.mxu0 0.0
    %6640 = vmatprep.subr.mxu0 0.0
    %6641 = vmatpush2.msra.mxu0 0.0
    %6642 = vmatprep.subr.mxu0 0.0
    %6643 = vmatpush2.msra.mxu0 0.0
    %6644 = vmatprep.subr.mxu0 0.0
    %6645 = vmatpush2.msra.mxu0 0.0
    %6646 = vmatprep.subr.mxu0 0.0
    %6647 = vmatpush2.msra.mxu0 0.0
    %6648 = vmatprep.subr.mxu0 0.0
    %6649 = vmatpush2.msra.mxu0 0.0
    %6650 = vmatprep.subr.mxu0 0.0
    %6651 = vmatpush2.msra.mxu0 0.0
    %6652 = vmatprep.subr.mxu0 0.0
    %6653 = vmatpush2.msra.mxu0 0.0
    %6654 = vmatprep.subr.mxu0 0.0
    %6655 = vmatpush2.msra.mxu0 0.0
    %6656 = vmatprep.subr.mxu0 0.0
    %6657 = vmatpush2.msra.mxu0 0.0
    %6658 = vmatprep.subr.mxu0 0.0
    %6659 = vmatpush2.msra.mxu0 0.0
    %6660 = vmatprep.mubr.f32.mxu0 0.0
    %6661 = vmatmul.mubr.f32.gmra.mxu0 %v6594
    %v6662 = vpop.f32.mrf.mxu0
    %v6663 = vadd.f32 %v6588, %v6662
    %v6664 = vpop.f32.mrf.mxu0
    %6665 = vdwg.mxu0
    %v6666 = vld [vmem:[%s3980] sm:$0x1]
    %v6668 = vlaneseq
    %v6669 = vshrl.u32 %v6668, 7
    %v6670 = vsub.s32 0, %v6669
    %v6671 = vrot.slane %v6666, %v6670
    %v6673 = vadd.f32 %v6663, %v6671
    %v6674 = vxor.u32 %v6673, 2147483648
    %v6675 = vmul.f32 %v6674, 1.442695
    %v6676 = vpow.pop %v6675
    %v6677 = vadd.f32 %v6676, 1.0
    %v6678 = vrcp.pop %v6677
    %v6679 = vmul.f32 1.0, %v6678
    %v6680 = vld [vmem:[%s3995] sm:$0x1]
    %v6682 = vlaneseq
    %v6683 = vshrl.u32 %v6682, 7
    %v6684 = vsub.s32 0, %v6683
    %v6685 = vrot.slane %v6680, %v6684
    %6686 = vrot.lane.b32.xlu0 %v6685, 96
    %v6687 = vpop.permute.xlu0 %6686
    %v6689 = vadd.f32 %v6673, %v6687
    %6691 = vrot.lane.b32.xlu0 %v6689, 32
    %v6692 = vpop.permute.xlu0 %6691
    %v6694 = vmul.f32 %v6679, %v6692
    %6696 = vrot.lane.b32.xlu0 %v6694, 64
    %v6697 = vpop.permute.xlu0 %6696
    %v6699 = vadd.f32 %v6673, %v6697
    %v6700 = vtanh.pop %v6699
    %v6701 = vsub.f32 1.0, %v6679
    %6703 = vrot.lane.b32.xlu0 %v6700, 96
    %v6704 = vpop.permute.xlu0 %6703
    %v6706 = vmul.f32 %v6701, %v6704
    %v6707 = vmul.f32 %v6679, %v6037
    %v6708 = vadd.f32 %v6706, %v6707
    %v6709 = vld [vmem:[%s13] sm:$0xff]
    %v6710 = vld [vmem:[%s13 + $0x8] sm:$0xff]
    %v6711 = vld [vmem:[%s13 + $0x10] sm:$0xff]
    %v6712 = vld [vmem:[%s13 + $0x18] sm:$0xff]
    %v6713 = vld [vmem:[%s14] sm:$0x1]
    %v6715 = vlaneseq
    %v6716 = vshrl.u32 %v6715, 7
    %v6717 = vsub.s32 0, %v6716
    %v6718 = vrot.slane %v6713, %v6717
    %6721 = vrot.lane.b32.xlu0 %v6708, 96
    %v6722 = vpop.permute.xlu0 %6721
    %v6723 = vsel %vm167, %v6722, 0
    %6725 = vmatprep.subr.mxu0 0.0
    %6726 = vmatpush1.msra.mxu0 0.0
    %6727 = vmatprep.subr.mxu0 0.0
    %6728 = vmatpush1.msra.mxu0 0.0
    %6729 = vmatprep.subr.mxu0 0.0
    %6730 = vmatpush1.msra.mxu0 0.0
    %6731 = vmatprep.subr.mxu0 0.0
    %6732 = vmatpush1.msra.mxu0 0.0
    %6733 = vmatprep.subr.mxu0 0.0
    %6734 = vmatpush1.msra.mxu0 0.0
    %6735 = vmatprep.subr.mxu0 0.0
    %6736 = vmatpush1.msra.mxu0 0.0
    %6737 = vmatprep.subr.mxu0 0.0
    %6738 = vmatpush1.msra.mxu0 0.0
    %6739 = vmatprep.subr.mxu0 0.0
    %6740 = vmatpush1.msra.mxu0 0.0
    %6741 = vmatprep.subr.mxu0 0.0
    %6742 = vmatpush1.msra.mxu0 0.0
    %6743 = vmatprep.subr.mxu0 0.0
    %6744 = vmatpush1.msra.mxu0 0.0
    %6745 = vmatprep.subr.mxu0 0.0
    %6746 = vmatpush1.msra.mxu0 0.0
    %6747 = vmatprep.subr.mxu0 0.0
    %6748 = vmatpush1.msra.mxu0 0.0
    %6749 = vmatprep.subr.mxu0 0.0
    %6750 = vmatpush1.msra.mxu0 %v6712
    %6751 = vmatprep.subr.mxu0 0.0
    %6752 = vmatpush1.msra.mxu0 %v6711
    %6753 = vmatprep.subr.mxu0 0.0
    %6754 = vmatpush1.msra.mxu0 %v6710
    %6755 = vmatprep.subr.mxu0 0.0
    %6756 = vmatpush1.msra.mxu0 %v6709
    %6757 = vmatprep.subr.mxu0 0.0
    %6758 = vmatpush2.msra.mxu0 0.0
    %6759 = vmatprep.subr.mxu0 0.0
    %6760 = vmatpush2.msra.mxu0 0.0
    %6761 = vmatprep.subr.mxu0 0.0
    %6762 = vmatpush2.msra.mxu0 0.0
    %6763 = vmatprep.subr.mxu0 0.0
    %6764 = vmatpush2.msra.mxu0 0.0
    %6765 = vmatprep.subr.mxu0 0.0
    %6766 = vmatpush2.msra.mxu0 0.0
    %6767 = vmatprep.subr.mxu0 0.0
    %6768 = vmatpush2.msra.mxu0 0.0
    %6769 = vmatprep.subr.mxu0 0.0
    %6770 = vmatpush2.msra.mxu0 0.0
    %6771 = vmatprep.subr.mxu0 0.0
    %6772 = vmatpush2.msra.mxu0 0.0
    %6773 = vmatprep.subr.mxu0 0.0
    %6774 = vmatpush2.msra.mxu0 0.0
    %6775 = vmatprep.subr.mxu0 0.0
    %6776 = vmatpush2.msra.mxu0 0.0
    %6777 = vmatprep.subr.mxu0 0.0
    %6778 = vmatpush2.msra.mxu0 0.0
    %6779 = vmatprep.subr.mxu0 0.0
    %6780 = vmatpush2.msra.mxu0 0.0
    %6781 = vmatprep.subr.mxu0 0.0
    %6782 = vmatpush2.msra.mxu0 0.0
    %6783 = vmatprep.subr.mxu0 0.0
    %6784 = vmatpush2.msra.mxu0 0.0
    %6785 = vmatprep.subr.mxu0 0.0
    %6786 = vmatpush2.msra.mxu0 0.0
    %6787 = vmatprep.subr.mxu0 0.0
    %6788 = vmatpush2.msra.mxu0 0.0
    %6789 = vmatprep.mubr.f32.mxu0 0.0
    %6790 = vmatmul.mubr.f32.gmra.mxu0 %v6723
    %v6791 = vpop.f32.mrf.mxu0
    %v6792 = vadd.f32 %v6718, %v6791
    %v6793 = vpop.f32.mrf.mxu0
    %6794 = vdwg.mxu0
    %s6795 = scalar_lea.vmem [#allocation5], 40
    %6796 = vst [vmem:[%s6795] sm:$0xff] %v6792
    %6797 = vmax.xlane.f32.xlu0 %v6792
    %v6798 = vpop.xlane.xlu0 %6797
    %vm6799 = vcmp.ge.f32.partialorder %v6792, %v6798
    %v6800 = vsel %vm6799, %v65, 128
    %v6801 = vand.u32 %v6800, 65535
    %v6802 = vshra.s32 %v6800, 16
    %v6803 = vcvt.s32.f32 %v6801
    %v6804 = vcvt.s32.f32 %v6802
    %6805 = vmin.xlane.f32.xlu0 %v6804
    %v6806 = vpop.xlane.xlu0 %6805
    %vm6807 = vcmp.eq.f32.partialorder %v6804, %v6806
    %v6808 = vsel %vm6807, %v6803, inf
    %6809 = vmin.xlane.f32.xlu0 %v6808
    %v6810 = vpop.xlane.xlu0 %6809
    %v6811 = vcvt.f32.s32 %v6810
    %v6812 = vcvt.f32.s32 %v6806
    %v6813 = vshll.u32 %v6812, 16
    %v6814 = vadd.s32 %v6813, %v6811
    %vm6815 = vcmp.eq.s32.totalorder %v65, %v6814
    %v6816 = vsel %vm6815, 1, 0
    %v6817 = vcvt.s32.f32 %v6816
    %v6818 = vld [vmem:[%s4] sm:$0xff]
    %v6819 = vld [vmem:[%s4 + $0x8] sm:$0xff]
    %v6820 = vld [vmem:[%s4 + $0x10] sm:$0xff]
    %v6821 = vld [vmem:[%s4 + $0x18] sm:$0xff]
    %v6822 = vld [vmem:[%s4 + $0x20] sm:$0xff]
    %v6823 = vld [vmem:[%s4 + $0x28] sm:$0xff]
    %v6824 = vld [vmem:[%s4 + $0x30] sm:$0xff]
    %v6825 = vld [vmem:[%s4 + $0x38] sm:$0xff]
    %v6826 = vld [vmem:[%s4 + $0x40] sm:$0xff]
    %v6827 = vld [vmem:[%s4 + $0x48] sm:$0xff]
    %v6828 = vld [vmem:[%s4 + $0x50] sm:$0xff]
    %v6829 = vld [vmem:[%s4 + $0x58] sm:$0xff]
    %v6830 = vld [vmem:[%s4 + $0x60] sm:$0xff]
    %v6831 = vld [vmem:[%s4 + $0x68] sm:$0xff]
    %v6832 = vld [vmem:[%s4 + $0x70] sm:$0xff]
    %v6833 = vld [vmem:[%s4 + $0x78] sm:$0xff]
    %6834 = vmatprep.subr.mxu0 0.0
    %6835 = vmatpush1.msra.mxu0 %v6833
    %6836 = vmatprep.subr.mxu0 0.0
    %6837 = vmatpush1.msra.mxu0 %v6832
    %6838 = vmatprep.subr.mxu0 0.0
    %6839 = vmatpush1.msra.mxu0 %v6831
    %6840 = vmatprep.subr.mxu0 0.0
    %6841 = vmatpush1.msra.mxu0 %v6830
    %6842 = vmatprep.subr.mxu0 0.0
    %6843 = vmatpush1.msra.mxu0 %v6829
    %6844 = vmatprep.subr.mxu0 0.0
    %6845 = vmatpush1.msra.mxu0 %v6828
    %6846 = vmatprep.subr.mxu0 0.0
    %6847 = vmatpush1.msra.mxu0 %v6827
    %6848 = vmatprep.subr.mxu0 0.0
    %6849 = vmatpush1.msra.mxu0 %v6826
    %6850 = vmatprep.subr.mxu0 0.0
    %6851 = vmatpush1.msra.mxu0 %v6825
    %6852 = vmatprep.subr.mxu0 0.0
    %6853 = vmatpush1.msra.mxu0 %v6824
    %6854 = vmatprep.subr.mxu0 0.0
    %6855 = vmatpush1.msra.mxu0 %v6823
    %6856 = vmatprep.subr.mxu0 0.0
    %6857 = vmatpush1.msra.mxu0 %v6822
    %6858 = vmatprep.subr.mxu0 0.0
    %6859 = vmatpush1.msra.mxu0 %v6821
    %6860 = vmatprep.subr.mxu0 0.0
    %6861 = vmatpush1.msra.mxu0 %v6820
    %6862 = vmatprep.subr.mxu0 0.0
    %6863 = vmatpush1.msra.mxu0 %v6819
    %6864 = vmatprep.subr.mxu0 0.0
    %6865 = vmatpush1.msra.mxu0 %v6818
    %6866 = vmatprep.subr.mxu0 0.0
    %6867 = vmatpush2.msra.mxu0 0.0
    %6868 = vmatprep.subr.mxu0 0.0
    %6869 = vmatpush2.msra.mxu0 0.0
    %6870 = vmatprep.subr.mxu0 0.0
    %6871 = vmatpush2.msra.mxu0 0.0
    %6872 = vmatprep.subr.mxu0 0.0
    %6873 = vmatpush2.msra.mxu0 0.0
    %6874 = vmatprep.subr.mxu0 0.0
    %6875 = vmatpush2.msra.mxu0 0.0
    %6876 = vmatprep.subr.mxu0 0.0
    %6877 = vmatpush2.msra.mxu0 0.0
    %6878 = vmatprep.subr.mxu0 0.0
    %6879 = vmatpush2.msra.mxu0 0.0
    %6880 = vmatprep.subr.mxu0 0.0
    %6881 = vmatpush2.msra.mxu0 0.0
    %6882 = vmatprep.subr.mxu0 0.0
    %6883 = vmatpush2.msra.mxu0 0.0
    %6884 = vmatprep.subr.mxu0 0.0
    %6885 = vmatpush2.msra.mxu0 0.0
    %6886 = vmatprep.subr.mxu0 0.0
    %6887 = vmatpush2.msra.mxu0 0.0
    %6888 = vmatprep.subr.mxu0 0.0
    %6889 = vmatpush2.msra.mxu0 0.0
    %6890 = vmatprep.subr.mxu0 0.0
    %6891 = vmatpush2.msra.mxu0 0.0
    %6892 = vmatprep.subr.mxu0 0.0
    %6893 = vmatpush2.msra.mxu0 0.0
    %6894 = vmatprep.subr.mxu0 0.0
    %6895 = vmatpush2.msra.mxu0 0.0
    %6896 = vmatprep.subr.mxu0 0.0
    %6897 = vmatpush2.msra.mxu0 0.0
    %6898 = vmatprep.mubr.f32.mxu0 0.0
    %6899 = vmatmul.mubr.f32.gmra.mxu0 %v6817
    %v6900 = vpop.f32.mrf.mxu0
    %v6901 = vadd.f32 0.0, %v6900
    %v6902 = vpop.f32.mrf.mxu0
    %6903 = vdwg.mxu0
    %s6904 = scalar_lea.vmem %s1, 40
    %v6905 = vld [vmem:[%s6904] sm:$0xff]
    %6906 = vset.pattern.permute.xlu0 0
    %6907 = vperm.xlu0 %6906, %v6905
    %v6908 = vpop.permute.xlu0 %6907
    %vm6909 = vcmp.eq.s32.totalorder %v6908, %v65
    %v6910 = vsel %vm6909, 1, 0
    %v6911 = vcvt.s32.f32 %v6910
    %6912 = vmatprep.subr.mxu0 0.0
    %6913 = vmatpush1.msra.mxu0 %v6833
    %6914 = vmatprep.subr.mxu0 0.0
    %6915 = vmatpush1.msra.mxu0 %v6832
    %6916 = vmatprep.subr.mxu0 0.0
    %6917 = vmatpush1.msra.mxu0 %v6831
    %6918 = vmatprep.subr.mxu0 0.0
    %6919 = vmatpush1.msra.mxu0 %v6830
    %6920 = vmatprep.subr.mxu0 0.0
    %6921 = vmatpush1.msra.mxu0 %v6829
    %6922 = vmatprep.subr.mxu0 0.0
    %6923 = vmatpush1.msra.mxu0 %v6828
    %6924 = vmatprep.subr.mxu0 0.0
    %6925 = vmatpush1.msra.mxu0 %v6827
    %6926 = vmatprep.subr.mxu0 0.0
    %6927 = vmatpush1.msra.mxu0 %v6826
    %6928 = vmatprep.subr.mxu0 0.0
    %6929 = vmatpush1.msra.mxu0 %v6825
    %6930 = vmatprep.subr.mxu0 0.0
    %6931 = vmatpush1.msra.mxu0 %v6824
    %6932 = vmatprep.subr.mxu0 0.0
    %6933 = vmatpush1.msra.mxu0 %v6823
    %6934 = vmatprep.subr.mxu0 0.0
    %6935 = vmatpush1.msra.mxu0 %v6822
    %6936 = vmatprep.subr.mxu0 0.0
    %6937 = vmatpush1.msra.mxu0 %v6821
    %6938 = vmatprep.subr.mxu0 0.0
    %6939 = vmatpush1.msra.mxu0 %v6820
    %6940 = vmatprep.subr.mxu0 0.0
    %6941 = vmatpush1.msra.mxu0 %v6819
    %6942 = vmatprep.subr.mxu0 0.0
    %6943 = vmatpush1.msra.mxu0 %v6818
    %6944 = vmatprep.subr.mxu0 0.0
    %6945 = vmatpush2.msra.mxu0 0.0
    %6946 = vmatprep.subr.mxu0 0.0
    %6947 = vmatpush2.msra.mxu0 0.0
    %6948 = vmatprep.subr.mxu0 0.0
    %6949 = vmatpush2.msra.mxu0 0.0
    %6950 = vmatprep.subr.mxu0 0.0
    %6951 = vmatpush2.msra.mxu0 0.0
    %6952 = vmatprep.subr.mxu0 0.0
    %6953 = vmatpush2.msra.mxu0 0.0
    %6954 = vmatprep.subr.mxu0 0.0
    %6955 = vmatpush2.msra.mxu0 0.0
    %6956 = vmatprep.subr.mxu0 0.0
    %6957 = vmatpush2.msra.mxu0 0.0
    %6958 = vmatprep.subr.mxu0 0.0
    %6959 = vmatpush2.msra.mxu0 0.0
    %6960 = vmatprep.subr.mxu0 0.0
    %6961 = vmatpush2.msra.mxu0 0.0
    %6962 = vmatprep.subr.mxu0 0.0
    %6963 = vmatpush2.msra.mxu0 0.0
    %6964 = vmatprep.subr.mxu0 0.0
    %6965 = vmatpush2.msra.mxu0 0.0
    %6966 = vmatprep.subr.mxu0 0.0
    %6967 = vmatpush2.msra.mxu0 0.0
    %6968 = vmatprep.subr.mxu0 0.0
    %6969 = vmatpush2.msra.mxu0 0.0
    %6970 = vmatprep.subr.mxu0 0.0
    %6971 = vmatpush2.msra.mxu0 0.0
    %6972 = vmatprep.subr.mxu0 0.0
    %6973 = vmatpush2.msra.mxu0 0.0
    %6974 = vmatprep.subr.mxu0 0.0
    %6975 = vmatpush2.msra.mxu0 0.0
    %6976 = vmatprep.mubr.f32.mxu0 0.0
    %6977 = vmatmul.mubr.f32.gmra.mxu0 %v6911
    %v6978 = vpop.f32.mrf.mxu0
    %v6979 = vadd.f32 0.0, %v6978
    %v6980 = vpop.f32.mrf.mxu0
    %6981 = vdwg.mxu0
    %s6982 = sld [smem:[#allocation2 + $0x4]]
    %s6983 = scvt.s32.f32 %s6982
    %v6984 = vstv %s6983
    %v6985 = vmul.f32 %v6984, %v6979
    %s6986 = ssub.f32 1.0, %s6983
    %v6987 = vstv %s6986
    %v6988 = vmul.f32 %v6987, %v6901
    %v6989 = vadd.f32 %v6985, %v6988
    %v6990 = vld [vmem:[%s9] sm:$0xff]
    %v6991 = vld [vmem:[%s9 + $0x8] sm:$0xff]
    %v6992 = vld [vmem:[%s9 + $0x10] sm:$0xff]
    %v6993 = vld [vmem:[%s9 + $0x18] sm:$0xff]
    %v6994 = vld [vmem:[%s10] sm:$0xff]
    %v6995 = vld [vmem:[%s10 + $0x8] sm:$0xff]
    %v6996 = vld [vmem:[%s10 + $0x10] sm:$0xff]
    %v6997 = vld [vmem:[%s10 + $0x18] sm:$0xff]
    %6998 = vmatprep.subr.mxu0 0.0
    %6999 = vmatpush1.msra.mxu0 0.0
    %7000 = vmatprep.subr.mxu0 0.0
    %7001 = vmatpush1.msra.mxu0 0.0
    %7002 = vmatprep.subr.mxu0 0.0
    %7003 = vmatpush1.msra.mxu0 0.0
    %7004 = vmatprep.subr.mxu0 0.0
    %7005 = vmatpush1.msra.mxu0 0.0
    %7006 = vmatprep.subr.mxu0 0.0
    %7007 = vmatpush1.msra.mxu0 0.0
    %7008 = vmatprep.subr.mxu0 0.0
    %7009 = vmatpush1.msra.mxu0 0.0
    %7010 = vmatprep.subr.mxu0 0.0
    %7011 = vmatpush1.msra.mxu0 0.0
    %7012 = vmatprep.subr.mxu0 0.0
    %7013 = vmatpush1.msra.mxu0 0.0
    %7014 = vmatprep.subr.mxu0 0.0
    %7015 = vmatpush1.msra.mxu0 0.0
    %7016 = vmatprep.subr.mxu0 0.0
    %7017 = vmatpush1.msra.mxu0 0.0
    %7018 = vmatprep.subr.mxu0 0.0
    %7019 = vmatpush1.msra.mxu0 0.0
    %7020 = vmatprep.subr.mxu0 0.0
    %7021 = vmatpush1.msra.mxu0 0.0
    %7022 = vmatprep.subr.mxu0 0.0
    %7023 = vmatpush1.msra.mxu0 %v6997
    %7024 = vmatprep.subr.mxu0 0.0
    %7025 = vmatpush1.msra.mxu0 %v6996
    %7026 = vmatprep.subr.mxu0 0.0
    %7027 = vmatpush1.msra.mxu0 %v6995
    %7028 = vmatprep.subr.mxu0 0.0
    %7029 = vmatpush1.msra.mxu0 %v6994
    %7030 = vmatprep.subr.mxu0 0.0
    %7031 = vmatpush2.msra.mxu0 0.0
    %7032 = vmatprep.subr.mxu0 0.0
    %7033 = vmatpush2.msra.mxu0 0.0
    %7034 = vmatprep.subr.mxu0 0.0
    %7035 = vmatpush2.msra.mxu0 0.0
    %7036 = vmatprep.subr.mxu0 0.0
    %7037 = vmatpush2.msra.mxu0 0.0
    %7038 = vmatprep.subr.mxu0 0.0
    %7039 = vmatpush2.msra.mxu0 0.0
    %7040 = vmatprep.subr.mxu0 0.0
    %7041 = vmatpush2.msra.mxu0 0.0
    %7042 = vmatprep.subr.mxu0 0.0
    %7043 = vmatpush2.msra.mxu0 0.0
    %7044 = vmatprep.subr.mxu0 0.0
    %7045 = vmatpush2.msra.mxu0 0.0
    %7046 = vmatprep.subr.mxu0 0.0
    %7047 = vmatpush2.msra.mxu0 0.0
    %7048 = vmatprep.subr.mxu0 0.0
    %7049 = vmatpush2.msra.mxu0 0.0
    %7050 = vmatprep.subr.mxu0 0.0
    %7051 = vmatpush2.msra.mxu0 0.0
    %7052 = vmatprep.subr.mxu0 0.0
    %7053 = vmatpush2.msra.mxu0 0.0
    %7054 = vmatprep.subr.mxu0 0.0
    %7055 = vmatpush2.msra.mxu0 0.0
    %7056 = vmatprep.subr.mxu0 0.0
    %7057 = vmatpush2.msra.mxu0 0.0
    %7058 = vmatprep.subr.mxu0 0.0
    %7059 = vmatpush2.msra.mxu0 0.0
    %7060 = vmatprep.subr.mxu0 0.0
    %7061 = vmatpush2.msra.mxu0 0.0
    %7062 = vmatprep.mubr.f32.mxu0 0.0
    %7063 = vmatmul.mubr.f32.gmra.mxu0 %v6594
    %v7064 = vpop.f32.mrf.mxu0
    %v7065 = vadd.f32 0.0, %v7064
    %v7066 = vpop.f32.mrf.mxu0
    %7067 = vdwg.mxu0
    %v7069 = vsel %vm167, %v6989, 0
    %7071 = vmatprep.subr.mxu0 0.0
    %7072 = vmatpush1.msra.mxu0 0.0
    %7073 = vmatprep.subr.mxu0 0.0
    %7074 = vmatpush1.msra.mxu0 0.0
    %7075 = vmatprep.subr.mxu0 0.0
    %7076 = vmatpush1.msra.mxu0 0.0
    %7077 = vmatprep.subr.mxu0 0.0
    %7078 = vmatpush1.msra.mxu0 0.0
    %7079 = vmatprep.subr.mxu0 0.0
    %7080 = vmatpush1.msra.mxu0 0.0
    %7081 = vmatprep.subr.mxu0 0.0
    %7082 = vmatpush1.msra.mxu0 0.0
    %7083 = vmatprep.subr.mxu0 0.0
    %7084 = vmatpush1.msra.mxu0 0.0
    %7085 = vmatprep.subr.mxu0 0.0
    %7086 = vmatpush1.msra.mxu0 0.0
    %7087 = vmatprep.subr.mxu0 0.0
    %7088 = vmatpush1.msra.mxu0 0.0
    %7089 = vmatprep.subr.mxu0 0.0
    %7090 = vmatpush1.msra.mxu0 0.0
    %7091 = vmatprep.subr.mxu0 0.0
    %7092 = vmatpush1.msra.mxu0 0.0
    %7093 = vmatprep.subr.mxu0 0.0
    %7094 = vmatpush1.msra.mxu0 0.0
    %7095 = vmatprep.subr.mxu0 0.0
    %7096 = vmatpush1.msra.mxu0 %v6993
    %7097 = vmatprep.subr.mxu0 0.0
    %7098 = vmatpush1.msra.mxu0 %v6992
    %7099 = vmatprep.subr.mxu0 0.0
    %7100 = vmatpush1.msra.mxu0 %v6991
    %7101 = vmatprep.subr.mxu0 0.0
    %7102 = vmatpush1.msra.mxu0 %v6990
    %7103 = vmatprep.subr.mxu0 0.0
    %7104 = vmatpush2.msra.mxu0 0.0
    %7105 = vmatprep.subr.mxu0 0.0
    %7106 = vmatpush2.msra.mxu0 0.0
    %7107 = vmatprep.subr.mxu0 0.0
    %7108 = vmatpush2.msra.mxu0 0.0
    %7109 = vmatprep.subr.mxu0 0.0
    %7110 = vmatpush2.msra.mxu0 0.0
    %7111 = vmatprep.subr.mxu0 0.0
    %7112 = vmatpush2.msra.mxu0 0.0
    %7113 = vmatprep.subr.mxu0 0.0
    %7114 = vmatpush2.msra.mxu0 0.0
    %7115 = vmatprep.subr.mxu0 0.0
    %7116 = vmatpush2.msra.mxu0 0.0
    %7117 = vmatprep.subr.mxu0 0.0
    %7118 = vmatpush2.msra.mxu0 0.0
    %7119 = vmatprep.subr.mxu0 0.0
    %7120 = vmatpush2.msra.mxu0 0.0
    %7121 = vmatprep.subr.mxu0 0.0
    %7122 = vmatpush2.msra.mxu0 0.0
    %7123 = vmatprep.subr.mxu0 0.0
    %7124 = vmatpush2.msra.mxu0 0.0
    %7125 = vmatprep.subr.mxu0 0.0
    %7126 = vmatpush2.msra.mxu0 0.0
    %7127 = vmatprep.subr.mxu0 0.0
    %7128 = vmatpush2.msra.mxu0 0.0
    %7129 = vmatprep.subr.mxu0 0.0
    %7130 = vmatpush2.msra.mxu0 0.0
    %7131 = vmatprep.subr.mxu0 0.0
    %7132 = vmatpush2.msra.mxu0 0.0
    %7133 = vmatprep.subr.mxu0 0.0
    %7134 = vmatpush2.msra.mxu0 0.0
    %7135 = vmatprep.mubr.f32.mxu0 0.0
    %7136 = vmatmul.mubr.f32.gmra.mxu0 %v7069
    %v7137 = vpop.f32.mrf.mxu0
    %v7138 = vadd.f32 %v7065, %v7137
    %v7139 = vpop.f32.mrf.mxu0
    %7140 = vdwg.mxu0
    %v7141 = vld [vmem:[%s11] sm:$0x1]
    %v7143 = vlaneseq
    %v7144 = vshrl.u32 %v7143, 7
    %v7145 = vsub.s32 0, %v7144
    %v7146 = vrot.slane %v7141, %v7145
    %v7148 = vadd.f32 %v7138, %v7146
    %v7149 = vxor.u32 %v7148, 2147483648
    %v7150 = vmul.f32 %v7149, 1.442695
    %v7151 = vpow.pop %v7150
    %v7152 = vadd.f32 %v7151, 1.0
    %v7153 = vrcp.pop %v7152
    %v7154 = vmul.f32 1.0, %v7153
    %v7155 = vld [vmem:[%s12] sm:$0x1]
    %v7157 = vlaneseq
    %v7158 = vshrl.u32 %v7157, 7
    %v7159 = vsub.s32 0, %v7158
    %v7160 = vrot.slane %v7155, %v7159
    %7161 = vrot.lane.b32.xlu0 %v7160, 96
    %v7162 = vpop.permute.xlu0 %7161
    %v7164 = vadd.f32 %v7148, %v7162
    %7166 = vrot.lane.b32.xlu0 %v7164, 32
    %v7167 = vpop.permute.xlu0 %7166
    %v7169 = vmul.f32 %v7154, %v7167
    %7171 = vrot.lane.b32.xlu0 %v7169, 64
    %v7172 = vpop.permute.xlu0 %7171
    %v7174 = vadd.f32 %v7148, %v7172
    %v7175 = vtanh.pop %v7174
    %v7176 = vsub.f32 1.0, %v7154
    %7178 = vrot.lane.b32.xlu0 %v7175, 96
    %v7179 = vpop.permute.xlu0 %7178
    %v7181 = vmul.f32 %v7176, %v7179
    %v7182 = vmul.f32 %v7154, %v6512
    %v7183 = vadd.f32 %v7181, %v7182
    %v7184 = vld [vmem:[%s3820] sm:$0xff]
    %v7185 = vld [vmem:[%s3820 + $0x8] sm:$0xff]
    %v7186 = vld [vmem:[%s3820 + $0x10] sm:$0xff]
    %v7187 = vld [vmem:[%s3820 + $0x18] sm:$0xff]
    %v7188 = vld [vmem:[%s3825] sm:$0xff]
    %v7189 = vld [vmem:[%s3825 + $0x8] sm:$0xff]
    %v7190 = vld [vmem:[%s3825 + $0x10] sm:$0xff]
    %v7191 = vld [vmem:[%s3825 + $0x18] sm:$0xff]
    %7192 = vmatprep.subr.mxu0 0.0
    %7193 = vmatpush1.msra.mxu0 0.0
    %7194 = vmatprep.subr.mxu0 0.0
    %7195 = vmatpush1.msra.mxu0 0.0
    %7196 = vmatprep.subr.mxu0 0.0
    %7197 = vmatpush1.msra.mxu0 0.0
    %7198 = vmatprep.subr.mxu0 0.0
    %7199 = vmatpush1.msra.mxu0 0.0
    %7200 = vmatprep.subr.mxu0 0.0
    %7201 = vmatpush1.msra.mxu0 0.0
    %7202 = vmatprep.subr.mxu0 0.0
    %7203 = vmatpush1.msra.mxu0 0.0
    %7204 = vmatprep.subr.mxu0 0.0
    %7205 = vmatpush1.msra.mxu0 0.0
    %7206 = vmatprep.subr.mxu0 0.0
    %7207 = vmatpush1.msra.mxu0 0.0
    %7208 = vmatprep.subr.mxu0 0.0
    %7209 = vmatpush1.msra.mxu0 0.0
    %7210 = vmatprep.subr.mxu0 0.0
    %7211 = vmatpush1.msra.mxu0 0.0
    %7212 = vmatprep.subr.mxu0 0.0
    %7213 = vmatpush1.msra.mxu0 0.0
    %7214 = vmatprep.subr.mxu0 0.0
    %7215 = vmatpush1.msra.mxu0 0.0
    %7216 = vmatprep.subr.mxu0 0.0
    %7217 = vmatpush1.msra.mxu0 %v7191
    %7218 = vmatprep.subr.mxu0 0.0
    %7219 = vmatpush1.msra.mxu0 %v7190
    %7220 = vmatprep.subr.mxu0 0.0
    %7221 = vmatpush1.msra.mxu0 %v7189
    %7222 = vmatprep.subr.mxu0 0.0
    %7223 = vmatpush1.msra.mxu0 %v7188
    %7224 = vmatprep.subr.mxu0 0.0
    %7225 = vmatpush2.msra.mxu0 0.0
    %7226 = vmatprep.subr.mxu0 0.0
    %7227 = vmatpush2.msra.mxu0 0.0
    %7228 = vmatprep.subr.mxu0 0.0
    %7229 = vmatpush2.msra.mxu0 0.0
    %7230 = vmatprep.subr.mxu0 0.0
    %7231 = vmatpush2.msra.mxu0 0.0
    %7232 = vmatprep.subr.mxu0 0.0
    %7233 = vmatpush2.msra.mxu0 0.0
    %7234 = vmatprep.subr.mxu0 0.0
    %7235 = vmatpush2.msra.mxu0 0.0
    %7236 = vmatprep.subr.mxu0 0.0
    %7237 = vmatpush2.msra.mxu0 0.0
    %7238 = vmatprep.subr.mxu0 0.0
    %7239 = vmatpush2.msra.mxu0 0.0
    %7240 = vmatprep.subr.mxu0 0.0
    %7241 = vmatpush2.msra.mxu0 0.0
    %7242 = vmatprep.subr.mxu0 0.0
    %7243 = vmatpush2.msra.mxu0 0.0
    %7244 = vmatprep.subr.mxu0 0.0
    %7245 = vmatpush2.msra.mxu0 0.0
    %7246 = vmatprep.subr.mxu0 0.0
    %7247 = vmatpush2.msra.mxu0 0.0
    %7248 = vmatprep.subr.mxu0 0.0
    %7249 = vmatpush2.msra.mxu0 0.0
    %7250 = vmatprep.subr.mxu0 0.0
    %7251 = vmatpush2.msra.mxu0 0.0
    %7252 = vmatprep.subr.mxu0 0.0
    %7253 = vmatpush2.msra.mxu0 0.0
    %7254 = vmatprep.subr.mxu0 0.0
    %7255 = vmatpush2.msra.mxu0 0.0
    %7256 = vmatprep.mubr.f32.mxu0 0.0
    %7257 = vmatmul.mubr.f32.gmra.mxu0 %v6723
    %v7258 = vpop.f32.mrf.mxu0
    %v7259 = vadd.f32 0.0, %v7258
    %v7260 = vpop.f32.mrf.mxu0
    %7261 = vdwg.mxu0
    %7263 = vrot.lane.b32.xlu0 %v7183, 96
    %v7264 = vpop.permute.xlu0 %7263
    %v7265 = vsel %vm167, %v7264, 0
    %7267 = vmatprep.subr.mxu0 0.0
    %7268 = vmatpush1.msra.mxu0 0.0
    %7269 = vmatprep.subr.mxu0 0.0
    %7270 = vmatpush1.msra.mxu0 0.0
    %7271 = vmatprep.subr.mxu0 0.0
    %7272 = vmatpush1.msra.mxu0 0.0
    %7273 = vmatprep.subr.mxu0 0.0
    %7274 = vmatpush1.msra.mxu0 0.0
    %7275 = vmatprep.subr.mxu0 0.0
    %7276 = vmatpush1.msra.mxu0 0.0
    %7277 = vmatprep.subr.mxu0 0.0
    %7278 = vmatpush1.msra.mxu0 0.0
    %7279 = vmatprep.subr.mxu0 0.0
    %7280 = vmatpush1.msra.mxu0 0.0
    %7281 = vmatprep.subr.mxu0 0.0
    %7282 = vmatpush1.msra.mxu0 0.0
    %7283 = vmatprep.subr.mxu0 0.0
    %7284 = vmatpush1.msra.mxu0 0.0
    %7285 = vmatprep.subr.mxu0 0.0
    %7286 = vmatpush1.msra.mxu0 0.0
    %7287 = vmatprep.subr.mxu0 0.0
    %7288 = vmatpush1.msra.mxu0 0.0
    %7289 = vmatprep.subr.mxu0 0.0
    %7290 = vmatpush1.msra.mxu0 0.0
    %7291 = vmatprep.subr.mxu0 0.0
    %7292 = vmatpush1.msra.mxu0 %v7187
    %7293 = vmatprep.subr.mxu0 0.0
    %7294 = vmatpush1.msra.mxu0 %v7186
    %7295 = vmatprep.subr.mxu0 0.0
    %7296 = vmatpush1.msra.mxu0 %v7185
    %7297 = vmatprep.subr.mxu0 0.0
    %7298 = vmatpush1.msra.mxu0 %v7184
    %7299 = vmatprep.subr.mxu0 0.0
    %7300 = vmatpush2.msra.mxu0 0.0
    %7301 = vmatprep.subr.mxu0 0.0
    %7302 = vmatpush2.msra.mxu0 0.0
    %7303 = vmatprep.subr.mxu0 0.0
    %7304 = vmatpush2.msra.mxu0 0.0
    %7305 = vmatprep.subr.mxu0 0.0
    %7306 = vmatpush2.msra.mxu0 0.0
    %7307 = vmatprep.subr.mxu0 0.0
    %7308 = vmatpush2.msra.mxu0 0.0
    %7309 = vmatprep.subr.mxu0 0.0
    %7310 = vmatpush2.msra.mxu0 0.0
    %7311 = vmatprep.subr.mxu0 0.0
    %7312 = vmatpush2.msra.mxu0 0.0
    %7313 = vmatprep.subr.mxu0 0.0
    %7314 = vmatpush2.msra.mxu0 0.0
    %7315 = vmatprep.subr.mxu0 0.0
    %7316 = vmatpush2.msra.mxu0 0.0
    %7317 = vmatprep.subr.mxu0 0.0
    %7318 = vmatpush2.msra.mxu0 0.0
    %7319 = vmatprep.subr.mxu0 0.0
    %7320 = vmatpush2.msra.mxu0 0.0
    %7321 = vmatprep.subr.mxu0 0.0
    %7322 = vmatpush2.msra.mxu0 0.0
    %7323 = vmatprep.subr.mxu0 0.0
    %7324 = vmatpush2.msra.mxu0 0.0
    %7325 = vmatprep.subr.mxu0 0.0
    %7326 = vmatpush2.msra.mxu0 0.0
    %7327 = vmatprep.subr.mxu0 0.0
    %7328 = vmatpush2.msra.mxu0 0.0
    %7329 = vmatprep.subr.mxu0 0.0
    %7330 = vmatpush2.msra.mxu0 0.0
    %7331 = vmatprep.mubr.f32.mxu0 0.0
    %7332 = vmatmul.mubr.f32.gmra.mxu0 %v7265
    %v7333 = vpop.f32.mrf.mxu0
    %v7334 = vadd.f32 %v7259, %v7333
    %v7335 = vpop.f32.mrf.mxu0
    %7336 = vdwg.mxu0
    %v7337 = vld [vmem:[%s3980] sm:$0x1]
    %v7339 = vlaneseq
    %v7340 = vshrl.u32 %v7339, 7
    %v7341 = vsub.s32 0, %v7340
    %v7342 = vrot.slane %v7337, %v7341
    %v7344 = vadd.f32 %v7334, %v7342
    %v7345 = vxor.u32 %v7344, 2147483648
    %v7346 = vmul.f32 %v7345, 1.442695
    %v7347 = vpow.pop %v7346
    %v7348 = vadd.f32 %v7347, 1.0
    %v7349 = vrcp.pop %v7348
    %v7350 = vmul.f32 1.0, %v7349
    %v7351 = vld [vmem:[%s3995] sm:$0x1]
    %v7353 = vlaneseq
    %v7354 = vshrl.u32 %v7353, 7
    %v7355 = vsub.s32 0, %v7354
    %v7356 = vrot.slane %v7351, %v7355
    %7357 = vrot.lane.b32.xlu0 %v7356, 96
    %v7358 = vpop.permute.xlu0 %7357
    %v7360 = vadd.f32 %v7344, %v7358
    %7362 = vrot.lane.b32.xlu0 %v7360, 32
    %v7363 = vpop.permute.xlu0 %7362
    %v7365 = vmul.f32 %v7350, %v7363
    %7367 = vrot.lane.b32.xlu0 %v7365, 64
    %v7368 = vpop.permute.xlu0 %7367
    %v7370 = vadd.f32 %v7344, %v7368
    %v7371 = vtanh.pop %v7370
    %v7372 = vsub.f32 1.0, %v7350
    %7374 = vrot.lane.b32.xlu0 %v7371, 96
    %v7375 = vpop.permute.xlu0 %7374
    %v7377 = vmul.f32 %v7372, %v7375
    %v7378 = vmul.f32 %v7350, %v6708
    %v7379 = vadd.f32 %v7377, %v7378
    %v7380 = vld [vmem:[%s13] sm:$0xff]
    %v7381 = vld [vmem:[%s13 + $0x8] sm:$0xff]
    %v7382 = vld [vmem:[%s13 + $0x10] sm:$0xff]
    %v7383 = vld [vmem:[%s13 + $0x18] sm:$0xff]
    %v7384 = vld [vmem:[%s14] sm:$0x1]
    %v7386 = vlaneseq
    %v7387 = vshrl.u32 %v7386, 7
    %v7388 = vsub.s32 0, %v7387
    %v7389 = vrot.slane %v7384, %v7388
    %7392 = vrot.lane.b32.xlu0 %v7379, 96
    %v7393 = vpop.permute.xlu0 %7392
    %v7394 = vsel %vm167, %v7393, 0
    %7396 = vmatprep.subr.mxu0 0.0
    %7397 = vmatpush1.msra.mxu0 0.0
    %7398 = vmatprep.subr.mxu0 0.0
    %7399 = vmatpush1.msra.mxu0 0.0
    %7400 = vmatprep.subr.mxu0 0.0
    %7401 = vmatpush1.msra.mxu0 0.0
    %7402 = vmatprep.subr.mxu0 0.0
    %7403 = vmatpush1.msra.mxu0 0.0
    %7404 = vmatprep.subr.mxu0 0.0
    %7405 = vmatpush1.msra.mxu0 0.0
    %7406 = vmatprep.subr.mxu0 0.0
    %7407 = vmatpush1.msra.mxu0 0.0
    %7408 = vmatprep.subr.mxu0 0.0
    %7409 = vmatpush1.msra.mxu0 0.0
    %7410 = vmatprep.subr.mxu0 0.0
    %7411 = vmatpush1.msra.mxu0 0.0
    %7412 = vmatprep.subr.mxu0 0.0
    %7413 = vmatpush1.msra.mxu0 0.0
    %7414 = vmatprep.subr.mxu0 0.0
    %7415 = vmatpush1.msra.mxu0 0.0
    %7416 = vmatprep.subr.mxu0 0.0
    %7417 = vmatpush1.msra.mxu0 0.0
    %7418 = vmatprep.subr.mxu0 0.0
    %7419 = vmatpush1.msra.mxu0 0.0
    %7420 = vmatprep.subr.mxu0 0.0
    %7421 = vmatpush1.msra.mxu0 %v7383
    %7422 = vmatprep.subr.mxu0 0.0
    %7423 = vmatpush1.msra.mxu0 %v7382
    %7424 = vmatprep.subr.mxu0 0.0
    %7425 = vmatpush1.msra.mxu0 %v7381
    %7426 = vmatprep.subr.mxu0 0.0
    %7427 = vmatpush1.msra.mxu0 %v7380
    %7428 = vmatprep.subr.mxu0 0.0
    %7429 = vmatpush2.msra.mxu0 0.0
    %7430 = vmatprep.subr.mxu0 0.0
    %7431 = vmatpush2.msra.mxu0 0.0
    %7432 = vmatprep.subr.mxu0 0.0
    %7433 = vmatpush2.msra.mxu0 0.0
    %7434 = vmatprep.subr.mxu0 0.0
    %7435 = vmatpush2.msra.mxu0 0.0
    %7436 = vmatprep.subr.mxu0 0.0
    %7437 = vmatpush2.msra.mxu0 0.0
    %7438 = vmatprep.subr.mxu0 0.0
    %7439 = vmatpush2.msra.mxu0 0.0
    %7440 = vmatprep.subr.mxu0 0.0
    %7441 = vmatpush2.msra.mxu0 0.0
    %7442 = vmatprep.subr.mxu0 0.0
    %7443 = vmatpush2.msra.mxu0 0.0
    %7444 = vmatprep.subr.mxu0 0.0
    %7445 = vmatpush2.msra.mxu0 0.0
    %7446 = vmatprep.subr.mxu0 0.0
    %7447 = vmatpush2.msra.mxu0 0.0
    %7448 = vmatprep.subr.mxu0 0.0
    %7449 = vmatpush2.msra.mxu0 0.0
    %7450 = vmatprep.subr.mxu0 0.0
    %7451 = vmatpush2.msra.mxu0 0.0
    %7452 = vmatprep.subr.mxu0 0.0
    %7453 = vmatpush2.msra.mxu0 0.0
    %7454 = vmatprep.subr.mxu0 0.0
    %7455 = vmatpush2.msra.mxu0 0.0
    %7456 = vmatprep.subr.mxu0 0.0
    %7457 = vmatpush2.msra.mxu0 0.0
    %7458 = vmatprep.subr.mxu0 0.0
    %7459 = vmatpush2.msra.mxu0 0.0
    %7460 = vmatprep.mubr.f32.mxu0 0.0
    %7461 = vmatmul.mubr.f32.gmra.mxu0 %v7394
    %v7462 = vpop.f32.mrf.mxu0
    %v7463 = vadd.f32 %v7389, %v7462
    %v7464 = vpop.f32.mrf.mxu0
    %7465 = vdwg.mxu0
    %s7466 = scalar_lea.vmem [#allocation5], 48
    %7467 = vst [vmem:[%s7466] sm:$0xff] %v7463
    %7468 = vmax.xlane.f32.xlu0 %v7463
    %v7469 = vpop.xlane.xlu0 %7468
    %vm7470 = vcmp.ge.f32.partialorder %v7463, %v7469
    %v7471 = vsel %vm7470, %v65, 128
    %v7472 = vand.u32 %v7471, 65535
    %v7473 = vshra.s32 %v7471, 16
    %v7474 = vcvt.s32.f32 %v7472
    %v7475 = vcvt.s32.f32 %v7473
    %7476 = vmin.xlane.f32.xlu0 %v7475
    %v7477 = vpop.xlane.xlu0 %7476
    %vm7478 = vcmp.eq.f32.partialorder %v7475, %v7477
    %v7479 = vsel %vm7478, %v7474, inf
    %7480 = vmin.xlane.f32.xlu0 %v7479
    %v7481 = vpop.xlane.xlu0 %7480
    %v7482 = vcvt.f32.s32 %v7481
    %v7483 = vcvt.f32.s32 %v7477
    %v7484 = vshll.u32 %v7483, 16
    %v7485 = vadd.s32 %v7484, %v7482
    %vm7486 = vcmp.eq.s32.totalorder %v65, %v7485
    %v7487 = vsel %vm7486, 1, 0
    %v7488 = vcvt.s32.f32 %v7487
    %v7489 = vld [vmem:[%s4] sm:$0xff]
    %v7490 = vld [vmem:[%s4 + $0x8] sm:$0xff]
    %v7491 = vld [vmem:[%s4 + $0x10] sm:$0xff]
    %v7492 = vld [vmem:[%s4 + $0x18] sm:$0xff]
    %v7493 = vld [vmem:[%s4 + $0x20] sm:$0xff]
    %v7494 = vld [vmem:[%s4 + $0x28] sm:$0xff]
    %v7495 = vld [vmem:[%s4 + $0x30] sm:$0xff]
    %v7496 = vld [vmem:[%s4 + $0x38] sm:$0xff]
    %v7497 = vld [vmem:[%s4 + $0x40] sm:$0xff]
    %v7498 = vld [vmem:[%s4 + $0x48] sm:$0xff]
    %v7499 = vld [vmem:[%s4 + $0x50] sm:$0xff]
    %v7500 = vld [vmem:[%s4 + $0x58] sm:$0xff]
    %v7501 = vld [vmem:[%s4 + $0x60] sm:$0xff]
    %v7502 = vld [vmem:[%s4 + $0x68] sm:$0xff]
    %v7503 = vld [vmem:[%s4 + $0x70] sm:$0xff]
    %v7504 = vld [vmem:[%s4 + $0x78] sm:$0xff]
    %7505 = vmatprep.subr.mxu0 0.0
    %7506 = vmatpush1.msra.mxu0 %v7504
    %7507 = vmatprep.subr.mxu0 0.0
    %7508 = vmatpush1.msra.mxu0 %v7503
    %7509 = vmatprep.subr.mxu0 0.0
    %7510 = vmatpush1.msra.mxu0 %v7502
    %7511 = vmatprep.subr.mxu0 0.0
    %7512 = vmatpush1.msra.mxu0 %v7501
    %7513 = vmatprep.subr.mxu0 0.0
    %7514 = vmatpush1.msra.mxu0 %v7500
    %7515 = vmatprep.subr.mxu0 0.0
    %7516 = vmatpush1.msra.mxu0 %v7499
    %7517 = vmatprep.subr.mxu0 0.0
    %7518 = vmatpush1.msra.mxu0 %v7498
    %7519 = vmatprep.subr.mxu0 0.0
    %7520 = vmatpush1.msra.mxu0 %v7497
    %7521 = vmatprep.subr.mxu0 0.0
    %7522 = vmatpush1.msra.mxu0 %v7496
    %7523 = vmatprep.subr.mxu0 0.0
    %7524 = vmatpush1.msra.mxu0 %v7495
    %7525 = vmatprep.subr.mxu0 0.0
    %7526 = vmatpush1.msra.mxu0 %v7494
    %7527 = vmatprep.subr.mxu0 0.0
    %7528 = vmatpush1.msra.mxu0 %v7493
    %7529 = vmatprep.subr.mxu0 0.0
    %7530 = vmatpush1.msra.mxu0 %v7492
    %7531 = vmatprep.subr.mxu0 0.0
    %7532 = vmatpush1.msra.mxu0 %v7491
    %7533 = vmatprep.subr.mxu0 0.0
    %7534 = vmatpush1.msra.mxu0 %v7490
    %7535 = vmatprep.subr.mxu0 0.0
    %7536 = vmatpush1.msra.mxu0 %v7489
    %7537 = vmatprep.subr.mxu0 0.0
    %7538 = vmatpush2.msra.mxu0 0.0
    %7539 = vmatprep.subr.mxu0 0.0
    %7540 = vmatpush2.msra.mxu0 0.0
    %7541 = vmatprep.subr.mxu0 0.0
    %7542 = vmatpush2.msra.mxu0 0.0
    %7543 = vmatprep.subr.mxu0 0.0
    %7544 = vmatpush2.msra.mxu0 0.0
    %7545 = vmatprep.subr.mxu0 0.0
    %7546 = vmatpush2.msra.mxu0 0.0
    %7547 = vmatprep.subr.mxu0 0.0
    %7548 = vmatpush2.msra.mxu0 0.0
    %7549 = vmatprep.subr.mxu0 0.0
    %7550 = vmatpush2.msra.mxu0 0.0
    %7551 = vmatprep.subr.mxu0 0.0
    %7552 = vmatpush2.msra.mxu0 0.0
    %7553 = vmatprep.subr.mxu0 0.0
    %7554 = vmatpush2.msra.mxu0 0.0
    %7555 = vmatprep.subr.mxu0 0.0
    %7556 = vmatpush2.msra.mxu0 0.0
    %7557 = vmatprep.subr.mxu0 0.0
    %7558 = vmatpush2.msra.mxu0 0.0
    %7559 = vmatprep.subr.mxu0 0.0
    %7560 = vmatpush2.msra.mxu0 0.0
    %7561 = vmatprep.subr.mxu0 0.0
    %7562 = vmatpush2.msra.mxu0 0.0
    %7563 = vmatprep.subr.mxu0 0.0
    %7564 = vmatpush2.msra.mxu0 0.0
    %7565 = vmatprep.subr.mxu0 0.0
    %7566 = vmatpush2.msra.mxu0 0.0
    %7567 = vmatprep.subr.mxu0 0.0
    %7568 = vmatpush2.msra.mxu0 0.0
    %7569 = vmatprep.mubr.f32.mxu0 0.0
    %7570 = vmatmul.mubr.f32.gmra.mxu0 %v7488
    %v7571 = vpop.f32.mrf.mxu0
    %v7572 = vadd.f32 0.0, %v7571
    %v7573 = vpop.f32.mrf.mxu0
    %7574 = vdwg.mxu0
    %s7575 = scalar_lea.vmem %s1, 48
    %v7576 = vld [vmem:[%s7575] sm:$0xff]
    %7577 = vset.pattern.permute.xlu0 0
    %7578 = vperm.xlu0 %7577, %v7576
    %v7579 = vpop.permute.xlu0 %7578
    %vm7580 = vcmp.eq.s32.totalorder %v7579, %v65
    %v7581 = vsel %vm7580, 1, 0
    %v7582 = vcvt.s32.f32 %v7581
    %7583 = vmatprep.subr.mxu0 0.0
    %7584 = vmatpush1.msra.mxu0 %v7504
    %7585 = vmatprep.subr.mxu0 0.0
    %7586 = vmatpush1.msra.mxu0 %v7503
    %7587 = vmatprep.subr.mxu0 0.0
    %7588 = vmatpush1.msra.mxu0 %v7502
    %7589 = vmatprep.subr.mxu0 0.0
    %7590 = vmatpush1.msra.mxu0 %v7501
    %7591 = vmatprep.subr.mxu0 0.0
    %7592 = vmatpush1.msra.mxu0 %v7500
    %7593 = vmatprep.subr.mxu0 0.0
    %7594 = vmatpush1.msra.mxu0 %v7499
    %7595 = vmatprep.subr.mxu0 0.0
    %7596 = vmatpush1.msra.mxu0 %v7498
    %7597 = vmatprep.subr.mxu0 0.0
    %7598 = vmatpush1.msra.mxu0 %v7497
    %7599 = vmatprep.subr.mxu0 0.0
    %7600 = vmatpush1.msra.mxu0 %v7496
    %7601 = vmatprep.subr.mxu0 0.0
    %7602 = vmatpush1.msra.mxu0 %v7495
    %7603 = vmatprep.subr.mxu0 0.0
    %7604 = vmatpush1.msra.mxu0 %v7494
    %7605 = vmatprep.subr.mxu0 0.0
    %7606 = vmatpush1.msra.mxu0 %v7493
    %7607 = vmatprep.subr.mxu0 0.0
    %7608 = vmatpush1.msra.mxu0 %v7492
    %7609 = vmatprep.subr.mxu0 0.0
    %7610 = vmatpush1.msra.mxu0 %v7491
    %7611 = vmatprep.subr.mxu0 0.0
    %7612 = vmatpush1.msra.mxu0 %v7490
    %7613 = vmatprep.subr.mxu0 0.0
    %7614 = vmatpush1.msra.mxu0 %v7489
    %7615 = vmatprep.subr.mxu0 0.0
    %7616 = vmatpush2.msra.mxu0 0.0
    %7617 = vmatprep.subr.mxu0 0.0
    %7618 = vmatpush2.msra.mxu0 0.0
    %7619 = vmatprep.subr.mxu0 0.0
    %7620 = vmatpush2.msra.mxu0 0.0
    %7621 = vmatprep.subr.mxu0 0.0
    %7622 = vmatpush2.msra.mxu0 0.0
    %7623 = vmatprep.subr.mxu0 0.0
    %7624 = vmatpush2.msra.mxu0 0.0
    %7625 = vmatprep.subr.mxu0 0.0
    %7626 = vmatpush2.msra.mxu0 0.0
    %7627 = vmatprep.subr.mxu0 0.0
    %7628 = vmatpush2.msra.mxu0 0.0
    %7629 = vmatprep.subr.mxu0 0.0
    %7630 = vmatpush2.msra.mxu0 0.0
    %7631 = vmatprep.subr.mxu0 0.0
    %7632 = vmatpush2.msra.mxu0 0.0
    %7633 = vmatprep.subr.mxu0 0.0
    %7634 = vmatpush2.msra.mxu0 0.0
    %7635 = vmatprep.subr.mxu0 0.0
    %7636 = vmatpush2.msra.mxu0 0.0
    %7637 = vmatprep.subr.mxu0 0.0
    %7638 = vmatpush2.msra.mxu0 0.0
    %7639 = vmatprep.subr.mxu0 0.0
    %7640 = vmatpush2.msra.mxu0 0.0
    %7641 = vmatprep.subr.mxu0 0.0
    %7642 = vmatpush2.msra.mxu0 0.0
    %7643 = vmatprep.subr.mxu0 0.0
    %7644 = vmatpush2.msra.mxu0 0.0
    %7645 = vmatprep.subr.mxu0 0.0
    %7646 = vmatpush2.msra.mxu0 0.0
    %7647 = vmatprep.mubr.f32.mxu0 0.0
    %7648 = vmatmul.mubr.f32.gmra.mxu0 %v7582
    %v7649 = vpop.f32.mrf.mxu0
    %v7650 = vadd.f32 0.0, %v7649
    %v7651 = vpop.f32.mrf.mxu0
    %7652 = vdwg.mxu0
    %s7653 = sld [smem:[#allocation2 + $0x5]]
    %s7654 = scvt.s32.f32 %s7653
    %v7655 = vstv %s7654
    %v7656 = vmul.f32 %v7655, %v7650
    %s7657 = ssub.f32 1.0, %s7654
    %v7658 = vstv %s7657
    %v7659 = vmul.f32 %v7658, %v7572
    %v7660 = vadd.f32 %v7656, %v7659
    %v7661 = vld [vmem:[%s9] sm:$0xff]
    %v7662 = vld [vmem:[%s9 + $0x8] sm:$0xff]
    %v7663 = vld [vmem:[%s9 + $0x10] sm:$0xff]
    %v7664 = vld [vmem:[%s9 + $0x18] sm:$0xff]
    %v7665 = vld [vmem:[%s10] sm:$0xff]
    %v7666 = vld [vmem:[%s10 + $0x8] sm:$0xff]
    %v7667 = vld [vmem:[%s10 + $0x10] sm:$0xff]
    %v7668 = vld [vmem:[%s10 + $0x18] sm:$0xff]
    %7669 = vmatprep.subr.mxu0 0.0
    %7670 = vmatpush1.msra.mxu0 0.0
    %7671 = vmatprep.subr.mxu0 0.0
    %7672 = vmatpush1.msra.mxu0 0.0
    %7673 = vmatprep.subr.mxu0 0.0
    %7674 = vmatpush1.msra.mxu0 0.0
    %7675 = vmatprep.subr.mxu0 0.0
    %7676 = vmatpush1.msra.mxu0 0.0
    %7677 = vmatprep.subr.mxu0 0.0
    %7678 = vmatpush1.msra.mxu0 0.0
    %7679 = vmatprep.subr.mxu0 0.0
    %7680 = vmatpush1.msra.mxu0 0.0
    %7681 = vmatprep.subr.mxu0 0.0
    %7682 = vmatpush1.msra.mxu0 0.0
    %7683 = vmatprep.subr.mxu0 0.0
    %7684 = vmatpush1.msra.mxu0 0.0
    %7685 = vmatprep.subr.mxu0 0.0
    %7686 = vmatpush1.msra.mxu0 0.0
    %7687 = vmatprep.subr.mxu0 0.0
    %7688 = vmatpush1.msra.mxu0 0.0
    %7689 = vmatprep.subr.mxu0 0.0
    %7690 = vmatpush1.msra.mxu0 0.0
    %7691 = vmatprep.subr.mxu0 0.0
    %7692 = vmatpush1.msra.mxu0 0.0
    %7693 = vmatprep.subr.mxu0 0.0
    %7694 = vmatpush1.msra.mxu0 %v7668
    %7695 = vmatprep.subr.mxu0 0.0
    %7696 = vmatpush1.msra.mxu0 %v7667
    %7697 = vmatprep.subr.mxu0 0.0
    %7698 = vmatpush1.msra.mxu0 %v7666
    %7699 = vmatprep.subr.mxu0 0.0
    %7700 = vmatpush1.msra.mxu0 %v7665
    %7701 = vmatprep.subr.mxu0 0.0
    %7702 = vmatpush2.msra.mxu0 0.0
    %7703 = vmatprep.subr.mxu0 0.0
    %7704 = vmatpush2.msra.mxu0 0.0
    %7705 = vmatprep.subr.mxu0 0.0
    %7706 = vmatpush2.msra.mxu0 0.0
    %7707 = vmatprep.subr.mxu0 0.0
    %7708 = vmatpush2.msra.mxu0 0.0
    %7709 = vmatprep.subr.mxu0 0.0
    %7710 = vmatpush2.msra.mxu0 0.0
    %7711 = vmatprep.subr.mxu0 0.0
    %7712 = vmatpush2.msra.mxu0 0.0
    %7713 = vmatprep.subr.mxu0 0.0
    %7714 = vmatpush2.msra.mxu0 0.0
    %7715 = vmatprep.subr.mxu0 0.0
    %7716 = vmatpush2.msra.mxu0 0.0
    %7717 = vmatprep.subr.mxu0 0.0
    %7718 = vmatpush2.msra.mxu0 0.0
    %7719 = vmatprep.subr.mxu0 0.0
    %7720 = vmatpush2.msra.mxu0 0.0
    %7721 = vmatprep.subr.mxu0 0.0
    %7722 = vmatpush2.msra.mxu0 0.0
    %7723 = vmatprep.subr.mxu0 0.0
    %7724 = vmatpush2.msra.mxu0 0.0
    %7725 = vmatprep.subr.mxu0 0.0
    %7726 = vmatpush2.msra.mxu0 0.0
    %7727 = vmatprep.subr.mxu0 0.0
    %7728 = vmatpush2.msra.mxu0 0.0
    %7729 = vmatprep.subr.mxu0 0.0
    %7730 = vmatpush2.msra.mxu0 0.0
    %7731 = vmatprep.subr.mxu0 0.0
    %7732 = vmatpush2.msra.mxu0 0.0
    %7733 = vmatprep.mubr.f32.mxu0 0.0
    %7734 = vmatmul.mubr.f32.gmra.mxu0 %v7265
    %v7735 = vpop.f32.mrf.mxu0
    %v7736 = vadd.f32 0.0, %v7735
    %v7737 = vpop.f32.mrf.mxu0
    %7738 = vdwg.mxu0
    %v7740 = vsel %vm167, %v7660, 0
    %7742 = vmatprep.subr.mxu0 0.0
    %7743 = vmatpush1.msra.mxu0 0.0
    %7744 = vmatprep.subr.mxu0 0.0
    %7745 = vmatpush1.msra.mxu0 0.0
    %7746 = vmatprep.subr.mxu0 0.0
    %7747 = vmatpush1.msra.mxu0 0.0
    %7748 = vmatprep.subr.mxu0 0.0
    %7749 = vmatpush1.msra.mxu0 0.0
    %7750 = vmatprep.subr.mxu0 0.0
    %7751 = vmatpush1.msra.mxu0 0.0
    %7752 = vmatprep.subr.mxu0 0.0
    %7753 = vmatpush1.msra.mxu0 0.0
    %7754 = vmatprep.subr.mxu0 0.0
    %7755 = vmatpush1.msra.mxu0 0.0
    %7756 = vmatprep.subr.mxu0 0.0
    %7757 = vmatpush1.msra.mxu0 0.0
    %7758 = vmatprep.subr.mxu0 0.0
    %7759 = vmatpush1.msra.mxu0 0.0
    %7760 = vmatprep.subr.mxu0 0.0
    %7761 = vmatpush1.msra.mxu0 0.0
    %7762 = vmatprep.subr.mxu0 0.0
    %7763 = vmatpush1.msra.mxu0 0.0
    %7764 = vmatprep.subr.mxu0 0.0
    %7765 = vmatpush1.msra.mxu0 0.0
    %7766 = vmatprep.subr.mxu0 0.0
    %7767 = vmatpush1.msra.mxu0 %v7664
    %7768 = vmatprep.subr.mxu0 0.0
    %7769 = vmatpush1.msra.mxu0 %v7663
    %7770 = vmatprep.subr.mxu0 0.0
    %7771 = vmatpush1.msra.mxu0 %v7662
    %7772 = vmatprep.subr.mxu0 0.0
    %7773 = vmatpush1.msra.mxu0 %v7661
    %7774 = vmatprep.subr.mxu0 0.0
    %7775 = vmatpush2.msra.mxu0 0.0
    %7776 = vmatprep.subr.mxu0 0.0
    %7777 = vmatpush2.msra.mxu0 0.0
    %7778 = vmatprep.subr.mxu0 0.0
    %7779 = vmatpush2.msra.mxu0 0.0
    %7780 = vmatprep.subr.mxu0 0.0
    %7781 = vmatpush2.msra.mxu0 0.0
    %7782 = vmatprep.subr.mxu0 0.0
    %7783 = vmatpush2.msra.mxu0 0.0
    %7784 = vmatprep.subr.mxu0 0.0
    %7785 = vmatpush2.msra.mxu0 0.0
    %7786 = vmatprep.subr.mxu0 0.0
    %7787 = vmatpush2.msra.mxu0 0.0
    %7788 = vmatprep.subr.mxu0 0.0
    %7789 = vmatpush2.msra.mxu0 0.0
    %7790 = vmatprep.subr.mxu0 0.0
    %7791 = vmatpush2.msra.mxu0 0.0
    %7792 = vmatprep.subr.mxu0 0.0
    %7793 = vmatpush2.msra.mxu0 0.0
    %7794 = vmatprep.subr.mxu0 0.0
    %7795 = vmatpush2.msra.mxu0 0.0
    %7796 = vmatprep.subr.mxu0 0.0
    %7797 = vmatpush2.msra.mxu0 0.0
    %7798 = vmatprep.subr.mxu0 0.0
    %7799 = vmatpush2.msra.mxu0 0.0
    %7800 = vmatprep.subr.mxu0 0.0
    %7801 = vmatpush2.msra.mxu0 0.0
    %7802 = vmatprep.subr.mxu0 0.0
    %7803 = vmatpush2.msra.mxu0 0.0
    %7804 = vmatprep.subr.mxu0 0.0
    %7805 = vmatpush2.msra.mxu0 0.0
    %7806 = vmatprep.mubr.f32.mxu0 0.0
    %7807 = vmatmul.mubr.f32.gmra.mxu0 %v7740
    %v7808 = vpop.f32.mrf.mxu0
    %v7809 = vadd.f32 %v7736, %v7808
    %v7810 = vpop.f32.mrf.mxu0
    %7811 = vdwg.mxu0
    %v7812 = vld [vmem:[%s11] sm:$0x1]
    %v7814 = vlaneseq
    %v7815 = vshrl.u32 %v7814, 7
    %v7816 = vsub.s32 0, %v7815
    %v7817 = vrot.slane %v7812, %v7816
    %v7819 = vadd.f32 %v7809, %v7817
    %v7820 = vxor.u32 %v7819, 2147483648
    %v7821 = vmul.f32 %v7820, 1.442695
    %v7822 = vpow.pop %v7821
    %v7823 = vadd.f32 %v7822, 1.0
    %v7824 = vrcp.pop %v7823
    %v7825 = vmul.f32 1.0, %v7824
    %v7826 = vld [vmem:[%s12] sm:$0x1]
    %v7828 = vlaneseq
    %v7829 = vshrl.u32 %v7828, 7
    %v7830 = vsub.s32 0, %v7829
    %v7831 = vrot.slane %v7826, %v7830
    %7832 = vrot.lane.b32.xlu0 %v7831, 96
    %v7833 = vpop.permute.xlu0 %7832
    %v7835 = vadd.f32 %v7819, %v7833
    %7837 = vrot.lane.b32.xlu0 %v7835, 32
    %v7838 = vpop.permute.xlu0 %7837
    %v7840 = vmul.f32 %v7825, %v7838
    %7842 = vrot.lane.b32.xlu0 %v7840, 64
    %v7843 = vpop.permute.xlu0 %7842
    %v7845 = vadd.f32 %v7819, %v7843
    %v7846 = vtanh.pop %v7845
    %v7847 = vsub.f32 1.0, %v7825
    %7849 = vrot.lane.b32.xlu0 %v7846, 96
    %v7850 = vpop.permute.xlu0 %7849
    %v7852 = vmul.f32 %v7847, %v7850
    %v7853 = vmul.f32 %v7825, %v7183
    %v7854 = vadd.f32 %v7852, %v7853
    %v7855 = vld [vmem:[%s3820] sm:$0xff]
    %v7856 = vld [vmem:[%s3820 + $0x8] sm:$0xff]
    %v7857 = vld [vmem:[%s3820 + $0x10] sm:$0xff]
    %v7858 = vld [vmem:[%s3820 + $0x18] sm:$0xff]
    %v7859 = vld [vmem:[%s3825] sm:$0xff]
    %v7860 = vld [vmem:[%s3825 + $0x8] sm:$0xff]
    %v7861 = vld [vmem:[%s3825 + $0x10] sm:$0xff]
    %v7862 = vld [vmem:[%s3825 + $0x18] sm:$0xff]
    %7863 = vmatprep.subr.mxu0 0.0
    %7864 = vmatpush1.msra.mxu0 0.0
    %7865 = vmatprep.subr.mxu0 0.0
    %7866 = vmatpush1.msra.mxu0 0.0
    %7867 = vmatprep.subr.mxu0 0.0
    %7868 = vmatpush1.msra.mxu0 0.0
    %7869 = vmatprep.subr.mxu0 0.0
    %7870 = vmatpush1.msra.mxu0 0.0
    %7871 = vmatprep.subr.mxu0 0.0
    %7872 = vmatpush1.msra.mxu0 0.0
    %7873 = vmatprep.subr.mxu0 0.0
    %7874 = vmatpush1.msra.mxu0 0.0
    %7875 = vmatprep.subr.mxu0 0.0
    %7876 = vmatpush1.msra.mxu0 0.0
    %7877 = vmatprep.subr.mxu0 0.0
    %7878 = vmatpush1.msra.mxu0 0.0
    %7879 = vmatprep.subr.mxu0 0.0
    %7880 = vmatpush1.msra.mxu0 0.0
    %7881 = vmatprep.subr.mxu0 0.0
    %7882 = vmatpush1.msra.mxu0 0.0
    %7883 = vmatprep.subr.mxu0 0.0
    %7884 = vmatpush1.msra.mxu0 0.0
    %7885 = vmatprep.subr.mxu0 0.0
    %7886 = vmatpush1.msra.mxu0 0.0
    %7887 = vmatprep.subr.mxu0 0.0
    %7888 = vmatpush1.msra.mxu0 %v7862
    %7889 = vmatprep.subr.mxu0 0.0
    %7890 = vmatpush1.msra.mxu0 %v7861
    %7891 = vmatprep.subr.mxu0 0.0
    %7892 = vmatpush1.msra.mxu0 %v7860
    %7893 = vmatprep.subr.mxu0 0.0
    %7894 = vmatpush1.msra.mxu0 %v7859
    %7895 = vmatprep.subr.mxu0 0.0
    %7896 = vmatpush2.msra.mxu0 0.0
    %7897 = vmatprep.subr.mxu0 0.0
    %7898 = vmatpush2.msra.mxu0 0.0
    %7899 = vmatprep.subr.mxu0 0.0
    %7900 = vmatpush2.msra.mxu0 0.0
    %7901 = vmatprep.subr.mxu0 0.0
    %7902 = vmatpush2.msra.mxu0 0.0
    %7903 = vmatprep.subr.mxu0 0.0
    %7904 = vmatpush2.msra.mxu0 0.0
    %7905 = vmatprep.subr.mxu0 0.0
    %7906 = vmatpush2.msra.mxu0 0.0
    %7907 = vmatprep.subr.mxu0 0.0
    %7908 = vmatpush2.msra.mxu0 0.0
    %7909 = vmatprep.subr.mxu0 0.0
    %7910 = vmatpush2.msra.mxu0 0.0
    %7911 = vmatprep.subr.mxu0 0.0
    %7912 = vmatpush2.msra.mxu0 0.0
    %7913 = vmatprep.subr.mxu0 0.0
    %7914 = vmatpush2.msra.mxu0 0.0
    %7915 = vmatprep.subr.mxu0 0.0
    %7916 = vmatpush2.msra.mxu0 0.0
    %7917 = vmatprep.subr.mxu0 0.0
    %7918 = vmatpush2.msra.mxu0 0.0
    %7919 = vmatprep.subr.mxu0 0.0
    %7920 = vmatpush2.msra.mxu0 0.0
    %7921 = vmatprep.subr.mxu0 0.0
    %7922 = vmatpush2.msra.mxu0 0.0
    %7923 = vmatprep.subr.mxu0 0.0
    %7924 = vmatpush2.msra.mxu0 0.0
    %7925 = vmatprep.subr.mxu0 0.0
    %7926 = vmatpush2.msra.mxu0 0.0
    %7927 = vmatprep.mubr.f32.mxu0 0.0
    %7928 = vmatmul.mubr.f32.gmra.mxu0 %v7394
    %v7929 = vpop.f32.mrf.mxu0
    %v7930 = vadd.f32 0.0, %v7929
    %v7931 = vpop.f32.mrf.mxu0
    %7932 = vdwg.mxu0
    %7934 = vrot.lane.b32.xlu0 %v7854, 96
    %v7935 = vpop.permute.xlu0 %7934
    %v7936 = vsel %vm167, %v7935, 0
    %7938 = vmatprep.subr.mxu0 0.0
    %7939 = vmatpush1.msra.mxu0 0.0
    %7940 = vmatprep.subr.mxu0 0.0
    %7941 = vmatpush1.msra.mxu0 0.0
    %7942 = vmatprep.subr.mxu0 0.0
    %7943 = vmatpush1.msra.mxu0 0.0
    %7944 = vmatprep.subr.mxu0 0.0
    %7945 = vmatpush1.msra.mxu0 0.0
    %7946 = vmatprep.subr.mxu0 0.0
    %7947 = vmatpush1.msra.mxu0 0.0
    %7948 = vmatprep.subr.mxu0 0.0
    %7949 = vmatpush1.msra.mxu0 0.0
    %7950 = vmatprep.subr.mxu0 0.0
    %7951 = vmatpush1.msra.mxu0 0.0
    %7952 = vmatprep.subr.mxu0 0.0
    %7953 = vmatpush1.msra.mxu0 0.0
    %7954 = vmatprep.subr.mxu0 0.0
    %7955 = vmatpush1.msra.mxu0 0.0
    %7956 = vmatprep.subr.mxu0 0.0
    %7957 = vmatpush1.msra.mxu0 0.0
    %7958 = vmatprep.subr.mxu0 0.0
    %7959 = vmatpush1.msra.mxu0 0.0
    %7960 = vmatprep.subr.mxu0 0.0
    %7961 = vmatpush1.msra.mxu0 0.0
    %7962 = vmatprep.subr.mxu0 0.0
    %7963 = vmatpush1.msra.mxu0 %v7858
    %7964 = vmatprep.subr.mxu0 0.0
    %7965 = vmatpush1.msra.mxu0 %v7857
    %7966 = vmatprep.subr.mxu0 0.0
    %7967 = vmatpush1.msra.mxu0 %v7856
    %7968 = vmatprep.subr.mxu0 0.0
    %7969 = vmatpush1.msra.mxu0 %v7855
    %7970 = vmatprep.subr.mxu0 0.0
    %7971 = vmatpush2.msra.mxu0 0.0
    %7972 = vmatprep.subr.mxu0 0.0
    %7973 = vmatpush2.msra.mxu0 0.0
    %7974 = vmatprep.subr.mxu0 0.0
    %7975 = vmatpush2.msra.mxu0 0.0
    %7976 = vmatprep.subr.mxu0 0.0
    %7977 = vmatpush2.msra.mxu0 0.0
    %7978 = vmatprep.subr.mxu0 0.0
    %7979 = vmatpush2.msra.mxu0 0.0
    %7980 = vmatprep.subr.mxu0 0.0
    %7981 = vmatpush2.msra.mxu0 0.0
    %7982 = vmatprep.subr.mxu0 0.0
    %7983 = vmatpush2.msra.mxu0 0.0
    %7984 = vmatprep.subr.mxu0 0.0
    %7985 = vmatpush2.msra.mxu0 0.0
    %7986 = vmatprep.subr.mxu0 0.0
    %7987 = vmatpush2.msra.mxu0 0.0
    %7988 = vmatprep.subr.mxu0 0.0
    %7989 = vmatpush2.msra.mxu0 0.0
    %7990 = vmatprep.subr.mxu0 0.0
    %7991 = vmatpush2.msra.mxu0 0.0
    %7992 = vmatprep.subr.mxu0 0.0
    %7993 = vmatpush2.msra.mxu0 0.0
    %7994 = vmatprep.subr.mxu0 0.0
    %7995 = vmatpush2.msra.mxu0 0.0
    %7996 = vmatprep.subr.mxu0 0.0
    %7997 = vmatpush2.msra.mxu0 0.0
    %7998 = vmatprep.subr.mxu0 0.0
    %7999 = vmatpush2.msra.mxu0 0.0
    %8000 = vmatprep.subr.mxu0 0.0
    %8001 = vmatpush2.msra.mxu0 0.0
    %8002 = vmatprep.mubr.f32.mxu0 0.0
    %8003 = vmatmul.mubr.f32.gmra.mxu0 %v7936
    %v8004 = vpop.f32.mrf.mxu0
    %v8005 = vadd.f32 %v7930, %v8004
    %v8006 = vpop.f32.mrf.mxu0
    %8007 = vdwg.mxu0
    %v8008 = vld [vmem:[%s3980] sm:$0x1]
    %v8010 = vlaneseq
    %v8011 = vshrl.u32 %v8010, 7
    %v8012 = vsub.s32 0, %v8011
    %v8013 = vrot.slane %v8008, %v8012
    %v8015 = vadd.f32 %v8005, %v8013
    %v8016 = vxor.u32 %v8015, 2147483648
    %v8017 = vmul.f32 %v8016, 1.442695
    %v8018 = vpow.pop %v8017
    %v8019 = vadd.f32 %v8018, 1.0
    %v8020 = vrcp.pop %v8019
    %v8021 = vmul.f32 1.0, %v8020
    %v8022 = vld [vmem:[%s3995] sm:$0x1]
    %v8024 = vlaneseq
    %v8025 = vshrl.u32 %v8024, 7
    %v8026 = vsub.s32 0, %v8025
    %v8027 = vrot.slane %v8022, %v8026
    %8028 = vrot.lane.b32.xlu0 %v8027, 96
    %v8029 = vpop.permute.xlu0 %8028
    %v8031 = vadd.f32 %v8015, %v8029
    %8033 = vrot.lane.b32.xlu0 %v8031, 32
    %v8034 = vpop.permute.xlu0 %8033
    %v8036 = vmul.f32 %v8021, %v8034
    %8038 = vrot.lane.b32.xlu0 %v8036, 64
    %v8039 = vpop.permute.xlu0 %8038
    %v8041 = vadd.f32 %v8015, %v8039
    %v8042 = vtanh.pop %v8041
    %v8043 = vsub.f32 1.0, %v8021
    %8045 = vrot.lane.b32.xlu0 %v8042, 96
    %v8046 = vpop.permute.xlu0 %8045
    %v8048 = vmul.f32 %v8043, %v8046
    %v8049 = vmul.f32 %v8021, %v7379
    %v8050 = vadd.f32 %v8048, %v8049
    %v8051 = vld [vmem:[%s13] sm:$0xff]
    %v8052 = vld [vmem:[%s13 + $0x8] sm:$0xff]
    %v8053 = vld [vmem:[%s13 + $0x10] sm:$0xff]
    %v8054 = vld [vmem:[%s13 + $0x18] sm:$0xff]
    %v8055 = vld [vmem:[%s14] sm:$0x1]
    %v8057 = vlaneseq
    %v8058 = vshrl.u32 %v8057, 7
    %v8059 = vsub.s32 0, %v8058
    %v8060 = vrot.slane %v8055, %v8059
    %8063 = vrot.lane.b32.xlu0 %v8050, 96
    %v8064 = vpop.permute.xlu0 %8063
    %v8065 = vsel %vm167, %v8064, 0
    %8067 = vmatprep.subr.mxu0 0.0
    %8068 = vmatpush1.msra.mxu0 0.0
    %8069 = vmatprep.subr.mxu0 0.0
    %8070 = vmatpush1.msra.mxu0 0.0
    %8071 = vmatprep.subr.mxu0 0.0
    %8072 = vmatpush1.msra.mxu0 0.0
    %8073 = vmatprep.subr.mxu0 0.0
    %8074 = vmatpush1.msra.mxu0 0.0
    %8075 = vmatprep.subr.mxu0 0.0
    %8076 = vmatpush1.msra.mxu0 0.0
    %8077 = vmatprep.subr.mxu0 0.0
    %8078 = vmatpush1.msra.mxu0 0.0
    %8079 = vmatprep.subr.mxu0 0.0
    %8080 = vmatpush1.msra.mxu0 0.0
    %8081 = vmatprep.subr.mxu0 0.0
    %8082 = vmatpush1.msra.mxu0 0.0
    %8083 = vmatprep.subr.mxu0 0.0
    %8084 = vmatpush1.msra.mxu0 0.0
    %8085 = vmatprep.subr.mxu0 0.0
    %8086 = vmatpush1.msra.mxu0 0.0
    %8087 = vmatprep.subr.mxu0 0.0
    %8088 = vmatpush1.msra.mxu0 0.0
    %8089 = vmatprep.subr.mxu0 0.0
    %8090 = vmatpush1.msra.mxu0 0.0
    %8091 = vmatprep.subr.mxu0 0.0
    %8092 = vmatpush1.msra.mxu0 %v8054
    %8093 = vmatprep.subr.mxu0 0.0
    %8094 = vmatpush1.msra.mxu0 %v8053
    %8095 = vmatprep.subr.mxu0 0.0
    %8096 = vmatpush1.msra.mxu0 %v8052
    %8097 = vmatprep.subr.mxu0 0.0
    %8098 = vmatpush1.msra.mxu0 %v8051
    %8099 = vmatprep.subr.mxu0 0.0
    %8100 = vmatpush2.msra.mxu0 0.0
    %8101 = vmatprep.subr.mxu0 0.0
    %8102 = vmatpush2.msra.mxu0 0.0
    %8103 = vmatprep.subr.mxu0 0.0
    %8104 = vmatpush2.msra.mxu0 0.0
    %8105 = vmatprep.subr.mxu0 0.0
    %8106 = vmatpush2.msra.mxu0 0.0
    %8107 = vmatprep.subr.mxu0 0.0
    %8108 = vmatpush2.msra.mxu0 0.0
    %8109 = vmatprep.subr.mxu0 0.0
    %8110 = vmatpush2.msra.mxu0 0.0
    %8111 = vmatprep.subr.mxu0 0.0
    %8112 = vmatpush2.msra.mxu0 0.0
    %8113 = vmatprep.subr.mxu0 0.0
    %8114 = vmatpush2.msra.mxu0 0.0
    %8115 = vmatprep.subr.mxu0 0.0
    %8116 = vmatpush2.msra.mxu0 0.0
    %8117 = vmatprep.subr.mxu0 0.0
    %8118 = vmatpush2.msra.mxu0 0.0
    %8119 = vmatprep.subr.mxu0 0.0
    %8120 = vmatpush2.msra.mxu0 0.0
    %8121 = vmatprep.subr.mxu0 0.0
    %8122 = vmatpush2.msra.mxu0 0.0
    %8123 = vmatprep.subr.mxu0 0.0
    %8124 = vmatpush2.msra.mxu0 0.0
    %8125 = vmatprep.subr.mxu0 0.0
    %8126 = vmatpush2.msra.mxu0 0.0
    %8127 = vmatprep.subr.mxu0 0.0
    %8128 = vmatpush2.msra.mxu0 0.0
    %8129 = vmatprep.subr.mxu0 0.0
    %8130 = vmatpush2.msra.mxu0 0.0
    %8131 = vmatprep.mubr.f32.mxu0 0.0
    %8132 = vmatmul.mubr.f32.gmra.mxu0 %v8065
    %v8133 = vpop.f32.mrf.mxu0
    %v8134 = vadd.f32 %v8060, %v8133
    %v8135 = vpop.f32.mrf.mxu0
    %8136 = vdwg.mxu0
    %s8137 = scalar_lea.vmem [#allocation5], 56
    %8138 = vst [vmem:[%s8137] sm:$0xff] %v8134
    // Predicated region
    $region66: #{seq2seq_forward.1} parent=1 // pred_check
      _
    $region67: #{seq2seq_forward.1} parent=1 // pred_check_branch
      %8140 = sbr.rel (0) target = $region69
    $region68: #{seq2seq_forward.1} parent=1 // pred_region
      %s8142 = ssub.s32 1024, 1024
      %8143 = vsyncadd [#allocation3], %s8142
      %s8144 = sshll.u32 [#allocation5], 4
      %s8145 = int_to_ptr.vmem [resolvable:$true] %s8144
      %8150 = dma.vmem_to_hbm [thread:$0]  %s8145, 1024, %s15, [#allocation3], 128, 128, 8
    $region69: #{seq2seq_forward.1} parent=1 // pred_fallthru
      _
    // Predicated region
    $region70: #{seq2seq_forward.1} parent=1 // pred_check
      _
    $region71: #{seq2seq_forward.1} parent=1 // pred_check_branch
      %8152 = sbr.rel (0) target = $region73
    $region72: #{seq2seq_forward.1} parent=1 // pred_region
      %8153 = dma.done [#allocation3], 1024
    $region73: #{seq2seq_forward.1} parent=1 // pred_fallthru
      _
    %8154 = vsyncpa [#allocation3], 1
    %8155 = vsyncpa [#allocation4], 1

</llo_original>
